<compile_context>
chip_gen: v7x
topology: tpu7x:2x2x1
jax: 0.10.0
libtpu: 0.0.40
codegen_flags: <defaults>
</compile_context>

<pallas_src>
import functools

import jax
import jax.numpy as jnp
from jax import lax
from jax.experimental import pallas as pl
from jax.experimental.pallas import tpu as pltpu


# ----------------------------------------------------------------------------
# Fused Pallas kernel: all layers + both directions in one pallas_call.
# ----------------------------------------------------------------------------
def _lstm_cell(gates, c_prev, H):
    """gates: [B, 4H] (PyTorch i,f,g,o order), c_prev: [B, H] -> (h, c)."""
    # Full-width activations: one sigmoid push + one tanh push over the whole
    # [B, 4H] row instead of four masked sub-vreg EUP ops; the slices below are
    # cheap lane selects feeding the VPU.
    sig = jax.nn.sigmoid(gates)
    th = jnp.tanh(gates)
    i = sig[:, 0 * H:1 * H]
    f = sig[:, 1 * H:2 * H]
    g = th[:, 2 * H:3 * H]
    o = sig[:, 3 * H:4 * H]
    c = f * c_prev + i * g
    h = o * jnp.tanh(c)
    return h, c


def _make_bilstm_kernel(T, B, H, num_layers, ndir, mm_dtype):
    """Builds the fused kernel.

    Ref order (positional):
      x_ref                                   [T, B, D0]
      per layer l: wih_l [D_l, ndir*4H], whh_l [ndir*H, ndir*4H], b_l [1, ndir*4H]
      y_ref                                   [T, B, ndir*H]
      gx_scr (scratch)                        [T, B, ndir*4H]
      act_scr (scratch, only if num_layers>1) [T, B, ndir*H]
    """
    L = num_layers
    G = 4 * H

    def kernel(*refs):
        x_ref = refs[0]
        w_refs = refs[1:1 + 3 * L]
        y_ref = refs[1 + 3 * L]
        gx_scr = refs[2 + 3 * L]
        act_scr = refs[3 + 3 * L] if L > 1 else None

        for l in range(L):
            wih_ref = w_refs[3 * l + 0]   # [D_l, ndir*4H]
            whh_ref = w_refs[3 * l + 1]   # [ndir*H, ndir*4H] (block-diag over dirs)
            b_ref = w_refs[3 * l + 2]     # [1, ndir*4H]  (b_ih + b_hh, both dirs)
            src = x_ref if l == 0 else act_scr
            dst = y_ref if l == L - 1 else act_scr

            # --- (1) hoisted input projection + bias (off the serial chain) ---
            # T independent [B, D_l] @ [D_l, ndir*4H] matmuls; they carry no
            # recurrent dependence so the MXU pipelines them back to back.
            for t in range(T):
                gx_scr[t] = (
                    jnp.dot(src[t].astype(mm_dtype), wih_ref[...],
                            preferred_element_type=jnp.float32)
                    + b_ref[...])

            # --- (2) serial recurrence: fwd chain at time s, bwd at T-1-s ---
            # One block-diagonal matmul per step drives both directions' gates.
            h = jnp.zeros((B, ndir * H), jnp.float32)
            c = jnp.zeros((B, ndir * H), jnp.float32)
            for s in range(T):
                gh = jnp.dot(h.astype(mm_dtype), whh_ref[...],
                             preferred_element_type=jnp.float32)  # [B, ndir*4H]

                g_f = gx_scr[s, :, 0:G] + gh[:, 0:G]
                hf, cf = _lstm_cell(g_f, c[:, 0:H], H)
                dst[s, :, 0:H] = hf

                if ndir == 2:
                    g_b = gx_scr[T - 1 - s, :, G:2 * G] + gh[:, G:2 * G]
                    hb, cb = _lstm_cell(g_b, c[:, H:2 * H], H)
                    dst[T - 1 - s, :, H:2 * H] = hb
                    h = jnp.concatenate([hf, hb], axis=-1)
                    c = jnp.concatenate([cf, cb], axis=-1)
                else:
                    h, c = hf, cf

    return kernel


# ----------------------------------------------------------------------------
# Wrapper: weight preparation + single pallas_call.
# ----------------------------------------------------------------------------
def _prep_layer_weights(p_fwd, p_bwd, H, ndir, mm_dtype):
    """Returns (W_ih_cat [D, ndir*4H], W_hh_blockdiag [ndir*H, ndir*4H], b [1, ndir*4H])."""
    wih_f = jnp.transpose(p_fwd["w_ih"])           # [D, 4H]
    whh_f = jnp.transpose(p_fwd["w_hh"])           # [H, 4H]
    b_f = p_fwd["b_ih"] + p_fwd["b_hh"]            # [4H]
    if ndir == 2:
        wih_b = jnp.transpose(p_bwd["w_ih"])
        whh_b = jnp.transpose(p_bwd["w_hh"])
        b_b = p_bwd["b_ih"] + p_bwd["b_hh"]
        wih = jnp.concatenate([wih_f, wih_b], axis=1)          # [D, 8H]
        z = jnp.zeros((H, 4 * H), jnp.float32)
        whh = jnp.concatenate(
            [jnp.concatenate([whh_f, z], axis=1),
             jnp.concatenate([z, whh_b], axis=1)], axis=0)      # [2H, 8H]
        b = jnp.concatenate([b_f, b_b])[None, :]                # [1, 8H]
    else:
        wih, whh, b = wih_f, whh_f, b_f[None, :]
    return wih.astype(mm_dtype), whh.astype(mm_dtype), b.astype(jnp.float32)


def bilstm_forward(inputs, params, hidden_size, num_layers, bidirectional,
                   matmul_dtype=jnp.float32):
    """inputs: [B, T, input_size] -> [B, T, dirs*hidden_size] (like nn.LSTM output)."""
    ndir = 2 if bidirectional else 1
    H = hidden_size
    B, T, _ = inputs.shape
    x_tbd = jnp.transpose(inputs, (1, 0, 2)).astype(jnp.float32)   # [T, B, D0]

    flat_w = []
    for layer in range(num_layers):
        p_f = params[(layer, 0)]
        p_b = params[(layer, 1)] if ndir == 2 else None
        flat_w.extend(_prep_layer_weights(p_f, p_b, H, ndir, matmul_dtype))

    kernel = _make_bilstm_kernel(T, B, H, num_layers, ndir, matmul_dtype)

    scratch = [pltpu.VMEM((T, B, ndir * 4 * H), jnp.float32)]   # precomputed input gates
    if num_layers > 1:
        scratch.append(pltpu.VMEM((T, B, ndir * H), jnp.float32))  # inter-layer activation

    # No grid: the whole (small) problem is resident in VMEM for a single kernel
    # invocation -> no dummy-grid double-buffering, one dispatch for all layers
    # and both directions.
    y_tbd = pl.pallas_call(
        kernel,
        out_shape=jax.ShapeDtypeStruct((T, B, ndir * H), jnp.float32),
        scratch_shapes=scratch,
    )(x_tbd, *flat_w)

    return jnp.transpose(y_tbd, (1, 0, 2))                         # [B, T, ndir*H]


# ----------------------------------------------------------------------------
# Parameter init matching nn.LSTM shapes (uniform +-1/sqrt(H)).
# ----------------------------------------------------------------------------
def init_bilstm_params(key, input_size, hidden_size, num_layers, bidirectional):
    dirs = 2 if bidirectional else 1
    bound = 1.0 / jnp.sqrt(jnp.float32(hidden_size))
    params = {}
    for layer in range(num_layers):
        layer_in = input_size if layer == 0 else hidden_size * dirs
        for d in range(dirs):
            key, k1, k2, k3, k4 = jax.random.split(key, 5)
            params[(layer, d)] = dict(
                w_ih=jax.random.uniform(k1, (4 * hidden_size, layer_in),
                                        jnp.float32, -bound, bound),
                w_hh=jax.random.uniform(k2, (4 * hidden_size, hidden_size),
                                        jnp.float32, -bound, bound),
                b_ih=jax.random.uniform(k3, (4 * hidden_size,),
                                        jnp.float32, -bound, bound),
                b_hh=jax.random.uniform(k4, (4 * hidden_size,),
                                        jnp.float32, -bound, bound),
            )
    return params


# ----------------------------------------------------------------------------
# Pure-JAX reference (for correctness check).
# ----------------------------------------------------------------------------
def _lstm_dir_ref(x_tbd, w_ih, w_hh, b_ih, b_hh, reverse):
    T, B, _ = x_tbd.shape
    H = w_hh.shape[1]
    xs = x_tbd[::-1] if reverse else x_tbd

    def step(carry, x_t):
        hp, cp = carry
        gates = x_t @ w_ih.T + hp @ w_hh.T + b_ih + b_hh
        i, f, g, o = jnp.split(gates, 4, axis=-1)
        i = jax.nn.sigmoid(i); f = jax.nn.sigmoid(f)
        g = jnp.tanh(g); o = jax.nn.sigmoid(o)
        c = f * cp + i * g
        hn = o * jnp.tanh(c)
        return (hn, c), hn

    (_, _), ys = lax.scan(step, (jnp.zeros((B, H)), jnp.zeros((B, H))), xs)
    return ys[::-1] if reverse else ys


def bilstm_forward_ref(inputs, params, hidden_size, num_layers, bidirectional):
    dirs = 2 if bidirectional else 1
    h = jnp.transpose(inputs, (1, 0, 2)).astype(jnp.float32)
    for layer in range(num_layers):
        outs = []
        for d in range(dirs):
            p = params[(layer, d)]
            outs.append(_lstm_dir_ref(h, p["w_ih"], p["w_hh"], p["b_ih"],
                                      p["b_hh"], reverse=(d == 1)))
        h = jnp.concatenate(outs, axis=-1) if dirs == 2 else outs[0]
    return jnp.transpose(h, (1, 0, 2))


# ----------------------------------------------------------------------------
# Main
# ----------------------------------------------------------------------------
if __name__ == "__main__":
    # Module config: BILSTM(hidden_size=32, num_layer=2, input_size=16,
    #                       dropout_p=0.1, num_classes=5, bi_tag=True)
    hidden_size = 32
    num_layer = 2
    input_size = 16
    bi_tag = True

    B, T = 2, 8
    key = jax.random.PRNGKey(0)
    kx, kp = jax.random.split(key)
    x = jax.random.normal(kx, (B, T, input_size), dtype=jnp.float32)
    params = init_bilstm_params(kp, input_size, hidden_size, num_layer, bi_tag)

    fwd = jax.jit(functools.partial(
        bilstm_forward, hidden_size=hidden_size, num_layers=num_layer,
        bidirectional=bi_tag))
    out = jax.block_until_ready(fwd(x, params))

    ref = jax.block_until_ready(
        bilstm_forward_ref(x, params, hidden_size, num_layer, bi_tag))

    assert out.shape == (B, T, (2 if bi_tag else 1) * hidden_size), out.shape
    assert jnp.allclose(out, ref, atol=1e-5, rtol=1e-5), \
        f"max abs err {jnp.max(jnp.abs(out - ref))}"

    print("KERNEL_OK")
</pallas_src>

<mosaic_0001>
module attributes {stable_mosaic.version = 11 : i64} {
  func.func @kernel(%arg0: memref<8x2x16xf32, #tpu.memory_space<vmem>>, %arg1: memref<16x256xf32, #tpu.memory_space<vmem>>, %arg2: memref<64x256xf32, #tpu.memory_space<vmem>>, %arg3: memref<1x256xf32, #tpu.memory_space<vmem>>, %arg4: memref<64x256xf32, #tpu.memory_space<vmem>>, %arg5: memref<64x256xf32, #tpu.memory_space<vmem>>, %arg6: memref<1x256xf32, #tpu.memory_space<vmem>>, %arg7: memref<8x2x64xf32, #tpu.memory_space<vmem>>, %arg8: memref<8x2x256xf32, #tpu.memory_space<vmem>>, %arg9: memref<8x2x64xf32, #tpu.memory_space<vmem>>) attributes {dimension_semantics = [], scalar_prefetch = 0 : i64, scratch_operands = 2 : i64, tpu.core_type = #tpu.core_type<tc>} {
    %c0 = arith.constant 0 : index
    %c0_0 = arith.constant 0 : index
    %c0_1 = arith.constant 0 : index
    %0 = vector.load %arg0[%c0, %c0_0, %c0_1] : memref<8x2x16xf32, #tpu.memory_space<vmem>>, vector<1x2x16xf32>
    %1 = vector.shape_cast %0 : vector<1x2x16xf32> to vector<2x16xf32>
    %c0_2 = arith.constant 0 : index
    %c0_3 = arith.constant 0 : index
    %2 = vector.load %arg1[%c0_2, %c0_3] : memref<16x256xf32, #tpu.memory_space<vmem>>, vector<16x256xf32>
    %cst = arith.constant dense<0.000000e+00> : vector<2x256xf32>
    %3 = tpu.matmul %1, %2, %cst {dimension_numbers = #tpu.dot_dimension_numbers<[1], [0], [0], [1], [0, 0, 1, 1], [], []>} : vector<2x16xf32>, vector<16x256xf32>, vector<2x256xf32> -> vector<2x256xf32>
    %c0_4 = arith.constant 0 : index
    %c0_5 = arith.constant 0 : index
    %4 = vector.load %arg3[%c0_4, %c0_5] : memref<1x256xf32, #tpu.memory_space<vmem>>, vector<1x256xf32>
    %5 = vector.broadcast %4 : vector<1x256xf32> to vector<2x256xf32>
    %6 = arith.addf %3, %5 : vector<2x256xf32>
    %c0_6 = arith.constant 0 : index
    %c0_7 = arith.constant 0 : index
    %c0_8 = arith.constant 0 : index
    %7 = vector.load %arg8[%c0_6, %c0_7, %c0_8] : memref<8x2x256xf32, #tpu.memory_space<vmem>>, vector<1x2x256xf32>
    %8 = vector.shape_cast %7 : vector<1x2x256xf32> to vector<2x256xf32>
    %9 = vector.shape_cast %6 : vector<2x256xf32> to vector<1x2x256xf32>
    tpu.vector_store %arg8[%c0_6, %c0_7, %c0_8], %9 {strides = array<i32>} : memref<8x2x256xf32, #tpu.memory_space<vmem>>, vector<1x2x256xf32>,
    %c1 = arith.constant 1 : index
    %c0_9 = arith.constant 0 : index
    %c0_10 = arith.constant 0 : index
    %10 = vector.load %arg0[%c1, %c0_9, %c0_10] : memref<8x2x16xf32, #tpu.memory_space<vmem>>, vector<1x2x16xf32>
    %11 = vector.shape_cast %10 : vector<1x2x16xf32> to vector<2x16xf32>
    %c0_11 = arith.constant 0 : index
    %c0_12 = arith.constant 0 : index
    %12 = vector.load %arg1[%c0_11, %c0_12] : memref<16x256xf32, #tpu.memory_space<vmem>>, vector<16x256xf32>
    %cst_13 = arith.constant dense<0.000000e+00> : vector<2x256xf32>
    %13 = tpu.matmul %11, %12, %cst_13 {dimension_numbers = #tpu.dot_dimension_numbers<[1], [0], [0], [1], [0, 0, 1, 1], [], []>} : vector<2x16xf32>, vector<16x256xf32>, vector<2x256xf32> -> vector<2x256xf32>
    %c0_14 = arith.constant 0 : index
    %c0_15 = arith.constant 0 : index
    %14 = vector.load %arg3[%c0_14, %c0_15] : memref<1x256xf32, #tpu.memory_space<vmem>>, vector<1x256xf32>
    %15 = vector.broadcast %14 : vector<1x256xf32> to vector<2x256xf32>
    %16 = arith.addf %13, %15 : vector<2x256xf32>
    %c1_16 = arith.constant 1 : index
    %c0_17 = arith.constant 0 : index
    %c0_18 = arith.constant 0 : index
    %17 = vector.load %arg8[%c1_16, %c0_17, %c0_18] : memref<8x2x256xf32, #tpu.memory_space<vmem>>, vector<1x2x256xf32>
    %18 = vector.shape_cast %17 : vector<1x2x256xf32> to vector<2x256xf32>
    %19 = vector.shape_cast %16 : vector<2x256xf32> to vector<1x2x256xf32>
    tpu.vector_store %arg8[%c1_16, %c0_17, %c0_18], %19 {strides = array<i32>} : memref<8x2x256xf32, #tpu.memory_space<vmem>>, vector<1x2x256xf32>,
    %c2 = arith.constant 2 : index
    %c0_19 = arith.constant 0 : index
    %c0_20 = arith.constant 0 : index
    %20 = vector.load %arg0[%c2, %c0_19, %c0_20] : memref<8x2x16xf32, #tpu.memory_space<vmem>>, vector<1x2x16xf32>
    %21 = vector.shape_cast %20 : vector<1x2x16xf32> to vector<2x16xf32>
    %c0_21 = arith.constant 0 : index
    %c0_22 = arith.constant 0 : index
    %22 = vector.load %arg1[%c0_21, %c0_22] : memref<16x256xf32, #tpu.memory_space<vmem>>, vector<16x256xf32>
    %cst_23 = arith.constant dense<0.000000e+00> : vector<2x256xf32>
    %23 = tpu.matmul %21, %22, %cst_23 {dimension_numbers = #tpu.dot_dimension_numbers<[1], [0], [0], [1], [0, 0, 1, 1], [], []>} : vector<2x16xf32>, vector<16x256xf32>, vector<2x256xf32> -> vector<2x256xf32>
    %c0_24 = arith.constant 0 : index
    %c0_25 = arith.constant 0 : index
    %24 = vector.load %arg3[%c0_24, %c0_25] : memref<1x256xf32, #tpu.memory_space<vmem>>, vector<1x256xf32>
    %25 = vector.broadcast %24 : vector<1x256xf32> to vector<2x256xf32>
    %26 = arith.addf %23, %25 : vector<2x256xf32>
    %c2_26 = arith.constant 2 : index
    %c0_27 = arith.constant 0 : index
    %c0_28 = arith.constant 0 : index
    %27 = vector.load %arg8[%c2_26, %c0_27, %c0_28] : memref<8x2x256xf32, #tpu.memory_space<vmem>>, vector<1x2x256xf32>
    %28 = vector.shape_cast %27 : vector<1x2x256xf32> to vector<2x256xf32>
    %29 = vector.shape_cast %26 : vector<2x256xf32> to vector<1x2x256xf32>
    tpu.vector_store %arg8[%c2_26, %c0_27, %c0_28], %29 {strides = array<i32>} : memref<8x2x256xf32, #tpu.memory_space<vmem>>, vector<1x2x256xf32>,
    %c3 = arith.constant 3 : index
    %c0_29 = arith.constant 0 : index
    %c0_30 = arith.constant 0 : index
    %30 = vector.load %arg0[%c3, %c0_29, %c0_30] : memref<8x2x16xf32, #tpu.memory_space<vmem>>, vector<1x2x16xf32>
    %31 = vector.shape_cast %30 : vector<1x2x16xf32> to vector<2x16xf32>
    %c0_31 = arith.constant 0 : index
    %c0_32 = arith.constant 0 : index
    %32 = vector.load %arg1[%c0_31, %c0_32] : memref<16x256xf32, #tpu.memory_space<vmem>>, vector<16x256xf32>
    %cst_33 = arith.constant dense<0.000000e+00> : vector<2x256xf32>
    %33 = tpu.matmul %31, %32, %cst_33 {dimension_numbers = #tpu.dot_dimension_numbers<[1], [0], [0], [1], [0, 0, 1, 1], [], []>} : vector<2x16xf32>, vector<16x256xf32>, vector<2x256xf32> -> vector<2x256xf32>
    %c0_34 = arith.constant 0 : index
    %c0_35 = arith.constant 0 : index
    %34 = vector.load %arg3[%c0_34, %c0_35] : memref<1x256xf32, #tpu.memory_space<vmem>>, vector<1x256xf32>
    %35 = vector.broadcast %34 : vector<1x256xf32> to vector<2x256xf32>
    %36 = arith.addf %33, %35 : vector<2x256xf32>
    %c3_36 = arith.constant 3 : index
    %c0_37 = arith.constant 0 : index
    %c0_38 = arith.constant 0 : index
    %37 = vector.load %arg8[%c3_36, %c0_37, %c0_38] : memref<8x2x256xf32, #tpu.memory_space<vmem>>, vector<1x2x256xf32>
    %38 = vector.shape_cast %37 : vector<1x2x256xf32> to vector<2x256xf32>
    %39 = vector.shape_cast %36 : vector<2x256xf32> to vector<1x2x256xf32>
    tpu.vector_store %arg8[%c3_36, %c0_37, %c0_38], %39 {strides = array<i32>} : memref<8x2x256xf32, #tpu.memory_space<vmem>>, vector<1x2x256xf32>,
    %c4 = arith.constant 4 : index
    %c0_39 = arith.constant 0 : index
    %c0_40 = arith.constant 0 : index
    %40 = vector.load %arg0[%c4, %c0_39, %c0_40] : memref<8x2x16xf32, #tpu.memory_space<vmem>>, vector<1x2x16xf32>
    %41 = vector.shape_cast %40 : vector<1x2x16xf32> to vector<2x16xf32>
    %c0_41 = arith.constant 0 : index
    %c0_42 = arith.constant 0 : index
    %42 = vector.load %arg1[%c0_41, %c0_42] : memref<16x256xf32, #tpu.memory_space<vmem>>, vector<16x256xf32>
    %cst_43 = arith.constant dense<0.000000e+00> : vector<2x256xf32>
    %43 = tpu.matmul %41, %42, %cst_43 {dimension_numbers = #tpu.dot_dimension_numbers<[1], [0], [0], [1], [0, 0, 1, 1], [], []>} : vector<2x16xf32>, vector<16x256xf32>, vector<2x256xf32> -> vector<2x256xf32>
    %c0_44 = arith.constant 0 : index
    %c0_45 = arith.constant 0 : index
    %44 = vector.load %arg3[%c0_44, %c0_45] : memref<1x256xf32, #tpu.memory_space<vmem>>, vector<1x256xf32>
    %45 = vector.broadcast %44 : vector<1x256xf32> to vector<2x256xf32>
    %46 = arith.addf %43, %45 : vector<2x256xf32>
    %c4_46 = arith.constant 4 : index
    %c0_47 = arith.constant 0 : index
    %c0_48 = arith.constant 0 : index
    %47 = vector.load %arg8[%c4_46, %c0_47, %c0_48] : memref<8x2x256xf32, #tpu.memory_space<vmem>>, vector<1x2x256xf32>
    %48 = vector.shape_cast %47 : vector<1x2x256xf32> to vector<2x256xf32>
    %49 = vector.shape_cast %46 : vector<2x256xf32> to vector<1x2x256xf32>
    tpu.vector_store %arg8[%c4_46, %c0_47, %c0_48], %49 {strides = array<i32>} : memref<8x2x256xf32, #tpu.memory_space<vmem>>, vector<1x2x256xf32>,
    %c5 = arith.constant 5 : index
    %c0_49 = arith.constant 0 : index
    %c0_50 = arith.constant 0 : index
    %50 = vector.load %arg0[%c5, %c0_49, %c0_50] : memref<8x2x16xf32, #tpu.memory_space<vmem>>, vector<1x2x16xf32>
    %51 = vector.shape_cast %50 : vector<1x2x16xf32> to vector<2x16xf32>
    %c0_51 = arith.constant 0 : index
    %c0_52 = arith.constant 0 : index
    %52 = vector.load %arg1[%c0_51, %c0_52] : memref<16x256xf32, #tpu.memory_space<vmem>>, vector<16x256xf32>
    %cst_53 = arith.constant dense<0.000000e+00> : vector<2x256xf32>
    %53 = tpu.matmul %51, %52, %cst_53 {dimension_numbers = #tpu.dot_dimension_numbers<[1], [0], [0], [1], [0, 0, 1, 1], [], []>} : vector<2x16xf32>, vector<16x256xf32>, vector<2x256xf32> -> vector<2x256xf32>
    %c0_54 = arith.constant 0 : index
    %c0_55 = arith.constant 0 : index
    %54 = vector.load %arg3[%c0_54, %c0_55] : memref<1x256xf32, #tpu.memory_space<vmem>>, vector<1x256xf32>
    %55 = vector.broadcast %54 : vector<1x256xf32> to vector<2x256xf32>
    %56 = arith.addf %53, %55 : vector<2x256xf32>
    %c5_56 = arith.constant 5 : index
    %c0_57 = arith.constant 0 : index
    %c0_58 = arith.constant 0 : index
    %57 = vector.load %arg8[%c5_56, %c0_57, %c0_58] : memref<8x2x256xf32, #tpu.memory_space<vmem>>, vector<1x2x256xf32>
    %58 = vector.shape_cast %57 : vector<1x2x256xf32> to vector<2x256xf32>
    %59 = vector.shape_cast %56 : vector<2x256xf32> to vector<1x2x256xf32>
    tpu.vector_store %arg8[%c5_56, %c0_57, %c0_58], %59 {strides = array<i32>} : memref<8x2x256xf32, #tpu.memory_space<vmem>>, vector<1x2x256xf32>,
    %c6 = arith.constant 6 : index
    %c0_59 = arith.constant 0 : index
    %c0_60 = arith.constant 0 : index
    %60 = vector.load %arg0[%c6, %c0_59, %c0_60] : memref<8x2x16xf32, #tpu.memory_space<vmem>>, vector<1x2x16xf32>
    %61 = vector.shape_cast %60 : vector<1x2x16xf32> to vector<2x16xf32>
    %c0_61 = arith.constant 0 : index
    %c0_62 = arith.constant 0 : index
    %62 = vector.load %arg1[%c0_61, %c0_62] : memref<16x256xf32, #tpu.memory_space<vmem>>, vector<16x256xf32>
    %cst_63 = arith.constant dense<0.000000e+00> : vector<2x256xf32>
    %63 = tpu.matmul %61, %62, %cst_63 {dimension_numbers = #tpu.dot_dimension_numbers<[1], [0], [0], [1], [0, 0, 1, 1], [], []>} : vector<2x16xf32>, vector<16x256xf32>, vector<2x256xf32> -> vector<2x256xf32>
    %c0_64 = arith.constant 0 : index
    %c0_65 = arith.constant 0 : index
    %64 = vector.load %arg3[%c0_64, %c0_65] : memref<1x256xf32, #tpu.memory_space<vmem>>, vector<1x256xf32>
    %65 = vector.broadcast %64 : vector<1x256xf32> to vector<2x256xf32>
    %66 = arith.addf %63, %65 : vector<2x256xf32>
    %c6_66 = arith.constant 6 : index
    %c0_67 = arith.constant 0 : index
    %c0_68 = arith.constant 0 : index
    %67 = vector.load %arg8[%c6_66, %c0_67, %c0_68] : memref<8x2x256xf32, #tpu.memory_space<vmem>>, vector<1x2x256xf32>
    %68 = vector.shape_cast %67 : vector<1x2x256xf32> to vector<2x256xf32>
    %69 = vector.shape_cast %66 : vector<2x256xf32> to vector<1x2x256xf32>
    tpu.vector_store %arg8[%c6_66, %c0_67, %c0_68], %69 {strides = array<i32>} : memref<8x2x256xf32, #tpu.memory_space<vmem>>, vector<1x2x256xf32>,
    %c7 = arith.constant 7 : index
    %c0_69 = arith.constant 0 : index
    %c0_70 = arith.constant 0 : index
    %70 = vector.load %arg0[%c7, %c0_69, %c0_70] : memref<8x2x16xf32, #tpu.memory_space<vmem>>, vector<1x2x16xf32>
    %71 = vector.shape_cast %70 : vector<1x2x16xf32> to vector<2x16xf32>
    %c0_71 = arith.constant 0 : index
    %c0_72 = arith.constant 0 : index
    %72 = vector.load %arg1[%c0_71, %c0_72] : memref<16x256xf32, #tpu.memory_space<vmem>>, vector<16x256xf32>
    %cst_73 = arith.constant dense<0.000000e+00> : vector<2x256xf32>
    %73 = tpu.matmul %71, %72, %cst_73 {dimension_numbers = #tpu.dot_dimension_numbers<[1], [0], [0], [1], [0, 0, 1, 1], [], []>} : vector<2x16xf32>, vector<16x256xf32>, vector<2x256xf32> -> vector<2x256xf32>
    %c0_74 = arith.constant 0 : index
    %c0_75 = arith.constant 0 : index
    %74 = vector.load %arg3[%c0_74, %c0_75] : memref<1x256xf32, #tpu.memory_space<vmem>>, vector<1x256xf32>
    %75 = vector.broadcast %74 : vector<1x256xf32> to vector<2x256xf32>
    %76 = arith.addf %73, %75 : vector<2x256xf32>
    %c7_76 = arith.constant 7 : index
    %c0_77 = arith.constant 0 : index
    %c0_78 = arith.constant 0 : index
    %77 = vector.load %arg8[%c7_76, %c0_77, %c0_78] : memref<8x2x256xf32, #tpu.memory_space<vmem>>, vector<1x2x256xf32>
    %78 = vector.shape_cast %77 : vector<1x2x256xf32> to vector<2x256xf32>
    %79 = vector.shape_cast %76 : vector<2x256xf32> to vector<1x2x256xf32>
    tpu.vector_store %arg8[%c7_76, %c0_77, %c0_78], %79 {strides = array<i32>} : memref<8x2x256xf32, #tpu.memory_space<vmem>>, vector<1x2x256xf32>,
    %cst_79 = arith.constant 0.000000e+00 : f32
    %80 = vector.broadcast %cst_79 : f32 to vector<2x64xf32>
    %cst_80 = arith.constant 0.000000e+00 : f32
    %81 = vector.broadcast %cst_80 : f32 to vector<2x64xf32>
    %c0_81 = arith.constant 0 : index
    %c0_82 = arith.constant 0 : index
    %82 = vector.load %arg2[%c0_81, %c0_82] : memref<64x256xf32, #tpu.memory_space<vmem>>, vector<64x256xf32>
    %cst_83 = arith.constant dense<0.000000e+00> : vector<2x256xf32>
    %83 = tpu.matmul %80, %82, %cst_83 {dimension_numbers = #tpu.dot_dimension_numbers<[1], [0], [0], [1], [0, 0, 1, 1], [], []>} : vector<2x64xf32>, vector<64x256xf32>, vector<2x256xf32> -> vector<2x256xf32>
    %c0_84 = arith.constant 0 : index
    %c0_85 = arith.constant 0 : index
    %c0_86 = arith.constant 0 : index
    %84 = vector.load %arg8[%c0_84, %c0_85, %c0_86] : memref<8x2x256xf32, #tpu.memory_space<vmem>>, vector<1x2x128xf32>
    %85 = vector.shape_cast %84 : vector<1x2x128xf32> to vector<2x128xf32>
    %86 = vector.extract_strided_slice %83 {offsets = [0, 0], sizes = [2, 128], strides = [1, 1]} : vector<2x256xf32> to vector<2x128xf32>
    %87 = arith.addf %85, %86 : vector<2x128xf32>
    %88 = vector.extract_strided_slice %81 {offsets = [0, 0], sizes = [2, 32], strides = [1, 1]} : vector<2x64xf32> to vector<2x32xf32>
    %89 = arith.negf %87 : vector<2x128xf32>
    %90 = math.exp %89 : vector<2x128xf32>
    %cst_87 = arith.constant 1.000000e+00 : f32
    %91 = vector.broadcast %cst_87 : f32 to vector<2x128xf32>
    %92 = arith.addf %91, %90 : vector<2x128xf32>
    %93 = arith.divf %91, %92 : vector<2x128xf32>
    %94 = math.tanh %87 : vector<2x128xf32>
    %95 = vector.extract_strided_slice %93 {offsets = [0, 0], sizes = [2, 32], strides = [1, 1]} : vector<2x128xf32> to vector<2x32xf32>
    %96 = vector.extract_strided_slice %93 {offsets = [0, 32], sizes = [2, 32], strides = [1, 1]} : vector<2x128xf32> to vector<2x32xf32>
    %97 = vector.extract_strided_slice %94 {offsets = [0, 64], sizes = [2, 32], strides = [1, 1]} : vector<2x128xf32> to vector<2x32xf32>
    %98 = vector.extract_strided_slice %93 {offsets = [0, 96], sizes = [2, 32], strides = [1, 1]} : vector<2x128xf32> to vector<2x32xf32>
    %99 = arith.mulf %96, %88 : vector<2x32xf32>
    %100 = arith.mulf %95, %97 : vector<2x32xf32>
    %101 = arith.addf %99, %100 : vector<2x32xf32>
    %102 = math.tanh %101 : vector<2x32xf32>
    %103 = arith.mulf %98, %102 : vector<2x32xf32>
    %c0_88 = arith.constant 0 : index
    %c0_89 = arith.constant 0 : index
    %c0_90 = arith.constant 0 : index
    %104 = vector.load %arg9[%c0_88, %c0_89, %c0_90] : memref<8x2x64xf32, #tpu.memory_space<vmem>>, vector<1x2x32xf32>
    %105 = vector.shape_cast %104 : vector<1x2x32xf32> to vector<2x32xf32>
    %106 = vector.shape_cast %103 : vector<2x32xf32> to vector<1x2x32xf32>
    tpu.vector_store %arg9[%c0_88, %c0_89, %c0_90], %106 {strides = array<i32>} : memref<8x2x64xf32, #tpu.memory_space<vmem>>, vector<1x2x32xf32>,
    %c7_91 = arith.constant 7 : index
    %c0_92 = arith.constant 0 : index
    %c128 = arith.constant 128 : index
    %107 = vector.load %arg8[%c7_91, %c0_92, %c128] : memref<8x2x256xf32, #tpu.memory_space<vmem>>, vector<1x2x128xf32>
    %108 = vector.shape_cast %107 : vector<1x2x128xf32> to vector<2x128xf32>
    %109 = vector.extract_strided_slice %83 {offsets = [0, 128], sizes = [2, 128], strides = [1, 1]} : vector<2x256xf32> to vector<2x128xf32>
    %110 = arith.addf %108, %109 : vector<2x128xf32>
    %111 = vector.extract_strided_slice %81 {offsets = [0, 32], sizes = [2, 32], strides = [1, 1]} : vector<2x64xf32> to vector<2x32xf32>
    %112 = arith.negf %110 : vector<2x128xf32>
    %113 = math.exp %112 : vector<2x128xf32>
    %cst_93 = arith.constant 1.000000e+00 : f32
    %114 = vector.broadcast %cst_93 : f32 to vector<2x128xf32>
    %115 = arith.addf %114, %113 : vector<2x128xf32>
    %116 = arith.divf %114, %115 : vector<2x128xf32>
    %117 = math.tanh %110 : vector<2x128xf32>
    %118 = vector.extract_strided_slice %116 {offsets = [0, 0], sizes = [2, 32], strides = [1, 1]} : vector<2x128xf32> to vector<2x32xf32>
    %119 = vector.extract_strided_slice %116 {offsets = [0, 32], sizes = [2, 32], strides = [1, 1]} : vector<2x128xf32> to vector<2x32xf32>
    %120 = vector.extract_strided_slice %117 {offsets = [0, 64], sizes = [2, 32], strides = [1, 1]} : vector<2x128xf32> to vector<2x32xf32>
    %121 = vector.extract_strided_slice %116 {offsets = [0, 96], sizes = [2, 32], strides = [1, 1]} : vector<2x128xf32> to vector<2x32xf32>
    %122 = arith.mulf %119, %111 : vector<2x32xf32>
    %123 = arith.mulf %118, %120 : vector<2x32xf32>
    %124 = arith.addf %122, %123 : vector<2x32xf32>
    %125 = math.tanh %124 : vector<2x32xf32>
    %126 = arith.mulf %121, %125 : vector<2x32xf32>
    %c7_94 = arith.constant 7 : index
    %c0_95 = arith.constant 0 : index
    %c32 = arith.constant 32 : index
    %127 = vector.load %arg9[%c7_94, %c0_95, %c32] : memref<8x2x64xf32, #tpu.memory_space<vmem>>, vector<1x2x32xf32>
    %128 = vector.shape_cast %127 : vector<1x2x32xf32> to vector<2x32xf32>
    %129 = vector.shape_cast %126 : vector<2x32xf32> to vector<1x2x32xf32>
    tpu.vector_store %arg9[%c7_94, %c0_95, %c32], %129 {strides = array<i32>} : memref<8x2x64xf32, #tpu.memory_space<vmem>>, vector<1x2x32xf32>,
    %130 = tpu.concatenate %103, %126 in 1 : vector<2x32xf32>, vector<2x32xf32> -> vector<2x64xf32>
    %131 = tpu.concatenate %101, %124 in 1 : vector<2x32xf32>, vector<2x32xf32> -> vector<2x64xf32>
    %c0_96 = arith.constant 0 : index
    %c0_97 = arith.constant 0 : index
    %132 = vector.load %arg2[%c0_96, %c0_97] : memref<64x256xf32, #tpu.memory_space<vmem>>, vector<64x256xf32>
    %cst_98 = arith.constant dense<0.000000e+00> : vector<2x256xf32>
    %133 = tpu.matmul %130, %132, %cst_98 {dimension_numbers = #tpu.dot_dimension_numbers<[1], [0], [0], [1], [0, 0, 1, 1], [], []>} : vector<2x64xf32>, vector<64x256xf32>, vector<2x256xf32> -> vector<2x256xf32>
    %c1_99 = arith.constant 1 : index
    %c0_100 = arith.constant 0 : index
    %c0_101 = arith.constant 0 : index
    %134 = vector.load %arg8[%c1_99, %c0_100, %c0_101] : memref<8x2x256xf32, #tpu.memory_space<vmem>>, vector<1x2x128xf32>
    %135 = vector.shape_cast %134 : vector<1x2x128xf32> to vector<2x128xf32>
    %136 = vector.extract_strided_slice %133 {offsets = [0, 0], sizes = [2, 128], strides = [1, 1]} : vector<2x256xf32> to vector<2x128xf32>
    %137 = arith.addf %135, %136 : vector<2x128xf32>
    %138 = vector.extract_strided_slice %131 {offsets = [0, 0], sizes = [2, 32], strides = [1, 1]} : vector<2x64xf32> to vector<2x32xf32>
    %139 = arith.negf %137 : vector<2x128xf32>
    %140 = math.exp %139 : vector<2x128xf32>
    %cst_102 = arith.constant 1.000000e+00 : f32
    %141 = vector.broadcast %cst_102 : f32 to vector<2x128xf32>
    %142 = arith.addf %141, %140 : vector<2x128xf32>
    %143 = arith.divf %141, %142 : vector<2x128xf32>
    %144 = math.tanh %137 : vector<2x128xf32>
    %145 = vector.extract_strided_slice %143 {offsets = [0, 0], sizes = [2, 32], strides = [1, 1]} : vector<2x128xf32> to vector<2x32xf32>
    %146 = vector.extract_strided_slice %143 {offsets = [0, 32], sizes = [2, 32], strides = [1, 1]} : vector<2x128xf32> to vector<2x32xf32>
    %147 = vector.extract_strided_slice %144 {offsets = [0, 64], sizes = [2, 32], strides = [1, 1]} : vector<2x128xf32> to vector<2x32xf32>
    %148 = vector.extract_strided_slice %143 {offsets = [0, 96], sizes = [2, 32], strides = [1, 1]} : vector<2x128xf32> to vector<2x32xf32>
    %149 = arith.mulf %146, %138 : vector<2x32xf32>
    %150 = arith.mulf %145, %147 : vector<2x32xf32>
    %151 = arith.addf %149, %150 : vector<2x32xf32>
    %152 = math.tanh %151 : vector<2x32xf32>
    %153 = arith.mulf %148, %152 : vector<2x32xf32>
    %c1_103 = arith.constant 1 : index
    %c0_104 = arith.constant 0 : index
    %c0_105 = arith.constant 0 : index
    %154 = vector.load %arg9[%c1_103, %c0_104, %c0_105] : memref<8x2x64xf32, #tpu.memory_space<vmem>>, vector<1x2x32xf32>
    %155 = vector.shape_cast %154 : vector<1x2x32xf32> to vector<2x32xf32>
    %156 = vector.shape_cast %153 : vector<2x32xf32> to vector<1x2x32xf32>
    tpu.vector_store %arg9[%c1_103, %c0_104, %c0_105], %156 {strides = array<i32>} : memref<8x2x64xf32, #tpu.memory_space<vmem>>, vector<1x2x32xf32>,
    %c6_106 = arith.constant 6 : index
    %c0_107 = arith.constant 0 : index
    %c128_108 = arith.constant 128 : index
    %157 = vector.load %arg8[%c6_106, %c0_107, %c128_108] : memref<8x2x256xf32, #tpu.memory_space<vmem>>, vector<1x2x128xf32>
    %158 = vector.shape_cast %157 : vector<1x2x128xf32> to vector<2x128xf32>
    %159 = vector.extract_strided_slice %133 {offsets = [0, 128], sizes = [2, 128], strides = [1, 1]} : vector<2x256xf32> to vector<2x128xf32>
    %160 = arith.addf %158, %159 : vector<2x128xf32>
    %161 = vector.extract_strided_slice %131 {offsets = [0, 32], sizes = [2, 32], strides = [1, 1]} : vector<2x64xf32> to vector<2x32xf32>
    %162 = arith.negf %160 : vector<2x128xf32>
    %163 = math.exp %162 : vector<2x128xf32>
    %cst_109 = arith.constant 1.000000e+00 : f32
    %164 = vector.broadcast %cst_109 : f32 to vector<2x128xf32>
    %165 = arith.addf %164, %163 : vector<2x128xf32>
    %166 = arith.divf %164, %165 : vector<2x128xf32>
    %167 = math.tanh %160 : vector<2x128xf32>
    %168 = vector.extract_strided_slice %166 {offsets = [0, 0], sizes = [2, 32], strides = [1, 1]} : vector<2x128xf32> to vector<2x32xf32>
    %169 = vector.extract_strided_slice %166 {offsets = [0, 32], sizes = [2, 32], strides = [1, 1]} : vector<2x128xf32> to vector<2x32xf32>
    %170 = vector.extract_strided_slice %167 {offsets = [0, 64], sizes = [2, 32], strides = [1, 1]} : vector<2x128xf32> to vector<2x32xf32>
    %171 = vector.extract_strided_slice %166 {offsets = [0, 96], sizes = [2, 32], strides = [1, 1]} : vector<2x128xf32> to vector<2x32xf32>
    %172 = arith.mulf %169, %161 : vector<2x32xf32>
    %173 = arith.mulf %168, %170 : vector<2x32xf32>
    %174 = arith.addf %172, %173 : vector<2x32xf32>
    %175 = math.tanh %174 : vector<2x32xf32>
    %176 = arith.mulf %171, %175 : vector<2x32xf32>
    %c6_110 = arith.constant 6 : index
    %c0_111 = arith.constant 0 : index
    %c32_112 = arith.constant 32 : index
    %177 = vector.load %arg9[%c6_110, %c0_111, %c32_112] : memref<8x2x64xf32, #tpu.memory_space<vmem>>, vector<1x2x32xf32>
    %178 = vector.shape_cast %177 : vector<1x2x32xf32> to vector<2x32xf32>
    %179 = vector.shape_cast %176 : vector<2x32xf32> to vector<1x2x32xf32>
    tpu.vector_store %arg9[%c6_110, %c0_111, %c32_112], %179 {strides = array<i32>} : memref<8x2x64xf32, #tpu.memory_space<vmem>>, vector<1x2x32xf32>,
    %180 = tpu.concatenate %153, %176 in 1 : vector<2x32xf32>, vector<2x32xf32> -> vector<2x64xf32>
    %181 = tpu.concatenate %151, %174 in 1 : vector<2x32xf32>, vector<2x32xf32> -> vector<2x64xf32>
    %c0_113 = arith.constant 0 : index
    %c0_114 = arith.constant 0 : index
    %182 = vector.load %arg2[%c0_113, %c0_114] : memref<64x256xf32, #tpu.memory_space<vmem>>, vector<64x256xf32>
    %cst_115 = arith.constant dense<0.000000e+00> : vector<2x256xf32>
    %183 = tpu.matmul %180, %182, %cst_115 {dimension_numbers = #tpu.dot_dimension_numbers<[1], [0], [0], [1], [0, 0, 1, 1], [], []>} : vector<2x64xf32>, vector<64x256xf32>, vector<2x256xf32> -> vector<2x256xf32>
    %c2_116 = arith.constant 2 : index
    %c0_117 = arith.constant 0 : index
    %c0_118 = arith.constant 0 : index
    %184 = vector.load %arg8[%c2_116, %c0_117, %c0_118] : memref<8x2x256xf32, #tpu.memory_space<vmem>>, vector<1x2x128xf32>
    %185 = vector.shape_cast %184 : vector<1x2x128xf32> to vector<2x128xf32>
    %186 = vector.extract_strided_slice %183 {offsets = [0, 0], sizes = [2, 128], strides = [1, 1]} : vector<2x256xf32> to vector<2x128xf32>
    %187 = arith.addf %185, %186 : vector<2x128xf32>
    %188 = vector.extract_strided_slice %181 {offsets = [0, 0], sizes = [2, 32], strides = [1, 1]} : vector<2x64xf32> to vector<2x32xf32>
    %189 = arith.negf %187 : vector<2x128xf32>
    %190 = math.exp %189 : vector<2x128xf32>
    %cst_119 = arith.constant 1.000000e+00 : f32
    %191 = vector.broadcast %cst_119 : f32 to vector<2x128xf32>
    %192 = arith.addf %191, %190 : vector<2x128xf32>
    %193 = arith.divf %191, %192 : vector<2x128xf32>
    %194 = math.tanh %187 : vector<2x128xf32>
    %195 = vector.extract_strided_slice %193 {offsets = [0, 0], sizes = [2, 32], strides = [1, 1]} : vector<2x128xf32> to vector<2x32xf32>
    %196 = vector.extract_strided_slice %193 {offsets = [0, 32], sizes = [2, 32], strides = [1, 1]} : vector<2x128xf32> to vector<2x32xf32>
    %197 = vector.extract_strided_slice %194 {offsets = [0, 64], sizes = [2, 32], strides = [1, 1]} : vector<2x128xf32> to vector<2x32xf32>
    %198 = vector.extract_strided_slice %193 {offsets = [0, 96], sizes = [2, 32], strides = [1, 1]} : vector<2x128xf32> to vector<2x32xf32>
    %199 = arith.mulf %196, %188 : vector<2x32xf32>
    %200 = arith.mulf %195, %197 : vector<2x32xf32>
    %201 = arith.addf %199, %200 : vector<2x32xf32>
    %202 = math.tanh %201 : vector<2x32xf32>
    %203 = arith.mulf %198, %202 : vector<2x32xf32>
    %c2_120 = arith.constant 2 : index
    %c0_121 = arith.constant 0 : index
    %c0_122 = arith.constant 0 : index
    %204 = vector.load %arg9[%c2_120, %c0_121, %c0_122] : memref<8x2x64xf32, #tpu.memory_space<vmem>>, vector<1x2x32xf32>
    %205 = vector.shape_cast %204 : vector<1x2x32xf32> to vector<2x32xf32>
    %206 = vector.shape_cast %203 : vector<2x32xf32> to vector<1x2x32xf32>
    tpu.vector_store %arg9[%c2_120, %c0_121, %c0_122], %206 {strides = array<i32>} : memref<8x2x64xf32, #tpu.memory_space<vmem>>, vector<1x2x32xf32>,
    %c5_123 = arith.constant 5 : index
    %c0_124 = arith.constant 0 : index
    %c128_125 = arith.constant 128 : index
    %207 = vector.load %arg8[%c5_123, %c0_124, %c128_125] : memref<8x2x256xf32, #tpu.memory_space<vmem>>, vector<1x2x128xf32>
    %208 = vector.shape_cast %207 : vector<1x2x128xf32> to vector<2x128xf32>
    %209 = vector.extract_strided_slice %183 {offsets = [0, 128], sizes = [2, 128], strides = [1, 1]} : vector<2x256xf32> to vector<2x128xf32>
    %210 = arith.addf %208, %209 : vector<2x128xf32>
    %211 = vector.extract_strided_slice %181 {offsets = [0, 32], sizes = [2, 32], strides = [1, 1]} : vector<2x64xf32> to vector<2x32xf32>
    %212 = arith.negf %210 : vector<2x128xf32>
    %213 = math.exp %212 : vector<2x128xf32>
    %cst_126 = arith.constant 1.000000e+00 : f32
    %214 = vector.broadcast %cst_126 : f32 to vector<2x128xf32>
    %215 = arith.addf %214, %213 : vector<2x128xf32>
    %216 = arith.divf %214, %215 : vector<2x128xf32>
    %217 = math.tanh %210 : vector<2x128xf32>
    %218 = vector.extract_strided_slice %216 {offsets = [0, 0], sizes = [2, 32], strides = [1, 1]} : vector<2x128xf32> to vector<2x32xf32>
    %219 = vector.extract_strided_slice %216 {offsets = [0, 32], sizes = [2, 32], strides = [1, 1]} : vector<2x128xf32> to vector<2x32xf32>
    %220 = vector.extract_strided_slice %217 {offsets = [0, 64], sizes = [2, 32], strides = [1, 1]} : vector<2x128xf32> to vector<2x32xf32>
    %221 = vector.extract_strided_slice %216 {offsets = [0, 96], sizes = [2, 32], strides = [1, 1]} : vector<2x128xf32> to vector<2x32xf32>
    %222 = arith.mulf %219, %211 : vector<2x32xf32>
    %223 = arith.mulf %218, %220 : vector<2x32xf32>
    %224 = arith.addf %222, %223 : vector<2x32xf32>
    %225 = math.tanh %224 : vector<2x32xf32>
    %226 = arith.mulf %221, %225 : vector<2x32xf32>
    %c5_127 = arith.constant 5 : index
    %c0_128 = arith.constant 0 : index
    %c32_129 = arith.constant 32 : index
    %227 = vector.load %arg9[%c5_127, %c0_128, %c32_129] : memref<8x2x64xf32, #tpu.memory_space<vmem>>, vector<1x2x32xf32>
    %228 = vector.shape_cast %227 : vector<1x2x32xf32> to vector<2x32xf32>
    %229 = vector.shape_cast %226 : vector<2x32xf32> to vector<1x2x32xf32>
    tpu.vector_store %arg9[%c5_127, %c0_128, %c32_129], %229 {strides = array<i32>} : memref<8x2x64xf32, #tpu.memory_space<vmem>>, vector<1x2x32xf32>,
    %230 = tpu.concatenate %203, %226 in 1 : vector<2x32xf32>, vector<2x32xf32> -> vector<2x64xf32>
    %231 = tpu.concatenate %201, %224 in 1 : vector<2x32xf32>, vector<2x32xf32> -> vector<2x64xf32>
    %c0_130 = arith.constant 0 : index
    %c0_131 = arith.constant 0 : index
    %232 = vector.load %arg2[%c0_130, %c0_131] : memref<64x256xf32, #tpu.memory_space<vmem>>, vector<64x256xf32>
    %cst_132 = arith.constant dense<0.000000e+00> : vector<2x256xf32>
    %233 = tpu.matmul %230, %232, %cst_132 {dimension_numbers = #tpu.dot_dimension_numbers<[1], [0], [0], [1], [0, 0, 1, 1], [], []>} : vector<2x64xf32>, vector<64x256xf32>, vector<2x256xf32> -> vector<2x256xf32>
    %c3_133 = arith.constant 3 : index
    %c0_134 = arith.constant 0 : index
    %c0_135 = arith.constant 0 : index
    %234 = vector.load %arg8[%c3_133, %c0_134, %c0_135] : memref<8x2x256xf32, #tpu.memory_space<vmem>>, vector<1x2x128xf32>
    %235 = vector.shape_cast %234 : vector<1x2x128xf32> to vector<2x128xf32>
    %236 = vector.extract_strided_slice %233 {offsets = [0, 0], sizes = [2, 128], strides = [1, 1]} : vector<2x256xf32> to vector<2x128xf32>
    %237 = arith.addf %235, %236 : vector<2x128xf32>
    %238 = vector.extract_strided_slice %231 {offsets = [0, 0], sizes = [2, 32], strides = [1, 1]} : vector<2x64xf32> to vector<2x32xf32>
    %239 = arith.negf %237 : vector<2x128xf32>
    %240 = math.exp %239 : vector<2x128xf32>
    %cst_136 = arith.constant 1.000000e+00 : f32
    %241 = vector.broadcast %cst_136 : f32 to vector<2x128xf32>
    %242 = arith.addf %241, %240 : vector<2x128xf32>
    %243 = arith.divf %241, %242 : vector<2x128xf32>
    %244 = math.tanh %237 : vector<2x128xf32>
    %245 = vector.extract_strided_slice %243 {offsets = [0, 0], sizes = [2, 32], strides = [1, 1]} : vector<2x128xf32> to vector<2x32xf32>
    %246 = vector.extract_strided_slice %243 {offsets = [0, 32], sizes = [2, 32], strides = [1, 1]} : vector<2x128xf32> to vector<2x32xf32>
    %247 = vector.extract_strided_slice %244 {offsets = [0, 64], sizes = [2, 32], strides = [1, 1]} : vector<2x128xf32> to vector<2x32xf32>
    %248 = vector.extract_strided_slice %243 {offsets = [0, 96], sizes = [2, 32], strides = [1, 1]} : vector<2x128xf32> to vector<2x32xf32>
    %249 = arith.mulf %246, %238 : vector<2x32xf32>
    %250 = arith.mulf %245, %247 : vector<2x32xf32>
    %251 = arith.addf %249, %250 : vector<2x32xf32>
    %252 = math.tanh %251 : vector<2x32xf32>
    %253 = arith.mulf %248, %252 : vector<2x32xf32>
    %c3_137 = arith.constant 3 : index
    %c0_138 = arith.constant 0 : index
    %c0_139 = arith.constant 0 : index
    %254 = vector.load %arg9[%c3_137, %c0_138, %c0_139] : memref<8x2x64xf32, #tpu.memory_space<vmem>>, vector<1x2x32xf32>
    %255 = vector.shape_cast %254 : vector<1x2x32xf32> to vector<2x32xf32>
    %256 = vector.shape_cast %253 : vector<2x32xf32> to vector<1x2x32xf32>
    tpu.vector_store %arg9[%c3_137, %c0_138, %c0_139], %256 {strides = array<i32>} : memref<8x2x64xf32, #tpu.memory_space<vmem>>, vector<1x2x32xf32>,
    %c4_140 = arith.constant 4 : index
    %c0_141 = arith.constant 0 : index
    %c128_142 = arith.constant 128 : index
    %257 = vector.load %arg8[%c4_140, %c0_141, %c128_142] : memref<8x2x256xf32, #tpu.memory_space<vmem>>, vector<1x2x128xf32>
    %258 = vector.shape_cast %257 : vector<1x2x128xf32> to vector<2x128xf32>
    %259 = vector.extract_strided_slice %233 {offsets = [0, 128], sizes = [2, 128], strides = [1, 1]} : vector<2x256xf32> to vector<2x128xf32>
    %260 = arith.addf %258, %259 : vector<2x128xf32>
    %261 = vector.extract_strided_slice %231 {offsets = [0, 32], sizes = [2, 32], strides = [1, 1]} : vector<2x64xf32> to vector<2x32xf32>
    %262 = arith.negf %260 : vector<2x128xf32>
    %263 = math.exp %262 : vector<2x128xf32>
    %cst_143 = arith.constant 1.000000e+00 : f32
    %264 = vector.broadcast %cst_143 : f32 to vector<2x128xf32>
    %265 = arith.addf %264, %263 : vector<2x128xf32>
    %266 = arith.divf %264, %265 : vector<2x128xf32>
    %267 = math.tanh %260 : vector<2x128xf32>
    %268 = vector.extract_strided_slice %266 {offsets = [0, 0], sizes = [2, 32], strides = [1, 1]} : vector<2x128xf32> to vector<2x32xf32>
    %269 = vector.extract_strided_slice %266 {offsets = [0, 32], sizes = [2, 32], strides = [1, 1]} : vector<2x128xf32> to vector<2x32xf32>
    %270 = vector.extract_strided_slice %267 {offsets = [0, 64], sizes = [2, 32], strides = [1, 1]} : vector<2x128xf32> to vector<2x32xf32>
    %271 = vector.extract_strided_slice %266 {offsets = [0, 96], sizes = [2, 32], strides = [1, 1]} : vector<2x128xf32> to vector<2x32xf32>
    %272 = arith.mulf %269, %261 : vector<2x32xf32>
    %273 = arith.mulf %268, %270 : vector<2x32xf32>
    %274 = arith.addf %272, %273 : vector<2x32xf32>
    %275 = math.tanh %274 : vector<2x32xf32>
    %276 = arith.mulf %271, %275 : vector<2x32xf32>
    %c4_144 = arith.constant 4 : index
    %c0_145 = arith.constant 0 : index
    %c32_146 = arith.constant 32 : index
    %277 = vector.load %arg9[%c4_144, %c0_145, %c32_146] : memref<8x2x64xf32, #tpu.memory_space<vmem>>, vector<1x2x32xf32>
    %278 = vector.shape_cast %277 : vector<1x2x32xf32> to vector<2x32xf32>
    %279 = vector.shape_cast %276 : vector<2x32xf32> to vector<1x2x32xf32>
    tpu.vector_store %arg9[%c4_144, %c0_145, %c32_146], %279 {strides = array<i32>} : memref<8x2x64xf32, #tpu.memory_space<vmem>>, vector<1x2x32xf32>,
    %280 = tpu.concatenate %253, %276 in 1 : vector<2x32xf32>, vector<2x32xf32> -> vector<2x64xf32>
    %281 = tpu.concatenate %251, %274 in 1 : vector<2x32xf32>, vector<2x32xf32> -> vector<2x64xf32>
    %c0_147 = arith.constant 0 : index
    %c0_148 = arith.constant 0 : index
    %282 = vector.load %arg2[%c0_147, %c0_148] : memref<64x256xf32, #tpu.memory_space<vmem>>, vector<64x256xf32>
    %cst_149 = arith.constant dense<0.000000e+00> : vector<2x256xf32>
    %283 = tpu.matmul %280, %282, %cst_149 {dimension_numbers = #tpu.dot_dimension_numbers<[1], [0], [0], [1], [0, 0, 1, 1], [], []>} : vector<2x64xf32>, vector<64x256xf32>, vector<2x256xf32> -> vector<2x256xf32>
    %c4_150 = arith.constant 4 : index
    %c0_151 = arith.constant 0 : index
    %c0_152 = arith.constant 0 : index
    %284 = vector.load %arg8[%c4_150, %c0_151, %c0_152] : memref<8x2x256xf32, #tpu.memory_space<vmem>>, vector<1x2x128xf32>
    %285 = vector.shape_cast %284 : vector<1x2x128xf32> to vector<2x128xf32>
    %286 = vector.extract_strided_slice %283 {offsets = [0, 0], sizes = [2, 128], strides = [1, 1]} : vector<2x256xf32> to vector<2x128xf32>
    %287 = arith.addf %285, %286 : vector<2x128xf32>
    %288 = vector.extract_strided_slice %281 {offsets = [0, 0], sizes = [2, 32], strides = [1, 1]} : vector<2x64xf32> to vector<2x32xf32>
    %289 = arith.negf %287 : vector<2x128xf32>
    %290 = math.exp %289 : vector<2x128xf32>
    %cst_153 = arith.constant 1.000000e+00 : f32
    %291 = vector.broadcast %cst_153 : f32 to vector<2x128xf32>
    %292 = arith.addf %291, %290 : vector<2x128xf32>
    %293 = arith.divf %291, %292 : vector<2x128xf32>
    %294 = math.tanh %287 : vector<2x128xf32>
    %295 = vector.extract_strided_slice %293 {offsets = [0, 0], sizes = [2, 32], strides = [1, 1]} : vector<2x128xf32> to vector<2x32xf32>
    %296 = vector.extract_strided_slice %293 {offsets = [0, 32], sizes = [2, 32], strides = [1, 1]} : vector<2x128xf32> to vector<2x32xf32>
    %297 = vector.extract_strided_slice %294 {offsets = [0, 64], sizes = [2, 32], strides = [1, 1]} : vector<2x128xf32> to vector<2x32xf32>
    %298 = vector.extract_strided_slice %293 {offsets = [0, 96], sizes = [2, 32], strides = [1, 1]} : vector<2x128xf32> to vector<2x32xf32>
    %299 = arith.mulf %296, %288 : vector<2x32xf32>
    %300 = arith.mulf %295, %297 : vector<2x32xf32>
    %301 = arith.addf %299, %300 : vector<2x32xf32>
    %302 = math.tanh %301 : vector<2x32xf32>
    %303 = arith.mulf %298, %302 : vector<2x32xf32>
    %c4_154 = arith.constant 4 : index
    %c0_155 = arith.constant 0 : index
    %c0_156 = arith.constant 0 : index
    %304 = vector.load %arg9[%c4_154, %c0_155, %c0_156] : memref<8x2x64xf32, #tpu.memory_space<vmem>>, vector<1x2x32xf32>
    %305 = vector.shape_cast %304 : vector<1x2x32xf32> to vector<2x32xf32>
    %306 = vector.shape_cast %303 : vector<2x32xf32> to vector<1x2x32xf32>
    tpu.vector_store %arg9[%c4_154, %c0_155, %c0_156], %306 {strides = array<i32>} : memref<8x2x64xf32, #tpu.memory_space<vmem>>, vector<1x2x32xf32>,
    %c3_157 = arith.constant 3 : index
    %c0_158 = arith.constant 0 : index
    %c128_159 = arith.constant 128 : index
    %307 = vector.load %arg8[%c3_157, %c0_158, %c128_159] : memref<8x2x256xf32, #tpu.memory_space<vmem>>, vector<1x2x128xf32>
    %308 = vector.shape_cast %307 : vector<1x2x128xf32> to vector<2x128xf32>
    %309 = vector.extract_strided_slice %283 {offsets = [0, 128], sizes = [2, 128], strides = [1, 1]} : vector<2x256xf32> to vector<2x128xf32>
    %310 = arith.addf %308, %309 : vector<2x128xf32>
    %311 = vector.extract_strided_slice %281 {offsets = [0, 32], sizes = [2, 32], strides = [1, 1]} : vector<2x64xf32> to vector<2x32xf32>
    %312 = arith.negf %310 : vector<2x128xf32>
    %313 = math.exp %312 : vector<2x128xf32>
    %cst_160 = arith.constant 1.000000e+00 : f32
    %314 = vector.broadcast %cst_160 : f32 to vector<2x128xf32>
    %315 = arith.addf %314, %313 : vector<2x128xf32>
    %316 = arith.divf %314, %315 : vector<2x128xf32>
    %317 = math.tanh %310 : vector<2x128xf32>
    %318 = vector.extract_strided_slice %316 {offsets = [0, 0], sizes = [2, 32], strides = [1, 1]} : vector<2x128xf32> to vector<2x32xf32>
    %319 = vector.extract_strided_slice %316 {offsets = [0, 32], sizes = [2, 32], strides = [1, 1]} : vector<2x128xf32> to vector<2x32xf32>
    %320 = vector.extract_strided_slice %317 {offsets = [0, 64], sizes = [2, 32], strides = [1, 1]} : vector<2x128xf32> to vector<2x32xf32>
    %321 = vector.extract_strided_slice %316 {offsets = [0, 96], sizes = [2, 32], strides = [1, 1]} : vector<2x128xf32> to vector<2x32xf32>
    %322 = arith.mulf %319, %311 : vector<2x32xf32>
    %323 = arith.mulf %318, %320 : vector<2x32xf32>
    %324 = arith.addf %322, %323 : vector<2x32xf32>
    %325 = math.tanh %324 : vector<2x32xf32>
    %326 = arith.mulf %321, %325 : vector<2x32xf32>
    %c3_161 = arith.constant 3 : index
    %c0_162 = arith.constant 0 : index
    %c32_163 = arith.constant 32 : index
    %327 = vector.load %arg9[%c3_161, %c0_162, %c32_163] : memref<8x2x64xf32, #tpu.memory_space<vmem>>, vector<1x2x32xf32>
    %328 = vector.shape_cast %327 : vector<1x2x32xf32> to vector<2x32xf32>
    %329 = vector.shape_cast %326 : vector<2x32xf32> to vector<1x2x32xf32>
    tpu.vector_store %arg9[%c3_161, %c0_162, %c32_163], %329 {strides = array<i32>} : memref<8x2x64xf32, #tpu.memory_space<vmem>>, vector<1x2x32xf32>,
    %330 = tpu.concatenate %303, %326 in 1 : vector<2x32xf32>, vector<2x32xf32> -> vector<2x64xf32>
    %331 = tpu.concatenate %301, %324 in 1 : vector<2x32xf32>, vector<2x32xf32> -> vector<2x64xf32>
    %c0_164 = arith.constant 0 : index
    %c0_165 = arith.constant 0 : index
    %332 = vector.load %arg2[%c0_164, %c0_165] : memref<64x256xf32, #tpu.memory_space<vmem>>, vector<64x256xf32>
    %cst_166 = arith.constant dense<0.000000e+00> : vector<2x256xf32>
    %333 = tpu.matmul %330, %332, %cst_166 {dimension_numbers = #tpu.dot_dimension_numbers<[1], [0], [0], [1], [0, 0, 1, 1], [], []>} : vector<2x64xf32>, vector<64x256xf32>, vector<2x256xf32> -> vector<2x256xf32>
    %c5_167 = arith.constant 5 : index
    %c0_168 = arith.constant 0 : index
    %c0_169 = arith.constant 0 : index
    %334 = vector.load %arg8[%c5_167, %c0_168, %c0_169] : memref<8x2x256xf32, #tpu.memory_space<vmem>>, vector<1x2x128xf32>
    %335 = vector.shape_cast %334 : vector<1x2x128xf32> to vector<2x128xf32>
    %336 = vector.extract_strided_slice %333 {offsets = [0, 0], sizes = [2, 128], strides = [1, 1]} : vector<2x256xf32> to vector<2x128xf32>
    %337 = arith.addf %335, %336 : vector<2x128xf32>
    %338 = vector.extract_strided_slice %331 {offsets = [0, 0], sizes = [2, 32], strides = [1, 1]} : vector<2x64xf32> to vector<2x32xf32>
    %339 = arith.negf %337 : vector<2x128xf32>
    %340 = math.exp %339 : vector<2x128xf32>
    %cst_170 = arith.constant 1.000000e+00 : f32
    %341 = vector.broadcast %cst_170 : f32 to vector<2x128xf32>
    %342 = arith.addf %341, %340 : vector<2x128xf32>
    %343 = arith.divf %341, %342 : vector<2x128xf32>
    %344 = math.tanh %337 : vector<2x128xf32>
    %345 = vector.extract_strided_slice %343 {offsets = [0, 0], sizes = [2, 32], strides = [1, 1]} : vector<2x128xf32> to vector<2x32xf32>
    %346 = vector.extract_strided_slice %343 {offsets = [0, 32], sizes = [2, 32], strides = [1, 1]} : vector<2x128xf32> to vector<2x32xf32>
    %347 = vector.extract_strided_slice %344 {offsets = [0, 64], sizes = [2, 32], strides = [1, 1]} : vector<2x128xf32> to vector<2x32xf32>
    %348 = vector.extract_strided_slice %343 {offsets = [0, 96], sizes = [2, 32], strides = [1, 1]} : vector<2x128xf32> to vector<2x32xf32>
    %349 = arith.mulf %346, %338 : vector<2x32xf32>
    %350 = arith.mulf %345, %347 : vector<2x32xf32>
    %351 = arith.addf %349, %350 : vector<2x32xf32>
    %352 = math.tanh %351 : vector<2x32xf32>
    %353 = arith.mulf %348, %352 : vector<2x32xf32>
    %c5_171 = arith.constant 5 : index
    %c0_172 = arith.constant 0 : index
    %c0_173 = arith.constant 0 : index
    %354 = vector.load %arg9[%c5_171, %c0_172, %c0_173] : memref<8x2x64xf32, #tpu.memory_space<vmem>>, vector<1x2x32xf32>
    %355 = vector.shape_cast %354 : vector<1x2x32xf32> to vector<2x32xf32>
    %356 = vector.shape_cast %353 : vector<2x32xf32> to vector<1x2x32xf32>
    tpu.vector_store %arg9[%c5_171, %c0_172, %c0_173], %356 {strides = array<i32>} : memref<8x2x64xf32, #tpu.memory_space<vmem>>, vector<1x2x32xf32>,
    %c2_174 = arith.constant 2 : index
    %c0_175 = arith.constant 0 : index
    %c128_176 = arith.constant 128 : index
    %357 = vector.load %arg8[%c2_174, %c0_175, %c128_176] : memref<8x2x256xf32, #tpu.memory_space<vmem>>, vector<1x2x128xf32>
    %358 = vector.shape_cast %357 : vector<1x2x128xf32> to vector<2x128xf32>
    %359 = vector.extract_strided_slice %333 {offsets = [0, 128], sizes = [2, 128], strides = [1, 1]} : vector<2x256xf32> to vector<2x128xf32>
    %360 = arith.addf %358, %359 : vector<2x128xf32>
    %361 = vector.extract_strided_slice %331 {offsets = [0, 32], sizes = [2, 32], strides = [1, 1]} : vector<2x64xf32> to vector<2x32xf32>
    %362 = arith.negf %360 : vector<2x128xf32>
    %363 = math.exp %362 : vector<2x128xf32>
    %cst_177 = arith.constant 1.000000e+00 : f32
    %364 = vector.broadcast %cst_177 : f32 to vector<2x128xf32>
    %365 = arith.addf %364, %363 : vector<2x128xf32>
    %366 = arith.divf %364, %365 : vector<2x128xf32>
    %367 = math.tanh %360 : vector<2x128xf32>
    %368 = vector.extract_strided_slice %366 {offsets = [0, 0], sizes = [2, 32], strides = [1, 1]} : vector<2x128xf32> to vector<2x32xf32>
    %369 = vector.extract_strided_slice %366 {offsets = [0, 32], sizes = [2, 32], strides = [1, 1]} : vector<2x128xf32> to vector<2x32xf32>
    %370 = vector.extract_strided_slice %367 {offsets = [0, 64], sizes = [2, 32], strides = [1, 1]} : vector<2x128xf32> to vector<2x32xf32>
    %371 = vector.extract_strided_slice %366 {offsets = [0, 96], sizes = [2, 32], strides = [1, 1]} : vector<2x128xf32> to vector<2x32xf32>
    %372 = arith.mulf %369, %361 : vector<2x32xf32>
    %373 = arith.mulf %368, %370 : vector<2x32xf32>
    %374 = arith.addf %372, %373 : vector<2x32xf32>
    %375 = math.tanh %374 : vector<2x32xf32>
    %376 = arith.mulf %371, %375 : vector<2x32xf32>
    %c2_178 = arith.constant 2 : index
    %c0_179 = arith.constant 0 : index
    %c32_180 = arith.constant 32 : index
    %377 = vector.load %arg9[%c2_178, %c0_179, %c32_180] : memref<8x2x64xf32, #tpu.memory_space<vmem>>, vector<1x2x32xf32>
    %378 = vector.shape_cast %377 : vector<1x2x32xf32> to vector<2x32xf32>
    %379 = vector.shape_cast %376 : vector<2x32xf32> to vector<1x2x32xf32>
    tpu.vector_store %arg9[%c2_178, %c0_179, %c32_180], %379 {strides = array<i32>} : memref<8x2x64xf32, #tpu.memory_space<vmem>>, vector<1x2x32xf32>,
    %380 = tpu.concatenate %353, %376 in 1 : vector<2x32xf32>, vector<2x32xf32> -> vector<2x64xf32>
    %381 = tpu.concatenate %351, %374 in 1 : vector<2x32xf32>, vector<2x32xf32> -> vector<2x64xf32>
    %c0_181 = arith.constant 0 : index
    %c0_182 = arith.constant 0 : index
    %382 = vector.load %arg2[%c0_181, %c0_182] : memref<64x256xf32, #tpu.memory_space<vmem>>, vector<64x256xf32>
    %cst_183 = arith.constant dense<0.000000e+00> : vector<2x256xf32>
    %383 = tpu.matmul %380, %382, %cst_183 {dimension_numbers = #tpu.dot_dimension_numbers<[1], [0], [0], [1], [0, 0, 1, 1], [], []>} : vector<2x64xf32>, vector<64x256xf32>, vector<2x256xf32> -> vector<2x256xf32>
    %c6_184 = arith.constant 6 : index
    %c0_185 = arith.constant 0 : index
    %c0_186 = arith.constant 0 : index
    %384 = vector.load %arg8[%c6_184, %c0_185, %c0_186] : memref<8x2x256xf32, #tpu.memory_space<vmem>>, vector<1x2x128xf32>
    %385 = vector.shape_cast %384 : vector<1x2x128xf32> to vector<2x128xf32>
    %386 = vector.extract_strided_slice %383 {offsets = [0, 0], sizes = [2, 128], strides = [1, 1]} : vector<2x256xf32> to vector<2x128xf32>
    %387 = arith.addf %385, %386 : vector<2x128xf32>
    %388 = vector.extract_strided_slice %381 {offsets = [0, 0], sizes = [2, 32], strides = [1, 1]} : vector<2x64xf32> to vector<2x32xf32>
    %389 = arith.negf %387 : vector<2x128xf32>
    %390 = math.exp %389 : vector<2x128xf32>
    %cst_187 = arith.constant 1.000000e+00 : f32
    %391 = vector.broadcast %cst_187 : f32 to vector<2x128xf32>
    %392 = arith.addf %391, %390 : vector<2x128xf32>
    %393 = arith.divf %391, %392 : vector<2x128xf32>
    %394 = math.tanh %387 : vector<2x128xf32>
    %395 = vector.extract_strided_slice %393 {offsets = [0, 0], sizes = [2, 32], strides = [1, 1]} : vector<2x128xf32> to vector<2x32xf32>
    %396 = vector.extract_strided_slice %393 {offsets = [0, 32], sizes = [2, 32], strides = [1, 1]} : vector<2x128xf32> to vector<2x32xf32>
    %397 = vector.extract_strided_slice %394 {offsets = [0, 64], sizes = [2, 32], strides = [1, 1]} : vector<2x128xf32> to vector<2x32xf32>
    %398 = vector.extract_strided_slice %393 {offsets = [0, 96], sizes = [2, 32], strides = [1, 1]} : vector<2x128xf32> to vector<2x32xf32>
    %399 = arith.mulf %396, %388 : vector<2x32xf32>
    %400 = arith.mulf %395, %397 : vector<2x32xf32>
    %401 = arith.addf %399, %400 : vector<2x32xf32>
    %402 = math.tanh %401 : vector<2x32xf32>
    %403 = arith.mulf %398, %402 : vector<2x32xf32>
    %c6_188 = arith.constant 6 : index
    %c0_189 = arith.constant 0 : index
    %c0_190 = arith.constant 0 : index
    %404 = vector.load %arg9[%c6_188, %c0_189, %c0_190] : memref<8x2x64xf32, #tpu.memory_space<vmem>>, vector<1x2x32xf32>
    %405 = vector.shape_cast %404 : vector<1x2x32xf32> to vector<2x32xf32>
    %406 = vector.shape_cast %403 : vector<2x32xf32> to vector<1x2x32xf32>
    tpu.vector_store %arg9[%c6_188, %c0_189, %c0_190], %406 {strides = array<i32>} : memref<8x2x64xf32, #tpu.memory_space<vmem>>, vector<1x2x32xf32>,
    %c1_191 = arith.constant 1 : index
    %c0_192 = arith.constant 0 : index
    %c128_193 = arith.constant 128 : index
    %407 = vector.load %arg8[%c1_191, %c0_192, %c128_193] : memref<8x2x256xf32, #tpu.memory_space<vmem>>, vector<1x2x128xf32>
    %408 = vector.shape_cast %407 : vector<1x2x128xf32> to vector<2x128xf32>
    %409 = vector.extract_strided_slice %383 {offsets = [0, 128], sizes = [2, 128], strides = [1, 1]} : vector<2x256xf32> to vector<2x128xf32>
    %410 = arith.addf %408, %409 : vector<2x128xf32>
    %411 = vector.extract_strided_slice %381 {offsets = [0, 32], sizes = [2, 32], strides = [1, 1]} : vector<2x64xf32> to vector<2x32xf32>
    %412 = arith.negf %410 : vector<2x128xf32>
    %413 = math.exp %412 : vector<2x128xf32>
    %cst_194 = arith.constant 1.000000e+00 : f32
    %414 = vector.broadcast %cst_194 : f32 to vector<2x128xf32>
    %415 = arith.addf %414, %413 : vector<2x128xf32>
    %416 = arith.divf %414, %415 : vector<2x128xf32>
    %417 = math.tanh %410 : vector<2x128xf32>
    %418 = vector.extract_strided_slice %416 {offsets = [0, 0], sizes = [2, 32], strides = [1, 1]} : vector<2x128xf32> to vector<2x32xf32>
    %419 = vector.extract_strided_slice %416 {offsets = [0, 32], sizes = [2, 32], strides = [1, 1]} : vector<2x128xf32> to vector<2x32xf32>
    %420 = vector.extract_strided_slice %417 {offsets = [0, 64], sizes = [2, 32], strides = [1, 1]} : vector<2x128xf32> to vector<2x32xf32>
    %421 = vector.extract_strided_slice %416 {offsets = [0, 96], sizes = [2, 32], strides = [1, 1]} : vector<2x128xf32> to vector<2x32xf32>
    %422 = arith.mulf %419, %411 : vector<2x32xf32>
    %423 = arith.mulf %418, %420 : vector<2x32xf32>
    %424 = arith.addf %422, %423 : vector<2x32xf32>
    %425 = math.tanh %424 : vector<2x32xf32>
    %426 = arith.mulf %421, %425 : vector<2x32xf32>
    %c1_195 = arith.constant 1 : index
    %c0_196 = arith.constant 0 : index
    %c32_197 = arith.constant 32 : index
    %427 = vector.load %arg9[%c1_195, %c0_196, %c32_197] : memref<8x2x64xf32, #tpu.memory_space<vmem>>, vector<1x2x32xf32>
    %428 = vector.shape_cast %427 : vector<1x2x32xf32> to vector<2x32xf32>
    %429 = vector.shape_cast %426 : vector<2x32xf32> to vector<1x2x32xf32>
    tpu.vector_store %arg9[%c1_195, %c0_196, %c32_197], %429 {strides = array<i32>} : memref<8x2x64xf32, #tpu.memory_space<vmem>>, vector<1x2x32xf32>,
    %430 = tpu.concatenate %403, %426 in 1 : vector<2x32xf32>, vector<2x32xf32> -> vector<2x64xf32>
    %431 = tpu.concatenate %401, %424 in 1 : vector<2x32xf32>, vector<2x32xf32> -> vector<2x64xf32>
    %c0_198 = arith.constant 0 : index
    %c0_199 = arith.constant 0 : index
    %432 = vector.load %arg2[%c0_198, %c0_199] : memref<64x256xf32, #tpu.memory_space<vmem>>, vector<64x256xf32>
    %cst_200 = arith.constant dense<0.000000e+00> : vector<2x256xf32>
    %433 = tpu.matmul %430, %432, %cst_200 {dimension_numbers = #tpu.dot_dimension_numbers<[1], [0], [0], [1], [0, 0, 1, 1], [], []>} : vector<2x64xf32>, vector<64x256xf32>, vector<2x256xf32> -> vector<2x256xf32>
    %c7_201 = arith.constant 7 : index
    %c0_202 = arith.constant 0 : index
    %c0_203 = arith.constant 0 : index
    %434 = vector.load %arg8[%c7_201, %c0_202, %c0_203] : memref<8x2x256xf32, #tpu.memory_space<vmem>>, vector<1x2x128xf32>
    %435 = vector.shape_cast %434 : vector<1x2x128xf32> to vector<2x128xf32>
    %436 = vector.extract_strided_slice %433 {offsets = [0, 0], sizes = [2, 128], strides = [1, 1]} : vector<2x256xf32> to vector<2x128xf32>
    %437 = arith.addf %435, %436 : vector<2x128xf32>
    %438 = vector.extract_strided_slice %431 {offsets = [0, 0], sizes = [2, 32], strides = [1, 1]} : vector<2x64xf32> to vector<2x32xf32>
    %439 = arith.negf %437 : vector<2x128xf32>
    %440 = math.exp %439 : vector<2x128xf32>
    %cst_204 = arith.constant 1.000000e+00 : f32
    %441 = vector.broadcast %cst_204 : f32 to vector<2x128xf32>
    %442 = arith.addf %441, %440 : vector<2x128xf32>
    %443 = arith.divf %441, %442 : vector<2x128xf32>
    %444 = math.tanh %437 : vector<2x128xf32>
    %445 = vector.extract_strided_slice %443 {offsets = [0, 0], sizes = [2, 32], strides = [1, 1]} : vector<2x128xf32> to vector<2x32xf32>
    %446 = vector.extract_strided_slice %443 {offsets = [0, 32], sizes = [2, 32], strides = [1, 1]} : vector<2x128xf32> to vector<2x32xf32>
    %447 = vector.extract_strided_slice %444 {offsets = [0, 64], sizes = [2, 32], strides = [1, 1]} : vector<2x128xf32> to vector<2x32xf32>
    %448 = vector.extract_strided_slice %443 {offsets = [0, 96], sizes = [2, 32], strides = [1, 1]} : vector<2x128xf32> to vector<2x32xf32>
    %449 = arith.mulf %446, %438 : vector<2x32xf32>
    %450 = arith.mulf %445, %447 : vector<2x32xf32>
    %451 = arith.addf %449, %450 : vector<2x32xf32>
    %452 = math.tanh %451 : vector<2x32xf32>
    %453 = arith.mulf %448, %452 : vector<2x32xf32>
    %c7_205 = arith.constant 7 : index
    %c0_206 = arith.constant 0 : index
    %c0_207 = arith.constant 0 : index
    %454 = vector.load %arg9[%c7_205, %c0_206, %c0_207] : memref<8x2x64xf32, #tpu.memory_space<vmem>>, vector<1x2x32xf32>
    %455 = vector.shape_cast %454 : vector<1x2x32xf32> to vector<2x32xf32>
    %456 = vector.shape_cast %453 : vector<2x32xf32> to vector<1x2x32xf32>
    tpu.vector_store %arg9[%c7_205, %c0_206, %c0_207], %456 {strides = array<i32>} : memref<8x2x64xf32, #tpu.memory_space<vmem>>, vector<1x2x32xf32>,
    %c0_208 = arith.constant 0 : index
    %c0_209 = arith.constant 0 : index
    %c128_210 = arith.constant 128 : index
    %457 = vector.load %arg8[%c0_208, %c0_209, %c128_210] : memref<8x2x256xf32, #tpu.memory_space<vmem>>, vector<1x2x128xf32>
    %458 = vector.shape_cast %457 : vector<1x2x128xf32> to vector<2x128xf32>
    %459 = vector.extract_strided_slice %433 {offsets = [0, 128], sizes = [2, 128], strides = [1, 1]} : vector<2x256xf32> to vector<2x128xf32>
    %460 = arith.addf %458, %459 : vector<2x128xf32>
    %461 = vector.extract_strided_slice %431 {offsets = [0, 32], sizes = [2, 32], strides = [1, 1]} : vector<2x64xf32> to vector<2x32xf32>
    %462 = arith.negf %460 : vector<2x128xf32>
    %463 = math.exp %462 : vector<2x128xf32>
    %cst_211 = arith.constant 1.000000e+00 : f32
    %464 = vector.broadcast %cst_211 : f32 to vector<2x128xf32>
    %465 = arith.addf %464, %463 : vector<2x128xf32>
    %466 = arith.divf %464, %465 : vector<2x128xf32>
    %467 = math.tanh %460 : vector<2x128xf32>
    %468 = vector.extract_strided_slice %466 {offsets = [0, 0], sizes = [2, 32], strides = [1, 1]} : vector<2x128xf32> to vector<2x32xf32>
    %469 = vector.extract_strided_slice %466 {offsets = [0, 32], sizes = [2, 32], strides = [1, 1]} : vector<2x128xf32> to vector<2x32xf32>
    %470 = vector.extract_strided_slice %467 {offsets = [0, 64], sizes = [2, 32], strides = [1, 1]} : vector<2x128xf32> to vector<2x32xf32>
    %471 = vector.extract_strided_slice %466 {offsets = [0, 96], sizes = [2, 32], strides = [1, 1]} : vector<2x128xf32> to vector<2x32xf32>
    %472 = arith.mulf %469, %461 : vector<2x32xf32>
    %473 = arith.mulf %468, %470 : vector<2x32xf32>
    %474 = arith.addf %472, %473 : vector<2x32xf32>
    %475 = math.tanh %474 : vector<2x32xf32>
    %476 = arith.mulf %471, %475 : vector<2x32xf32>
    %c0_212 = arith.constant 0 : index
    %c0_213 = arith.constant 0 : index
    %c32_214 = arith.constant 32 : index
    %477 = vector.load %arg9[%c0_212, %c0_213, %c32_214] : memref<8x2x64xf32, #tpu.memory_space<vmem>>, vector<1x2x32xf32>
    %478 = vector.shape_cast %477 : vector<1x2x32xf32> to vector<2x32xf32>
    %479 = vector.shape_cast %476 : vector<2x32xf32> to vector<1x2x32xf32>
    tpu.vector_store %arg9[%c0_212, %c0_213, %c32_214], %479 {strides = array<i32>} : memref<8x2x64xf32, #tpu.memory_space<vmem>>, vector<1x2x32xf32>,
    %c0_215 = arith.constant 0 : index
    %c0_216 = arith.constant 0 : index
    %c0_217 = arith.constant 0 : index
    %480 = vector.load %arg9[%c0_215, %c0_216, %c0_217] : memref<8x2x64xf32, #tpu.memory_space<vmem>>, vector<1x2x64xf32>
    %481 = vector.shape_cast %480 : vector<1x2x64xf32> to vector<2x64xf32>
    %c0_218 = arith.constant 0 : index
    %c0_219 = arith.constant 0 : index
    %482 = vector.load %arg4[%c0_218, %c0_219] : memref<64x256xf32, #tpu.memory_space<vmem>>, vector<64x256xf32>
    %cst_220 = arith.constant dense<0.000000e+00> : vector<2x256xf32>
    %483 = tpu.matmul %481, %482, %cst_220 {dimension_numbers = #tpu.dot_dimension_numbers<[1], [0], [0], [1], [0, 0, 1, 1], [], []>} : vector<2x64xf32>, vector<64x256xf32>, vector<2x256xf32> -> vector<2x256xf32>
    %c0_221 = arith.constant 0 : index
    %c0_222 = arith.constant 0 : index
    %484 = vector.load %arg6[%c0_221, %c0_222] : memref<1x256xf32, #tpu.memory_space<vmem>>, vector<1x256xf32>
    %485 = vector.broadcast %484 : vector<1x256xf32> to vector<2x256xf32>
    %486 = arith.addf %483, %485 : vector<2x256xf32>
    %c0_223 = arith.constant 0 : index
    %c0_224 = arith.constant 0 : index
    %c0_225 = arith.constant 0 : index
    %487 = vector.load %arg8[%c0_223, %c0_224, %c0_225] : memref<8x2x256xf32, #tpu.memory_space<vmem>>, vector<1x2x256xf32>
    %488 = vector.shape_cast %487 : vector<1x2x256xf32> to vector<2x256xf32>
    %489 = vector.shape_cast %486 : vector<2x256xf32> to vector<1x2x256xf32>
    tpu.vector_store %arg8[%c0_223, %c0_224, %c0_225], %489 {strides = array<i32>} : memref<8x2x256xf32, #tpu.memory_space<vmem>>, vector<1x2x256xf32>,
    %c1_226 = arith.constant 1 : index
    %c0_227 = arith.constant 0 : index
    %c0_228 = arith.constant 0 : index
    %490 = vector.load %arg9[%c1_226, %c0_227, %c0_228] : memref<8x2x64xf32, #tpu.memory_space<vmem>>, vector<1x2x64xf32>
    %491 = vector.shape_cast %490 : vector<1x2x64xf32> to vector<2x64xf32>
    %c0_229 = arith.constant 0 : index
    %c0_230 = arith.constant 0 : index
    %492 = vector.load %arg4[%c0_229, %c0_230] : memref<64x256xf32, #tpu.memory_space<vmem>>, vector<64x256xf32>
    %cst_231 = arith.constant dense<0.000000e+00> : vector<2x256xf32>
    %493 = tpu.matmul %491, %492, %cst_231 {dimension_numbers = #tpu.dot_dimension_numbers<[1], [0], [0], [1], [0, 0, 1, 1], [], []>} : vector<2x64xf32>, vector<64x256xf32>, vector<2x256xf32> -> vector<2x256xf32>
    %c0_232 = arith.constant 0 : index
    %c0_233 = arith.constant 0 : index
    %494 = vector.load %arg6[%c0_232, %c0_233] : memref<1x256xf32, #tpu.memory_space<vmem>>, vector<1x256xf32>
    %495 = vector.broadcast %494 : vector<1x256xf32> to vector<2x256xf32>
    %496 = arith.addf %493, %495 : vector<2x256xf32>
    %c1_234 = arith.constant 1 : index
    %c0_235 = arith.constant 0 : index
    %c0_236 = arith.constant 0 : index
    %497 = vector.load %arg8[%c1_234, %c0_235, %c0_236] : memref<8x2x256xf32, #tpu.memory_space<vmem>>, vector<1x2x256xf32>
    %498 = vector.shape_cast %497 : vector<1x2x256xf32> to vector<2x256xf32>
    %499 = vector.shape_cast %496 : vector<2x256xf32> to vector<1x2x256xf32>
    tpu.vector_store %arg8[%c1_234, %c0_235, %c0_236], %499 {strides = array<i32>} : memref<8x2x256xf32, #tpu.memory_space<vmem>>, vector<1x2x256xf32>,
    %c2_237 = arith.constant 2 : index
    %c0_238 = arith.constant 0 : index
    %c0_239 = arith.constant 0 : index
    %500 = vector.load %arg9[%c2_237, %c0_238, %c0_239] : memref<8x2x64xf32, #tpu.memory_space<vmem>>, vector<1x2x64xf32>
    %501 = vector.shape_cast %500 : vector<1x2x64xf32> to vector<2x64xf32>
    %c0_240 = arith.constant 0 : index
    %c0_241 = arith.constant 0 : index
    %502 = vector.load %arg4[%c0_240, %c0_241] : memref<64x256xf32, #tpu.memory_space<vmem>>, vector<64x256xf32>
    %cst_242 = arith.constant dense<0.000000e+00> : vector<2x256xf32>
    %503 = tpu.matmul %501, %502, %cst_242 {dimension_numbers = #tpu.dot_dimension_numbers<[1], [0], [0], [1], [0, 0, 1, 1], [], []>} : vector<2x64xf32>, vector<64x256xf32>, vector<2x256xf32> -> vector<2x256xf32>
    %c0_243 = arith.constant 0 : index
    %c0_244 = arith.constant 0 : index
    %504 = vector.load %arg6[%c0_243, %c0_244] : memref<1x256xf32, #tpu.memory_space<vmem>>, vector<1x256xf32>
    %505 = vector.broadcast %504 : vector<1x256xf32> to vector<2x256xf32>
    %506 = arith.addf %503, %505 : vector<2x256xf32>
    %c2_245 = arith.constant 2 : index
    %c0_246 = arith.constant 0 : index
    %c0_247 = arith.constant 0 : index
    %507 = vector.load %arg8[%c2_245, %c0_246, %c0_247] : memref<8x2x256xf32, #tpu.memory_space<vmem>>, vector<1x2x256xf32>
    %508 = vector.shape_cast %507 : vector<1x2x256xf32> to vector<2x256xf32>
    %509 = vector.shape_cast %506 : vector<2x256xf32> to vector<1x2x256xf32>
    tpu.vector_store %arg8[%c2_245, %c0_246, %c0_247], %509 {strides = array<i32>} : memref<8x2x256xf32, #tpu.memory_space<vmem>>, vector<1x2x256xf32>,
    %c3_248 = arith.constant 3 : index
    %c0_249 = arith.constant 0 : index
    %c0_250 = arith.constant 0 : index
    %510 = vector.load %arg9[%c3_248, %c0_249, %c0_250] : memref<8x2x64xf32, #tpu.memory_space<vmem>>, vector<1x2x64xf32>
    %511 = vector.shape_cast %510 : vector<1x2x64xf32> to vector<2x64xf32>
    %c0_251 = arith.constant 0 : index
    %c0_252 = arith.constant 0 : index
    %512 = vector.load %arg4[%c0_251, %c0_252] : memref<64x256xf32, #tpu.memory_space<vmem>>, vector<64x256xf32>
    %cst_253 = arith.constant dense<0.000000e+00> : vector<2x256xf32>
    %513 = tpu.matmul %511, %512, %cst_253 {dimension_numbers = #tpu.dot_dimension_numbers<[1], [0], [0], [1], [0, 0, 1, 1], [], []>} : vector<2x64xf32>, vector<64x256xf32>, vector<2x256xf32> -> vector<2x256xf32>
    %c0_254 = arith.constant 0 : index
    %c0_255 = arith.constant 0 : index
    %514 = vector.load %arg6[%c0_254, %c0_255] : memref<1x256xf32, #tpu.memory_space<vmem>>, vector<1x256xf32>
    %515 = vector.broadcast %514 : vector<1x256xf32> to vector<2x256xf32>
    %516 = arith.addf %513, %515 : vector<2x256xf32>
    %c3_256 = arith.constant 3 : index
    %c0_257 = arith.constant 0 : index
    %c0_258 = arith.constant 0 : index
    %517 = vector.load %arg8[%c3_256, %c0_257, %c0_258] : memref<8x2x256xf32, #tpu.memory_space<vmem>>, vector<1x2x256xf32>
    %518 = vector.shape_cast %517 : vector<1x2x256xf32> to vector<2x256xf32>
    %519 = vector.shape_cast %516 : vector<2x256xf32> to vector<1x2x256xf32>
    tpu.vector_store %arg8[%c3_256, %c0_257, %c0_258], %519 {strides = array<i32>} : memref<8x2x256xf32, #tpu.memory_space<vmem>>, vector<1x2x256xf32>,
    %c4_259 = arith.constant 4 : index
    %c0_260 = arith.constant 0 : index
    %c0_261 = arith.constant 0 : index
    %520 = vector.load %arg9[%c4_259, %c0_260, %c0_261] : memref<8x2x64xf32, #tpu.memory_space<vmem>>, vector<1x2x64xf32>
    %521 = vector.shape_cast %520 : vector<1x2x64xf32> to vector<2x64xf32>
    %c0_262 = arith.constant 0 : index
    %c0_263 = arith.constant 0 : index
    %522 = vector.load %arg4[%c0_262, %c0_263] : memref<64x256xf32, #tpu.memory_space<vmem>>, vector<64x256xf32>
    %cst_264 = arith.constant dense<0.000000e+00> : vector<2x256xf32>
    %523 = tpu.matmul %521, %522, %cst_264 {dimension_numbers = #tpu.dot_dimension_numbers<[1], [0], [0], [1], [0, 0, 1, 1], [], []>} : vector<2x64xf32>, vector<64x256xf32>, vector<2x256xf32> -> vector<2x256xf32>
    %c0_265 = arith.constant 0 : index
    %c0_266 = arith.constant 0 : index
    %524 = vector.load %arg6[%c0_265, %c0_266] : memref<1x256xf32, #tpu.memory_space<vmem>>, vector<1x256xf32>
    %525 = vector.broadcast %524 : vector<1x256xf32> to vector<2x256xf32>
    %526 = arith.addf %523, %525 : vector<2x256xf32>
    %c4_267 = arith.constant 4 : index
    %c0_268 = arith.constant 0 : index
    %c0_269 = arith.constant 0 : index
    %527 = vector.load %arg8[%c4_267, %c0_268, %c0_269] : memref<8x2x256xf32, #tpu.memory_space<vmem>>, vector<1x2x256xf32>
    %528 = vector.shape_cast %527 : vector<1x2x256xf32> to vector<2x256xf32>
    %529 = vector.shape_cast %526 : vector<2x256xf32> to vector<1x2x256xf32>
    tpu.vector_store %arg8[%c4_267, %c0_268, %c0_269], %529 {strides = array<i32>} : memref<8x2x256xf32, #tpu.memory_space<vmem>>, vector<1x2x256xf32>,
    %c5_270 = arith.constant 5 : index
    %c0_271 = arith.constant 0 : index
    %c0_272 = arith.constant 0 : index
    %530 = vector.load %arg9[%c5_270, %c0_271, %c0_272] : memref<8x2x64xf32, #tpu.memory_space<vmem>>, vector<1x2x64xf32>
    %531 = vector.shape_cast %530 : vector<1x2x64xf32> to vector<2x64xf32>
    %c0_273 = arith.constant 0 : index
    %c0_274 = arith.constant 0 : index
    %532 = vector.load %arg4[%c0_273, %c0_274] : memref<64x256xf32, #tpu.memory_space<vmem>>, vector<64x256xf32>
    %cst_275 = arith.constant dense<0.000000e+00> : vector<2x256xf32>
    %533 = tpu.matmul %531, %532, %cst_275 {dimension_numbers = #tpu.dot_dimension_numbers<[1], [0], [0], [1], [0, 0, 1, 1], [], []>} : vector<2x64xf32>, vector<64x256xf32>, vector<2x256xf32> -> vector<2x256xf32>
    %c0_276 = arith.constant 0 : index
    %c0_277 = arith.constant 0 : index
    %534 = vector.load %arg6[%c0_276, %c0_277] : memref<1x256xf32, #tpu.memory_space<vmem>>, vector<1x256xf32>
    %535 = vector.broadcast %534 : vector<1x256xf32> to vector<2x256xf32>
    %536 = arith.addf %533, %535 : vector<2x256xf32>
    %c5_278 = arith.constant 5 : index
    %c0_279 = arith.constant 0 : index
    %c0_280 = arith.constant 0 : index
    %537 = vector.load %arg8[%c5_278, %c0_279, %c0_280] : memref<8x2x256xf32, #tpu.memory_space<vmem>>, vector<1x2x256xf32>
    %538 = vector.shape_cast %537 : vector<1x2x256xf32> to vector<2x256xf32>
    %539 = vector.shape_cast %536 : vector<2x256xf32> to vector<1x2x256xf32>
    tpu.vector_store %arg8[%c5_278, %c0_279, %c0_280], %539 {strides = array<i32>} : memref<8x2x256xf32, #tpu.memory_space<vmem>>, vector<1x2x256xf32>,
    %c6_281 = arith.constant 6 : index
    %c0_282 = arith.constant 0 : index
    %c0_283 = arith.constant 0 : index
    %540 = vector.load %arg9[%c6_281, %c0_282, %c0_283] : memref<8x2x64xf32, #tpu.memory_space<vmem>>, vector<1x2x64xf32>
    %541 = vector.shape_cast %540 : vector<1x2x64xf32> to vector<2x64xf32>
    %c0_284 = arith.constant 0 : index
    %c0_285 = arith.constant 0 : index
    %542 = vector.load %arg4[%c0_284, %c0_285] : memref<64x256xf32, #tpu.memory_space<vmem>>, vector<64x256xf32>
    %cst_286 = arith.constant dense<0.000000e+00> : vector<2x256xf32>
    %543 = tpu.matmul %541, %542, %cst_286 {dimension_numbers = #tpu.dot_dimension_numbers<[1], [0], [0], [1], [0, 0, 1, 1], [], []>} : vector<2x64xf32>, vector<64x256xf32>, vector<2x256xf32> -> vector<2x256xf32>
    %c0_287 = arith.constant 0 : index
    %c0_288 = arith.constant 0 : index
    %544 = vector.load %arg6[%c0_287, %c0_288] : memref<1x256xf32, #tpu.memory_space<vmem>>, vector<1x256xf32>
    %545 = vector.broadcast %544 : vector<1x256xf32> to vector<2x256xf32>
    %546 = arith.addf %543, %545 : vector<2x256xf32>
    %c6_289 = arith.constant 6 : index
    %c0_290 = arith.constant 0 : index
    %c0_291 = arith.constant 0 : index
    %547 = vector.load %arg8[%c6_289, %c0_290, %c0_291] : memref<8x2x256xf32, #tpu.memory_space<vmem>>, vector<1x2x256xf32>
    %548 = vector.shape_cast %547 : vector<1x2x256xf32> to vector<2x256xf32>
    %549 = vector.shape_cast %546 : vector<2x256xf32> to vector<1x2x256xf32>
    tpu.vector_store %arg8[%c6_289, %c0_290, %c0_291], %549 {strides = array<i32>} : memref<8x2x256xf32, #tpu.memory_space<vmem>>, vector<1x2x256xf32>,
    %c7_292 = arith.constant 7 : index
    %c0_293 = arith.constant 0 : index
    %c0_294 = arith.constant 0 : index
    %550 = vector.load %arg9[%c7_292, %c0_293, %c0_294] : memref<8x2x64xf32, #tpu.memory_space<vmem>>, vector<1x2x64xf32>
    %551 = vector.shape_cast %550 : vector<1x2x64xf32> to vector<2x64xf32>
    %c0_295 = arith.constant 0 : index
    %c0_296 = arith.constant 0 : index
    %552 = vector.load %arg4[%c0_295, %c0_296] : memref<64x256xf32, #tpu.memory_space<vmem>>, vector<64x256xf32>
    %cst_297 = arith.constant dense<0.000000e+00> : vector<2x256xf32>
    %553 = tpu.matmul %551, %552, %cst_297 {dimension_numbers = #tpu.dot_dimension_numbers<[1], [0], [0], [1], [0, 0, 1, 1], [], []>} : vector<2x64xf32>, vector<64x256xf32>, vector<2x256xf32> -> vector<2x256xf32>
    %c0_298 = arith.constant 0 : index
    %c0_299 = arith.constant 0 : index
    %554 = vector.load %arg6[%c0_298, %c0_299] : memref<1x256xf32, #tpu.memory_space<vmem>>, vector<1x256xf32>
    %555 = vector.broadcast %554 : vector<1x256xf32> to vector<2x256xf32>
    %556 = arith.addf %553, %555 : vector<2x256xf32>
    %c7_300 = arith.constant 7 : index
    %c0_301 = arith.constant 0 : index
    %c0_302 = arith.constant 0 : index
    %557 = vector.load %arg8[%c7_300, %c0_301, %c0_302] : memref<8x2x256xf32, #tpu.memory_space<vmem>>, vector<1x2x256xf32>
    %558 = vector.shape_cast %557 : vector<1x2x256xf32> to vector<2x256xf32>
    %559 = vector.shape_cast %556 : vector<2x256xf32> to vector<1x2x256xf32>
    tpu.vector_store %arg8[%c7_300, %c0_301, %c0_302], %559 {strides = array<i32>} : memref<8x2x256xf32, #tpu.memory_space<vmem>>, vector<1x2x256xf32>,
    %cst_303 = arith.constant 0.000000e+00 : f32
    %560 = vector.broadcast %cst_303 : f32 to vector<2x64xf32>
    %cst_304 = arith.constant 0.000000e+00 : f32
    %561 = vector.broadcast %cst_304 : f32 to vector<2x64xf32>
    %c0_305 = arith.constant 0 : index
    %c0_306 = arith.constant 0 : index
    %562 = vector.load %arg5[%c0_305, %c0_306] : memref<64x256xf32, #tpu.memory_space<vmem>>, vector<64x256xf32>
    %cst_307 = arith.constant dense<0.000000e+00> : vector<2x256xf32>
    %563 = tpu.matmul %560, %562, %cst_307 {dimension_numbers = #tpu.dot_dimension_numbers<[1], [0], [0], [1], [0, 0, 1, 1], [], []>} : vector<2x64xf32>, vector<64x256xf32>, vector<2x256xf32> -> vector<2x256xf32>
    %c0_308 = arith.constant 0 : index
    %c0_309 = arith.constant 0 : index
    %c0_310 = arith.constant 0 : index
    %564 = vector.load %arg8[%c0_308, %c0_309, %c0_310] : memref<8x2x256xf32, #tpu.memory_space<vmem>>, vector<1x2x128xf32>
    %565 = vector.shape_cast %564 : vector<1x2x128xf32> to vector<2x128xf32>
    %566 = vector.extract_strided_slice %563 {offsets = [0, 0], sizes = [2, 128], strides = [1, 1]} : vector<2x256xf32> to vector<2x128xf32>
    %567 = arith.addf %565, %566 : vector<2x128xf32>
    %568 = vector.extract_strided_slice %561 {offsets = [0, 0], sizes = [2, 32], strides = [1, 1]} : vector<2x64xf32> to vector<2x32xf32>
    %569 = arith.negf %567 : vector<2x128xf32>
    %570 = math.exp %569 : vector<2x128xf32>
    %cst_311 = arith.constant 1.000000e+00 : f32
    %571 = vector.broadcast %cst_311 : f32 to vector<2x128xf32>
    %572 = arith.addf %571, %570 : vector<2x128xf32>
    %573 = arith.divf %571, %572 : vector<2x128xf32>
    %574 = math.tanh %567 : vector<2x128xf32>
    %575 = vector.extract_strided_slice %573 {offsets = [0, 0], sizes = [2, 32], strides = [1, 1]} : vector<2x128xf32> to vector<2x32xf32>
    %576 = vector.extract_strided_slice %573 {offsets = [0, 32], sizes = [2, 32], strides = [1, 1]} : vector<2x128xf32> to vector<2x32xf32>
    %577 = vector.extract_strided_slice %574 {offsets = [0, 64], sizes = [2, 32], strides = [1, 1]} : vector<2x128xf32> to vector<2x32xf32>
    %578 = vector.extract_strided_slice %573 {offsets = [0, 96], sizes = [2, 32], strides = [1, 1]} : vector<2x128xf32> to vector<2x32xf32>
    %579 = arith.mulf %576, %568 : vector<2x32xf32>
    %580 = arith.mulf %575, %577 : vector<2x32xf32>
    %581 = arith.addf %579, %580 : vector<2x32xf32>
    %582 = math.tanh %581 : vector<2x32xf32>
    %583 = arith.mulf %578, %582 : vector<2x32xf32>
    %c0_312 = arith.constant 0 : index
    %c0_313 = arith.constant 0 : index
    %c0_314 = arith.constant 0 : index
    %584 = vector.load %arg7[%c0_312, %c0_313, %c0_314] : memref<8x2x64xf32, #tpu.memory_space<vmem>>, vector<1x2x32xf32>
    %585 = vector.shape_cast %584 : vector<1x2x32xf32> to vector<2x32xf32>
    %586 = vector.shape_cast %583 : vector<2x32xf32> to vector<1x2x32xf32>
    tpu.vector_store %arg7[%c0_312, %c0_313, %c0_314], %586 {strides = array<i32>} : memref<8x2x64xf32, #tpu.memory_space<vmem>>, vector<1x2x32xf32>,
    %c7_315 = arith.constant 7 : index
    %c0_316 = arith.constant 0 : index
    %c128_317 = arith.constant 128 : index
    %587 = vector.load %arg8[%c7_315, %c0_316, %c128_317] : memref<8x2x256xf32, #tpu.memory_space<vmem>>, vector<1x2x128xf32>
    %588 = vector.shape_cast %587 : vector<1x2x128xf32> to vector<2x128xf32>
    %589 = vector.extract_strided_slice %563 {offsets = [0, 128], sizes = [2, 128], strides = [1, 1]} : vector<2x256xf32> to vector<2x128xf32>
    %590 = arith.addf %588, %589 : vector<2x128xf32>
    %591 = vector.extract_strided_slice %561 {offsets = [0, 32], sizes = [2, 32], strides = [1, 1]} : vector<2x64xf32> to vector<2x32xf32>
    %592 = arith.negf %590 : vector<2x128xf32>
    %593 = math.exp %592 : vector<2x128xf32>
    %cst_318 = arith.constant 1.000000e+00 : f32
    %594 = vector.broadcast %cst_318 : f32 to vector<2x128xf32>
    %595 = arith.addf %594, %593 : vector<2x128xf32>
    %596 = arith.divf %594, %595 : vector<2x128xf32>
    %597 = math.tanh %590 : vector<2x128xf32>
    %598 = vector.extract_strided_slice %596 {offsets = [0, 0], sizes = [2, 32], strides = [1, 1]} : vector<2x128xf32> to vector<2x32xf32>
    %599 = vector.extract_strided_slice %596 {offsets = [0, 32], sizes = [2, 32], strides = [1, 1]} : vector<2x128xf32> to vector<2x32xf32>
    %600 = vector.extract_strided_slice %597 {offsets = [0, 64], sizes = [2, 32], strides = [1, 1]} : vector<2x128xf32> to vector<2x32xf32>
    %601 = vector.extract_strided_slice %596 {offsets = [0, 96], sizes = [2, 32], strides = [1, 1]} : vector<2x128xf32> to vector<2x32xf32>
    %602 = arith.mulf %599, %591 : vector<2x32xf32>
    %603 = arith.mulf %598, %600 : vector<2x32xf32>
    %604 = arith.addf %602, %603 : vector<2x32xf32>
    %605 = math.tanh %604 : vector<2x32xf32>
    %606 = arith.mulf %601, %605 : vector<2x32xf32>
    %c7_319 = arith.constant 7 : index
    %c0_320 = arith.constant 0 : index
    %c32_321 = arith.constant 32 : index
    %607 = vector.load %arg7[%c7_319, %c0_320, %c32_321] : memref<8x2x64xf32, #tpu.memory_space<vmem>>, vector<1x2x32xf32>
    %608 = vector.shape_cast %607 : vector<1x2x32xf32> to vector<2x32xf32>
    %609 = vector.shape_cast %606 : vector<2x32xf32> to vector<1x2x32xf32>
    tpu.vector_store %arg7[%c7_319, %c0_320, %c32_321], %609 {strides = array<i32>} : memref<8x2x64xf32, #tpu.memory_space<vmem>>, vector<1x2x32xf32>,
    %610 = tpu.concatenate %583, %606 in 1 : vector<2x32xf32>, vector<2x32xf32> -> vector<2x64xf32>
    %611 = tpu.concatenate %581, %604 in 1 : vector<2x32xf32>, vector<2x32xf32> -> vector<2x64xf32>
    %c0_322 = arith.constant 0 : index
    %c0_323 = arith.constant 0 : index
    %612 = vector.load %arg5[%c0_322, %c0_323] : memref<64x256xf32, #tpu.memory_space<vmem>>, vector<64x256xf32>
    %cst_324 = arith.constant dense<0.000000e+00> : vector<2x256xf32>
    %613 = tpu.matmul %610, %612, %cst_324 {dimension_numbers = #tpu.dot_dimension_numbers<[1], [0], [0], [1], [0, 0, 1, 1], [], []>} : vector<2x64xf32>, vector<64x256xf32>, vector<2x256xf32> -> vector<2x256xf32>
    %c1_325 = arith.constant 1 : index
    %c0_326 = arith.constant 0 : index
    %c0_327 = arith.constant 0 : index
    %614 = vector.load %arg8[%c1_325, %c0_326, %c0_327] : memref<8x2x256xf32, #tpu.memory_space<vmem>>, vector<1x2x128xf32>
    %615 = vector.shape_cast %614 : vector<1x2x128xf32> to vector<2x128xf32>
    %616 = vector.extract_strided_slice %613 {offsets = [0, 0], sizes = [2, 128], strides = [1, 1]} : vector<2x256xf32> to vector<2x128xf32>
    %617 = arith.addf %615, %616 : vector<2x128xf32>
    %618 = vector.extract_strided_slice %611 {offsets = [0, 0], sizes = [2, 32], strides = [1, 1]} : vector<2x64xf32> to vector<2x32xf32>
    %619 = arith.negf %617 : vector<2x128xf32>
    %620 = math.exp %619 : vector<2x128xf32>
    %cst_328 = arith.constant 1.000000e+00 : f32
    %621 = vector.broadcast %cst_328 : f32 to vector<2x128xf32>
    %622 = arith.addf %621, %620 : vector<2x128xf32>
    %623 = arith.divf %621, %622 : vector<2x128xf32>
    %624 = math.tanh %617 : vector<2x128xf32>
    %625 = vector.extract_strided_slice %623 {offsets = [0, 0], sizes = [2, 32], strides = [1, 1]} : vector<2x128xf32> to vector<2x32xf32>
    %626 = vector.extract_strided_slice %623 {offsets = [0, 32], sizes = [2, 32], strides = [1, 1]} : vector<2x128xf32> to vector<2x32xf32>
    %627 = vector.extract_strided_slice %624 {offsets = [0, 64], sizes = [2, 32], strides = [1, 1]} : vector<2x128xf32> to vector<2x32xf32>
    %628 = vector.extract_strided_slice %623 {offsets = [0, 96], sizes = [2, 32], strides = [1, 1]} : vector<2x128xf32> to vector<2x32xf32>
    %629 = arith.mulf %626, %618 : vector<2x32xf32>
    %630 = arith.mulf %625, %627 : vector<2x32xf32>
    %631 = arith.addf %629, %630 : vector<2x32xf32>
    %632 = math.tanh %631 : vector<2x32xf32>
    %633 = arith.mulf %628, %632 : vector<2x32xf32>
    %c1_329 = arith.constant 1 : index
    %c0_330 = arith.constant 0 : index
    %c0_331 = arith.constant 0 : index
    %634 = vector.load %arg7[%c1_329, %c0_330, %c0_331] : memref<8x2x64xf32, #tpu.memory_space<vmem>>, vector<1x2x32xf32>
    %635 = vector.shape_cast %634 : vector<1x2x32xf32> to vector<2x32xf32>
    %636 = vector.shape_cast %633 : vector<2x32xf32> to vector<1x2x32xf32>
    tpu.vector_store %arg7[%c1_329, %c0_330, %c0_331], %636 {strides = array<i32>} : memref<8x2x64xf32, #tpu.memory_space<vmem>>, vector<1x2x32xf32>,
    %c6_332 = arith.constant 6 : index
    %c0_333 = arith.constant 0 : index
    %c128_334 = arith.constant 128 : index
    %637 = vector.load %arg8[%c6_332, %c0_333, %c128_334] : memref<8x2x256xf32, #tpu.memory_space<vmem>>, vector<1x2x128xf32>
    %638 = vector.shape_cast %637 : vector<1x2x128xf32> to vector<2x128xf32>
    %639 = vector.extract_strided_slice %613 {offsets = [0, 128], sizes = [2, 128], strides = [1, 1]} : vector<2x256xf32> to vector<2x128xf32>
    %640 = arith.addf %638, %639 : vector<2x128xf32>
    %641 = vector.extract_strided_slice %611 {offsets = [0, 32], sizes = [2, 32], strides = [1, 1]} : vector<2x64xf32> to vector<2x32xf32>
    %642 = arith.negf %640 : vector<2x128xf32>
    %643 = math.exp %642 : vector<2x128xf32>
    %cst_335 = arith.constant 1.000000e+00 : f32
    %644 = vector.broadcast %cst_335 : f32 to vector<2x128xf32>
    %645 = arith.addf %644, %643 : vector<2x128xf32>
    %646 = arith.divf %644, %645 : vector<2x128xf32>
    %647 = math.tanh %640 : vector<2x128xf32>
    %648 = vector.extract_strided_slice %646 {offsets = [0, 0], sizes = [2, 32], strides = [1, 1]} : vector<2x128xf32> to vector<2x32xf32>
    %649 = vector.extract_strided_slice %646 {offsets = [0, 32], sizes = [2, 32], strides = [1, 1]} : vector<2x128xf32> to vector<2x32xf32>
    %650 = vector.extract_strided_slice %647 {offsets = [0, 64], sizes = [2, 32], strides = [1, 1]} : vector<2x128xf32> to vector<2x32xf32>
    %651 = vector.extract_strided_slice %646 {offsets = [0, 96], sizes = [2, 32], strides = [1, 1]} : vector<2x128xf32> to vector<2x32xf32>
    %652 = arith.mulf %649, %641 : vector<2x32xf32>
    %653 = arith.mulf %648, %650 : vector<2x32xf32>
    %654 = arith.addf %652, %653 : vector<2x32xf32>
    %655 = math.tanh %654 : vector<2x32xf32>
    %656 = arith.mulf %651, %655 : vector<2x32xf32>
    %c6_336 = arith.constant 6 : index
    %c0_337 = arith.constant 0 : index
    %c32_338 = arith.constant 32 : index
    %657 = vector.load %arg7[%c6_336, %c0_337, %c32_338] : memref<8x2x64xf32, #tpu.memory_space<vmem>>, vector<1x2x32xf32>
    %658 = vector.shape_cast %657 : vector<1x2x32xf32> to vector<2x32xf32>
    %659 = vector.shape_cast %656 : vector<2x32xf32> to vector<1x2x32xf32>
    tpu.vector_store %arg7[%c6_336, %c0_337, %c32_338], %659 {strides = array<i32>} : memref<8x2x64xf32, #tpu.memory_space<vmem>>, vector<1x2x32xf32>,
    %660 = tpu.concatenate %633, %656 in 1 : vector<2x32xf32>, vector<2x32xf32> -> vector<2x64xf32>
    %661 = tpu.concatenate %631, %654 in 1 : vector<2x32xf32>, vector<2x32xf32> -> vector<2x64xf32>
    %c0_339 = arith.constant 0 : index
    %c0_340 = arith.constant 0 : index
    %662 = vector.load %arg5[%c0_339, %c0_340] : memref<64x256xf32, #tpu.memory_space<vmem>>, vector<64x256xf32>
    %cst_341 = arith.constant dense<0.000000e+00> : vector<2x256xf32>
    %663 = tpu.matmul %660, %662, %cst_341 {dimension_numbers = #tpu.dot_dimension_numbers<[1], [0], [0], [1], [0, 0, 1, 1], [], []>} : vector<2x64xf32>, vector<64x256xf32>, vector<2x256xf32> -> vector<2x256xf32>
    %c2_342 = arith.constant 2 : index
    %c0_343 = arith.constant 0 : index
    %c0_344 = arith.constant 0 : index
    %664 = vector.load %arg8[%c2_342, %c0_343, %c0_344] : memref<8x2x256xf32, #tpu.memory_space<vmem>>, vector<1x2x128xf32>
    %665 = vector.shape_cast %664 : vector<1x2x128xf32> to vector<2x128xf32>
    %666 = vector.extract_strided_slice %663 {offsets = [0, 0], sizes = [2, 128], strides = [1, 1]} : vector<2x256xf32> to vector<2x128xf32>
    %667 = arith.addf %665, %666 : vector<2x128xf32>
    %668 = vector.extract_strided_slice %661 {offsets = [0, 0], sizes = [2, 32], strides = [1, 1]} : vector<2x64xf32> to vector<2x32xf32>
    %669 = arith.negf %667 : vector<2x128xf32>
    %670 = math.exp %669 : vector<2x128xf32>
    %cst_345 = arith.constant 1.000000e+00 : f32
    %671 = vector.broadcast %cst_345 : f32 to vector<2x128xf32>
    %672 = arith.addf %671, %670 : vector<2x128xf32>
    %673 = arith.divf %671, %672 : vector<2x128xf32>
    %674 = math.tanh %667 : vector<2x128xf32>
    %675 = vector.extract_strided_slice %673 {offsets = [0, 0], sizes = [2, 32], strides = [1, 1]} : vector<2x128xf32> to vector<2x32xf32>
    %676 = vector.extract_strided_slice %673 {offsets = [0, 32], sizes = [2, 32], strides = [1, 1]} : vector<2x128xf32> to vector<2x32xf32>
    %677 = vector.extract_strided_slice %674 {offsets = [0, 64], sizes = [2, 32], strides = [1, 1]} : vector<2x128xf32> to vector<2x32xf32>
    %678 = vector.extract_strided_slice %673 {offsets = [0, 96], sizes = [2, 32], strides = [1, 1]} : vector<2x128xf32> to vector<2x32xf32>
    %679 = arith.mulf %676, %668 : vector<2x32xf32>
    %680 = arith.mulf %675, %677 : vector<2x32xf32>
    %681 = arith.addf %679, %680 : vector<2x32xf32>
    %682 = math.tanh %681 : vector<2x32xf32>
    %683 = arith.mulf %678, %682 : vector<2x32xf32>
    %c2_346 = arith.constant 2 : index
    %c0_347 = arith.constant 0 : index
    %c0_348 = arith.constant 0 : index
    %684 = vector.load %arg7[%c2_346, %c0_347, %c0_348] : memref<8x2x64xf32, #tpu.memory_space<vmem>>, vector<1x2x32xf32>
    %685 = vector.shape_cast %684 : vector<1x2x32xf32> to vector<2x32xf32>
    %686 = vector.shape_cast %683 : vector<2x32xf32> to vector<1x2x32xf32>
    tpu.vector_store %arg7[%c2_346, %c0_347, %c0_348], %686 {strides = array<i32>} : memref<8x2x64xf32, #tpu.memory_space<vmem>>, vector<1x2x32xf32>,
    %c5_349 = arith.constant 5 : index
    %c0_350 = arith.constant 0 : index
    %c128_351 = arith.constant 128 : index
    %687 = vector.load %arg8[%c5_349, %c0_350, %c128_351] : memref<8x2x256xf32, #tpu.memory_space<vmem>>, vector<1x2x128xf32>
    %688 = vector.shape_cast %687 : vector<1x2x128xf32> to vector<2x128xf32>
    %689 = vector.extract_strided_slice %663 {offsets = [0, 128], sizes = [2, 128], strides = [1, 1]} : vector<2x256xf32> to vector<2x128xf32>
    %690 = arith.addf %688, %689 : vector<2x128xf32>
    %691 = vector.extract_strided_slice %661 {offsets = [0, 32], sizes = [2, 32], strides = [1, 1]} : vector<2x64xf32> to vector<2x32xf32>
    %692 = arith.negf %690 : vector<2x128xf32>
    %693 = math.exp %692 : vector<2x128xf32>
    %cst_352 = arith.constant 1.000000e+00 : f32
    %694 = vector.broadcast %cst_352 : f32 to vector<2x128xf32>
    %695 = arith.addf %694, %693 : vector<2x128xf32>
    %696 = arith.divf %694, %695 : vector<2x128xf32>
    %697 = math.tanh %690 : vector<2x128xf32>
    %698 = vector.extract_strided_slice %696 {offsets = [0, 0], sizes = [2, 32], strides = [1, 1]} : vector<2x128xf32> to vector<2x32xf32>
    %699 = vector.extract_strided_slice %696 {offsets = [0, 32], sizes = [2, 32], strides = [1, 1]} : vector<2x128xf32> to vector<2x32xf32>
    %700 = vector.extract_strided_slice %697 {offsets = [0, 64], sizes = [2, 32], strides = [1, 1]} : vector<2x128xf32> to vector<2x32xf32>
    %701 = vector.extract_strided_slice %696 {offsets = [0, 96], sizes = [2, 32], strides = [1, 1]} : vector<2x128xf32> to vector<2x32xf32>
    %702 = arith.mulf %699, %691 : vector<2x32xf32>
    %703 = arith.mulf %698, %700 : vector<2x32xf32>
    %704 = arith.addf %702, %703 : vector<2x32xf32>
    %705 = math.tanh %704 : vector<2x32xf32>
    %706 = arith.mulf %701, %705 : vector<2x32xf32>
    %c5_353 = arith.constant 5 : index
    %c0_354 = arith.constant 0 : index
    %c32_355 = arith.constant 32 : index
    %707 = vector.load %arg7[%c5_353, %c0_354, %c32_355] : memref<8x2x64xf32, #tpu.memory_space<vmem>>, vector<1x2x32xf32>
    %708 = vector.shape_cast %707 : vector<1x2x32xf32> to vector<2x32xf32>
    %709 = vector.shape_cast %706 : vector<2x32xf32> to vector<1x2x32xf32>
    tpu.vector_store %arg7[%c5_353, %c0_354, %c32_355], %709 {strides = array<i32>} : memref<8x2x64xf32, #tpu.memory_space<vmem>>, vector<1x2x32xf32>,
    %710 = tpu.concatenate %683, %706 in 1 : vector<2x32xf32>, vector<2x32xf32> -> vector<2x64xf32>
    %711 = tpu.concatenate %681, %704 in 1 : vector<2x32xf32>, vector<2x32xf32> -> vector<2x64xf32>
    %c0_356 = arith.constant 0 : index
    %c0_357 = arith.constant 0 : index
    %712 = vector.load %arg5[%c0_356, %c0_357] : memref<64x256xf32, #tpu.memory_space<vmem>>, vector<64x256xf32>
    %cst_358 = arith.constant dense<0.000000e+00> : vector<2x256xf32>
    %713 = tpu.matmul %710, %712, %cst_358 {dimension_numbers = #tpu.dot_dimension_numbers<[1], [0], [0], [1], [0, 0, 1, 1], [], []>} : vector<2x64xf32>, vector<64x256xf32>, vector<2x256xf32> -> vector<2x256xf32>
    %c3_359 = arith.constant 3 : index
    %c0_360 = arith.constant 0 : index
    %c0_361 = arith.constant 0 : index
    %714 = vector.load %arg8[%c3_359, %c0_360, %c0_361] : memref<8x2x256xf32, #tpu.memory_space<vmem>>, vector<1x2x128xf32>
    %715 = vector.shape_cast %714 : vector<1x2x128xf32> to vector<2x128xf32>
    %716 = vector.extract_strided_slice %713 {offsets = [0, 0], sizes = [2, 128], strides = [1, 1]} : vector<2x256xf32> to vector<2x128xf32>
    %717 = arith.addf %715, %716 : vector<2x128xf32>
    %718 = vector.extract_strided_slice %711 {offsets = [0, 0], sizes = [2, 32], strides = [1, 1]} : vector<2x64xf32> to vector<2x32xf32>
    %719 = arith.negf %717 : vector<2x128xf32>
    %720 = math.exp %719 : vector<2x128xf32>
    %cst_362 = arith.constant 1.000000e+00 : f32
    %721 = vector.broadcast %cst_362 : f32 to vector<2x128xf32>
    %722 = arith.addf %721, %720 : vector<2x128xf32>
    %723 = arith.divf %721, %722 : vector<2x128xf32>
    %724 = math.tanh %717 : vector<2x128xf32>
    %725 = vector.extract_strided_slice %723 {offsets = [0, 0], sizes = [2, 32], strides = [1, 1]} : vector<2x128xf32> to vector<2x32xf32>
    %726 = vector.extract_strided_slice %723 {offsets = [0, 32], sizes = [2, 32], strides = [1, 1]} : vector<2x128xf32> to vector<2x32xf32>
    %727 = vector.extract_strided_slice %724 {offsets = [0, 64], sizes = [2, 32], strides = [1, 1]} : vector<2x128xf32> to vector<2x32xf32>
    %728 = vector.extract_strided_slice %723 {offsets = [0, 96], sizes = [2, 32], strides = [1, 1]} : vector<2x128xf32> to vector<2x32xf32>
    %729 = arith.mulf %726, %718 : vector<2x32xf32>
    %730 = arith.mulf %725, %727 : vector<2x32xf32>
    %731 = arith.addf %729, %730 : vector<2x32xf32>
    %732 = math.tanh %731 : vector<2x32xf32>
    %733 = arith.mulf %728, %732 : vector<2x32xf32>
    %c3_363 = arith.constant 3 : index
    %c0_364 = arith.constant 0 : index
    %c0_365 = arith.constant 0 : index
    %734 = vector.load %arg7[%c3_363, %c0_364, %c0_365] : memref<8x2x64xf32, #tpu.memory_space<vmem>>, vector<1x2x32xf32>
    %735 = vector.shape_cast %734 : vector<1x2x32xf32> to vector<2x32xf32>
    %736 = vector.shape_cast %733 : vector<2x32xf32> to vector<1x2x32xf32>
    tpu.vector_store %arg7[%c3_363, %c0_364, %c0_365], %736 {strides = array<i32>} : memref<8x2x64xf32, #tpu.memory_space<vmem>>, vector<1x2x32xf32>,
    %c4_366 = arith.constant 4 : index
    %c0_367 = arith.constant 0 : index
    %c128_368 = arith.constant 128 : index
    %737 = vector.load %arg8[%c4_366, %c0_367, %c128_368] : memref<8x2x256xf32, #tpu.memory_space<vmem>>, vector<1x2x128xf32>
    %738 = vector.shape_cast %737 : vector<1x2x128xf32> to vector<2x128xf32>
    %739 = vector.extract_strided_slice %713 {offsets = [0, 128], sizes = [2, 128], strides = [1, 1]} : vector<2x256xf32> to vector<2x128xf32>
    %740 = arith.addf %738, %739 : vector<2x128xf32>
    %741 = vector.extract_strided_slice %711 {offsets = [0, 32], sizes = [2, 32], strides = [1, 1]} : vector<2x64xf32> to vector<2x32xf32>
    %742 = arith.negf %740 : vector<2x128xf32>
    %743 = math.exp %742 : vector<2x128xf32>
    %cst_369 = arith.constant 1.000000e+00 : f32
    %744 = vector.broadcast %cst_369 : f32 to vector<2x128xf32>
    %745 = arith.addf %744, %743 : vector<2x128xf32>
    %746 = arith.divf %744, %745 : vector<2x128xf32>
    %747 = math.tanh %740 : vector<2x128xf32>
    %748 = vector.extract_strided_slice %746 {offsets = [0, 0], sizes = [2, 32], strides = [1, 1]} : vector<2x128xf32> to vector<2x32xf32>
    %749 = vector.extract_strided_slice %746 {offsets = [0, 32], sizes = [2, 32], strides = [1, 1]} : vector<2x128xf32> to vector<2x32xf32>
    %750 = vector.extract_strided_slice %747 {offsets = [0, 64], sizes = [2, 32], strides = [1, 1]} : vector<2x128xf32> to vector<2x32xf32>
    %751 = vector.extract_strided_slice %746 {offsets = [0, 96], sizes = [2, 32], strides = [1, 1]} : vector<2x128xf32> to vector<2x32xf32>
    %752 = arith.mulf %749, %741 : vector<2x32xf32>
    %753 = arith.mulf %748, %750 : vector<2x32xf32>
    %754 = arith.addf %752, %753 : vector<2x32xf32>
    %755 = math.tanh %754 : vector<2x32xf32>
    %756 = arith.mulf %751, %755 : vector<2x32xf32>
    %c4_370 = arith.constant 4 : index
    %c0_371 = arith.constant 0 : index
    %c32_372 = arith.constant 32 : index
    %757 = vector.load %arg7[%c4_370, %c0_371, %c32_372] : memref<8x2x64xf32, #tpu.memory_space<vmem>>, vector<1x2x32xf32>
    %758 = vector.shape_cast %757 : vector<1x2x32xf32> to vector<2x32xf32>
    %759 = vector.shape_cast %756 : vector<2x32xf32> to vector<1x2x32xf32>
    tpu.vector_store %arg7[%c4_370, %c0_371, %c32_372], %759 {strides = array<i32>} : memref<8x2x64xf32, #tpu.memory_space<vmem>>, vector<1x2x32xf32>,
    %760 = tpu.concatenate %733, %756 in 1 : vector<2x32xf32>, vector<2x32xf32> -> vector<2x64xf32>
    %761 = tpu.concatenate %731, %754 in 1 : vector<2x32xf32>, vector<2x32xf32> -> vector<2x64xf32>
    %c0_373 = arith.constant 0 : index
    %c0_374 = arith.constant 0 : index
    %762 = vector.load %arg5[%c0_373, %c0_374] : memref<64x256xf32, #tpu.memory_space<vmem>>, vector<64x256xf32>
    %cst_375 = arith.constant dense<0.000000e+00> : vector<2x256xf32>
    %763 = tpu.matmul %760, %762, %cst_375 {dimension_numbers = #tpu.dot_dimension_numbers<[1], [0], [0], [1], [0, 0, 1, 1], [], []>} : vector<2x64xf32>, vector<64x256xf32>, vector<2x256xf32> -> vector<2x256xf32>
    %c4_376 = arith.constant 4 : index
    %c0_377 = arith.constant 0 : index
    %c0_378 = arith.constant 0 : index
    %764 = vector.load %arg8[%c4_376, %c0_377, %c0_378] : memref<8x2x256xf32, #tpu.memory_space<vmem>>, vector<1x2x128xf32>
    %765 = vector.shape_cast %764 : vector<1x2x128xf32> to vector<2x128xf32>
    %766 = vector.extract_strided_slice %763 {offsets = [0, 0], sizes = [2, 128], strides = [1, 1]} : vector<2x256xf32> to vector<2x128xf32>
    %767 = arith.addf %765, %766 : vector<2x128xf32>
    %768 = vector.extract_strided_slice %761 {offsets = [0, 0], sizes = [2, 32], strides = [1, 1]} : vector<2x64xf32> to vector<2x32xf32>
    %769 = arith.negf %767 : vector<2x128xf32>
    %770 = math.exp %769 : vector<2x128xf32>
    %cst_379 = arith.constant 1.000000e+00 : f32
    %771 = vector.broadcast %cst_379 : f32 to vector<2x128xf32>
    %772 = arith.addf %771, %770 : vector<2x128xf32>
    %773 = arith.divf %771, %772 : vector<2x128xf32>
    %774 = math.tanh %767 : vector<2x128xf32>
    %775 = vector.extract_strided_slice %773 {offsets = [0, 0], sizes = [2, 32], strides = [1, 1]} : vector<2x128xf32> to vector<2x32xf32>
    %776 = vector.extract_strided_slice %773 {offsets = [0, 32], sizes = [2, 32], strides = [1, 1]} : vector<2x128xf32> to vector<2x32xf32>
    %777 = vector.extract_strided_slice %774 {offsets = [0, 64], sizes = [2, 32], strides = [1, 1]} : vector<2x128xf32> to vector<2x32xf32>
    %778 = vector.extract_strided_slice %773 {offsets = [0, 96], sizes = [2, 32], strides = [1, 1]} : vector<2x128xf32> to vector<2x32xf32>
    %779 = arith.mulf %776, %768 : vector<2x32xf32>
    %780 = arith.mulf %775, %777 : vector<2x32xf32>
    %781 = arith.addf %779, %780 : vector<2x32xf32>
    %782 = math.tanh %781 : vector<2x32xf32>
    %783 = arith.mulf %778, %782 : vector<2x32xf32>
    %c4_380 = arith.constant 4 : index
    %c0_381 = arith.constant 0 : index
    %c0_382 = arith.constant 0 : index
    %784 = vector.load %arg7[%c4_380, %c0_381, %c0_382] : memref<8x2x64xf32, #tpu.memory_space<vmem>>, vector<1x2x32xf32>
    %785 = vector.shape_cast %784 : vector<1x2x32xf32> to vector<2x32xf32>
    %786 = vector.shape_cast %783 : vector<2x32xf32> to vector<1x2x32xf32>
    tpu.vector_store %arg7[%c4_380, %c0_381, %c0_382], %786 {strides = array<i32>} : memref<8x2x64xf32, #tpu.memory_space<vmem>>, vector<1x2x32xf32>,
    %c3_383 = arith.constant 3 : index
    %c0_384 = arith.constant 0 : index
    %c128_385 = arith.constant 128 : index
    %787 = vector.load %arg8[%c3_383, %c0_384, %c128_385] : memref<8x2x256xf32, #tpu.memory_space<vmem>>, vector<1x2x128xf32>
    %788 = vector.shape_cast %787 : vector<1x2x128xf32> to vector<2x128xf32>
    %789 = vector.extract_strided_slice %763 {offsets = [0, 128], sizes = [2, 128], strides = [1, 1]} : vector<2x256xf32> to vector<2x128xf32>
    %790 = arith.addf %788, %789 : vector<2x128xf32>
    %791 = vector.extract_strided_slice %761 {offsets = [0, 32], sizes = [2, 32], strides = [1, 1]} : vector<2x64xf32> to vector<2x32xf32>
    %792 = arith.negf %790 : vector<2x128xf32>
    %793 = math.exp %792 : vector<2x128xf32>
    %cst_386 = arith.constant 1.000000e+00 : f32
    %794 = vector.broadcast %cst_386 : f32 to vector<2x128xf32>
    %795 = arith.addf %794, %793 : vector<2x128xf32>
    %796 = arith.divf %794, %795 : vector<2x128xf32>
    %797 = math.tanh %790 : vector<2x128xf32>
    %798 = vector.extract_strided_slice %796 {offsets = [0, 0], sizes = [2, 32], strides = [1, 1]} : vector<2x128xf32> to vector<2x32xf32>
    %799 = vector.extract_strided_slice %796 {offsets = [0, 32], sizes = [2, 32], strides = [1, 1]} : vector<2x128xf32> to vector<2x32xf32>
    %800 = vector.extract_strided_slice %797 {offsets = [0, 64], sizes = [2, 32], strides = [1, 1]} : vector<2x128xf32> to vector<2x32xf32>
    %801 = vector.extract_strided_slice %796 {offsets = [0, 96], sizes = [2, 32], strides = [1, 1]} : vector<2x128xf32> to vector<2x32xf32>
    %802 = arith.mulf %799, %791 : vector<2x32xf32>
    %803 = arith.mulf %798, %800 : vector<2x32xf32>
    %804 = arith.addf %802, %803 : vector<2x32xf32>
    %805 = math.tanh %804 : vector<2x32xf32>
    %806 = arith.mulf %801, %805 : vector<2x32xf32>
    %c3_387 = arith.constant 3 : index
    %c0_388 = arith.constant 0 : index
    %c32_389 = arith.constant 32 : index
    %807 = vector.load %arg7[%c3_387, %c0_388, %c32_389] : memref<8x2x64xf32, #tpu.memory_space<vmem>>, vector<1x2x32xf32>
    %808 = vector.shape_cast %807 : vector<1x2x32xf32> to vector<2x32xf32>
    %809 = vector.shape_cast %806 : vector<2x32xf32> to vector<1x2x32xf32>
    tpu.vector_store %arg7[%c3_387, %c0_388, %c32_389], %809 {strides = array<i32>} : memref<8x2x64xf32, #tpu.memory_space<vmem>>, vector<1x2x32xf32>,
    %810 = tpu.concatenate %783, %806 in 1 : vector<2x32xf32>, vector<2x32xf32> -> vector<2x64xf32>
    %811 = tpu.concatenate %781, %804 in 1 : vector<2x32xf32>, vector<2x32xf32> -> vector<2x64xf32>
    %c0_390 = arith.constant 0 : index
    %c0_391 = arith.constant 0 : index
    %812 = vector.load %arg5[%c0_390, %c0_391] : memref<64x256xf32, #tpu.memory_space<vmem>>, vector<64x256xf32>
    %cst_392 = arith.constant dense<0.000000e+00> : vector<2x256xf32>
    %813 = tpu.matmul %810, %812, %cst_392 {dimension_numbers = #tpu.dot_dimension_numbers<[1], [0], [0], [1], [0, 0, 1, 1], [], []>} : vector<2x64xf32>, vector<64x256xf32>, vector<2x256xf32> -> vector<2x256xf32>
    %c5_393 = arith.constant 5 : index
    %c0_394 = arith.constant 0 : index
    %c0_395 = arith.constant 0 : index
    %814 = vector.load %arg8[%c5_393, %c0_394, %c0_395] : memref<8x2x256xf32, #tpu.memory_space<vmem>>, vector<1x2x128xf32>
    %815 = vector.shape_cast %814 : vector<1x2x128xf32> to vector<2x128xf32>
    %816 = vector.extract_strided_slice %813 {offsets = [0, 0], sizes = [2, 128], strides = [1, 1]} : vector<2x256xf32> to vector<2x128xf32>
    %817 = arith.addf %815, %816 : vector<2x128xf32>
    %818 = vector.extract_strided_slice %811 {offsets = [0, 0], sizes = [2, 32], strides = [1, 1]} : vector<2x64xf32> to vector<2x32xf32>
    %819 = arith.negf %817 : vector<2x128xf32>
    %820 = math.exp %819 : vector<2x128xf32>
    %cst_396 = arith.constant 1.000000e+00 : f32
    %821 = vector.broadcast %cst_396 : f32 to vector<2x128xf32>
    %822 = arith.addf %821, %820 : vector<2x128xf32>
    %823 = arith.divf %821, %822 : vector<2x128xf32>
    %824 = math.tanh %817 : vector<2x128xf32>
    %825 = vector.extract_strided_slice %823 {offsets = [0, 0], sizes = [2, 32], strides = [1, 1]} : vector<2x128xf32> to vector<2x32xf32>
    %826 = vector.extract_strided_slice %823 {offsets = [0, 32], sizes = [2, 32], strides = [1, 1]} : vector<2x128xf32> to vector<2x32xf32>
    %827 = vector.extract_strided_slice %824 {offsets = [0, 64], sizes = [2, 32], strides = [1, 1]} : vector<2x128xf32> to vector<2x32xf32>
    %828 = vector.extract_strided_slice %823 {offsets = [0, 96], sizes = [2, 32], strides = [1, 1]} : vector<2x128xf32> to vector<2x32xf32>
    %829 = arith.mulf %826, %818 : vector<2x32xf32>
    %830 = arith.mulf %825, %827 : vector<2x32xf32>
    %831 = arith.addf %829, %830 : vector<2x32xf32>
    %832 = math.tanh %831 : vector<2x32xf32>
    %833 = arith.mulf %828, %832 : vector<2x32xf32>
    %c5_397 = arith.constant 5 : index
    %c0_398 = arith.constant 0 : index
    %c0_399 = arith.constant 0 : index
    %834 = vector.load %arg7[%c5_397, %c0_398, %c0_399] : memref<8x2x64xf32, #tpu.memory_space<vmem>>, vector<1x2x32xf32>
    %835 = vector.shape_cast %834 : vector<1x2x32xf32> to vector<2x32xf32>
    %836 = vector.shape_cast %833 : vector<2x32xf32> to vector<1x2x32xf32>
    tpu.vector_store %arg7[%c5_397, %c0_398, %c0_399], %836 {strides = array<i32>} : memref<8x2x64xf32, #tpu.memory_space<vmem>>, vector<1x2x32xf32>,
    %c2_400 = arith.constant 2 : index
    %c0_401 = arith.constant 0 : index
    %c128_402 = arith.constant 128 : index
    %837 = vector.load %arg8[%c2_400, %c0_401, %c128_402] : memref<8x2x256xf32, #tpu.memory_space<vmem>>, vector<1x2x128xf32>
    %838 = vector.shape_cast %837 : vector<1x2x128xf32> to vector<2x128xf32>
    %839 = vector.extract_strided_slice %813 {offsets = [0, 128], sizes = [2, 128], strides = [1, 1]} : vector<2x256xf32> to vector<2x128xf32>
    %840 = arith.addf %838, %839 : vector<2x128xf32>
    %841 = vector.extract_strided_slice %811 {offsets = [0, 32], sizes = [2, 32], strides = [1, 1]} : vector<2x64xf32> to vector<2x32xf32>
    %842 = arith.negf %840 : vector<2x128xf32>
    %843 = math.exp %842 : vector<2x128xf32>
    %cst_403 = arith.constant 1.000000e+00 : f32
    %844 = vector.broadcast %cst_403 : f32 to vector<2x128xf32>
    %845 = arith.addf %844, %843 : vector<2x128xf32>
    %846 = arith.divf %844, %845 : vector<2x128xf32>
    %847 = math.tanh %840 : vector<2x128xf32>
    %848 = vector.extract_strided_slice %846 {offsets = [0, 0], sizes = [2, 32], strides = [1, 1]} : vector<2x128xf32> to vector<2x32xf32>
    %849 = vector.extract_strided_slice %846 {offsets = [0, 32], sizes = [2, 32], strides = [1, 1]} : vector<2x128xf32> to vector<2x32xf32>
    %850 = vector.extract_strided_slice %847 {offsets = [0, 64], sizes = [2, 32], strides = [1, 1]} : vector<2x128xf32> to vector<2x32xf32>
    %851 = vector.extract_strided_slice %846 {offsets = [0, 96], sizes = [2, 32], strides = [1, 1]} : vector<2x128xf32> to vector<2x32xf32>
    %852 = arith.mulf %849, %841 : vector<2x32xf32>
    %853 = arith.mulf %848, %850 : vector<2x32xf32>
    %854 = arith.addf %852, %853 : vector<2x32xf32>
    %855 = math.tanh %854 : vector<2x32xf32>
    %856 = arith.mulf %851, %855 : vector<2x32xf32>
    %c2_404 = arith.constant 2 : index
    %c0_405 = arith.constant 0 : index
    %c32_406 = arith.constant 32 : index
    %857 = vector.load %arg7[%c2_404, %c0_405, %c32_406] : memref<8x2x64xf32, #tpu.memory_space<vmem>>, vector<1x2x32xf32>
    %858 = vector.shape_cast %857 : vector<1x2x32xf32> to vector<2x32xf32>
    %859 = vector.shape_cast %856 : vector<2x32xf32> to vector<1x2x32xf32>
    tpu.vector_store %arg7[%c2_404, %c0_405, %c32_406], %859 {strides = array<i32>} : memref<8x2x64xf32, #tpu.memory_space<vmem>>, vector<1x2x32xf32>,
    %860 = tpu.concatenate %833, %856 in 1 : vector<2x32xf32>, vector<2x32xf32> -> vector<2x64xf32>
    %861 = tpu.concatenate %831, %854 in 1 : vector<2x32xf32>, vector<2x32xf32> -> vector<2x64xf32>
    %c0_407 = arith.constant 0 : index
    %c0_408 = arith.constant 0 : index
    %862 = vector.load %arg5[%c0_407, %c0_408] : memref<64x256xf32, #tpu.memory_space<vmem>>, vector<64x256xf32>
    %cst_409 = arith.constant dense<0.000000e+00> : vector<2x256xf32>
    %863 = tpu.matmul %860, %862, %cst_409 {dimension_numbers = #tpu.dot_dimension_numbers<[1], [0], [0], [1], [0, 0, 1, 1], [], []>} : vector<2x64xf32>, vector<64x256xf32>, vector<2x256xf32> -> vector<2x256xf32>
    %c6_410 = arith.constant 6 : index
    %c0_411 = arith.constant 0 : index
    %c0_412 = arith.constant 0 : index
    %864 = vector.load %arg8[%c6_410, %c0_411, %c0_412] : memref<8x2x256xf32, #tpu.memory_space<vmem>>, vector<1x2x128xf32>
    %865 = vector.shape_cast %864 : vector<1x2x128xf32> to vector<2x128xf32>
    %866 = vector.extract_strided_slice %863 {offsets = [0, 0], sizes = [2, 128], strides = [1, 1]} : vector<2x256xf32> to vector<2x128xf32>
    %867 = arith.addf %865, %866 : vector<2x128xf32>
    %868 = vector.extract_strided_slice %861 {offsets = [0, 0], sizes = [2, 32], strides = [1, 1]} : vector<2x64xf32> to vector<2x32xf32>
    %869 = arith.negf %867 : vector<2x128xf32>
    %870 = math.exp %869 : vector<2x128xf32>
    %cst_413 = arith.constant 1.000000e+00 : f32
    %871 = vector.broadcast %cst_413 : f32 to vector<2x128xf32>
    %872 = arith.addf %871, %870 : vector<2x128xf32>
    %873 = arith.divf %871, %872 : vector<2x128xf32>
    %874 = math.tanh %867 : vector<2x128xf32>
    %875 = vector.extract_strided_slice %873 {offsets = [0, 0], sizes = [2, 32], strides = [1, 1]} : vector<2x128xf32> to vector<2x32xf32>
    %876 = vector.extract_strided_slice %873 {offsets = [0, 32], sizes = [2, 32], strides = [1, 1]} : vector<2x128xf32> to vector<2x32xf32>
    %877 = vector.extract_strided_slice %874 {offsets = [0, 64], sizes = [2, 32], strides = [1, 1]} : vector<2x128xf32> to vector<2x32xf32>
    %878 = vector.extract_strided_slice %873 {offsets = [0, 96], sizes = [2, 32], strides = [1, 1]} : vector<2x128xf32> to vector<2x32xf32>
    %879 = arith.mulf %876, %868 : vector<2x32xf32>
    %880 = arith.mulf %875, %877 : vector<2x32xf32>
    %881 = arith.addf %879, %880 : vector<2x32xf32>
    %882 = math.tanh %881 : vector<2x32xf32>
    %883 = arith.mulf %878, %882 : vector<2x32xf32>
    %c6_414 = arith.constant 6 : index
    %c0_415 = arith.constant 0 : index
    %c0_416 = arith.constant 0 : index
    %884 = vector.load %arg7[%c6_414, %c0_415, %c0_416] : memref<8x2x64xf32, #tpu.memory_space<vmem>>, vector<1x2x32xf32>
    %885 = vector.shape_cast %884 : vector<1x2x32xf32> to vector<2x32xf32>
    %886 = vector.shape_cast %883 : vector<2x32xf32> to vector<1x2x32xf32>
    tpu.vector_store %arg7[%c6_414, %c0_415, %c0_416], %886 {strides = array<i32>} : memref<8x2x64xf32, #tpu.memory_space<vmem>>, vector<1x2x32xf32>,
    %c1_417 = arith.constant 1 : index
    %c0_418 = arith.constant 0 : index
    %c128_419 = arith.constant 128 : index
    %887 = vector.load %arg8[%c1_417, %c0_418, %c128_419] : memref<8x2x256xf32, #tpu.memory_space<vmem>>, vector<1x2x128xf32>
    %888 = vector.shape_cast %887 : vector<1x2x128xf32> to vector<2x128xf32>
    %889 = vector.extract_strided_slice %863 {offsets = [0, 128], sizes = [2, 128], strides = [1, 1]} : vector<2x256xf32> to vector<2x128xf32>
    %890 = arith.addf %888, %889 : vector<2x128xf32>
    %891 = vector.extract_strided_slice %861 {offsets = [0, 32], sizes = [2, 32], strides = [1, 1]} : vector<2x64xf32> to vector<2x32xf32>
    %892 = arith.negf %890 : vector<2x128xf32>
    %893 = math.exp %892 : vector<2x128xf32>
    %cst_420 = arith.constant 1.000000e+00 : f32
    %894 = vector.broadcast %cst_420 : f32 to vector<2x128xf32>
    %895 = arith.addf %894, %893 : vector<2x128xf32>
    %896 = arith.divf %894, %895 : vector<2x128xf32>
    %897 = math.tanh %890 : vector<2x128xf32>
    %898 = vector.extract_strided_slice %896 {offsets = [0, 0], sizes = [2, 32], strides = [1, 1]} : vector<2x128xf32> to vector<2x32xf32>
    %899 = vector.extract_strided_slice %896 {offsets = [0, 32], sizes = [2, 32], strides = [1, 1]} : vector<2x128xf32> to vector<2x32xf32>
    %900 = vector.extract_strided_slice %897 {offsets = [0, 64], sizes = [2, 32], strides = [1, 1]} : vector<2x128xf32> to vector<2x32xf32>
    %901 = vector.extract_strided_slice %896 {offsets = [0, 96], sizes = [2, 32], strides = [1, 1]} : vector<2x128xf32> to vector<2x32xf32>
    %902 = arith.mulf %899, %891 : vector<2x32xf32>
    %903 = arith.mulf %898, %900 : vector<2x32xf32>
    %904 = arith.addf %902, %903 : vector<2x32xf32>
    %905 = math.tanh %904 : vector<2x32xf32>
    %906 = arith.mulf %901, %905 : vector<2x32xf32>
    %c1_421 = arith.constant 1 : index
    %c0_422 = arith.constant 0 : index
    %c32_423 = arith.constant 32 : index
    %907 = vector.load %arg7[%c1_421, %c0_422, %c32_423] : memref<8x2x64xf32, #tpu.memory_space<vmem>>, vector<1x2x32xf32>
    %908 = vector.shape_cast %907 : vector<1x2x32xf32> to vector<2x32xf32>
    %909 = vector.shape_cast %906 : vector<2x32xf32> to vector<1x2x32xf32>
    tpu.vector_store %arg7[%c1_421, %c0_422, %c32_423], %909 {strides = array<i32>} : memref<8x2x64xf32, #tpu.memory_space<vmem>>, vector<1x2x32xf32>,
    %910 = tpu.concatenate %883, %906 in 1 : vector<2x32xf32>, vector<2x32xf32> -> vector<2x64xf32>
    %911 = tpu.concatenate %881, %904 in 1 : vector<2x32xf32>, vector<2x32xf32> -> vector<2x64xf32>
    %c0_424 = arith.constant 0 : index
    %c0_425 = arith.constant 0 : index
    %912 = vector.load %arg5[%c0_424, %c0_425] : memref<64x256xf32, #tpu.memory_space<vmem>>, vector<64x256xf32>
    %cst_426 = arith.constant dense<0.000000e+00> : vector<2x256xf32>
    %913 = tpu.matmul %910, %912, %cst_426 {dimension_numbers = #tpu.dot_dimension_numbers<[1], [0], [0], [1], [0, 0, 1, 1], [], []>} : vector<2x64xf32>, vector<64x256xf32>, vector<2x256xf32> -> vector<2x256xf32>
    %c7_427 = arith.constant 7 : index
    %c0_428 = arith.constant 0 : index
    %c0_429 = arith.constant 0 : index
    %914 = vector.load %arg8[%c7_427, %c0_428, %c0_429] : memref<8x2x256xf32, #tpu.memory_space<vmem>>, vector<1x2x128xf32>
    %915 = vector.shape_cast %914 : vector<1x2x128xf32> to vector<2x128xf32>
    %916 = vector.extract_strided_slice %913 {offsets = [0, 0], sizes = [2, 128], strides = [1, 1]} : vector<2x256xf32> to vector<2x128xf32>
    %917 = arith.addf %915, %916 : vector<2x128xf32>
    %918 = vector.extract_strided_slice %911 {offsets = [0, 0], sizes = [2, 32], strides = [1, 1]} : vector<2x64xf32> to vector<2x32xf32>
    %919 = arith.negf %917 : vector<2x128xf32>
    %920 = math.exp %919 : vector<2x128xf32>
    %cst_430 = arith.constant 1.000000e+00 : f32
    %921 = vector.broadcast %cst_430 : f32 to vector<2x128xf32>
    %922 = arith.addf %921, %920 : vector<2x128xf32>
    %923 = arith.divf %921, %922 : vector<2x128xf32>
    %924 = math.tanh %917 : vector<2x128xf32>
    %925 = vector.extract_strided_slice %923 {offsets = [0, 0], sizes = [2, 32], strides = [1, 1]} : vector<2x128xf32> to vector<2x32xf32>
    %926 = vector.extract_strided_slice %923 {offsets = [0, 32], sizes = [2, 32], strides = [1, 1]} : vector<2x128xf32> to vector<2x32xf32>
    %927 = vector.extract_strided_slice %924 {offsets = [0, 64], sizes = [2, 32], strides = [1, 1]} : vector<2x128xf32> to vector<2x32xf32>
    %928 = vector.extract_strided_slice %923 {offsets = [0, 96], sizes = [2, 32], strides = [1, 1]} : vector<2x128xf32> to vector<2x32xf32>
    %929 = arith.mulf %926, %918 : vector<2x32xf32>
    %930 = arith.mulf %925, %927 : vector<2x32xf32>
    %931 = arith.addf %929, %930 : vector<2x32xf32>
    %932 = math.tanh %931 : vector<2x32xf32>
    %933 = arith.mulf %928, %932 : vector<2x32xf32>
    %c7_431 = arith.constant 7 : index
    %c0_432 = arith.constant 0 : index
    %c0_433 = arith.constant 0 : index
    %934 = vector.load %arg7[%c7_431, %c0_432, %c0_433] : memref<8x2x64xf32, #tpu.memory_space<vmem>>, vector<1x2x32xf32>
    %935 = vector.shape_cast %934 : vector<1x2x32xf32> to vector<2x32xf32>
    %936 = vector.shape_cast %933 : vector<2x32xf32> to vector<1x2x32xf32>
    tpu.vector_store %arg7[%c7_431, %c0_432, %c0_433], %936 {strides = array<i32>} : memref<8x2x64xf32, #tpu.memory_space<vmem>>, vector<1x2x32xf32>,
    %c0_434 = arith.constant 0 : index
    %c0_435 = arith.constant 0 : index
    %c128_436 = arith.constant 128 : index
    %937 = vector.load %arg8[%c0_434, %c0_435, %c128_436] : memref<8x2x256xf32, #tpu.memory_space<vmem>>, vector<1x2x128xf32>
    %938 = vector.shape_cast %937 : vector<1x2x128xf32> to vector<2x128xf32>
    %939 = vector.extract_strided_slice %913 {offsets = [0, 128], sizes = [2, 128], strides = [1, 1]} : vector<2x256xf32> to vector<2x128xf32>
    %940 = arith.addf %938, %939 : vector<2x128xf32>
    %941 = vector.extract_strided_slice %911 {offsets = [0, 32], sizes = [2, 32], strides = [1, 1]} : vector<2x64xf32> to vector<2x32xf32>
    %942 = arith.negf %940 : vector<2x128xf32>
    %943 = math.exp %942 : vector<2x128xf32>
    %cst_437 = arith.constant 1.000000e+00 : f32
    %944 = vector.broadcast %cst_437 : f32 to vector<2x128xf32>
    %945 = arith.addf %944, %943 : vector<2x128xf32>
    %946 = arith.divf %944, %945 : vector<2x128xf32>
    %947 = math.tanh %940 : vector<2x128xf32>
    %948 = vector.extract_strided_slice %946 {offsets = [0, 0], sizes = [2, 32], strides = [1, 1]} : vector<2x128xf32> to vector<2x32xf32>
    %949 = vector.extract_strided_slice %946 {offsets = [0, 32], sizes = [2, 32], strides = [1, 1]} : vector<2x128xf32> to vector<2x32xf32>
    %950 = vector.extract_strided_slice %947 {offsets = [0, 64], sizes = [2, 32], strides = [1, 1]} : vector<2x128xf32> to vector<2x32xf32>
    %951 = vector.extract_strided_slice %946 {offsets = [0, 96], sizes = [2, 32], strides = [1, 1]} : vector<2x128xf32> to vector<2x32xf32>
    %952 = arith.mulf %949, %941 : vector<2x32xf32>
    %953 = arith.mulf %948, %950 : vector<2x32xf32>
    %954 = arith.addf %952, %953 : vector<2x32xf32>
    %955 = math.tanh %954 : vector<2x32xf32>
    %956 = arith.mulf %951, %955 : vector<2x32xf32>
    %c0_438 = arith.constant 0 : index
    %c0_439 = arith.constant 0 : index
    %c32_440 = arith.constant 32 : index
    %957 = vector.load %arg7[%c0_438, %c0_439, %c32_440] : memref<8x2x64xf32, #tpu.memory_space<vmem>>, vector<1x2x32xf32>
    %958 = vector.shape_cast %957 : vector<1x2x32xf32> to vector<2x32xf32>
    %959 = vector.shape_cast %956 : vector<2x32xf32> to vector<1x2x32xf32>
    tpu.vector_store %arg7[%c0_438, %c0_439, %c32_440], %959 {strides = array<i32>} : memref<8x2x64xf32, #tpu.memory_space<vmem>>, vector<1x2x32xf32>,
    return
  }
}

</mosaic_0001>

<llo_original>
// kernel: bilstm_forward.1
$region0: #{bilstm_forward.1}
  #allocation0 [shape = 'u32[]', space=smem, size = 0x4, offset = 0x4, fixed_abs, tag = 'smem constant byte address 0x4 - core index']
  #allocation1 [shape = 'u32[144,128]{1,0:T(1,128)}', space=vmem, size = 0x12000, scoped, tag = 'internal scratch']
  #allocation2 [shape = 'f32[8,2,256]{2,1,0:T(2,128)}', space=vmem, size = 0x4000, scoped, tag = 'scratch operand']
  #allocation3 [shape = 'f32[8,2,64]{2,1,0:T(2,128)}', space=vmem, size = 0x2000, scoped, tag = 'scratch operand']
  %s0 = inlined_call_operand.vmem [shape: f32[8,2,16], index: 0, kind: input, shape index: {}]
  %s1 = inlined_call_operand.vmem [shape: f32[16,256], index: 1, kind: input, shape index: {}]
  %s2 = inlined_call_operand.vmem [shape: f32[64,256], index: 2, kind: input, shape index: {}]
  %s3 = inlined_call_operand.vmem [shape: f32[1,256], index: 3, kind: input, shape index: {}]
  %s4 = inlined_call_operand.vmem [shape: f32[64,256], index: 4, kind: input, shape index: {}]
  %s5 = inlined_call_operand.vmem [shape: f32[64,256], index: 5, kind: input, shape index: {}]
  %s6 = inlined_call_operand.vmem [shape: f32[1,256], index: 6, kind: input, shape index: {}]
  %s7 = inlined_call_operand.vmem [shape: f32[8,2,64], index: 7, kind: output, shape index: {}]
  %s8 = sld [smem:[#allocation0]]
  $region38: #{bilstm_forward.1} parent=0
    _
  %s10 = ssub.s32 1, %s8
  %s11 = scalar_select 0, %s10, %s8
  // Predicated region
  $region2: #{bilstm_forward.1} parent=0 // pred_check
    _
  $region3: #{bilstm_forward.1} parent=0 // pred_check_branch
    %13 = sbr.rel (0) target = $region5
  $region4: #{bilstm_forward.1} parent=0 // pred_region
    _
  $region5: #{bilstm_forward.1} parent=0 // pred_fallthru
    _
  // Predicated region
  $region6: #{bilstm_forward.1} parent=0 // pred_check
    _
  $region7: #{bilstm_forward.1} parent=0 // pred_check_branch
    %15 = sbr.rel (0) target = $region9
  $region8: #{bilstm_forward.1} parent=0 // pred_region
    _
  $region9: #{bilstm_forward.1} parent=0 // pred_fallthru
    _
  // Predicated region
  $region10: #{bilstm_forward.1} parent=0 // pred_check
    _
  $region11: #{bilstm_forward.1} parent=0 // pred_check_branch
    %17 = sbr.rel (0) target = $region13
  $region12: #{bilstm_forward.1} parent=0 // pred_region
    _
  $region13: #{bilstm_forward.1} parent=0 // pred_fallthru
    _
  // Predicated region
  $region14: #{bilstm_forward.1} parent=0 // pred_check
    _
  $region15: #{bilstm_forward.1} parent=0 // pred_check_branch
    %19 = sbr.rel (0) target = $region17
  $region16: #{bilstm_forward.1} parent=0 // pred_region
    _
  $region17: #{bilstm_forward.1} parent=0 // pred_fallthru
    _
  // Predicated region
  $region18: #{bilstm_forward.1} parent=0 // pred_check
    _
  $region19: #{bilstm_forward.1} parent=0 // pred_check_branch
    %21 = sbr.rel (0) target = $region21
  $region20: #{bilstm_forward.1} parent=0 // pred_region
    _
  $region21: #{bilstm_forward.1} parent=0 // pred_fallthru
    _
  // Predicated region
  $region22: #{bilstm_forward.1} parent=0 // pred_check
    _
  $region23: #{bilstm_forward.1} parent=0 // pred_check_branch
    %23 = sbr.rel (0) target = $region25
  $region24: #{bilstm_forward.1} parent=0 // pred_region
    _
  $region25: #{bilstm_forward.1} parent=0 // pred_fallthru
    _
  // Predicated region
  $region26: #{bilstm_forward.1} parent=0 // pred_check
    _
  $region27: #{bilstm_forward.1} parent=0 // pred_check_branch
    %25 = sbr.rel (0) target = $region29
  $region28: #{bilstm_forward.1} parent=0 // pred_region
    _
  $region29: #{bilstm_forward.1} parent=0 // pred_fallthru
    _
  %v26 = vld [vmem:[%s0] sm:$0x3]
  %v27 = vld [vmem:[%s1] sm:$0xff]
  %v28 = vld [vmem:[%s1 + $0x8] sm:$0xff]
  %v29 = vld [vmem:[%s1 + $0x10] sm:$0xff]
  %v30 = vld [vmem:[%s1 + $0x18] sm:$0xff]
  %v31 = vld [vmem:[%s3] sm:$0x3]
  %v33 = vlaneseq
  %v34 = vshrl.u32 %v33, 7
  %v35 = vsub.s32 0, %v34
  %v36 = vrot.slane %v31, %v35
  %v37 = vlaneseq
  %v38 = vshrl.u32 %v37, 7
  %v39 = vsub.s32 1, %v38
  %v40 = vrot.slane %v31, %v39
  %vm43 = vcmask 130048
  %v45 = vsel %vm43, %v26, 0
  %47 = vmatprep.subr.mxu0 %v28
  %48 = vmatpush1.msra.mxu0 %v27
  %49 = vmatprep.subr.mxu0 %v30
  %50 = vmatpush1.msra.mxu0 %v29
  %51 = vmatprep.subr.mxu0 0.0
  %52 = vmatpush1.msra.mxu0 0.0
  %53 = vmatprep.subr.mxu0 0.0
  %54 = vmatpush1.msra.mxu0 0.0
  %55 = vmatprep.subr.mxu0 0.0
  %56 = vmatpush1.msra.mxu0 0.0
  %57 = vmatprep.subr.mxu0 0.0
  %58 = vmatpush1.msra.mxu0 0.0
  %59 = vmatprep.subr.mxu0 0.0
  %60 = vmatpush1.msra.mxu0 0.0
  %61 = vmatprep.subr.mxu0 0.0
  %62 = vmatpush1.msra.mxu0 0.0
  %63 = vmatprep.subr.mxu0 0.0
  %64 = vmatpush1.msra.mxu0 0.0
  %65 = vmatprep.subr.mxu0 0.0
  %66 = vmatpush1.msra.mxu0 0.0
  %67 = vmatprep.subr.mxu0 0.0
  %68 = vmatpush1.msra.mxu0 0.0
  %69 = vmatprep.subr.mxu0 0.0
  %70 = vmatpush1.msra.mxu0 0.0
  %71 = vmatprep.subr.mxu0 0.0
  %72 = vmatpush1.msra.mxu0 0.0
  %73 = vmatprep.subr.mxu0 0.0
  %74 = vmatpush1.msra.mxu0 0.0
  %75 = vmatprep.subr.mxu0 0.0
  %76 = vmatpush1.msra.mxu0 0.0
  %77 = vmatprep.subr.mxu0 0.0
  %78 = vmatpush1.msra.mxu0 0.0
  %79 = vmatprep.subr.mxu0 0.0
  %80 = vmatpush1.msra.mxu0 0.0
  %81 = vmatprep.subr.mxu0 0.0
  %82 = vmatpush1.msra.mxu0 0.0
  %83 = vmatprep.subr.mxu0 0.0
  %84 = vmatpush1.msra.mxu0 0.0
  %85 = vmatprep.subr.mxu0 0.0
  %86 = vmatpush1.msra.mxu0 0.0
  %87 = vmatprep.subr.mxu0 0.0
  %88 = vmatpush1.msra.mxu0 0.0
  %89 = vmatprep.subr.mxu0 0.0
  %90 = vmatpush1.msra.mxu0 0.0
  %91 = vmatprep.subr.mxu0 0.0
  %92 = vmatpush1.msra.mxu0 0.0
  %93 = vmatprep.subr.mxu0 0.0
  %94 = vmatpush1.msra.mxu0 0.0
  %95 = vmatprep.subr.mxu0 0.0
  %96 = vmatpush1.msra.mxu0 0.0
  %97 = vmatprep.subr.mxu0 0.0
  %98 = vmatpush1.msra.mxu0 0.0
  %99 = vmatprep.subr.mxu0 0.0
  %100 = vmatpush1.msra.mxu0 0.0
  %101 = vmatprep.subr.mxu0 0.0
  %102 = vmatpush1.msra.mxu0 0.0
  %103 = vmatprep.subr.mxu0 0.0
  %104 = vmatpush1.msra.mxu0 0.0
  %105 = vmatprep.subr.mxu0 0.0
  %106 = vmatpush1.msra.mxu0 0.0
  %107 = vmatprep.subr.mxu0 0.0
  %108 = vmatpush1.msra.mxu0 0.0
  %109 = vmatprep.subr.mxu0 0.0
  %110 = vmatpush1.msra.mxu0 0.0
  %111 = vmatprep.mubr.f32.mxu0 0.0
  %112 = vmatmul.mubr.f32.gmra.mrb[0].mxu0 %v45
  %v113 = vpop.f32.mrb[0].mxu0
  %v114 = vadd.f32 %v36, %v113
  %v115 = vpop.f32.mrb[0].mxu0
  %v116 = vadd.f32 %v40, %v115
  %117 = vdwg.mxu0
  %v120 = vcombine.low %v114, %v116
  %v122 = vunpack.c.l.s4 1983009808
  %v123 = vunpack.c.0.s8 %v122
  %v124 = vlaneseq
  %v125 = vshrl.u32 %v124, 7
  %v126 = vsub.s32 %v123, %v125
  %v127 = vrot.slane %v120, %v126
  %129 = vst [vmem:[#allocation2] sm:$0xf] %v127
  %s130 = scalar_lea.vmem %s0, 2
  %v131 = vld [vmem:[%s130] sm:$0x3]
  %v132 = vld [vmem:[%s1] sm:$0xff]
  %v133 = vld [vmem:[%s1 + $0x8] sm:$0xff]
  %v134 = vld [vmem:[%s1 + $0x10] sm:$0xff]
  %v135 = vld [vmem:[%s1 + $0x18] sm:$0xff]
  %v136 = vld [vmem:[%s3] sm:$0x3]
  %v138 = vlaneseq
  %v139 = vshrl.u32 %v138, 7
  %v140 = vsub.s32 0, %v139
  %v141 = vrot.slane %v136, %v140
  %v142 = vlaneseq
  %v143 = vshrl.u32 %v142, 7
  %v144 = vsub.s32 1, %v143
  %v145 = vrot.slane %v136, %v144
  %v149 = vsel %vm43, %v131, 0
  %151 = vmatprep.subr.mxu0 %v133
  %152 = vmatpush1.msra.mxu0 %v132
  %153 = vmatprep.subr.mxu0 %v135
  %154 = vmatpush1.msra.mxu0 %v134
  %155 = vmatprep.subr.mxu0 0.0
  %156 = vmatpush1.msra.mxu0 0.0
  %157 = vmatprep.subr.mxu0 0.0
  %158 = vmatpush1.msra.mxu0 0.0
  %159 = vmatprep.subr.mxu0 0.0
  %160 = vmatpush1.msra.mxu0 0.0
  %161 = vmatprep.subr.mxu0 0.0
  %162 = vmatpush1.msra.mxu0 0.0
  %163 = vmatprep.subr.mxu0 0.0
  %164 = vmatpush1.msra.mxu0 0.0
  %165 = vmatprep.subr.mxu0 0.0
  %166 = vmatpush1.msra.mxu0 0.0
  %167 = vmatprep.subr.mxu0 0.0
  %168 = vmatpush1.msra.mxu0 0.0
  %169 = vmatprep.subr.mxu0 0.0
  %170 = vmatpush1.msra.mxu0 0.0
  %171 = vmatprep.subr.mxu0 0.0
  %172 = vmatpush1.msra.mxu0 0.0
  %173 = vmatprep.subr.mxu0 0.0
  %174 = vmatpush1.msra.mxu0 0.0
  %175 = vmatprep.subr.mxu0 0.0
  %176 = vmatpush1.msra.mxu0 0.0
  %177 = vmatprep.subr.mxu0 0.0
  %178 = vmatpush1.msra.mxu0 0.0
  %179 = vmatprep.subr.mxu0 0.0
  %180 = vmatpush1.msra.mxu0 0.0
  %181 = vmatprep.subr.mxu0 0.0
  %182 = vmatpush1.msra.mxu0 0.0
  %183 = vmatprep.subr.mxu0 0.0
  %184 = vmatpush1.msra.mxu0 0.0
  %185 = vmatprep.subr.mxu0 0.0
  %186 = vmatpush1.msra.mxu0 0.0
  %187 = vmatprep.subr.mxu0 0.0
  %188 = vmatpush1.msra.mxu0 0.0
  %189 = vmatprep.subr.mxu0 0.0
  %190 = vmatpush1.msra.mxu0 0.0
  %191 = vmatprep.subr.mxu0 0.0
  %192 = vmatpush1.msra.mxu0 0.0
  %193 = vmatprep.subr.mxu0 0.0
  %194 = vmatpush1.msra.mxu0 0.0
  %195 = vmatprep.subr.mxu0 0.0
  %196 = vmatpush1.msra.mxu0 0.0
  %197 = vmatprep.subr.mxu0 0.0
  %198 = vmatpush1.msra.mxu0 0.0
  %199 = vmatprep.subr.mxu0 0.0
  %200 = vmatpush1.msra.mxu0 0.0
  %201 = vmatprep.subr.mxu0 0.0
  %202 = vmatpush1.msra.mxu0 0.0
  %203 = vmatprep.subr.mxu0 0.0
  %204 = vmatpush1.msra.mxu0 0.0
  %205 = vmatprep.subr.mxu0 0.0
  %206 = vmatpush1.msra.mxu0 0.0
  %207 = vmatprep.subr.mxu0 0.0
  %208 = vmatpush1.msra.mxu0 0.0
  %209 = vmatprep.subr.mxu0 0.0
  %210 = vmatpush1.msra.mxu0 0.0
  %211 = vmatprep.subr.mxu0 0.0
  %212 = vmatpush1.msra.mxu0 0.0
  %213 = vmatprep.subr.mxu0 0.0
  %214 = vmatpush1.msra.mxu0 0.0
  %215 = vmatprep.mubr.f32.mxu0 0.0
  %216 = vmatmul.mubr.f32.gmra.mrb[0].mxu0 %v149
  %v217 = vpop.f32.mrb[0].mxu0
  %v218 = vadd.f32 %v141, %v217
  %v219 = vpop.f32.mrb[0].mxu0
  %v220 = vadd.f32 %v145, %v219
  %221 = vdwg.mxu0
  %v224 = vcombine.low %v218, %v220
  %v226 = vunpack.c.l.s4 1983009808
  %v227 = vunpack.c.0.s8 %v226
  %v228 = vlaneseq
  %v229 = vshrl.u32 %v228, 7
  %v230 = vsub.s32 %v227, %v229
  %v231 = vrot.slane %v224, %v230
  %s233 = scalar_lea.vmem [#allocation2], 4
  %234 = vst [vmem:[%s233] sm:$0xf] %v231
  %s235 = scalar_lea.vmem %s0, 4
  %v236 = vld [vmem:[%s235] sm:$0x3]
  %v237 = vld [vmem:[%s1] sm:$0xff]
  %v238 = vld [vmem:[%s1 + $0x8] sm:$0xff]
  %v239 = vld [vmem:[%s1 + $0x10] sm:$0xff]
  %v240 = vld [vmem:[%s1 + $0x18] sm:$0xff]
  %v241 = vld [vmem:[%s3] sm:$0x3]
  %v243 = vlaneseq
  %v244 = vshrl.u32 %v243, 7
  %v245 = vsub.s32 0, %v244
  %v246 = vrot.slane %v241, %v245
  %v247 = vlaneseq
  %v248 = vshrl.u32 %v247, 7
  %v249 = vsub.s32 1, %v248
  %v250 = vrot.slane %v241, %v249
  %v254 = vsel %vm43, %v236, 0
  %256 = vmatprep.subr.mxu0 %v238
  %257 = vmatpush1.msra.mxu0 %v237
  %258 = vmatprep.subr.mxu0 %v240
  %259 = vmatpush1.msra.mxu0 %v239
  %260 = vmatprep.subr.mxu0 0.0
  %261 = vmatpush1.msra.mxu0 0.0
  %262 = vmatprep.subr.mxu0 0.0
  %263 = vmatpush1.msra.mxu0 0.0
  %264 = vmatprep.subr.mxu0 0.0
  %265 = vmatpush1.msra.mxu0 0.0
  %266 = vmatprep.subr.mxu0 0.0
  %267 = vmatpush1.msra.mxu0 0.0
  %268 = vmatprep.subr.mxu0 0.0
  %269 = vmatpush1.msra.mxu0 0.0
  %270 = vmatprep.subr.mxu0 0.0
  %271 = vmatpush1.msra.mxu0 0.0
  %272 = vmatprep.subr.mxu0 0.0
  %273 = vmatpush1.msra.mxu0 0.0
  %274 = vmatprep.subr.mxu0 0.0
  %275 = vmatpush1.msra.mxu0 0.0
  %276 = vmatprep.subr.mxu0 0.0
  %277 = vmatpush1.msra.mxu0 0.0
  %278 = vmatprep.subr.mxu0 0.0
  %279 = vmatpush1.msra.mxu0 0.0
  %280 = vmatprep.subr.mxu0 0.0
  %281 = vmatpush1.msra.mxu0 0.0
  %282 = vmatprep.subr.mxu0 0.0
  %283 = vmatpush1.msra.mxu0 0.0
  %284 = vmatprep.subr.mxu0 0.0
  %285 = vmatpush1.msra.mxu0 0.0
  %286 = vmatprep.subr.mxu0 0.0
  %287 = vmatpush1.msra.mxu0 0.0
  %288 = vmatprep.subr.mxu0 0.0
  %289 = vmatpush1.msra.mxu0 0.0
  %290 = vmatprep.subr.mxu0 0.0
  %291 = vmatpush1.msra.mxu0 0.0
  %292 = vmatprep.subr.mxu0 0.0
  %293 = vmatpush1.msra.mxu0 0.0
  %294 = vmatprep.subr.mxu0 0.0
  %295 = vmatpush1.msra.mxu0 0.0
  %296 = vmatprep.subr.mxu0 0.0
  %297 = vmatpush1.msra.mxu0 0.0
  %298 = vmatprep.subr.mxu0 0.0
  %299 = vmatpush1.msra.mxu0 0.0
  %300 = vmatprep.subr.mxu0 0.0
  %301 = vmatpush1.msra.mxu0 0.0
  %302 = vmatprep.subr.mxu0 0.0
  %303 = vmatpush1.msra.mxu0 0.0
  %304 = vmatprep.subr.mxu0 0.0
  %305 = vmatpush1.msra.mxu0 0.0
  %306 = vmatprep.subr.mxu0 0.0
  %307 = vmatpush1.msra.mxu0 0.0
  %308 = vmatprep.subr.mxu0 0.0
  %309 = vmatpush1.msra.mxu0 0.0
  %310 = vmatprep.subr.mxu0 0.0
  %311 = vmatpush1.msra.mxu0 0.0
  %312 = vmatprep.subr.mxu0 0.0
  %313 = vmatpush1.msra.mxu0 0.0
  %314 = vmatprep.subr.mxu0 0.0
  %315 = vmatpush1.msra.mxu0 0.0
  %316 = vmatprep.subr.mxu0 0.0
  %317 = vmatpush1.msra.mxu0 0.0
  %318 = vmatprep.subr.mxu0 0.0
  %319 = vmatpush1.msra.mxu0 0.0
  %320 = vmatprep.mubr.f32.mxu0 0.0
  %321 = vmatmul.mubr.f32.gmra.mrb[0].mxu0 %v254
  %v322 = vpop.f32.mrb[0].mxu0
  %v323 = vadd.f32 %v246, %v322
  %v324 = vpop.f32.mrb[0].mxu0
  %v325 = vadd.f32 %v250, %v324
  %326 = vdwg.mxu0
  %v329 = vcombine.low %v323, %v325
  %v331 = vunpack.c.l.s4 1983009808
  %v332 = vunpack.c.0.s8 %v331
  %v333 = vlaneseq
  %v334 = vshrl.u32 %v333, 7
  %v335 = vsub.s32 %v332, %v334
  %v336 = vrot.slane %v329, %v335
  %s338 = scalar_lea.vmem [#allocation2], 8
  %339 = vst [vmem:[%s338] sm:$0xf] %v336
  %s340 = scalar_lea.vmem %s0, 6
  %v341 = vld [vmem:[%s340] sm:$0x3]
  %v342 = vld [vmem:[%s1] sm:$0xff]
  %v343 = vld [vmem:[%s1 + $0x8] sm:$0xff]
  %v344 = vld [vmem:[%s1 + $0x10] sm:$0xff]
  %v345 = vld [vmem:[%s1 + $0x18] sm:$0xff]
  %v346 = vld [vmem:[%s3] sm:$0x3]
  %v348 = vlaneseq
  %v349 = vshrl.u32 %v348, 7
  %v350 = vsub.s32 0, %v349
  %v351 = vrot.slane %v346, %v350
  %v352 = vlaneseq
  %v353 = vshrl.u32 %v352, 7
  %v354 = vsub.s32 1, %v353
  %v355 = vrot.slane %v346, %v354
  %v359 = vsel %vm43, %v341, 0
  %361 = vmatprep.subr.mxu0 %v343
  %362 = vmatpush1.msra.mxu0 %v342
  %363 = vmatprep.subr.mxu0 %v345
  %364 = vmatpush1.msra.mxu0 %v344
  %365 = vmatprep.subr.mxu0 0.0
  %366 = vmatpush1.msra.mxu0 0.0
  %367 = vmatprep.subr.mxu0 0.0
  %368 = vmatpush1.msra.mxu0 0.0
  %369 = vmatprep.subr.mxu0 0.0
  %370 = vmatpush1.msra.mxu0 0.0
  %371 = vmatprep.subr.mxu0 0.0
  %372 = vmatpush1.msra.mxu0 0.0
  %373 = vmatprep.subr.mxu0 0.0
  %374 = vmatpush1.msra.mxu0 0.0
  %375 = vmatprep.subr.mxu0 0.0
  %376 = vmatpush1.msra.mxu0 0.0
  %377 = vmatprep.subr.mxu0 0.0
  %378 = vmatpush1.msra.mxu0 0.0
  %379 = vmatprep.subr.mxu0 0.0
  %380 = vmatpush1.msra.mxu0 0.0
  %381 = vmatprep.subr.mxu0 0.0
  %382 = vmatpush1.msra.mxu0 0.0
  %383 = vmatprep.subr.mxu0 0.0
  %384 = vmatpush1.msra.mxu0 0.0
  %385 = vmatprep.subr.mxu0 0.0
  %386 = vmatpush1.msra.mxu0 0.0
  %387 = vmatprep.subr.mxu0 0.0
  %388 = vmatpush1.msra.mxu0 0.0
  %389 = vmatprep.subr.mxu0 0.0
  %390 = vmatpush1.msra.mxu0 0.0
  %391 = vmatprep.subr.mxu0 0.0
  %392 = vmatpush1.msra.mxu0 0.0
  %393 = vmatprep.subr.mxu0 0.0
  %394 = vmatpush1.msra.mxu0 0.0
  %395 = vmatprep.subr.mxu0 0.0
  %396 = vmatpush1.msra.mxu0 0.0
  %397 = vmatprep.subr.mxu0 0.0
  %398 = vmatpush1.msra.mxu0 0.0
  %399 = vmatprep.subr.mxu0 0.0
  %400 = vmatpush1.msra.mxu0 0.0
  %401 = vmatprep.subr.mxu0 0.0
  %402 = vmatpush1.msra.mxu0 0.0
  %403 = vmatprep.subr.mxu0 0.0
  %404 = vmatpush1.msra.mxu0 0.0
  %405 = vmatprep.subr.mxu0 0.0
  %406 = vmatpush1.msra.mxu0 0.0
  %407 = vmatprep.subr.mxu0 0.0
  %408 = vmatpush1.msra.mxu0 0.0
  %409 = vmatprep.subr.mxu0 0.0
  %410 = vmatpush1.msra.mxu0 0.0
  %411 = vmatprep.subr.mxu0 0.0
  %412 = vmatpush1.msra.mxu0 0.0
  %413 = vmatprep.subr.mxu0 0.0
  %414 = vmatpush1.msra.mxu0 0.0
  %415 = vmatprep.subr.mxu0 0.0
  %416 = vmatpush1.msra.mxu0 0.0
  %417 = vmatprep.subr.mxu0 0.0
  %418 = vmatpush1.msra.mxu0 0.0
  %419 = vmatprep.subr.mxu0 0.0
  %420 = vmatpush1.msra.mxu0 0.0
  %421 = vmatprep.subr.mxu0 0.0
  %422 = vmatpush1.msra.mxu0 0.0
  %423 = vmatprep.subr.mxu0 0.0
  %424 = vmatpush1.msra.mxu0 0.0
  %425 = vmatprep.mubr.f32.mxu0 0.0
  %426 = vmatmul.mubr.f32.gmra.mrb[0].mxu0 %v359
  %v427 = vpop.f32.mrb[0].mxu0
  %v428 = vadd.f32 %v351, %v427
  %v429 = vpop.f32.mrb[0].mxu0
  %v430 = vadd.f32 %v355, %v429
  %431 = vdwg.mxu0
  %v434 = vcombine.low %v428, %v430
  %v436 = vunpack.c.l.s4 1983009808
  %v437 = vunpack.c.0.s8 %v436
  %v438 = vlaneseq
  %v439 = vshrl.u32 %v438, 7
  %v440 = vsub.s32 %v437, %v439
  %v441 = vrot.slane %v434, %v440
  %s443 = scalar_lea.vmem [#allocation2], 12
  %444 = vst [vmem:[%s443] sm:$0xf] %v441
  %s445 = scalar_lea.vmem %s0, 8
  %v446 = vld [vmem:[%s445] sm:$0x3]
  %v447 = vld [vmem:[%s1] sm:$0xff]
  %v448 = vld [vmem:[%s1 + $0x8] sm:$0xff]
  %v449 = vld [vmem:[%s1 + $0x10] sm:$0xff]
  %v450 = vld [vmem:[%s1 + $0x18] sm:$0xff]
  %v451 = vld [vmem:[%s3] sm:$0x3]
  %v453 = vlaneseq
  %v454 = vshrl.u32 %v453, 7
  %v455 = vsub.s32 0, %v454
  %v456 = vrot.slane %v451, %v455
  %v457 = vlaneseq
  %v458 = vshrl.u32 %v457, 7
  %v459 = vsub.s32 1, %v458
  %v460 = vrot.slane %v451, %v459
  %v464 = vsel %vm43, %v446, 0
  %466 = vmatprep.subr.mxu0 %v448
  %467 = vmatpush1.msra.mxu0 %v447
  %468 = vmatprep.subr.mxu0 %v450
  %469 = vmatpush1.msra.mxu0 %v449
  %470 = vmatprep.subr.mxu0 0.0
  %471 = vmatpush1.msra.mxu0 0.0
  %472 = vmatprep.subr.mxu0 0.0
  %473 = vmatpush1.msra.mxu0 0.0
  %474 = vmatprep.subr.mxu0 0.0
  %475 = vmatpush1.msra.mxu0 0.0
  %476 = vmatprep.subr.mxu0 0.0
  %477 = vmatpush1.msra.mxu0 0.0
  %478 = vmatprep.subr.mxu0 0.0
  %479 = vmatpush1.msra.mxu0 0.0
  %480 = vmatprep.subr.mxu0 0.0
  %481 = vmatpush1.msra.mxu0 0.0
  %482 = vmatprep.subr.mxu0 0.0
  %483 = vmatpush1.msra.mxu0 0.0
  %484 = vmatprep.subr.mxu0 0.0
  %485 = vmatpush1.msra.mxu0 0.0
  %486 = vmatprep.subr.mxu0 0.0
  %487 = vmatpush1.msra.mxu0 0.0
  %488 = vmatprep.subr.mxu0 0.0
  %489 = vmatpush1.msra.mxu0 0.0
  %490 = vmatprep.subr.mxu0 0.0
  %491 = vmatpush1.msra.mxu0 0.0
  %492 = vmatprep.subr.mxu0 0.0
  %493 = vmatpush1.msra.mxu0 0.0
  %494 = vmatprep.subr.mxu0 0.0
  %495 = vmatpush1.msra.mxu0 0.0
  %496 = vmatprep.subr.mxu0 0.0
  %497 = vmatpush1.msra.mxu0 0.0
  %498 = vmatprep.subr.mxu0 0.0
  %499 = vmatpush1.msra.mxu0 0.0
  %500 = vmatprep.subr.mxu0 0.0
  %501 = vmatpush1.msra.mxu0 0.0
  %502 = vmatprep.subr.mxu0 0.0
  %503 = vmatpush1.msra.mxu0 0.0
  %504 = vmatprep.subr.mxu0 0.0
  %505 = vmatpush1.msra.mxu0 0.0
  %506 = vmatprep.subr.mxu0 0.0
  %507 = vmatpush1.msra.mxu0 0.0
  %508 = vmatprep.subr.mxu0 0.0
  %509 = vmatpush1.msra.mxu0 0.0
  %510 = vmatprep.subr.mxu0 0.0
  %511 = vmatpush1.msra.mxu0 0.0
  %512 = vmatprep.subr.mxu0 0.0
  %513 = vmatpush1.msra.mxu0 0.0
  %514 = vmatprep.subr.mxu0 0.0
  %515 = vmatpush1.msra.mxu0 0.0
  %516 = vmatprep.subr.mxu0 0.0
  %517 = vmatpush1.msra.mxu0 0.0
  %518 = vmatprep.subr.mxu0 0.0
  %519 = vmatpush1.msra.mxu0 0.0
  %520 = vmatprep.subr.mxu0 0.0
  %521 = vmatpush1.msra.mxu0 0.0
  %522 = vmatprep.subr.mxu0 0.0
  %523 = vmatpush1.msra.mxu0 0.0
  %524 = vmatprep.subr.mxu0 0.0
  %525 = vmatpush1.msra.mxu0 0.0
  %526 = vmatprep.subr.mxu0 0.0
  %527 = vmatpush1.msra.mxu0 0.0
  %528 = vmatprep.subr.mxu0 0.0
  %529 = vmatpush1.msra.mxu0 0.0
  %530 = vmatprep.mubr.f32.mxu0 0.0
  %531 = vmatmul.mubr.f32.gmra.mrb[0].mxu0 %v464
  %v532 = vpop.f32.mrb[0].mxu0
  %v533 = vadd.f32 %v456, %v532
  %v534 = vpop.f32.mrb[0].mxu0
  %v535 = vadd.f32 %v460, %v534
  %536 = vdwg.mxu0
  %v539 = vcombine.low %v533, %v535
  %v541 = vunpack.c.l.s4 1983009808
  %v542 = vunpack.c.0.s8 %v541
  %v543 = vlaneseq
  %v544 = vshrl.u32 %v543, 7
  %v545 = vsub.s32 %v542, %v544
  %v546 = vrot.slane %v539, %v545
  %s548 = scalar_lea.vmem [#allocation2], 16
  %549 = vst [vmem:[%s548] sm:$0xf] %v546
  %s550 = scalar_lea.vmem %s0, 10
  %v551 = vld [vmem:[%s550] sm:$0x3]
  %v552 = vld [vmem:[%s1] sm:$0xff]
  %v553 = vld [vmem:[%s1 + $0x8] sm:$0xff]
  %v554 = vld [vmem:[%s1 + $0x10] sm:$0xff]
  %v555 = vld [vmem:[%s1 + $0x18] sm:$0xff]
  %v556 = vld [vmem:[%s3] sm:$0x3]
  %v558 = vlaneseq
  %v559 = vshrl.u32 %v558, 7
  %v560 = vsub.s32 0, %v559
  %v561 = vrot.slane %v556, %v560
  %v562 = vlaneseq
  %v563 = vshrl.u32 %v562, 7
  %v564 = vsub.s32 1, %v563
  %v565 = vrot.slane %v556, %v564
  %v569 = vsel %vm43, %v551, 0
  %571 = vmatprep.subr.mxu0 %v553
  %572 = vmatpush1.msra.mxu0 %v552
  %573 = vmatprep.subr.mxu0 %v555
  %574 = vmatpush1.msra.mxu0 %v554
  %575 = vmatprep.subr.mxu0 0.0
  %576 = vmatpush1.msra.mxu0 0.0
  %577 = vmatprep.subr.mxu0 0.0
  %578 = vmatpush1.msra.mxu0 0.0
  %579 = vmatprep.subr.mxu0 0.0
  %580 = vmatpush1.msra.mxu0 0.0
  %581 = vmatprep.subr.mxu0 0.0
  %582 = vmatpush1.msra.mxu0 0.0
  %583 = vmatprep.subr.mxu0 0.0
  %584 = vmatpush1.msra.mxu0 0.0
  %585 = vmatprep.subr.mxu0 0.0
  %586 = vmatpush1.msra.mxu0 0.0
  %587 = vmatprep.subr.mxu0 0.0
  %588 = vmatpush1.msra.mxu0 0.0
  %589 = vmatprep.subr.mxu0 0.0
  %590 = vmatpush1.msra.mxu0 0.0
  %591 = vmatprep.subr.mxu0 0.0
  %592 = vmatpush1.msra.mxu0 0.0
  %593 = vmatprep.subr.mxu0 0.0
  %594 = vmatpush1.msra.mxu0 0.0
  %595 = vmatprep.subr.mxu0 0.0
  %596 = vmatpush1.msra.mxu0 0.0
  %597 = vmatprep.subr.mxu0 0.0
  %598 = vmatpush1.msra.mxu0 0.0
  %599 = vmatprep.subr.mxu0 0.0
  %600 = vmatpush1.msra.mxu0 0.0
  %601 = vmatprep.subr.mxu0 0.0
  %602 = vmatpush1.msra.mxu0 0.0
  %603 = vmatprep.subr.mxu0 0.0
  %604 = vmatpush1.msra.mxu0 0.0
  %605 = vmatprep.subr.mxu0 0.0
  %606 = vmatpush1.msra.mxu0 0.0
  %607 = vmatprep.subr.mxu0 0.0
  %608 = vmatpush1.msra.mxu0 0.0
  %609 = vmatprep.subr.mxu0 0.0
  %610 = vmatpush1.msra.mxu0 0.0
  %611 = vmatprep.subr.mxu0 0.0
  %612 = vmatpush1.msra.mxu0 0.0
  %613 = vmatprep.subr.mxu0 0.0
  %614 = vmatpush1.msra.mxu0 0.0
  %615 = vmatprep.subr.mxu0 0.0
  %616 = vmatpush1.msra.mxu0 0.0
  %617 = vmatprep.subr.mxu0 0.0
  %618 = vmatpush1.msra.mxu0 0.0
  %619 = vmatprep.subr.mxu0 0.0
  %620 = vmatpush1.msra.mxu0 0.0
  %621 = vmatprep.subr.mxu0 0.0
  %622 = vmatpush1.msra.mxu0 0.0
  %623 = vmatprep.subr.mxu0 0.0
  %624 = vmatpush1.msra.mxu0 0.0
  %625 = vmatprep.subr.mxu0 0.0
  %626 = vmatpush1.msra.mxu0 0.0
  %627 = vmatprep.subr.mxu0 0.0
  %628 = vmatpush1.msra.mxu0 0.0
  %629 = vmatprep.subr.mxu0 0.0
  %630 = vmatpush1.msra.mxu0 0.0
  %631 = vmatprep.subr.mxu0 0.0
  %632 = vmatpush1.msra.mxu0 0.0
  %633 = vmatprep.subr.mxu0 0.0
  %634 = vmatpush1.msra.mxu0 0.0
  %635 = vmatprep.mubr.f32.mxu0 0.0
  %636 = vmatmul.mubr.f32.gmra.mrb[0].mxu0 %v569
  %v637 = vpop.f32.mrb[0].mxu0
  %v638 = vadd.f32 %v561, %v637
  %v639 = vpop.f32.mrb[0].mxu0
  %v640 = vadd.f32 %v565, %v639
  %641 = vdwg.mxu0
  %v644 = vcombine.low %v638, %v640
  %v646 = vunpack.c.l.s4 1983009808
  %v647 = vunpack.c.0.s8 %v646
  %v648 = vlaneseq
  %v649 = vshrl.u32 %v648, 7
  %v650 = vsub.s32 %v647, %v649
  %v651 = vrot.slane %v644, %v650
  %s653 = scalar_lea.vmem [#allocation2], 20
  %654 = vst [vmem:[%s653] sm:$0xf] %v651
  %s655 = scalar_lea.vmem %s0, 12
  %v656 = vld [vmem:[%s655] sm:$0x3]
  %v657 = vld [vmem:[%s1] sm:$0xff]
  %v658 = vld [vmem:[%s1 + $0x8] sm:$0xff]
  %v659 = vld [vmem:[%s1 + $0x10] sm:$0xff]
  %v660 = vld [vmem:[%s1 + $0x18] sm:$0xff]
  %v661 = vld [vmem:[%s3] sm:$0x3]
  %v663 = vlaneseq
  %v664 = vshrl.u32 %v663, 7
  %v665 = vsub.s32 0, %v664
  %v666 = vrot.slane %v661, %v665
  %v667 = vlaneseq
  %v668 = vshrl.u32 %v667, 7
  %v669 = vsub.s32 1, %v668
  %v670 = vrot.slane %v661, %v669
  %v674 = vsel %vm43, %v656, 0
  %676 = vmatprep.subr.mxu0 %v658
  %677 = vmatpush1.msra.mxu0 %v657
  %678 = vmatprep.subr.mxu0 %v660
  %679 = vmatpush1.msra.mxu0 %v659
  %680 = vmatprep.subr.mxu0 0.0
  %681 = vmatpush1.msra.mxu0 0.0
  %682 = vmatprep.subr.mxu0 0.0
  %683 = vmatpush1.msra.mxu0 0.0
  %684 = vmatprep.subr.mxu0 0.0
  %685 = vmatpush1.msra.mxu0 0.0
  %686 = vmatprep.subr.mxu0 0.0
  %687 = vmatpush1.msra.mxu0 0.0
  %688 = vmatprep.subr.mxu0 0.0
  %689 = vmatpush1.msra.mxu0 0.0
  %690 = vmatprep.subr.mxu0 0.0
  %691 = vmatpush1.msra.mxu0 0.0
  %692 = vmatprep.subr.mxu0 0.0
  %693 = vmatpush1.msra.mxu0 0.0
  %694 = vmatprep.subr.mxu0 0.0
  %695 = vmatpush1.msra.mxu0 0.0
  %696 = vmatprep.subr.mxu0 0.0
  %697 = vmatpush1.msra.mxu0 0.0
  %698 = vmatprep.subr.mxu0 0.0
  %699 = vmatpush1.msra.mxu0 0.0
  %700 = vmatprep.subr.mxu0 0.0
  %701 = vmatpush1.msra.mxu0 0.0
  %702 = vmatprep.subr.mxu0 0.0
  %703 = vmatpush1.msra.mxu0 0.0
  %704 = vmatprep.subr.mxu0 0.0
  %705 = vmatpush1.msra.mxu0 0.0
  %706 = vmatprep.subr.mxu0 0.0
  %707 = vmatpush1.msra.mxu0 0.0
  %708 = vmatprep.subr.mxu0 0.0
  %709 = vmatpush1.msra.mxu0 0.0
  %710 = vmatprep.subr.mxu0 0.0
  %711 = vmatpush1.msra.mxu0 0.0
  %712 = vmatprep.subr.mxu0 0.0
  %713 = vmatpush1.msra.mxu0 0.0
  %714 = vmatprep.subr.mxu0 0.0
  %715 = vmatpush1.msra.mxu0 0.0
  %716 = vmatprep.subr.mxu0 0.0
  %717 = vmatpush1.msra.mxu0 0.0
  %718 = vmatprep.subr.mxu0 0.0
  %719 = vmatpush1.msra.mxu0 0.0
  %720 = vmatprep.subr.mxu0 0.0
  %721 = vmatpush1.msra.mxu0 0.0
  %722 = vmatprep.subr.mxu0 0.0
  %723 = vmatpush1.msra.mxu0 0.0
  %724 = vmatprep.subr.mxu0 0.0
  %725 = vmatpush1.msra.mxu0 0.0
  %726 = vmatprep.subr.mxu0 0.0
  %727 = vmatpush1.msra.mxu0 0.0
  %728 = vmatprep.subr.mxu0 0.0
  %729 = vmatpush1.msra.mxu0 0.0
  %730 = vmatprep.subr.mxu0 0.0
  %731 = vmatpush1.msra.mxu0 0.0
  %732 = vmatprep.subr.mxu0 0.0
  %733 = vmatpush1.msra.mxu0 0.0
  %734 = vmatprep.subr.mxu0 0.0
  %735 = vmatpush1.msra.mxu0 0.0
  %736 = vmatprep.subr.mxu0 0.0
  %737 = vmatpush1.msra.mxu0 0.0
  %738 = vmatprep.subr.mxu0 0.0
  %739 = vmatpush1.msra.mxu0 0.0
  %740 = vmatprep.mubr.f32.mxu0 0.0
  %741 = vmatmul.mubr.f32.gmra.mrb[0].mxu0 %v674
  %v742 = vpop.f32.mrb[0].mxu0
  %v743 = vadd.f32 %v666, %v742
  %v744 = vpop.f32.mrb[0].mxu0
  %v745 = vadd.f32 %v670, %v744
  %746 = vdwg.mxu0
  %v749 = vcombine.low %v743, %v745
  %v751 = vunpack.c.l.s4 1983009808
  %v752 = vunpack.c.0.s8 %v751
  %v753 = vlaneseq
  %v754 = vshrl.u32 %v753, 7
  %v755 = vsub.s32 %v752, %v754
  %v756 = vrot.slane %v749, %v755
  %s758 = scalar_lea.vmem [#allocation2], 24
  %759 = vst [vmem:[%s758] sm:$0xf] %v756
  %s760 = scalar_lea.vmem %s0, 14
  %v761 = vld [vmem:[%s760] sm:$0x3]
  %v762 = vld [vmem:[%s1] sm:$0xff]
  %v763 = vld [vmem:[%s1 + $0x8] sm:$0xff]
  %v764 = vld [vmem:[%s1 + $0x10] sm:$0xff]
  %v765 = vld [vmem:[%s1 + $0x18] sm:$0xff]
  %v766 = vld [vmem:[%s3] sm:$0x3]
  %v768 = vlaneseq
  %v769 = vshrl.u32 %v768, 7
  %v770 = vsub.s32 0, %v769
  %v771 = vrot.slane %v766, %v770
  %v772 = vlaneseq
  %v773 = vshrl.u32 %v772, 7
  %v774 = vsub.s32 1, %v773
  %v775 = vrot.slane %v766, %v774
  %v779 = vsel %vm43, %v761, 0
  %781 = vmatprep.subr.mxu0 %v763
  %782 = vmatpush1.msra.mxu0 %v762
  %783 = vmatprep.subr.mxu0 %v765
  %784 = vmatpush1.msra.mxu0 %v764
  %785 = vmatprep.subr.mxu0 0.0
  %786 = vmatpush1.msra.mxu0 0.0
  %787 = vmatprep.subr.mxu0 0.0
  %788 = vmatpush1.msra.mxu0 0.0
  %789 = vmatprep.subr.mxu0 0.0
  %790 = vmatpush1.msra.mxu0 0.0
  %791 = vmatprep.subr.mxu0 0.0
  %792 = vmatpush1.msra.mxu0 0.0
  %793 = vmatprep.subr.mxu0 0.0
  %794 = vmatpush1.msra.mxu0 0.0
  %795 = vmatprep.subr.mxu0 0.0
  %796 = vmatpush1.msra.mxu0 0.0
  %797 = vmatprep.subr.mxu0 0.0
  %798 = vmatpush1.msra.mxu0 0.0
  %799 = vmatprep.subr.mxu0 0.0
  %800 = vmatpush1.msra.mxu0 0.0
  %801 = vmatprep.subr.mxu0 0.0
  %802 = vmatpush1.msra.mxu0 0.0
  %803 = vmatprep.subr.mxu0 0.0
  %804 = vmatpush1.msra.mxu0 0.0
  %805 = vmatprep.subr.mxu0 0.0
  %806 = vmatpush1.msra.mxu0 0.0
  %807 = vmatprep.subr.mxu0 0.0
  %808 = vmatpush1.msra.mxu0 0.0
  %809 = vmatprep.subr.mxu0 0.0
  %810 = vmatpush1.msra.mxu0 0.0
  %811 = vmatprep.subr.mxu0 0.0
  %812 = vmatpush1.msra.mxu0 0.0
  %813 = vmatprep.subr.mxu0 0.0
  %814 = vmatpush1.msra.mxu0 0.0
  %815 = vmatprep.subr.mxu0 0.0
  %816 = vmatpush1.msra.mxu0 0.0
  %817 = vmatprep.subr.mxu0 0.0
  %818 = vmatpush1.msra.mxu0 0.0
  %819 = vmatprep.subr.mxu0 0.0
  %820 = vmatpush1.msra.mxu0 0.0
  %821 = vmatprep.subr.mxu0 0.0
  %822 = vmatpush1.msra.mxu0 0.0
  %823 = vmatprep.subr.mxu0 0.0
  %824 = vmatpush1.msra.mxu0 0.0
  %825 = vmatprep.subr.mxu0 0.0
  %826 = vmatpush1.msra.mxu0 0.0
  %827 = vmatprep.subr.mxu0 0.0
  %828 = vmatpush1.msra.mxu0 0.0
  %829 = vmatprep.subr.mxu0 0.0
  %830 = vmatpush1.msra.mxu0 0.0
  %831 = vmatprep.subr.mxu0 0.0
  %832 = vmatpush1.msra.mxu0 0.0
  %833 = vmatprep.subr.mxu0 0.0
  %834 = vmatpush1.msra.mxu0 0.0
  %835 = vmatprep.subr.mxu0 0.0
  %836 = vmatpush1.msra.mxu0 0.0
  %837 = vmatprep.subr.mxu0 0.0
  %838 = vmatpush1.msra.mxu0 0.0
  %839 = vmatprep.subr.mxu0 0.0
  %840 = vmatpush1.msra.mxu0 0.0
  %841 = vmatprep.subr.mxu0 0.0
  %842 = vmatpush1.msra.mxu0 0.0
  %843 = vmatprep.subr.mxu0 0.0
  %844 = vmatpush1.msra.mxu0 0.0
  %845 = vmatprep.mubr.f32.mxu0 0.0
  %846 = vmatmul.mubr.f32.gmra.mrb[0].mxu0 %v779
  %v847 = vpop.f32.mrb[0].mxu0
  %v848 = vadd.f32 %v771, %v847
  %v849 = vpop.f32.mrb[0].mxu0
  %v850 = vadd.f32 %v775, %v849
  %851 = vdwg.mxu0
  %v854 = vcombine.low %v848, %v850
  %v856 = vunpack.c.l.s4 1983009808
  %v857 = vunpack.c.0.s8 %v856
  %v858 = vlaneseq
  %v859 = vshrl.u32 %v858, 7
  %v860 = vsub.s32 %v857, %v859
  %v861 = vrot.slane %v854, %v860
  %s863 = scalar_lea.vmem [#allocation2], 28
  %864 = vst [vmem:[%s863] sm:$0xf] %v861
  %v865 = vld [vmem:[%s2] sm:$0xff]
  %v866 = vld [vmem:[%s2 + $0x8] sm:$0xff]
  %v867 = vld [vmem:[%s2 + $0x10] sm:$0xff]
  %v868 = vld [vmem:[%s2 + $0x18] sm:$0xff]
  %v869 = vld [vmem:[%s2 + $0x20] sm:$0xff]
  %v870 = vld [vmem:[%s2 + $0x28] sm:$0xff]
  %v871 = vld [vmem:[%s2 + $0x30] sm:$0xff]
  %v872 = vld [vmem:[%s2 + $0x38] sm:$0xff]
  %v873 = vld [vmem:[%s2 + $0x40] sm:$0xff]
  %v874 = vld [vmem:[%s2 + $0x48] sm:$0xff]
  %v875 = vld [vmem:[%s2 + $0x50] sm:$0xff]
  %v876 = vld [vmem:[%s2 + $0x58] sm:$0xff]
  %v877 = vld [vmem:[%s2 + $0x60] sm:$0xff]
  %v878 = vld [vmem:[%s2 + $0x68] sm:$0xff]
  %v879 = vld [vmem:[%s2 + $0x70] sm:$0xff]
  %v880 = vld [vmem:[%s2 + $0x78] sm:$0xff]
  %vm881 = vcmask 523264
  %v883 = vsel %vm881, 0.0, 0
  %885 = vmatprep.subr.mxu0 %v866
  %886 = vmatpush1.msra.mxu0 %v865
  %887 = vmatprep.subr.mxu0 %v868
  %888 = vmatpush1.msra.mxu0 %v867
  %889 = vmatprep.subr.mxu0 %v870
  %890 = vmatpush1.msra.mxu0 %v869
  %891 = vmatprep.subr.mxu0 %v872
  %892 = vmatpush1.msra.mxu0 %v871
  %893 = vmatprep.subr.mxu0 %v874
  %894 = vmatpush1.msra.mxu0 %v873
  %895 = vmatprep.subr.mxu0 %v876
  %896 = vmatpush1.msra.mxu0 %v875
  %897 = vmatprep.subr.mxu0 %v878
  %898 = vmatpush1.msra.mxu0 %v877
  %899 = vmatprep.subr.mxu0 %v880
  %900 = vmatpush1.msra.mxu0 %v879
  %901 = vmatprep.subr.mxu0 0.0
  %902 = vmatpush1.msra.mxu0 0.0
  %903 = vmatprep.subr.mxu0 0.0
  %904 = vmatpush1.msra.mxu0 0.0
  %905 = vmatprep.subr.mxu0 0.0
  %906 = vmatpush1.msra.mxu0 0.0
  %907 = vmatprep.subr.mxu0 0.0
  %908 = vmatpush1.msra.mxu0 0.0
  %909 = vmatprep.subr.mxu0 0.0
  %910 = vmatpush1.msra.mxu0 0.0
  %911 = vmatprep.subr.mxu0 0.0
  %912 = vmatpush1.msra.mxu0 0.0
  %913 = vmatprep.subr.mxu0 0.0
  %914 = vmatpush1.msra.mxu0 0.0
  %915 = vmatprep.subr.mxu0 0.0
  %916 = vmatpush1.msra.mxu0 0.0
  %917 = vmatprep.subr.mxu0 0.0
  %918 = vmatpush1.msra.mxu0 0.0
  %919 = vmatprep.subr.mxu0 0.0
  %920 = vmatpush1.msra.mxu0 0.0
  %921 = vmatprep.subr.mxu0 0.0
  %922 = vmatpush1.msra.mxu0 0.0
  %923 = vmatprep.subr.mxu0 0.0
  %924 = vmatpush1.msra.mxu0 0.0
  %925 = vmatprep.subr.mxu0 0.0
  %926 = vmatpush1.msra.mxu0 0.0
  %927 = vmatprep.subr.mxu0 0.0
  %928 = vmatpush1.msra.mxu0 0.0
  %929 = vmatprep.subr.mxu0 0.0
  %930 = vmatpush1.msra.mxu0 0.0
  %931 = vmatprep.subr.mxu0 0.0
  %932 = vmatpush1.msra.mxu0 0.0
  %933 = vmatprep.subr.mxu0 0.0
  %934 = vmatpush1.msra.mxu0 0.0
  %935 = vmatprep.subr.mxu0 0.0
  %936 = vmatpush1.msra.mxu0 0.0
  %937 = vmatprep.subr.mxu0 0.0
  %938 = vmatpush1.msra.mxu0 0.0
  %939 = vmatprep.subr.mxu0 0.0
  %940 = vmatpush1.msra.mxu0 0.0
  %941 = vmatprep.subr.mxu0 0.0
  %942 = vmatpush1.msra.mxu0 0.0
  %943 = vmatprep.subr.mxu0 0.0
  %944 = vmatpush1.msra.mxu0 0.0
  %945 = vmatprep.subr.mxu0 0.0
  %946 = vmatpush1.msra.mxu0 0.0
  %947 = vmatprep.subr.mxu0 0.0
  %948 = vmatpush1.msra.mxu0 0.0
  %949 = vmatprep.mubr.f32.mxu0 0.0
  %950 = vmatmul.mubr.f32.gmra.mrb[0].mxu0 %v883
  %v951 = vpop.f32.mrb[0].mxu0
  %v952 = vadd.f32 0.0, %v951
  %v953 = vpop.f32.mrb[0].mxu0
  %v954 = vadd.f32 0.0, %v953
  %955 = vdwg.mxu0
  %v956 = vld [vmem:[#allocation2] sm:$0x3]
  %v957 = vadd.f32 %v956, %v952
  %v958 = vxor.u32 %v957, 2147483648
  %v959 = vmul.f32 %v958, 1.442695
  %v960 = vpow.pop %v959
  %v961 = vadd.f32 %v960, 1.0
  %v962 = vrcp.pop %v961
  %v963 = vmul.f32 1.0, %v962
  %v964 = vtanh.pop %v957
  %v965 = vmul.f32 %v963, 0.0
  %967 = vrot.lane.b32.xlu0 %v964, 64
  %v968 = vpop.permute.xlu0 %967
  %v970 = vmul.f32 %v963, %v968
  %972 = vrot.lane.b32.xlu0 %v970, 32
  %v973 = vpop.permute.xlu0 %972
  %v975 = vadd.f32 %v965, %v973
  %v976 = vtanh.pop %v975
  %978 = vrot.lane.b32.xlu0 %v976, 64
  %v979 = vpop.permute.xlu0 %978
  %v981 = vmul.f32 %v963, %v979
  %v984 = vunpack.c.l.s4 1983009808
  %v985 = vunpack.c.0.s8 %v984
  %v986 = vlaneseq
  %v987 = vshrl.u32 %v986, 7
  %v988 = vsub.s32 %v985, %v987
  %v989 = vrot.slane %v981, %v988
  %990 = vrot.lane.b32.xlu0 %v989, 32
  %v991 = vpop.permute.xlu0 %990
  %vm993 = vcmask 254976
  %994 = vst.msk [vmem:[#allocation3] sm:$0x3] %vm993, %v991
  %v995 = vld [vmem:[%s863 + $0x2] sm:$0x3]
  %v996 = vadd.f32 %v995, %v954
  %v997 = vxor.u32 %v996, 2147483648
  %v998 = vmul.f32 %v997, 1.442695
  %v999 = vpow.pop %v998
  %v1000 = vadd.f32 %v999, 1.0
  %v1001 = vrcp.pop %v1000
  %v1002 = vmul.f32 1.0, %v1001
  %v1003 = vtanh.pop %v996
  %v1004 = vmul.f32 %v1002, 0.0
  %1006 = vrot.lane.b32.xlu0 %v1003, 64
  %v1007 = vpop.permute.xlu0 %1006
  %v1009 = vmul.f32 %v1002, %v1007
  %1011 = vrot.lane.b32.xlu0 %v1009, 32
  %v1012 = vpop.permute.xlu0 %1011
  %v1014 = vadd.f32 %v1004, %v1012
  %v1015 = vtanh.pop %v1014
  %1017 = vrot.lane.b32.xlu0 %v1015, 64
  %v1018 = vpop.permute.xlu0 %1017
  %v1020 = vmul.f32 %v1002, %v1018
  %v1023 = vunpack.c.l.s4 1983009808
  %v1024 = vunpack.c.0.s8 %v1023
  %v1025 = vlaneseq
  %v1026 = vshrl.u32 %v1025, 7
  %v1027 = vsub.s32 %v1024, %v1026
  %v1028 = vrot.slane %v1020, %v1027
  %1029 = vrot.lane.b32.xlu0 %v1028, 64
  %v1030 = vpop.permute.xlu0 %1029
  %s1032 = scalar_lea.vmem [#allocation3], 14
  %vm1033 = vcmask 517376
  %1034 = vst.msk [vmem:[%s1032] sm:$0x3] %vm1033, %v1030
  %vm1035 = vcmask 261120
  %v1036 = vsel %vm1035, %v991, %v1030
  %v1039 = vunpack.c.l.s4 1983009808
  %v1040 = vunpack.c.0.s8 %v1039
  %v1041 = vlaneseq
  %v1042 = vshrl.u32 %v1041, 7
  %v1043 = vsub.s32 %v1040, %v1042
  %v1044 = vrot.slane %v975, %v1043
  %1045 = vrot.lane.b32.xlu0 %v1044, 96
  %v1046 = vpop.permute.xlu0 %1045
  %v1048 = vsel %vm1035, %v1046, %v1014
  %v1049 = vld [vmem:[%s2] sm:$0xff]
  %v1050 = vld [vmem:[%s2 + $0x8] sm:$0xff]
  %v1051 = vld [vmem:[%s2 + $0x10] sm:$0xff]
  %v1052 = vld [vmem:[%s2 + $0x18] sm:$0xff]
  %v1053 = vld [vmem:[%s2 + $0x20] sm:$0xff]
  %v1054 = vld [vmem:[%s2 + $0x28] sm:$0xff]
  %v1055 = vld [vmem:[%s2 + $0x30] sm:$0xff]
  %v1056 = vld [vmem:[%s2 + $0x38] sm:$0xff]
  %v1057 = vld [vmem:[%s2 + $0x40] sm:$0xff]
  %v1058 = vld [vmem:[%s2 + $0x48] sm:$0xff]
  %v1059 = vld [vmem:[%s2 + $0x50] sm:$0xff]
  %v1060 = vld [vmem:[%s2 + $0x58] sm:$0xff]
  %v1061 = vld [vmem:[%s2 + $0x60] sm:$0xff]
  %v1062 = vld [vmem:[%s2 + $0x68] sm:$0xff]
  %v1063 = vld [vmem:[%s2 + $0x70] sm:$0xff]
  %v1064 = vld [vmem:[%s2 + $0x78] sm:$0xff]
  %v1066 = vsel %vm881, %v1036, 0
  %1068 = vmatprep.subr.mxu0 %v1050
  %1069 = vmatpush1.msra.mxu0 %v1049
  %1070 = vmatprep.subr.mxu0 %v1052
  %1071 = vmatpush1.msra.mxu0 %v1051
  %1072 = vmatprep.subr.mxu0 %v1054
  %1073 = vmatpush1.msra.mxu0 %v1053
  %1074 = vmatprep.subr.mxu0 %v1056
  %1075 = vmatpush1.msra.mxu0 %v1055
  %1076 = vmatprep.subr.mxu0 %v1058
  %1077 = vmatpush1.msra.mxu0 %v1057
  %1078 = vmatprep.subr.mxu0 %v1060
  %1079 = vmatpush1.msra.mxu0 %v1059
  %1080 = vmatprep.subr.mxu0 %v1062
  %1081 = vmatpush1.msra.mxu0 %v1061
  %1082 = vmatprep.subr.mxu0 %v1064
  %1083 = vmatpush1.msra.mxu0 %v1063
  %1084 = vmatprep.subr.mxu0 0.0
  %1085 = vmatpush1.msra.mxu0 0.0
  %1086 = vmatprep.subr.mxu0 0.0
  %1087 = vmatpush1.msra.mxu0 0.0
  %1088 = vmatprep.subr.mxu0 0.0
  %1089 = vmatpush1.msra.mxu0 0.0
  %1090 = vmatprep.subr.mxu0 0.0
  %1091 = vmatpush1.msra.mxu0 0.0
  %1092 = vmatprep.subr.mxu0 0.0
  %1093 = vmatpush1.msra.mxu0 0.0
  %1094 = vmatprep.subr.mxu0 0.0
  %1095 = vmatpush1.msra.mxu0 0.0
  %1096 = vmatprep.subr.mxu0 0.0
  %1097 = vmatpush1.msra.mxu0 0.0
  %1098 = vmatprep.subr.mxu0 0.0
  %1099 = vmatpush1.msra.mxu0 0.0
  %1100 = vmatprep.subr.mxu0 0.0
  %1101 = vmatpush1.msra.mxu0 0.0
  %1102 = vmatprep.subr.mxu0 0.0
  %1103 = vmatpush1.msra.mxu0 0.0
  %1104 = vmatprep.subr.mxu0 0.0
  %1105 = vmatpush1.msra.mxu0 0.0
  %1106 = vmatprep.subr.mxu0 0.0
  %1107 = vmatpush1.msra.mxu0 0.0
  %1108 = vmatprep.subr.mxu0 0.0
  %1109 = vmatpush1.msra.mxu0 0.0
  %1110 = vmatprep.subr.mxu0 0.0
  %1111 = vmatpush1.msra.mxu0 0.0
  %1112 = vmatprep.subr.mxu0 0.0
  %1113 = vmatpush1.msra.mxu0 0.0
  %1114 = vmatprep.subr.mxu0 0.0
  %1115 = vmatpush1.msra.mxu0 0.0
  %1116 = vmatprep.subr.mxu0 0.0
  %1117 = vmatpush1.msra.mxu0 0.0
  %1118 = vmatprep.subr.mxu0 0.0
  %1119 = vmatpush1.msra.mxu0 0.0
  %1120 = vmatprep.subr.mxu0 0.0
  %1121 = vmatpush1.msra.mxu0 0.0
  %1122 = vmatprep.subr.mxu0 0.0
  %1123 = vmatpush1.msra.mxu0 0.0
  %1124 = vmatprep.subr.mxu0 0.0
  %1125 = vmatpush1.msra.mxu0 0.0
  %1126 = vmatprep.subr.mxu0 0.0
  %1127 = vmatpush1.msra.mxu0 0.0
  %1128 = vmatprep.subr.mxu0 0.0
  %1129 = vmatpush1.msra.mxu0 0.0
  %1130 = vmatprep.subr.mxu0 0.0
  %1131 = vmatpush1.msra.mxu0 0.0
  %1132 = vmatprep.mubr.f32.mxu0 0.0
  %1133 = vmatmul.mubr.f32.gmra.mrb[0].mxu0 %v1066
  %v1134 = vpop.f32.mrb[0].mxu0
  %v1135 = vadd.f32 0.0, %v1134
  %v1136 = vpop.f32.mrb[0].mxu0
  %v1137 = vadd.f32 0.0, %v1136
  %1138 = vdwg.mxu0
  %v1139 = vld [vmem:[%s233] sm:$0x3]
  %v1140 = vadd.f32 %v1139, %v1135
  %v1141 = vxor.u32 %v1140, 2147483648
  %v1142 = vmul.f32 %v1141, 1.442695
  %v1143 = vpow.pop %v1142
  %v1144 = vadd.f32 %v1143, 1.0
  %v1145 = vrcp.pop %v1144
  %v1146 = vmul.f32 1.0, %v1145
  %v1147 = vtanh.pop %v1140
  %v1150 = vunpack.c.l.s4 1983009808
  %v1151 = vunpack.c.0.s8 %v1150
  %v1152 = vlaneseq
  %v1153 = vshrl.u32 %v1152, 7
  %v1154 = vsub.s32 %v1151, %v1153
  %v1155 = vrot.slane %v1048, %v1154
  %1156 = vrot.lane.b32.xlu0 %v1155, 32
  %v1157 = vpop.permute.xlu0 %1156
  %v1159 = vmul.f32 %v1146, %v1157
  %1161 = vrot.lane.b32.xlu0 %v1147, 64
  %v1162 = vpop.permute.xlu0 %1161
  %v1164 = vmul.f32 %v1146, %v1162
  %1166 = vrot.lane.b32.xlu0 %v1164, 32
  %v1167 = vpop.permute.xlu0 %1166
  %v1169 = vadd.f32 %v1159, %v1167
  %v1170 = vtanh.pop %v1169
  %1172 = vrot.lane.b32.xlu0 %v1170, 64
  %v1173 = vpop.permute.xlu0 %1172
  %v1175 = vmul.f32 %v1146, %v1173
  %v1178 = vunpack.c.l.s4 1983009808
  %v1179 = vunpack.c.0.s8 %v1178
  %v1180 = vlaneseq
  %v1181 = vshrl.u32 %v1180, 7
  %v1182 = vsub.s32 %v1179, %v1181
  %v1183 = vrot.slane %v1175, %v1182
  %1184 = vrot.lane.b32.xlu0 %v1183, 32
  %v1185 = vpop.permute.xlu0 %1184
  %s1187 = scalar_lea.vmem [#allocation3], 2
  %1188 = vst.msk [vmem:[%s1187] sm:$0x3] %vm993, %v1185
  %v1189 = vld [vmem:[%s758 + $0x2] sm:$0x3]
  %v1190 = vadd.f32 %v1189, %v1137
  %v1191 = vxor.u32 %v1190, 2147483648
  %v1192 = vmul.f32 %v1191, 1.442695
  %v1193 = vpow.pop %v1192
  %v1194 = vadd.f32 %v1193, 1.0
  %v1195 = vrcp.pop %v1194
  %v1196 = vmul.f32 1.0, %v1195
  %v1197 = vtanh.pop %v1190
  %v1198 = vmul.f32 %v1196, %v1048
  %1200 = vrot.lane.b32.xlu0 %v1197, 64
  %v1201 = vpop.permute.xlu0 %1200
  %v1203 = vmul.f32 %v1196, %v1201
  %1205 = vrot.lane.b32.xlu0 %v1203, 32
  %v1206 = vpop.permute.xlu0 %1205
  %v1208 = vadd.f32 %v1198, %v1206
  %v1209 = vtanh.pop %v1208
  %1211 = vrot.lane.b32.xlu0 %v1209, 64
  %v1212 = vpop.permute.xlu0 %1211
  %v1214 = vmul.f32 %v1196, %v1212
  %v1217 = vunpack.c.l.s4 1983009808
  %v1218 = vunpack.c.0.s8 %v1217
  %v1219 = vlaneseq
  %v1220 = vshrl.u32 %v1219, 7
  %v1221 = vsub.s32 %v1218, %v1220
  %v1222 = vrot.slane %v1214, %v1221
  %1223 = vrot.lane.b32.xlu0 %v1222, 64
  %v1224 = vpop.permute.xlu0 %1223
  %s1226 = scalar_lea.vmem [#allocation3], 12
  %1227 = vst.msk [vmem:[%s1226] sm:$0x3] %vm1033, %v1224
  %v1228 = vsel %vm1035, %v1185, %v1224
  %v1231 = vunpack.c.l.s4 1983009808
  %v1232 = vunpack.c.0.s8 %v1231
  %v1233 = vlaneseq
  %v1234 = vshrl.u32 %v1233, 7
  %v1235 = vsub.s32 %v1232, %v1234
  %v1236 = vrot.slane %v1169, %v1235
  %1237 = vrot.lane.b32.xlu0 %v1236, 96
  %v1238 = vpop.permute.xlu0 %1237
  %v1240 = vsel %vm1035, %v1238, %v1208
  %v1241 = vld [vmem:[%s2] sm:$0xff]
  %v1242 = vld [vmem:[%s2 + $0x8] sm:$0xff]
  %v1243 = vld [vmem:[%s2 + $0x10] sm:$0xff]
  %v1244 = vld [vmem:[%s2 + $0x18] sm:$0xff]
  %v1245 = vld [vmem:[%s2 + $0x20] sm:$0xff]
  %v1246 = vld [vmem:[%s2 + $0x28] sm:$0xff]
  %v1247 = vld [vmem:[%s2 + $0x30] sm:$0xff]
  %v1248 = vld [vmem:[%s2 + $0x38] sm:$0xff]
  %v1249 = vld [vmem:[%s2 + $0x40] sm:$0xff]
  %v1250 = vld [vmem:[%s2 + $0x48] sm:$0xff]
  %v1251 = vld [vmem:[%s2 + $0x50] sm:$0xff]
  %v1252 = vld [vmem:[%s2 + $0x58] sm:$0xff]
  %v1253 = vld [vmem:[%s2 + $0x60] sm:$0xff]
  %v1254 = vld [vmem:[%s2 + $0x68] sm:$0xff]
  %v1255 = vld [vmem:[%s2 + $0x70] sm:$0xff]
  %v1256 = vld [vmem:[%s2 + $0x78] sm:$0xff]
  %v1258 = vsel %vm881, %v1228, 0
  %1260 = vmatprep.subr.mxu0 %v1242
  %1261 = vmatpush1.msra.mxu0 %v1241
  %1262 = vmatprep.subr.mxu0 %v1244
  %1263 = vmatpush1.msra.mxu0 %v1243
  %1264 = vmatprep.subr.mxu0 %v1246
  %1265 = vmatpush1.msra.mxu0 %v1245
  %1266 = vmatprep.subr.mxu0 %v1248
  %1267 = vmatpush1.msra.mxu0 %v1247
  %1268 = vmatprep.subr.mxu0 %v1250
  %1269 = vmatpush1.msra.mxu0 %v1249
  %1270 = vmatprep.subr.mxu0 %v1252
  %1271 = vmatpush1.msra.mxu0 %v1251
  %1272 = vmatprep.subr.mxu0 %v1254
  %1273 = vmatpush1.msra.mxu0 %v1253
  %1274 = vmatprep.subr.mxu0 %v1256
  %1275 = vmatpush1.msra.mxu0 %v1255
  %1276 = vmatprep.subr.mxu0 0.0
  %1277 = vmatpush1.msra.mxu0 0.0
  %1278 = vmatprep.subr.mxu0 0.0
  %1279 = vmatpush1.msra.mxu0 0.0
  %1280 = vmatprep.subr.mxu0 0.0
  %1281 = vmatpush1.msra.mxu0 0.0
  %1282 = vmatprep.subr.mxu0 0.0
  %1283 = vmatpush1.msra.mxu0 0.0
  %1284 = vmatprep.subr.mxu0 0.0
  %1285 = vmatpush1.msra.mxu0 0.0
  %1286 = vmatprep.subr.mxu0 0.0
  %1287 = vmatpush1.msra.mxu0 0.0
  %1288 = vmatprep.subr.mxu0 0.0
  %1289 = vmatpush1.msra.mxu0 0.0
  %1290 = vmatprep.subr.mxu0 0.0
  %1291 = vmatpush1.msra.mxu0 0.0
  %1292 = vmatprep.subr.mxu0 0.0
  %1293 = vmatpush1.msra.mxu0 0.0
  %1294 = vmatprep.subr.mxu0 0.0
  %1295 = vmatpush1.msra.mxu0 0.0
  %1296 = vmatprep.subr.mxu0 0.0
  %1297 = vmatpush1.msra.mxu0 0.0
  %1298 = vmatprep.subr.mxu0 0.0
  %1299 = vmatpush1.msra.mxu0 0.0
  %1300 = vmatprep.subr.mxu0 0.0
  %1301 = vmatpush1.msra.mxu0 0.0
  %1302 = vmatprep.subr.mxu0 0.0
  %1303 = vmatpush1.msra.mxu0 0.0
  %1304 = vmatprep.subr.mxu0 0.0
  %1305 = vmatpush1.msra.mxu0 0.0
  %1306 = vmatprep.subr.mxu0 0.0
  %1307 = vmatpush1.msra.mxu0 0.0
  %1308 = vmatprep.subr.mxu0 0.0
  %1309 = vmatpush1.msra.mxu0 0.0
  %1310 = vmatprep.subr.mxu0 0.0
  %1311 = vmatpush1.msra.mxu0 0.0
  %1312 = vmatprep.subr.mxu0 0.0
  %1313 = vmatpush1.msra.mxu0 0.0
  %1314 = vmatprep.subr.mxu0 0.0
  %1315 = vmatpush1.msra.mxu0 0.0
  %1316 = vmatprep.subr.mxu0 0.0
  %1317 = vmatpush1.msra.mxu0 0.0
  %1318 = vmatprep.subr.mxu0 0.0
  %1319 = vmatpush1.msra.mxu0 0.0
  %1320 = vmatprep.subr.mxu0 0.0
  %1321 = vmatpush1.msra.mxu0 0.0
  %1322 = vmatprep.subr.mxu0 0.0
  %1323 = vmatpush1.msra.mxu0 0.0
  %1324 = vmatprep.mubr.f32.mxu0 0.0
  %1325 = vmatmul.mubr.f32.gmra.mrb[0].mxu0 %v1258
  %v1326 = vpop.f32.mrb[0].mxu0
  %v1327 = vadd.f32 0.0, %v1326
  %v1328 = vpop.f32.mrb[0].mxu0
  %v1329 = vadd.f32 0.0, %v1328
  %1330 = vdwg.mxu0
  %v1331 = vld [vmem:[%s338] sm:$0x3]
  %v1332 = vadd.f32 %v1331, %v1327
  %v1333 = vxor.u32 %v1332, 2147483648
  %v1334 = vmul.f32 %v1333, 1.442695
  %v1335 = vpow.pop %v1334
  %v1336 = vadd.f32 %v1335, 1.0
  %v1337 = vrcp.pop %v1336
  %v1338 = vmul.f32 1.0, %v1337
  %v1339 = vtanh.pop %v1332
  %v1342 = vunpack.c.l.s4 1983009808
  %v1343 = vunpack.c.0.s8 %v1342
  %v1344 = vlaneseq
  %v1345 = vshrl.u32 %v1344, 7
  %v1346 = vsub.s32 %v1343, %v1345
  %v1347 = vrot.slane %v1240, %v1346
  %1348 = vrot.lane.b32.xlu0 %v1347, 32
  %v1349 = vpop.permute.xlu0 %1348
  %v1351 = vmul.f32 %v1338, %v1349
  %1353 = vrot.lane.b32.xlu0 %v1339, 64
  %v1354 = vpop.permute.xlu0 %1353
  %v1356 = vmul.f32 %v1338, %v1354
  %1358 = vrot.lane.b32.xlu0 %v1356, 32
  %v1359 = vpop.permute.xlu0 %1358
  %v1361 = vadd.f32 %v1351, %v1359
  %v1362 = vtanh.pop %v1361
  %1364 = vrot.lane.b32.xlu0 %v1362, 64
  %v1365 = vpop.permute.xlu0 %1364
  %v1367 = vmul.f32 %v1338, %v1365
  %v1370 = vunpack.c.l.s4 1983009808
  %v1371 = vunpack.c.0.s8 %v1370
  %v1372 = vlaneseq
  %v1373 = vshrl.u32 %v1372, 7
  %v1374 = vsub.s32 %v1371, %v1373
  %v1375 = vrot.slane %v1367, %v1374
  %1376 = vrot.lane.b32.xlu0 %v1375, 32
  %v1377 = vpop.permute.xlu0 %1376
  %s1379 = scalar_lea.vmem [#allocation3], 4
  %1380 = vst.msk [vmem:[%s1379] sm:$0x3] %vm993, %v1377
  %v1381 = vld [vmem:[%s653 + $0x2] sm:$0x3]
  %v1382 = vadd.f32 %v1381, %v1329
  %v1383 = vxor.u32 %v1382, 2147483648
  %v1384 = vmul.f32 %v1383, 1.442695
  %v1385 = vpow.pop %v1384
  %v1386 = vadd.f32 %v1385, 1.0
  %v1387 = vrcp.pop %v1386
  %v1388 = vmul.f32 1.0, %v1387
  %v1389 = vtanh.pop %v1382
  %v1390 = vmul.f32 %v1388, %v1240
  %1392 = vrot.lane.b32.xlu0 %v1389, 64
  %v1393 = vpop.permute.xlu0 %1392
  %v1395 = vmul.f32 %v1388, %v1393
  %1397 = vrot.lane.b32.xlu0 %v1395, 32
  %v1398 = vpop.permute.xlu0 %1397
  %v1400 = vadd.f32 %v1390, %v1398
  %v1401 = vtanh.pop %v1400
  %1403 = vrot.lane.b32.xlu0 %v1401, 64
  %v1404 = vpop.permute.xlu0 %1403
  %v1406 = vmul.f32 %v1388, %v1404
  %v1409 = vunpack.c.l.s4 1983009808
  %v1410 = vunpack.c.0.s8 %v1409
  %v1411 = vlaneseq
  %v1412 = vshrl.u32 %v1411, 7
  %v1413 = vsub.s32 %v1410, %v1412
  %v1414 = vrot.slane %v1406, %v1413
  %1415 = vrot.lane.b32.xlu0 %v1414, 64
  %v1416 = vpop.permute.xlu0 %1415
  %s1418 = scalar_lea.vmem [#allocation3], 10
  %1419 = vst.msk [vmem:[%s1418] sm:$0x3] %vm1033, %v1416
  %v1420 = vsel %vm1035, %v1377, %v1416
  %v1423 = vunpack.c.l.s4 1983009808
  %v1424 = vunpack.c.0.s8 %v1423
  %v1425 = vlaneseq
  %v1426 = vshrl.u32 %v1425, 7
  %v1427 = vsub.s32 %v1424, %v1426
  %v1428 = vrot.slane %v1361, %v1427
  %1429 = vrot.lane.b32.xlu0 %v1428, 96
  %v1430 = vpop.permute.xlu0 %1429
  %v1432 = vsel %vm1035, %v1430, %v1400
  %v1433 = vld [vmem:[%s2] sm:$0xff]
  %v1434 = vld [vmem:[%s2 + $0x8] sm:$0xff]
  %v1435 = vld [vmem:[%s2 + $0x10] sm:$0xff]
  %v1436 = vld [vmem:[%s2 + $0x18] sm:$0xff]
  %v1437 = vld [vmem:[%s2 + $0x20] sm:$0xff]
  %v1438 = vld [vmem:[%s2 + $0x28] sm:$0xff]
  %v1439 = vld [vmem:[%s2 + $0x30] sm:$0xff]
  %v1440 = vld [vmem:[%s2 + $0x38] sm:$0xff]
  %v1441 = vld [vmem:[%s2 + $0x40] sm:$0xff]
  %v1442 = vld [vmem:[%s2 + $0x48] sm:$0xff]
  %v1443 = vld [vmem:[%s2 + $0x50] sm:$0xff]
  %v1444 = vld [vmem:[%s2 + $0x58] sm:$0xff]
  %v1445 = vld [vmem:[%s2 + $0x60] sm:$0xff]
  %v1446 = vld [vmem:[%s2 + $0x68] sm:$0xff]
  %v1447 = vld [vmem:[%s2 + $0x70] sm:$0xff]
  %v1448 = vld [vmem:[%s2 + $0x78] sm:$0xff]
  %v1450 = vsel %vm881, %v1420, 0
  %1452 = vmatprep.subr.mxu0 %v1434
  %1453 = vmatpush1.msra.mxu0 %v1433
  %1454 = vmatprep.subr.mxu0 %v1436
  %1455 = vmatpush1.msra.mxu0 %v1435
  %1456 = vmatprep.subr.mxu0 %v1438
  %1457 = vmatpush1.msra.mxu0 %v1437
  %1458 = vmatprep.subr.mxu0 %v1440
  %1459 = vmatpush1.msra.mxu0 %v1439
  %1460 = vmatprep.subr.mxu0 %v1442
  %1461 = vmatpush1.msra.mxu0 %v1441
  %1462 = vmatprep.subr.mxu0 %v1444
  %1463 = vmatpush1.msra.mxu0 %v1443
  %1464 = vmatprep.subr.mxu0 %v1446
  %1465 = vmatpush1.msra.mxu0 %v1445
  %1466 = vmatprep.subr.mxu0 %v1448
  %1467 = vmatpush1.msra.mxu0 %v1447
  %1468 = vmatprep.subr.mxu0 0.0
  %1469 = vmatpush1.msra.mxu0 0.0
  %1470 = vmatprep.subr.mxu0 0.0
  %1471 = vmatpush1.msra.mxu0 0.0
  %1472 = vmatprep.subr.mxu0 0.0
  %1473 = vmatpush1.msra.mxu0 0.0
  %1474 = vmatprep.subr.mxu0 0.0
  %1475 = vmatpush1.msra.mxu0 0.0
  %1476 = vmatprep.subr.mxu0 0.0
  %1477 = vmatpush1.msra.mxu0 0.0
  %1478 = vmatprep.subr.mxu0 0.0
  %1479 = vmatpush1.msra.mxu0 0.0
  %1480 = vmatprep.subr.mxu0 0.0
  %1481 = vmatpush1.msra.mxu0 0.0
  %1482 = vmatprep.subr.mxu0 0.0
  %1483 = vmatpush1.msra.mxu0 0.0
  %1484 = vmatprep.subr.mxu0 0.0
  %1485 = vmatpush1.msra.mxu0 0.0
  %1486 = vmatprep.subr.mxu0 0.0
  %1487 = vmatpush1.msra.mxu0 0.0
  %1488 = vmatprep.subr.mxu0 0.0
  %1489 = vmatpush1.msra.mxu0 0.0
  %1490 = vmatprep.subr.mxu0 0.0
  %1491 = vmatpush1.msra.mxu0 0.0
  %1492 = vmatprep.subr.mxu0 0.0
  %1493 = vmatpush1.msra.mxu0 0.0
  %1494 = vmatprep.subr.mxu0 0.0
  %1495 = vmatpush1.msra.mxu0 0.0
  %1496 = vmatprep.subr.mxu0 0.0
  %1497 = vmatpush1.msra.mxu0 0.0
  %1498 = vmatprep.subr.mxu0 0.0
  %1499 = vmatpush1.msra.mxu0 0.0
  %1500 = vmatprep.subr.mxu0 0.0
  %1501 = vmatpush1.msra.mxu0 0.0
  %1502 = vmatprep.subr.mxu0 0.0
  %1503 = vmatpush1.msra.mxu0 0.0
  %1504 = vmatprep.subr.mxu0 0.0
  %1505 = vmatpush1.msra.mxu0 0.0
  %1506 = vmatprep.subr.mxu0 0.0
  %1507 = vmatpush1.msra.mxu0 0.0
  %1508 = vmatprep.subr.mxu0 0.0
  %1509 = vmatpush1.msra.mxu0 0.0
  %1510 = vmatprep.subr.mxu0 0.0
  %1511 = vmatpush1.msra.mxu0 0.0
  %1512 = vmatprep.subr.mxu0 0.0
  %1513 = vmatpush1.msra.mxu0 0.0
  %1514 = vmatprep.subr.mxu0 0.0
  %1515 = vmatpush1.msra.mxu0 0.0
  %1516 = vmatprep.mubr.f32.mxu0 0.0
  %1517 = vmatmul.mubr.f32.gmra.mrb[0].mxu0 %v1450
  %v1518 = vpop.f32.mrb[0].mxu0
  %v1519 = vadd.f32 0.0, %v1518
  %v1520 = vpop.f32.mrb[0].mxu0
  %v1521 = vadd.f32 0.0, %v1520
  %1522 = vdwg.mxu0
  %v1523 = vld [vmem:[%s443] sm:$0x3]
  %v1524 = vadd.f32 %v1523, %v1519
  %v1525 = vxor.u32 %v1524, 2147483648
  %v1526 = vmul.f32 %v1525, 1.442695
  %v1527 = vpow.pop %v1526
  %v1528 = vadd.f32 %v1527, 1.0
  %v1529 = vrcp.pop %v1528
  %v1530 = vmul.f32 1.0, %v1529
  %v1531 = vtanh.pop %v1524
  %v1534 = vunpack.c.l.s4 1983009808
  %v1535 = vunpack.c.0.s8 %v1534
  %v1536 = vlaneseq
  %v1537 = vshrl.u32 %v1536, 7
  %v1538 = vsub.s32 %v1535, %v1537
  %v1539 = vrot.slane %v1432, %v1538
  %1540 = vrot.lane.b32.xlu0 %v1539, 32
  %v1541 = vpop.permute.xlu0 %1540
  %v1543 = vmul.f32 %v1530, %v1541
  %1545 = vrot.lane.b32.xlu0 %v1531, 64
  %v1546 = vpop.permute.xlu0 %1545
  %v1548 = vmul.f32 %v1530, %v1546
  %1550 = vrot.lane.b32.xlu0 %v1548, 32
  %v1551 = vpop.permute.xlu0 %1550
  %v1553 = vadd.f32 %v1543, %v1551
  %v1554 = vtanh.pop %v1553
  %1556 = vrot.lane.b32.xlu0 %v1554, 64
  %v1557 = vpop.permute.xlu0 %1556
  %v1559 = vmul.f32 %v1530, %v1557
  %v1562 = vunpack.c.l.s4 1983009808
  %v1563 = vunpack.c.0.s8 %v1562
  %v1564 = vlaneseq
  %v1565 = vshrl.u32 %v1564, 7
  %v1566 = vsub.s32 %v1563, %v1565
  %v1567 = vrot.slane %v1559, %v1566
  %1568 = vrot.lane.b32.xlu0 %v1567, 32
  %v1569 = vpop.permute.xlu0 %1568
  %s1571 = scalar_lea.vmem [#allocation3], 6
  %1572 = vst.msk [vmem:[%s1571] sm:$0x3] %vm993, %v1569
  %v1573 = vld [vmem:[%s548 + $0x2] sm:$0x3]
  %v1574 = vadd.f32 %v1573, %v1521
  %v1575 = vxor.u32 %v1574, 2147483648
  %v1576 = vmul.f32 %v1575, 1.442695
  %v1577 = vpow.pop %v1576
  %v1578 = vadd.f32 %v1577, 1.0
  %v1579 = vrcp.pop %v1578
  %v1580 = vmul.f32 1.0, %v1579
  %v1581 = vtanh.pop %v1574
  %v1582 = vmul.f32 %v1580, %v1432
  %1584 = vrot.lane.b32.xlu0 %v1581, 64
  %v1585 = vpop.permute.xlu0 %1584
  %v1587 = vmul.f32 %v1580, %v1585
  %1589 = vrot.lane.b32.xlu0 %v1587, 32
  %v1590 = vpop.permute.xlu0 %1589
  %v1592 = vadd.f32 %v1582, %v1590
  %v1593 = vtanh.pop %v1592
  %1595 = vrot.lane.b32.xlu0 %v1593, 64
  %v1596 = vpop.permute.xlu0 %1595
  %v1598 = vmul.f32 %v1580, %v1596
  %v1601 = vunpack.c.l.s4 1983009808
  %v1602 = vunpack.c.0.s8 %v1601
  %v1603 = vlaneseq
  %v1604 = vshrl.u32 %v1603, 7
  %v1605 = vsub.s32 %v1602, %v1604
  %v1606 = vrot.slane %v1598, %v1605
  %1607 = vrot.lane.b32.xlu0 %v1606, 64
  %v1608 = vpop.permute.xlu0 %1607
  %s1610 = scalar_lea.vmem [#allocation3], 8
  %1611 = vst.msk [vmem:[%s1610] sm:$0x3] %vm1033, %v1608
  %v1612 = vsel %vm1035, %v1569, %v1608
  %v1615 = vunpack.c.l.s4 1983009808
  %v1616 = vunpack.c.0.s8 %v1615
  %v1617 = vlaneseq
  %v1618 = vshrl.u32 %v1617, 7
  %v1619 = vsub.s32 %v1616, %v1618
  %v1620 = vrot.slane %v1553, %v1619
  %1621 = vrot.lane.b32.xlu0 %v1620, 96
  %v1622 = vpop.permute.xlu0 %1621
  %v1624 = vsel %vm1035, %v1622, %v1592
  %v1625 = vld [vmem:[%s2] sm:$0xff]
  %v1626 = vld [vmem:[%s2 + $0x8] sm:$0xff]
  %v1627 = vld [vmem:[%s2 + $0x10] sm:$0xff]
  %v1628 = vld [vmem:[%s2 + $0x18] sm:$0xff]
  %v1629 = vld [vmem:[%s2 + $0x20] sm:$0xff]
  %v1630 = vld [vmem:[%s2 + $0x28] sm:$0xff]
  %v1631 = vld [vmem:[%s2 + $0x30] sm:$0xff]
  %v1632 = vld [vmem:[%s2 + $0x38] sm:$0xff]
  %v1633 = vld [vmem:[%s2 + $0x40] sm:$0xff]
  %v1634 = vld [vmem:[%s2 + $0x48] sm:$0xff]
  %v1635 = vld [vmem:[%s2 + $0x50] sm:$0xff]
  %v1636 = vld [vmem:[%s2 + $0x58] sm:$0xff]
  %v1637 = vld [vmem:[%s2 + $0x60] sm:$0xff]
  %v1638 = vld [vmem:[%s2 + $0x68] sm:$0xff]
  %v1639 = vld [vmem:[%s2 + $0x70] sm:$0xff]
  %v1640 = vld [vmem:[%s2 + $0x78] sm:$0xff]
  %v1642 = vsel %vm881, %v1612, 0
  %1644 = vmatprep.subr.mxu0 %v1626
  %1645 = vmatpush1.msra.mxu0 %v1625
  %1646 = vmatprep.subr.mxu0 %v1628
  %1647 = vmatpush1.msra.mxu0 %v1627
  %1648 = vmatprep.subr.mxu0 %v1630
  %1649 = vmatpush1.msra.mxu0 %v1629
  %1650 = vmatprep.subr.mxu0 %v1632
  %1651 = vmatpush1.msra.mxu0 %v1631
  %1652 = vmatprep.subr.mxu0 %v1634
  %1653 = vmatpush1.msra.mxu0 %v1633
  %1654 = vmatprep.subr.mxu0 %v1636
  %1655 = vmatpush1.msra.mxu0 %v1635
  %1656 = vmatprep.subr.mxu0 %v1638
  %1657 = vmatpush1.msra.mxu0 %v1637
  %1658 = vmatprep.subr.mxu0 %v1640
  %1659 = vmatpush1.msra.mxu0 %v1639
  %1660 = vmatprep.subr.mxu0 0.0
  %1661 = vmatpush1.msra.mxu0 0.0
  %1662 = vmatprep.subr.mxu0 0.0
  %1663 = vmatpush1.msra.mxu0 0.0
  %1664 = vmatprep.subr.mxu0 0.0
  %1665 = vmatpush1.msra.mxu0 0.0
  %1666 = vmatprep.subr.mxu0 0.0
  %1667 = vmatpush1.msra.mxu0 0.0
  %1668 = vmatprep.subr.mxu0 0.0
  %1669 = vmatpush1.msra.mxu0 0.0
  %1670 = vmatprep.subr.mxu0 0.0
  %1671 = vmatpush1.msra.mxu0 0.0
  %1672 = vmatprep.subr.mxu0 0.0
  %1673 = vmatpush1.msra.mxu0 0.0
  %1674 = vmatprep.subr.mxu0 0.0
  %1675 = vmatpush1.msra.mxu0 0.0
  %1676 = vmatprep.subr.mxu0 0.0
  %1677 = vmatpush1.msra.mxu0 0.0
  %1678 = vmatprep.subr.mxu0 0.0
  %1679 = vmatpush1.msra.mxu0 0.0
  %1680 = vmatprep.subr.mxu0 0.0
  %1681 = vmatpush1.msra.mxu0 0.0
  %1682 = vmatprep.subr.mxu0 0.0
  %1683 = vmatpush1.msra.mxu0 0.0
  %1684 = vmatprep.subr.mxu0 0.0
  %1685 = vmatpush1.msra.mxu0 0.0
  %1686 = vmatprep.subr.mxu0 0.0
  %1687 = vmatpush1.msra.mxu0 0.0
  %1688 = vmatprep.subr.mxu0 0.0
  %1689 = vmatpush1.msra.mxu0 0.0
  %1690 = vmatprep.subr.mxu0 0.0
  %1691 = vmatpush1.msra.mxu0 0.0
  %1692 = vmatprep.subr.mxu0 0.0
  %1693 = vmatpush1.msra.mxu0 0.0
  %1694 = vmatprep.subr.mxu0 0.0
  %1695 = vmatpush1.msra.mxu0 0.0
  %1696 = vmatprep.subr.mxu0 0.0
  %1697 = vmatpush1.msra.mxu0 0.0
  %1698 = vmatprep.subr.mxu0 0.0
  %1699 = vmatpush1.msra.mxu0 0.0
  %1700 = vmatprep.subr.mxu0 0.0
  %1701 = vmatpush1.msra.mxu0 0.0
  %1702 = vmatprep.subr.mxu0 0.0
  %1703 = vmatpush1.msra.mxu0 0.0
  %1704 = vmatprep.subr.mxu0 0.0
  %1705 = vmatpush1.msra.mxu0 0.0
  %1706 = vmatprep.subr.mxu0 0.0
  %1707 = vmatpush1.msra.mxu0 0.0
  %1708 = vmatprep.mubr.f32.mxu0 0.0
  %1709 = vmatmul.mubr.f32.gmra.mrb[0].mxu0 %v1642
  %v1710 = vpop.f32.mrb[0].mxu0
  %v1711 = vadd.f32 0.0, %v1710
  %v1712 = vpop.f32.mrb[0].mxu0
  %v1713 = vadd.f32 0.0, %v1712
  %1714 = vdwg.mxu0
  %v1715 = vld [vmem:[%s548] sm:$0x3]
  %v1716 = vadd.f32 %v1715, %v1711
  %v1717 = vxor.u32 %v1716, 2147483648
  %v1718 = vmul.f32 %v1717, 1.442695
  %v1719 = vpow.pop %v1718
  %v1720 = vadd.f32 %v1719, 1.0
  %v1721 = vrcp.pop %v1720
  %v1722 = vmul.f32 1.0, %v1721
  %v1723 = vtanh.pop %v1716
  %v1726 = vunpack.c.l.s4 1983009808
  %v1727 = vunpack.c.0.s8 %v1726
  %v1728 = vlaneseq
  %v1729 = vshrl.u32 %v1728, 7
  %v1730 = vsub.s32 %v1727, %v1729
  %v1731 = vrot.slane %v1624, %v1730
  %1732 = vrot.lane.b32.xlu0 %v1731, 32
  %v1733 = vpop.permute.xlu0 %1732
  %v1735 = vmul.f32 %v1722, %v1733
  %1737 = vrot.lane.b32.xlu0 %v1723, 64
  %v1738 = vpop.permute.xlu0 %1737
  %v1740 = vmul.f32 %v1722, %v1738
  %1742 = vrot.lane.b32.xlu0 %v1740, 32
  %v1743 = vpop.permute.xlu0 %1742
  %v1745 = vadd.f32 %v1735, %v1743
  %v1746 = vtanh.pop %v1745
  %1748 = vrot.lane.b32.xlu0 %v1746, 64
  %v1749 = vpop.permute.xlu0 %1748
  %v1751 = vmul.f32 %v1722, %v1749
  %v1754 = vunpack.c.l.s4 1983009808
  %v1755 = vunpack.c.0.s8 %v1754
  %v1756 = vlaneseq
  %v1757 = vshrl.u32 %v1756, 7
  %v1758 = vsub.s32 %v1755, %v1757
  %v1759 = vrot.slane %v1751, %v1758
  %1760 = vrot.lane.b32.xlu0 %v1759, 32
  %v1761 = vpop.permute.xlu0 %1760
  %1763 = vst.msk [vmem:[%s1610] sm:$0x3] %vm993, %v1761
  %v1764 = vld [vmem:[%s443 + $0x2] sm:$0x3]
  %v1765 = vadd.f32 %v1764, %v1713
  %v1766 = vxor.u32 %v1765, 2147483648
  %v1767 = vmul.f32 %v1766, 1.442695
  %v1768 = vpow.pop %v1767
  %v1769 = vadd.f32 %v1768, 1.0
  %v1770 = vrcp.pop %v1769
  %v1771 = vmul.f32 1.0, %v1770
  %v1772 = vtanh.pop %v1765
  %v1773 = vmul.f32 %v1771, %v1624
  %1775 = vrot.lane.b32.xlu0 %v1772, 64
  %v1776 = vpop.permute.xlu0 %1775
  %v1778 = vmul.f32 %v1771, %v1776
  %1780 = vrot.lane.b32.xlu0 %v1778, 32
  %v1781 = vpop.permute.xlu0 %1780
  %v1783 = vadd.f32 %v1773, %v1781
  %v1784 = vtanh.pop %v1783
  %1786 = vrot.lane.b32.xlu0 %v1784, 64
  %v1787 = vpop.permute.xlu0 %1786
  %v1789 = vmul.f32 %v1771, %v1787
  %v1792 = vunpack.c.l.s4 1983009808
  %v1793 = vunpack.c.0.s8 %v1792
  %v1794 = vlaneseq
  %v1795 = vshrl.u32 %v1794, 7
  %v1796 = vsub.s32 %v1793, %v1795
  %v1797 = vrot.slane %v1789, %v1796
  %1798 = vrot.lane.b32.xlu0 %v1797, 64
  %v1799 = vpop.permute.xlu0 %1798
  %1801 = vst.msk [vmem:[%s1571] sm:$0x3] %vm1033, %v1799
  %v1802 = vsel %vm1035, %v1761, %v1799
  %v1805 = vunpack.c.l.s4 1983009808
  %v1806 = vunpack.c.0.s8 %v1805
  %v1807 = vlaneseq
  %v1808 = vshrl.u32 %v1807, 7
  %v1809 = vsub.s32 %v1806, %v1808
  %v1810 = vrot.slane %v1745, %v1809
  %1811 = vrot.lane.b32.xlu0 %v1810, 96
  %v1812 = vpop.permute.xlu0 %1811
  %v1814 = vsel %vm1035, %v1812, %v1783
  %v1815 = vld [vmem:[%s2] sm:$0xff]
  %v1816 = vld [vmem:[%s2 + $0x8] sm:$0xff]
  %v1817 = vld [vmem:[%s2 + $0x10] sm:$0xff]
  %v1818 = vld [vmem:[%s2 + $0x18] sm:$0xff]
  %v1819 = vld [vmem:[%s2 + $0x20] sm:$0xff]
  %v1820 = vld [vmem:[%s2 + $0x28] sm:$0xff]
  %v1821 = vld [vmem:[%s2 + $0x30] sm:$0xff]
  %v1822 = vld [vmem:[%s2 + $0x38] sm:$0xff]
  %v1823 = vld [vmem:[%s2 + $0x40] sm:$0xff]
  %v1824 = vld [vmem:[%s2 + $0x48] sm:$0xff]
  %v1825 = vld [vmem:[%s2 + $0x50] sm:$0xff]
  %v1826 = vld [vmem:[%s2 + $0x58] sm:$0xff]
  %v1827 = vld [vmem:[%s2 + $0x60] sm:$0xff]
  %v1828 = vld [vmem:[%s2 + $0x68] sm:$0xff]
  %v1829 = vld [vmem:[%s2 + $0x70] sm:$0xff]
  %v1830 = vld [vmem:[%s2 + $0x78] sm:$0xff]
  %v1832 = vsel %vm881, %v1802, 0
  %1834 = vmatprep.subr.mxu0 %v1816
  %1835 = vmatpush1.msra.mxu0 %v1815
  %1836 = vmatprep.subr.mxu0 %v1818
  %1837 = vmatpush1.msra.mxu0 %v1817
  %1838 = vmatprep.subr.mxu0 %v1820
  %1839 = vmatpush1.msra.mxu0 %v1819
  %1840 = vmatprep.subr.mxu0 %v1822
  %1841 = vmatpush1.msra.mxu0 %v1821
  %1842 = vmatprep.subr.mxu0 %v1824
  %1843 = vmatpush1.msra.mxu0 %v1823
  %1844 = vmatprep.subr.mxu0 %v1826
  %1845 = vmatpush1.msra.mxu0 %v1825
  %1846 = vmatprep.subr.mxu0 %v1828
  %1847 = vmatpush1.msra.mxu0 %v1827
  %1848 = vmatprep.subr.mxu0 %v1830
  %1849 = vmatpush1.msra.mxu0 %v1829
  %1850 = vmatprep.subr.mxu0 0.0
  %1851 = vmatpush1.msra.mxu0 0.0
  %1852 = vmatprep.subr.mxu0 0.0
  %1853 = vmatpush1.msra.mxu0 0.0
  %1854 = vmatprep.subr.mxu0 0.0
  %1855 = vmatpush1.msra.mxu0 0.0
  %1856 = vmatprep.subr.mxu0 0.0
  %1857 = vmatpush1.msra.mxu0 0.0
  %1858 = vmatprep.subr.mxu0 0.0
  %1859 = vmatpush1.msra.mxu0 0.0
  %1860 = vmatprep.subr.mxu0 0.0
  %1861 = vmatpush1.msra.mxu0 0.0
  %1862 = vmatprep.subr.mxu0 0.0
  %1863 = vmatpush1.msra.mxu0 0.0
  %1864 = vmatprep.subr.mxu0 0.0
  %1865 = vmatpush1.msra.mxu0 0.0
  %1866 = vmatprep.subr.mxu0 0.0
  %1867 = vmatpush1.msra.mxu0 0.0
  %1868 = vmatprep.subr.mxu0 0.0
  %1869 = vmatpush1.msra.mxu0 0.0
  %1870 = vmatprep.subr.mxu0 0.0
  %1871 = vmatpush1.msra.mxu0 0.0
  %1872 = vmatprep.subr.mxu0 0.0
  %1873 = vmatpush1.msra.mxu0 0.0
  %1874 = vmatprep.subr.mxu0 0.0
  %1875 = vmatpush1.msra.mxu0 0.0
  %1876 = vmatprep.subr.mxu0 0.0
  %1877 = vmatpush1.msra.mxu0 0.0
  %1878 = vmatprep.subr.mxu0 0.0
  %1879 = vmatpush1.msra.mxu0 0.0
  %1880 = vmatprep.subr.mxu0 0.0
  %1881 = vmatpush1.msra.mxu0 0.0
  %1882 = vmatprep.subr.mxu0 0.0
  %1883 = vmatpush1.msra.mxu0 0.0
  %1884 = vmatprep.subr.mxu0 0.0
  %1885 = vmatpush1.msra.mxu0 0.0
  %1886 = vmatprep.subr.mxu0 0.0
  %1887 = vmatpush1.msra.mxu0 0.0
  %1888 = vmatprep.subr.mxu0 0.0
  %1889 = vmatpush1.msra.mxu0 0.0
  %1890 = vmatprep.subr.mxu0 0.0
  %1891 = vmatpush1.msra.mxu0 0.0
  %1892 = vmatprep.subr.mxu0 0.0
  %1893 = vmatpush1.msra.mxu0 0.0
  %1894 = vmatprep.subr.mxu0 0.0
  %1895 = vmatpush1.msra.mxu0 0.0
  %1896 = vmatprep.subr.mxu0 0.0
  %1897 = vmatpush1.msra.mxu0 0.0
  %1898 = vmatprep.mubr.f32.mxu0 0.0
  %1899 = vmatmul.mubr.f32.gmra.mrb[0].mxu0 %v1832
  %v1900 = vpop.f32.mrb[0].mxu0
  %v1901 = vadd.f32 0.0, %v1900
  %v1902 = vpop.f32.mrb[0].mxu0
  %v1903 = vadd.f32 0.0, %v1902
  %1904 = vdwg.mxu0
  %v1905 = vld [vmem:[%s653] sm:$0x3]
  %v1906 = vadd.f32 %v1905, %v1901
  %v1907 = vxor.u32 %v1906, 2147483648
  %v1908 = vmul.f32 %v1907, 1.442695
  %v1909 = vpow.pop %v1908
  %v1910 = vadd.f32 %v1909, 1.0
  %v1911 = vrcp.pop %v1910
  %v1912 = vmul.f32 1.0, %v1911
  %v1913 = vtanh.pop %v1906
  %v1916 = vunpack.c.l.s4 1983009808
  %v1917 = vunpack.c.0.s8 %v1916
  %v1918 = vlaneseq
  %v1919 = vshrl.u32 %v1918, 7
  %v1920 = vsub.s32 %v1917, %v1919
  %v1921 = vrot.slane %v1814, %v1920
  %1922 = vrot.lane.b32.xlu0 %v1921, 32
  %v1923 = vpop.permute.xlu0 %1922
  %v1925 = vmul.f32 %v1912, %v1923
  %1927 = vrot.lane.b32.xlu0 %v1913, 64
  %v1928 = vpop.permute.xlu0 %1927
  %v1930 = vmul.f32 %v1912, %v1928
  %1932 = vrot.lane.b32.xlu0 %v1930, 32
  %v1933 = vpop.permute.xlu0 %1932
  %v1935 = vadd.f32 %v1925, %v1933
  %v1936 = vtanh.pop %v1935
  %1938 = vrot.lane.b32.xlu0 %v1936, 64
  %v1939 = vpop.permute.xlu0 %1938
  %v1941 = vmul.f32 %v1912, %v1939
  %v1944 = vunpack.c.l.s4 1983009808
  %v1945 = vunpack.c.0.s8 %v1944
  %v1946 = vlaneseq
  %v1947 = vshrl.u32 %v1946, 7
  %v1948 = vsub.s32 %v1945, %v1947
  %v1949 = vrot.slane %v1941, %v1948
  %1950 = vrot.lane.b32.xlu0 %v1949, 32
  %v1951 = vpop.permute.xlu0 %1950
  %1953 = vst.msk [vmem:[%s1418] sm:$0x3] %vm993, %v1951
  %v1954 = vld [vmem:[%s338 + $0x2] sm:$0x3]
  %v1955 = vadd.f32 %v1954, %v1903
  %v1956 = vxor.u32 %v1955, 2147483648
  %v1957 = vmul.f32 %v1956, 1.442695
  %v1958 = vpow.pop %v1957
  %v1959 = vadd.f32 %v1958, 1.0
  %v1960 = vrcp.pop %v1959
  %v1961 = vmul.f32 1.0, %v1960
  %v1962 = vtanh.pop %v1955
  %v1963 = vmul.f32 %v1961, %v1814
  %1965 = vrot.lane.b32.xlu0 %v1962, 64
  %v1966 = vpop.permute.xlu0 %1965
  %v1968 = vmul.f32 %v1961, %v1966
  %1970 = vrot.lane.b32.xlu0 %v1968, 32
  %v1971 = vpop.permute.xlu0 %1970
  %v1973 = vadd.f32 %v1963, %v1971
  %v1974 = vtanh.pop %v1973
  %1976 = vrot.lane.b32.xlu0 %v1974, 64
  %v1977 = vpop.permute.xlu0 %1976
  %v1979 = vmul.f32 %v1961, %v1977
  %v1982 = vunpack.c.l.s4 1983009808
  %v1983 = vunpack.c.0.s8 %v1982
  %v1984 = vlaneseq
  %v1985 = vshrl.u32 %v1984, 7
  %v1986 = vsub.s32 %v1983, %v1985
  %v1987 = vrot.slane %v1979, %v1986
  %1988 = vrot.lane.b32.xlu0 %v1987, 64
  %v1989 = vpop.permute.xlu0 %1988
  %1991 = vst.msk [vmem:[%s1379] sm:$0x3] %vm1033, %v1989
  %v1992 = vsel %vm1035, %v1951, %v1989
  %v1995 = vunpack.c.l.s4 1983009808
  %v1996 = vunpack.c.0.s8 %v1995
  %v1997 = vlaneseq
  %v1998 = vshrl.u32 %v1997, 7
  %v1999 = vsub.s32 %v1996, %v1998
  %v2000 = vrot.slane %v1935, %v1999
  %2001 = vrot.lane.b32.xlu0 %v2000, 96
  %v2002 = vpop.permute.xlu0 %2001
  %v2004 = vsel %vm1035, %v2002, %v1973
  %v2005 = vld [vmem:[%s2] sm:$0xff]
  %v2006 = vld [vmem:[%s2 + $0x8] sm:$0xff]
  %v2007 = vld [vmem:[%s2 + $0x10] sm:$0xff]
  %v2008 = vld [vmem:[%s2 + $0x18] sm:$0xff]
  %v2009 = vld [vmem:[%s2 + $0x20] sm:$0xff]
  %v2010 = vld [vmem:[%s2 + $0x28] sm:$0xff]
  %v2011 = vld [vmem:[%s2 + $0x30] sm:$0xff]
  %v2012 = vld [vmem:[%s2 + $0x38] sm:$0xff]
  %v2013 = vld [vmem:[%s2 + $0x40] sm:$0xff]
  %v2014 = vld [vmem:[%s2 + $0x48] sm:$0xff]
  %v2015 = vld [vmem:[%s2 + $0x50] sm:$0xff]
  %v2016 = vld [vmem:[%s2 + $0x58] sm:$0xff]
  %v2017 = vld [vmem:[%s2 + $0x60] sm:$0xff]
  %v2018 = vld [vmem:[%s2 + $0x68] sm:$0xff]
  %v2019 = vld [vmem:[%s2 + $0x70] sm:$0xff]
  %v2020 = vld [vmem:[%s2 + $0x78] sm:$0xff]
  %v2022 = vsel %vm881, %v1992, 0
  %2024 = vmatprep.subr.mxu0 %v2006
  %2025 = vmatpush1.msra.mxu0 %v2005
  %2026 = vmatprep.subr.mxu0 %v2008
  %2027 = vmatpush1.msra.mxu0 %v2007
  %2028 = vmatprep.subr.mxu0 %v2010
  %2029 = vmatpush1.msra.mxu0 %v2009
  %2030 = vmatprep.subr.mxu0 %v2012
  %2031 = vmatpush1.msra.mxu0 %v2011
  %2032 = vmatprep.subr.mxu0 %v2014
  %2033 = vmatpush1.msra.mxu0 %v2013
  %2034 = vmatprep.subr.mxu0 %v2016
  %2035 = vmatpush1.msra.mxu0 %v2015
  %2036 = vmatprep.subr.mxu0 %v2018
  %2037 = vmatpush1.msra.mxu0 %v2017
  %2038 = vmatprep.subr.mxu0 %v2020
  %2039 = vmatpush1.msra.mxu0 %v2019
  %2040 = vmatprep.subr.mxu0 0.0
  %2041 = vmatpush1.msra.mxu0 0.0
  %2042 = vmatprep.subr.mxu0 0.0
  %2043 = vmatpush1.msra.mxu0 0.0
  %2044 = vmatprep.subr.mxu0 0.0
  %2045 = vmatpush1.msra.mxu0 0.0
  %2046 = vmatprep.subr.mxu0 0.0
  %2047 = vmatpush1.msra.mxu0 0.0
  %2048 = vmatprep.subr.mxu0 0.0
  %2049 = vmatpush1.msra.mxu0 0.0
  %2050 = vmatprep.subr.mxu0 0.0
  %2051 = vmatpush1.msra.mxu0 0.0
  %2052 = vmatprep.subr.mxu0 0.0
  %2053 = vmatpush1.msra.mxu0 0.0
  %2054 = vmatprep.subr.mxu0 0.0
  %2055 = vmatpush1.msra.mxu0 0.0
  %2056 = vmatprep.subr.mxu0 0.0
  %2057 = vmatpush1.msra.mxu0 0.0
  %2058 = vmatprep.subr.mxu0 0.0
  %2059 = vmatpush1.msra.mxu0 0.0
  %2060 = vmatprep.subr.mxu0 0.0
  %2061 = vmatpush1.msra.mxu0 0.0
  %2062 = vmatprep.subr.mxu0 0.0
  %2063 = vmatpush1.msra.mxu0 0.0
  %2064 = vmatprep.subr.mxu0 0.0
  %2065 = vmatpush1.msra.mxu0 0.0
  %2066 = vmatprep.subr.mxu0 0.0
  %2067 = vmatpush1.msra.mxu0 0.0
  %2068 = vmatprep.subr.mxu0 0.0
  %2069 = vmatpush1.msra.mxu0 0.0
  %2070 = vmatprep.subr.mxu0 0.0
  %2071 = vmatpush1.msra.mxu0 0.0
  %2072 = vmatprep.subr.mxu0 0.0
  %2073 = vmatpush1.msra.mxu0 0.0
  %2074 = vmatprep.subr.mxu0 0.0
  %2075 = vmatpush1.msra.mxu0 0.0
  %2076 = vmatprep.subr.mxu0 0.0
  %2077 = vmatpush1.msra.mxu0 0.0
  %2078 = vmatprep.subr.mxu0 0.0
  %2079 = vmatpush1.msra.mxu0 0.0
  %2080 = vmatprep.subr.mxu0 0.0
  %2081 = vmatpush1.msra.mxu0 0.0
  %2082 = vmatprep.subr.mxu0 0.0
  %2083 = vmatpush1.msra.mxu0 0.0
  %2084 = vmatprep.subr.mxu0 0.0
  %2085 = vmatpush1.msra.mxu0 0.0
  %2086 = vmatprep.subr.mxu0 0.0
  %2087 = vmatpush1.msra.mxu0 0.0
  %2088 = vmatprep.mubr.f32.mxu0 0.0
  %2089 = vmatmul.mubr.f32.gmra.mrb[0].mxu0 %v2022
  %v2090 = vpop.f32.mrb[0].mxu0
  %v2091 = vadd.f32 0.0, %v2090
  %v2092 = vpop.f32.mrb[0].mxu0
  %v2093 = vadd.f32 0.0, %v2092
  %2094 = vdwg.mxu0
  %v2095 = vld [vmem:[%s758] sm:$0x3]
  %v2096 = vadd.f32 %v2095, %v2091
  %v2097 = vxor.u32 %v2096, 2147483648
  %v2098 = vmul.f32 %v2097, 1.442695
  %v2099 = vpow.pop %v2098
  %v2100 = vadd.f32 %v2099, 1.0
  %v2101 = vrcp.pop %v2100
  %v2102 = vmul.f32 1.0, %v2101
  %v2103 = vtanh.pop %v2096
  %v2106 = vunpack.c.l.s4 1983009808
  %v2107 = vunpack.c.0.s8 %v2106
  %v2108 = vlaneseq
  %v2109 = vshrl.u32 %v2108, 7
  %v2110 = vsub.s32 %v2107, %v2109
  %v2111 = vrot.slane %v2004, %v2110
  %2112 = vrot.lane.b32.xlu0 %v2111, 32
  %v2113 = vpop.permute.xlu0 %2112
  %v2115 = vmul.f32 %v2102, %v2113
  %2117 = vrot.lane.b32.xlu0 %v2103, 64
  %v2118 = vpop.permute.xlu0 %2117
  %v2120 = vmul.f32 %v2102, %v2118
  %2122 = vrot.lane.b32.xlu0 %v2120, 32
  %v2123 = vpop.permute.xlu0 %2122
  %v2125 = vadd.f32 %v2115, %v2123
  %v2126 = vtanh.pop %v2125
  %2128 = vrot.lane.b32.xlu0 %v2126, 64
  %v2129 = vpop.permute.xlu0 %2128
  %v2131 = vmul.f32 %v2102, %v2129
  %v2134 = vunpack.c.l.s4 1983009808
  %v2135 = vunpack.c.0.s8 %v2134
  %v2136 = vlaneseq
  %v2137 = vshrl.u32 %v2136, 7
  %v2138 = vsub.s32 %v2135, %v2137
  %v2139 = vrot.slane %v2131, %v2138
  %2140 = vrot.lane.b32.xlu0 %v2139, 32
  %v2141 = vpop.permute.xlu0 %2140
  %2143 = vst.msk [vmem:[%s1226] sm:$0x3] %vm993, %v2141
  %v2144 = vld [vmem:[%s233 + $0x2] sm:$0x3]
  %v2145 = vadd.f32 %v2144, %v2093
  %v2146 = vxor.u32 %v2145, 2147483648
  %v2147 = vmul.f32 %v2146, 1.442695
  %v2148 = vpow.pop %v2147
  %v2149 = vadd.f32 %v2148, 1.0
  %v2150 = vrcp.pop %v2149
  %v2151 = vmul.f32 1.0, %v2150
  %v2152 = vtanh.pop %v2145
  %v2153 = vmul.f32 %v2151, %v2004
  %2155 = vrot.lane.b32.xlu0 %v2152, 64
  %v2156 = vpop.permute.xlu0 %2155
  %v2158 = vmul.f32 %v2151, %v2156
  %2160 = vrot.lane.b32.xlu0 %v2158, 32
  %v2161 = vpop.permute.xlu0 %2160
  %v2163 = vadd.f32 %v2153, %v2161
  %v2164 = vtanh.pop %v2163
  %2166 = vrot.lane.b32.xlu0 %v2164, 64
  %v2167 = vpop.permute.xlu0 %2166
  %v2169 = vmul.f32 %v2151, %v2167
  %v2172 = vunpack.c.l.s4 1983009808
  %v2173 = vunpack.c.0.s8 %v2172
  %v2174 = vlaneseq
  %v2175 = vshrl.u32 %v2174, 7
  %v2176 = vsub.s32 %v2173, %v2175
  %v2177 = vrot.slane %v2169, %v2176
  %2178 = vrot.lane.b32.xlu0 %v2177, 64
  %v2179 = vpop.permute.xlu0 %2178
  %2181 = vst.msk [vmem:[%s1187] sm:$0x3] %vm1033, %v2179
  %v2182 = vsel %vm1035, %v2141, %v2179
  %v2185 = vunpack.c.l.s4 1983009808
  %v2186 = vunpack.c.0.s8 %v2185
  %v2187 = vlaneseq
  %v2188 = vshrl.u32 %v2187, 7
  %v2189 = vsub.s32 %v2186, %v2188
  %v2190 = vrot.slane %v2125, %v2189
  %2191 = vrot.lane.b32.xlu0 %v2190, 96
  %v2192 = vpop.permute.xlu0 %2191
  %v2194 = vsel %vm1035, %v2192, %v2163
  %v2195 = vld [vmem:[%s2] sm:$0xff]
  %v2196 = vld [vmem:[%s2 + $0x8] sm:$0xff]
  %v2197 = vld [vmem:[%s2 + $0x10] sm:$0xff]
  %v2198 = vld [vmem:[%s2 + $0x18] sm:$0xff]
  %v2199 = vld [vmem:[%s2 + $0x20] sm:$0xff]
  %v2200 = vld [vmem:[%s2 + $0x28] sm:$0xff]
  %v2201 = vld [vmem:[%s2 + $0x30] sm:$0xff]
  %v2202 = vld [vmem:[%s2 + $0x38] sm:$0xff]
  %v2203 = vld [vmem:[%s2 + $0x40] sm:$0xff]
  %v2204 = vld [vmem:[%s2 + $0x48] sm:$0xff]
  %v2205 = vld [vmem:[%s2 + $0x50] sm:$0xff]
  %v2206 = vld [vmem:[%s2 + $0x58] sm:$0xff]
  %v2207 = vld [vmem:[%s2 + $0x60] sm:$0xff]
  %v2208 = vld [vmem:[%s2 + $0x68] sm:$0xff]
  %v2209 = vld [vmem:[%s2 + $0x70] sm:$0xff]
  %v2210 = vld [vmem:[%s2 + $0x78] sm:$0xff]
  %v2212 = vsel %vm881, %v2182, 0
  %2214 = vmatprep.subr.mxu0 %v2196
  %2215 = vmatpush1.msra.mxu0 %v2195
  %2216 = vmatprep.subr.mxu0 %v2198
  %2217 = vmatpush1.msra.mxu0 %v2197
  %2218 = vmatprep.subr.mxu0 %v2200
  %2219 = vmatpush1.msra.mxu0 %v2199
  %2220 = vmatprep.subr.mxu0 %v2202
  %2221 = vmatpush1.msra.mxu0 %v2201
  %2222 = vmatprep.subr.mxu0 %v2204
  %2223 = vmatpush1.msra.mxu0 %v2203
  %2224 = vmatprep.subr.mxu0 %v2206
  %2225 = vmatpush1.msra.mxu0 %v2205
  %2226 = vmatprep.subr.mxu0 %v2208
  %2227 = vmatpush1.msra.mxu0 %v2207
  %2228 = vmatprep.subr.mxu0 %v2210
  %2229 = vmatpush1.msra.mxu0 %v2209
  %2230 = vmatprep.subr.mxu0 0.0
  %2231 = vmatpush1.msra.mxu0 0.0
  %2232 = vmatprep.subr.mxu0 0.0
  %2233 = vmatpush1.msra.mxu0 0.0
  %2234 = vmatprep.subr.mxu0 0.0
  %2235 = vmatpush1.msra.mxu0 0.0
  %2236 = vmatprep.subr.mxu0 0.0
  %2237 = vmatpush1.msra.mxu0 0.0
  %2238 = vmatprep.subr.mxu0 0.0
  %2239 = vmatpush1.msra.mxu0 0.0
  %2240 = vmatprep.subr.mxu0 0.0
  %2241 = vmatpush1.msra.mxu0 0.0
  %2242 = vmatprep.subr.mxu0 0.0
  %2243 = vmatpush1.msra.mxu0 0.0
  %2244 = vmatprep.subr.mxu0 0.0
  %2245 = vmatpush1.msra.mxu0 0.0
  %2246 = vmatprep.subr.mxu0 0.0
  %2247 = vmatpush1.msra.mxu0 0.0
  %2248 = vmatprep.subr.mxu0 0.0
  %2249 = vmatpush1.msra.mxu0 0.0
  %2250 = vmatprep.subr.mxu0 0.0
  %2251 = vmatpush1.msra.mxu0 0.0
  %2252 = vmatprep.subr.mxu0 0.0
  %2253 = vmatpush1.msra.mxu0 0.0
  %2254 = vmatprep.subr.mxu0 0.0
  %2255 = vmatpush1.msra.mxu0 0.0
  %2256 = vmatprep.subr.mxu0 0.0
  %2257 = vmatpush1.msra.mxu0 0.0
  %2258 = vmatprep.subr.mxu0 0.0
  %2259 = vmatpush1.msra.mxu0 0.0
  %2260 = vmatprep.subr.mxu0 0.0
  %2261 = vmatpush1.msra.mxu0 0.0
  %2262 = vmatprep.subr.mxu0 0.0
  %2263 = vmatpush1.msra.mxu0 0.0
  %2264 = vmatprep.subr.mxu0 0.0
  %2265 = vmatpush1.msra.mxu0 0.0
  %2266 = vmatprep.subr.mxu0 0.0
  %2267 = vmatpush1.msra.mxu0 0.0
  %2268 = vmatprep.subr.mxu0 0.0
  %2269 = vmatpush1.msra.mxu0 0.0
  %2270 = vmatprep.subr.mxu0 0.0
  %2271 = vmatpush1.msra.mxu0 0.0
  %2272 = vmatprep.subr.mxu0 0.0
  %2273 = vmatpush1.msra.mxu0 0.0
  %2274 = vmatprep.subr.mxu0 0.0
  %2275 = vmatpush1.msra.mxu0 0.0
  %2276 = vmatprep.subr.mxu0 0.0
  %2277 = vmatpush1.msra.mxu0 0.0
  %2278 = vmatprep.mubr.f32.mxu0 0.0
  %2279 = vmatmul.mubr.f32.gmra.mrb[0].mxu0 %v2212
  %v2280 = vpop.f32.mrb[0].mxu0
  %v2281 = vadd.f32 0.0, %v2280
  %v2282 = vpop.f32.mrb[0].mxu0
  %v2283 = vadd.f32 0.0, %v2282
  %2284 = vdwg.mxu0
  %v2285 = vld [vmem:[%s863] sm:$0x3]
  %v2286 = vadd.f32 %v2285, %v2281
  %v2287 = vxor.u32 %v2286, 2147483648
  %v2288 = vmul.f32 %v2287, 1.442695
  %v2289 = vpow.pop %v2288
  %v2290 = vadd.f32 %v2289, 1.0
  %v2291 = vrcp.pop %v2290
  %v2292 = vmul.f32 1.0, %v2291
  %v2293 = vtanh.pop %v2286
  %v2296 = vunpack.c.l.s4 1983009808
  %v2297 = vunpack.c.0.s8 %v2296
  %v2298 = vlaneseq
  %v2299 = vshrl.u32 %v2298, 7
  %v2300 = vsub.s32 %v2297, %v2299
  %v2301 = vrot.slane %v2194, %v2300
  %2302 = vrot.lane.b32.xlu0 %v2301, 32
  %v2303 = vpop.permute.xlu0 %2302
  %v2305 = vmul.f32 %v2292, %v2303
  %2307 = vrot.lane.b32.xlu0 %v2293, 64
  %v2308 = vpop.permute.xlu0 %2307
  %v2310 = vmul.f32 %v2292, %v2308
  %2312 = vrot.lane.b32.xlu0 %v2310, 32
  %v2313 = vpop.permute.xlu0 %2312
  %v2315 = vadd.f32 %v2305, %v2313
  %v2316 = vtanh.pop %v2315
  %2318 = vrot.lane.b32.xlu0 %v2316, 64
  %v2319 = vpop.permute.xlu0 %2318
  %v2321 = vmul.f32 %v2292, %v2319
  %v2324 = vunpack.c.l.s4 1983009808
  %v2325 = vunpack.c.0.s8 %v2324
  %v2326 = vlaneseq
  %v2327 = vshrl.u32 %v2326, 7
  %v2328 = vsub.s32 %v2325, %v2327
  %v2329 = vrot.slane %v2321, %v2328
  %2330 = vrot.lane.b32.xlu0 %v2329, 32
  %v2331 = vpop.permute.xlu0 %2330
  %2333 = vst.msk [vmem:[%s1032] sm:$0x3] %vm993, %v2331
  %v2334 = vld [vmem:[#allocation2 + $0x2] sm:$0x3]
  %v2335 = vadd.f32 %v2334, %v2283
  %v2336 = vxor.u32 %v2335, 2147483648
  %v2337 = vmul.f32 %v2336, 1.442695
  %v2338 = vpow.pop %v2337
  %v2339 = vadd.f32 %v2338, 1.0
  %v2340 = vrcp.pop %v2339
  %v2341 = vmul.f32 1.0, %v2340
  %v2342 = vtanh.pop %v2335
  %v2343 = vmul.f32 %v2341, %v2194
  %2345 = vrot.lane.b32.xlu0 %v2342, 64
  %v2346 = vpop.permute.xlu0 %2345
  %v2348 = vmul.f32 %v2341, %v2346
  %2350 = vrot.lane.b32.xlu0 %v2348, 32
  %v2351 = vpop.permute.xlu0 %2350
  %v2353 = vadd.f32 %v2343, %v2351
  %v2354 = vtanh.pop %v2353
  %2356 = vrot.lane.b32.xlu0 %v2354, 64
  %v2357 = vpop.permute.xlu0 %2356
  %v2359 = vmul.f32 %v2341, %v2357
  %v2362 = vunpack.c.l.s4 1983009808
  %v2363 = vunpack.c.0.s8 %v2362
  %v2364 = vlaneseq
  %v2365 = vshrl.u32 %v2364, 7
  %v2366 = vsub.s32 %v2363, %v2365
  %v2367 = vrot.slane %v2359, %v2366
  %2368 = vrot.lane.b32.xlu0 %v2367, 64
  %v2369 = vpop.permute.xlu0 %2368
  %2371 = vst.msk [vmem:[#allocation3] sm:$0x3] %vm1033, %v2369
  %v2372 = vld [vmem:[#allocation3] sm:$0x3]
  %v2373 = vld [vmem:[%s4] sm:$0xff]
  %v2374 = vld [vmem:[%s4 + $0x8] sm:$0xff]
  %v2375 = vld [vmem:[%s4 + $0x10] sm:$0xff]
  %v2376 = vld [vmem:[%s4 + $0x18] sm:$0xff]
  %v2377 = vld [vmem:[%s4 + $0x20] sm:$0xff]
  %v2378 = vld [vmem:[%s4 + $0x28] sm:$0xff]
  %v2379 = vld [vmem:[%s4 + $0x30] sm:$0xff]
  %v2380 = vld [vmem:[%s4 + $0x38] sm:$0xff]
  %v2381 = vld [vmem:[%s4 + $0x40] sm:$0xff]
  %v2382 = vld [vmem:[%s4 + $0x48] sm:$0xff]
  %v2383 = vld [vmem:[%s4 + $0x50] sm:$0xff]
  %v2384 = vld [vmem:[%s4 + $0x58] sm:$0xff]
  %v2385 = vld [vmem:[%s4 + $0x60] sm:$0xff]
  %v2386 = vld [vmem:[%s4 + $0x68] sm:$0xff]
  %v2387 = vld [vmem:[%s4 + $0x70] sm:$0xff]
  %v2388 = vld [vmem:[%s4 + $0x78] sm:$0xff]
  %v2389 = vld [vmem:[%s6] sm:$0x3]
  %v2391 = vlaneseq
  %v2392 = vshrl.u32 %v2391, 7
  %v2393 = vsub.s32 0, %v2392
  %v2394 = vrot.slane %v2389, %v2393
  %v2395 = vlaneseq
  %v2396 = vshrl.u32 %v2395, 7
  %v2397 = vsub.s32 1, %v2396
  %v2398 = vrot.slane %v2389, %v2397
  %v2402 = vsel %vm881, %v2372, 0
  %2404 = vmatprep.subr.mxu0 %v2374
  %2405 = vmatpush1.msra.mxu0 %v2373
  %2406 = vmatprep.subr.mxu0 %v2376
  %2407 = vmatpush1.msra.mxu0 %v2375
  %2408 = vmatprep.subr.mxu0 %v2378
  %2409 = vmatpush1.msra.mxu0 %v2377
  %2410 = vmatprep.subr.mxu0 %v2380
  %2411 = vmatpush1.msra.mxu0 %v2379
  %2412 = vmatprep.subr.mxu0 %v2382
  %2413 = vmatpush1.msra.mxu0 %v2381
  %2414 = vmatprep.subr.mxu0 %v2384
  %2415 = vmatpush1.msra.mxu0 %v2383
  %2416 = vmatprep.subr.mxu0 %v2386
  %2417 = vmatpush1.msra.mxu0 %v2385
  %2418 = vmatprep.subr.mxu0 %v2388
  %2419 = vmatpush1.msra.mxu0 %v2387
  %2420 = vmatprep.subr.mxu0 0.0
  %2421 = vmatpush1.msra.mxu0 0.0
  %2422 = vmatprep.subr.mxu0 0.0
  %2423 = vmatpush1.msra.mxu0 0.0
  %2424 = vmatprep.subr.mxu0 0.0
  %2425 = vmatpush1.msra.mxu0 0.0
  %2426 = vmatprep.subr.mxu0 0.0
  %2427 = vmatpush1.msra.mxu0 0.0
  %2428 = vmatprep.subr.mxu0 0.0
  %2429 = vmatpush1.msra.mxu0 0.0
  %2430 = vmatprep.subr.mxu0 0.0
  %2431 = vmatpush1.msra.mxu0 0.0
  %2432 = vmatprep.subr.mxu0 0.0
  %2433 = vmatpush1.msra.mxu0 0.0
  %2434 = vmatprep.subr.mxu0 0.0
  %2435 = vmatpush1.msra.mxu0 0.0
  %2436 = vmatprep.subr.mxu0 0.0
  %2437 = vmatpush1.msra.mxu0 0.0
  %2438 = vmatprep.subr.mxu0 0.0
  %2439 = vmatpush1.msra.mxu0 0.0
  %2440 = vmatprep.subr.mxu0 0.0
  %2441 = vmatpush1.msra.mxu0 0.0
  %2442 = vmatprep.subr.mxu0 0.0
  %2443 = vmatpush1.msra.mxu0 0.0
  %2444 = vmatprep.subr.mxu0 0.0
  %2445 = vmatpush1.msra.mxu0 0.0
  %2446 = vmatprep.subr.mxu0 0.0
  %2447 = vmatpush1.msra.mxu0 0.0
  %2448 = vmatprep.subr.mxu0 0.0
  %2449 = vmatpush1.msra.mxu0 0.0
  %2450 = vmatprep.subr.mxu0 0.0
  %2451 = vmatpush1.msra.mxu0 0.0
  %2452 = vmatprep.subr.mxu0 0.0
  %2453 = vmatpush1.msra.mxu0 0.0
  %2454 = vmatprep.subr.mxu0 0.0
  %2455 = vmatpush1.msra.mxu0 0.0
  %2456 = vmatprep.subr.mxu0 0.0
  %2457 = vmatpush1.msra.mxu0 0.0
  %2458 = vmatprep.subr.mxu0 0.0
  %2459 = vmatpush1.msra.mxu0 0.0
  %2460 = vmatprep.subr.mxu0 0.0
  %2461 = vmatpush1.msra.mxu0 0.0
  %2462 = vmatprep.subr.mxu0 0.0
  %2463 = vmatpush1.msra.mxu0 0.0
  %2464 = vmatprep.subr.mxu0 0.0
  %2465 = vmatpush1.msra.mxu0 0.0
  %2466 = vmatprep.subr.mxu0 0.0
  %2467 = vmatpush1.msra.mxu0 0.0
  %2468 = vmatprep.mubr.f32.mxu0 0.0
  %2469 = vmatmul.mubr.f32.gmra.mrb[0].mxu0 %v2402
  %v2470 = vpop.f32.mrb[0].mxu0
  %v2471 = vadd.f32 %v2394, %v2470
  %v2472 = vpop.f32.mrb[0].mxu0
  %v2473 = vadd.f32 %v2398, %v2472
  %2474 = vdwg.mxu0
  %v2477 = vcombine.low %v2471, %v2473
  %v2479 = vunpack.c.l.s4 1983009808
  %v2480 = vunpack.c.0.s8 %v2479
  %v2481 = vlaneseq
  %v2482 = vshrl.u32 %v2481, 7
  %v2483 = vsub.s32 %v2480, %v2482
  %v2484 = vrot.slane %v2477, %v2483
  %2486 = vst [vmem:[#allocation2] sm:$0xf] %v2484
  %v2487 = vld [vmem:[%s1187] sm:$0x3]
  %v2488 = vld [vmem:[%s4] sm:$0xff]
  %v2489 = vld [vmem:[%s4 + $0x8] sm:$0xff]
  %v2490 = vld [vmem:[%s4 + $0x10] sm:$0xff]
  %v2491 = vld [vmem:[%s4 + $0x18] sm:$0xff]
  %v2492 = vld [vmem:[%s4 + $0x20] sm:$0xff]
  %v2493 = vld [vmem:[%s4 + $0x28] sm:$0xff]
  %v2494 = vld [vmem:[%s4 + $0x30] sm:$0xff]
  %v2495 = vld [vmem:[%s4 + $0x38] sm:$0xff]
  %v2496 = vld [vmem:[%s4 + $0x40] sm:$0xff]
  %v2497 = vld [vmem:[%s4 + $0x48] sm:$0xff]
  %v2498 = vld [vmem:[%s4 + $0x50] sm:$0xff]
  %v2499 = vld [vmem:[%s4 + $0x58] sm:$0xff]
  %v2500 = vld [vmem:[%s4 + $0x60] sm:$0xff]
  %v2501 = vld [vmem:[%s4 + $0x68] sm:$0xff]
  %v2502 = vld [vmem:[%s4 + $0x70] sm:$0xff]
  %v2503 = vld [vmem:[%s4 + $0x78] sm:$0xff]
  %v2504 = vld [vmem:[%s6] sm:$0x3]
  %v2506 = vlaneseq
  %v2507 = vshrl.u32 %v2506, 7
  %v2508 = vsub.s32 0, %v2507
  %v2509 = vrot.slane %v2504, %v2508
  %v2510 = vlaneseq
  %v2511 = vshrl.u32 %v2510, 7
  %v2512 = vsub.s32 1, %v2511
  %v2513 = vrot.slane %v2504, %v2512
  %v2517 = vsel %vm881, %v2487, 0
  %2519 = vmatprep.subr.mxu0 %v2489
  %2520 = vmatpush1.msra.mxu0 %v2488
  %2521 = vmatprep.subr.mxu0 %v2491
  %2522 = vmatpush1.msra.mxu0 %v2490
  %2523 = vmatprep.subr.mxu0 %v2493
  %2524 = vmatpush1.msra.mxu0 %v2492
  %2525 = vmatprep.subr.mxu0 %v2495
  %2526 = vmatpush1.msra.mxu0 %v2494
  %2527 = vmatprep.subr.mxu0 %v2497
  %2528 = vmatpush1.msra.mxu0 %v2496
  %2529 = vmatprep.subr.mxu0 %v2499
  %2530 = vmatpush1.msra.mxu0 %v2498
  %2531 = vmatprep.subr.mxu0 %v2501
  %2532 = vmatpush1.msra.mxu0 %v2500
  %2533 = vmatprep.subr.mxu0 %v2503
  %2534 = vmatpush1.msra.mxu0 %v2502
  %2535 = vmatprep.subr.mxu0 0.0
  %2536 = vmatpush1.msra.mxu0 0.0
  %2537 = vmatprep.subr.mxu0 0.0
  %2538 = vmatpush1.msra.mxu0 0.0
  %2539 = vmatprep.subr.mxu0 0.0
  %2540 = vmatpush1.msra.mxu0 0.0
  %2541 = vmatprep.subr.mxu0 0.0
  %2542 = vmatpush1.msra.mxu0 0.0
  %2543 = vmatprep.subr.mxu0 0.0
  %2544 = vmatpush1.msra.mxu0 0.0
  %2545 = vmatprep.subr.mxu0 0.0
  %2546 = vmatpush1.msra.mxu0 0.0
  %2547 = vmatprep.subr.mxu0 0.0
  %2548 = vmatpush1.msra.mxu0 0.0
  %2549 = vmatprep.subr.mxu0 0.0
  %2550 = vmatpush1.msra.mxu0 0.0
  %2551 = vmatprep.subr.mxu0 0.0
  %2552 = vmatpush1.msra.mxu0 0.0
  %2553 = vmatprep.subr.mxu0 0.0
  %2554 = vmatpush1.msra.mxu0 0.0
  %2555 = vmatprep.subr.mxu0 0.0
  %2556 = vmatpush1.msra.mxu0 0.0
  %2557 = vmatprep.subr.mxu0 0.0
  %2558 = vmatpush1.msra.mxu0 0.0
  %2559 = vmatprep.subr.mxu0 0.0
  %2560 = vmatpush1.msra.mxu0 0.0
  %2561 = vmatprep.subr.mxu0 0.0
  %2562 = vmatpush1.msra.mxu0 0.0
  %2563 = vmatprep.subr.mxu0 0.0
  %2564 = vmatpush1.msra.mxu0 0.0
  %2565 = vmatprep.subr.mxu0 0.0
  %2566 = vmatpush1.msra.mxu0 0.0
  %2567 = vmatprep.subr.mxu0 0.0
  %2568 = vmatpush1.msra.mxu0 0.0
  %2569 = vmatprep.subr.mxu0 0.0
  %2570 = vmatpush1.msra.mxu0 0.0
  %2571 = vmatprep.subr.mxu0 0.0
  %2572 = vmatpush1.msra.mxu0 0.0
  %2573 = vmatprep.subr.mxu0 0.0
  %2574 = vmatpush1.msra.mxu0 0.0
  %2575 = vmatprep.subr.mxu0 0.0
  %2576 = vmatpush1.msra.mxu0 0.0
  %2577 = vmatprep.subr.mxu0 0.0
  %2578 = vmatpush1.msra.mxu0 0.0
  %2579 = vmatprep.subr.mxu0 0.0
  %2580 = vmatpush1.msra.mxu0 0.0
  %2581 = vmatprep.subr.mxu0 0.0
  %2582 = vmatpush1.msra.mxu0 0.0
  %2583 = vmatprep.mubr.f32.mxu0 0.0
  %2584 = vmatmul.mubr.f32.gmra.mrb[0].mxu0 %v2517
  %v2585 = vpop.f32.mrb[0].mxu0
  %v2586 = vadd.f32 %v2509, %v2585
  %v2587 = vpop.f32.mrb[0].mxu0
  %v2588 = vadd.f32 %v2513, %v2587
  %2589 = vdwg.mxu0
  %v2592 = vcombine.low %v2586, %v2588
  %v2594 = vunpack.c.l.s4 1983009808
  %v2595 = vunpack.c.0.s8 %v2594
  %v2596 = vlaneseq
  %v2597 = vshrl.u32 %v2596, 7
  %v2598 = vsub.s32 %v2595, %v2597
  %v2599 = vrot.slane %v2592, %v2598
  %2601 = vst [vmem:[%s233] sm:$0xf] %v2599
  %v2602 = vld [vmem:[%s1379] sm:$0x3]
  %v2603 = vld [vmem:[%s4] sm:$0xff]
  %v2604 = vld [vmem:[%s4 + $0x8] sm:$0xff]
  %v2605 = vld [vmem:[%s4 + $0x10] sm:$0xff]
  %v2606 = vld [vmem:[%s4 + $0x18] sm:$0xff]
  %v2607 = vld [vmem:[%s4 + $0x20] sm:$0xff]
  %v2608 = vld [vmem:[%s4 + $0x28] sm:$0xff]
  %v2609 = vld [vmem:[%s4 + $0x30] sm:$0xff]
  %v2610 = vld [vmem:[%s4 + $0x38] sm:$0xff]
  %v2611 = vld [vmem:[%s4 + $0x40] sm:$0xff]
  %v2612 = vld [vmem:[%s4 + $0x48] sm:$0xff]
  %v2613 = vld [vmem:[%s4 + $0x50] sm:$0xff]
  %v2614 = vld [vmem:[%s4 + $0x58] sm:$0xff]
  %v2615 = vld [vmem:[%s4 + $0x60] sm:$0xff]
  %v2616 = vld [vmem:[%s4 + $0x68] sm:$0xff]
  %v2617 = vld [vmem:[%s4 + $0x70] sm:$0xff]
  %v2618 = vld [vmem:[%s4 + $0x78] sm:$0xff]
  %v2619 = vld [vmem:[%s6] sm:$0x3]
  %v2621 = vlaneseq
  %v2622 = vshrl.u32 %v2621, 7
  %v2623 = vsub.s32 0, %v2622
  %v2624 = vrot.slane %v2619, %v2623
  %v2625 = vlaneseq
  %v2626 = vshrl.u32 %v2625, 7
  %v2627 = vsub.s32 1, %v2626
  %v2628 = vrot.slane %v2619, %v2627
  %v2632 = vsel %vm881, %v2602, 0
  %2634 = vmatprep.subr.mxu0 %v2604
  %2635 = vmatpush1.msra.mxu0 %v2603
  %2636 = vmatprep.subr.mxu0 %v2606
  %2637 = vmatpush1.msra.mxu0 %v2605
  %2638 = vmatprep.subr.mxu0 %v2608
  %2639 = vmatpush1.msra.mxu0 %v2607
  %2640 = vmatprep.subr.mxu0 %v2610
  %2641 = vmatpush1.msra.mxu0 %v2609
  %2642 = vmatprep.subr.mxu0 %v2612
  %2643 = vmatpush1.msra.mxu0 %v2611
  %2644 = vmatprep.subr.mxu0 %v2614
  %2645 = vmatpush1.msra.mxu0 %v2613
  %2646 = vmatprep.subr.mxu0 %v2616
  %2647 = vmatpush1.msra.mxu0 %v2615
  %2648 = vmatprep.subr.mxu0 %v2618
  %2649 = vmatpush1.msra.mxu0 %v2617
  %2650 = vmatprep.subr.mxu0 0.0
  %2651 = vmatpush1.msra.mxu0 0.0
  %2652 = vmatprep.subr.mxu0 0.0
  %2653 = vmatpush1.msra.mxu0 0.0
  %2654 = vmatprep.subr.mxu0 0.0
  %2655 = vmatpush1.msra.mxu0 0.0
  %2656 = vmatprep.subr.mxu0 0.0
  %2657 = vmatpush1.msra.mxu0 0.0
  %2658 = vmatprep.subr.mxu0 0.0
  %2659 = vmatpush1.msra.mxu0 0.0
  %2660 = vmatprep.subr.mxu0 0.0
  %2661 = vmatpush1.msra.mxu0 0.0
  %2662 = vmatprep.subr.mxu0 0.0
  %2663 = vmatpush1.msra.mxu0 0.0
  %2664 = vmatprep.subr.mxu0 0.0
  %2665 = vmatpush1.msra.mxu0 0.0
  %2666 = vmatprep.subr.mxu0 0.0
  %2667 = vmatpush1.msra.mxu0 0.0
  %2668 = vmatprep.subr.mxu0 0.0
  %2669 = vmatpush1.msra.mxu0 0.0
  %2670 = vmatprep.subr.mxu0 0.0
  %2671 = vmatpush1.msra.mxu0 0.0
  %2672 = vmatprep.subr.mxu0 0.0
  %2673 = vmatpush1.msra.mxu0 0.0
  %2674 = vmatprep.subr.mxu0 0.0
  %2675 = vmatpush1.msra.mxu0 0.0
  %2676 = vmatprep.subr.mxu0 0.0
  %2677 = vmatpush1.msra.mxu0 0.0
  %2678 = vmatprep.subr.mxu0 0.0
  %2679 = vmatpush1.msra.mxu0 0.0
  %2680 = vmatprep.subr.mxu0 0.0
  %2681 = vmatpush1.msra.mxu0 0.0
  %2682 = vmatprep.subr.mxu0 0.0
  %2683 = vmatpush1.msra.mxu0 0.0
  %2684 = vmatprep.subr.mxu0 0.0
  %2685 = vmatpush1.msra.mxu0 0.0
  %2686 = vmatprep.subr.mxu0 0.0
  %2687 = vmatpush1.msra.mxu0 0.0
  %2688 = vmatprep.subr.mxu0 0.0
  %2689 = vmatpush1.msra.mxu0 0.0
  %2690 = vmatprep.subr.mxu0 0.0
  %2691 = vmatpush1.msra.mxu0 0.0
  %2692 = vmatprep.subr.mxu0 0.0
  %2693 = vmatpush1.msra.mxu0 0.0
  %2694 = vmatprep.subr.mxu0 0.0
  %2695 = vmatpush1.msra.mxu0 0.0
  %2696 = vmatprep.subr.mxu0 0.0
  %2697 = vmatpush1.msra.mxu0 0.0
  %2698 = vmatprep.mubr.f32.mxu0 0.0
  %2699 = vmatmul.mubr.f32.gmra.mrb[0].mxu0 %v2632
  %v2700 = vpop.f32.mrb[0].mxu0
  %v2701 = vadd.f32 %v2624, %v2700
  %v2702 = vpop.f32.mrb[0].mxu0
  %v2703 = vadd.f32 %v2628, %v2702
  %2704 = vdwg.mxu0
  %v2707 = vcombine.low %v2701, %v2703
  %v2709 = vunpack.c.l.s4 1983009808
  %v2710 = vunpack.c.0.s8 %v2709
  %v2711 = vlaneseq
  %v2712 = vshrl.u32 %v2711, 7
  %v2713 = vsub.s32 %v2710, %v2712
  %v2714 = vrot.slane %v2707, %v2713
  %2716 = vst [vmem:[%s338] sm:$0xf] %v2714
  %v2717 = vld [vmem:[%s1571] sm:$0x3]
  %v2718 = vld [vmem:[%s4] sm:$0xff]
  %v2719 = vld [vmem:[%s4 + $0x8] sm:$0xff]
  %v2720 = vld [vmem:[%s4 + $0x10] sm:$0xff]
  %v2721 = vld [vmem:[%s4 + $0x18] sm:$0xff]
  %v2722 = vld [vmem:[%s4 + $0x20] sm:$0xff]
  %v2723 = vld [vmem:[%s4 + $0x28] sm:$0xff]
  %v2724 = vld [vmem:[%s4 + $0x30] sm:$0xff]
  %v2725 = vld [vmem:[%s4 + $0x38] sm:$0xff]
  %v2726 = vld [vmem:[%s4 + $0x40] sm:$0xff]
  %v2727 = vld [vmem:[%s4 + $0x48] sm:$0xff]
  %v2728 = vld [vmem:[%s4 + $0x50] sm:$0xff]
  %v2729 = vld [vmem:[%s4 + $0x58] sm:$0xff]
  %v2730 = vld [vmem:[%s4 + $0x60] sm:$0xff]
  %v2731 = vld [vmem:[%s4 + $0x68] sm:$0xff]
  %v2732 = vld [vmem:[%s4 + $0x70] sm:$0xff]
  %v2733 = vld [vmem:[%s4 + $0x78] sm:$0xff]
  %v2734 = vld [vmem:[%s6] sm:$0x3]
  %v2736 = vlaneseq
  %v2737 = vshrl.u32 %v2736, 7
  %v2738 = vsub.s32 0, %v2737
  %v2739 = vrot.slane %v2734, %v2738
  %v2740 = vlaneseq
  %v2741 = vshrl.u32 %v2740, 7
  %v2742 = vsub.s32 1, %v2741
  %v2743 = vrot.slane %v2734, %v2742
  %v2747 = vsel %vm881, %v2717, 0
  %2749 = vmatprep.subr.mxu0 %v2719
  %2750 = vmatpush1.msra.mxu0 %v2718
  %2751 = vmatprep.subr.mxu0 %v2721
  %2752 = vmatpush1.msra.mxu0 %v2720
  %2753 = vmatprep.subr.mxu0 %v2723
  %2754 = vmatpush1.msra.mxu0 %v2722
  %2755 = vmatprep.subr.mxu0 %v2725
  %2756 = vmatpush1.msra.mxu0 %v2724
  %2757 = vmatprep.subr.mxu0 %v2727
  %2758 = vmatpush1.msra.mxu0 %v2726
  %2759 = vmatprep.subr.mxu0 %v2729
  %2760 = vmatpush1.msra.mxu0 %v2728
  %2761 = vmatprep.subr.mxu0 %v2731
  %2762 = vmatpush1.msra.mxu0 %v2730
  %2763 = vmatprep.subr.mxu0 %v2733
  %2764 = vmatpush1.msra.mxu0 %v2732
  %2765 = vmatprep.subr.mxu0 0.0
  %2766 = vmatpush1.msra.mxu0 0.0
  %2767 = vmatprep.subr.mxu0 0.0
  %2768 = vmatpush1.msra.mxu0 0.0
  %2769 = vmatprep.subr.mxu0 0.0
  %2770 = vmatpush1.msra.mxu0 0.0
  %2771 = vmatprep.subr.mxu0 0.0
  %2772 = vmatpush1.msra.mxu0 0.0
  %2773 = vmatprep.subr.mxu0 0.0
  %2774 = vmatpush1.msra.mxu0 0.0
  %2775 = vmatprep.subr.mxu0 0.0
  %2776 = vmatpush1.msra.mxu0 0.0
  %2777 = vmatprep.subr.mxu0 0.0
  %2778 = vmatpush1.msra.mxu0 0.0
  %2779 = vmatprep.subr.mxu0 0.0
  %2780 = vmatpush1.msra.mxu0 0.0
  %2781 = vmatprep.subr.mxu0 0.0
  %2782 = vmatpush1.msra.mxu0 0.0
  %2783 = vmatprep.subr.mxu0 0.0
  %2784 = vmatpush1.msra.mxu0 0.0
  %2785 = vmatprep.subr.mxu0 0.0
  %2786 = vmatpush1.msra.mxu0 0.0
  %2787 = vmatprep.subr.mxu0 0.0
  %2788 = vmatpush1.msra.mxu0 0.0
  %2789 = vmatprep.subr.mxu0 0.0
  %2790 = vmatpush1.msra.mxu0 0.0
  %2791 = vmatprep.subr.mxu0 0.0
  %2792 = vmatpush1.msra.mxu0 0.0
  %2793 = vmatprep.subr.mxu0 0.0
  %2794 = vmatpush1.msra.mxu0 0.0
  %2795 = vmatprep.subr.mxu0 0.0
  %2796 = vmatpush1.msra.mxu0 0.0
  %2797 = vmatprep.subr.mxu0 0.0
  %2798 = vmatpush1.msra.mxu0 0.0
  %2799 = vmatprep.subr.mxu0 0.0
  %2800 = vmatpush1.msra.mxu0 0.0
  %2801 = vmatprep.subr.mxu0 0.0
  %2802 = vmatpush1.msra.mxu0 0.0
  %2803 = vmatprep.subr.mxu0 0.0
  %2804 = vmatpush1.msra.mxu0 0.0
  %2805 = vmatprep.subr.mxu0 0.0
  %2806 = vmatpush1.msra.mxu0 0.0
  %2807 = vmatprep.subr.mxu0 0.0
  %2808 = vmatpush1.msra.mxu0 0.0
  %2809 = vmatprep.subr.mxu0 0.0
  %2810 = vmatpush1.msra.mxu0 0.0
  %2811 = vmatprep.subr.mxu0 0.0
  %2812 = vmatpush1.msra.mxu0 0.0
  %2813 = vmatprep.mubr.f32.mxu0 0.0
  %2814 = vmatmul.mubr.f32.gmra.mrb[0].mxu0 %v2747
  %v2815 = vpop.f32.mrb[0].mxu0
  %v2816 = vadd.f32 %v2739, %v2815
  %v2817 = vpop.f32.mrb[0].mxu0
  %v2818 = vadd.f32 %v2743, %v2817
  %2819 = vdwg.mxu0
  %v2822 = vcombine.low %v2816, %v2818
  %v2824 = vunpack.c.l.s4 1983009808
  %v2825 = vunpack.c.0.s8 %v2824
  %v2826 = vlaneseq
  %v2827 = vshrl.u32 %v2826, 7
  %v2828 = vsub.s32 %v2825, %v2827
  %v2829 = vrot.slane %v2822, %v2828
  %2831 = vst [vmem:[%s443] sm:$0xf] %v2829
  %v2832 = vld [vmem:[%s1610] sm:$0x3]
  %v2833 = vld [vmem:[%s4] sm:$0xff]
  %v2834 = vld [vmem:[%s4 + $0x8] sm:$0xff]
  %v2835 = vld [vmem:[%s4 + $0x10] sm:$0xff]
  %v2836 = vld [vmem:[%s4 + $0x18] sm:$0xff]
  %v2837 = vld [vmem:[%s4 + $0x20] sm:$0xff]
  %v2838 = vld [vmem:[%s4 + $0x28] sm:$0xff]
  %v2839 = vld [vmem:[%s4 + $0x30] sm:$0xff]
  %v2840 = vld [vmem:[%s4 + $0x38] sm:$0xff]
  %v2841 = vld [vmem:[%s4 + $0x40] sm:$0xff]
  %v2842 = vld [vmem:[%s4 + $0x48] sm:$0xff]
  %v2843 = vld [vmem:[%s4 + $0x50] sm:$0xff]
  %v2844 = vld [vmem:[%s4 + $0x58] sm:$0xff]
  %v2845 = vld [vmem:[%s4 + $0x60] sm:$0xff]
  %v2846 = vld [vmem:[%s4 + $0x68] sm:$0xff]
  %v2847 = vld [vmem:[%s4 + $0x70] sm:$0xff]
  %v2848 = vld [vmem:[%s4 + $0x78] sm:$0xff]
  %v2849 = vld [vmem:[%s6] sm:$0x3]
  %v2851 = vlaneseq
  %v2852 = vshrl.u32 %v2851, 7
  %v2853 = vsub.s32 0, %v2852
  %v2854 = vrot.slane %v2849, %v2853
  %v2855 = vlaneseq
  %v2856 = vshrl.u32 %v2855, 7
  %v2857 = vsub.s32 1, %v2856
  %v2858 = vrot.slane %v2849, %v2857
  %v2862 = vsel %vm881, %v2832, 0
  %2864 = vmatprep.subr.mxu0 %v2834
  %2865 = vmatpush1.msra.mxu0 %v2833
  %2866 = vmatprep.subr.mxu0 %v2836
  %2867 = vmatpush1.msra.mxu0 %v2835
  %2868 = vmatprep.subr.mxu0 %v2838
  %2869 = vmatpush1.msra.mxu0 %v2837
  %2870 = vmatprep.subr.mxu0 %v2840
  %2871 = vmatpush1.msra.mxu0 %v2839
  %2872 = vmatprep.subr.mxu0 %v2842
  %2873 = vmatpush1.msra.mxu0 %v2841
  %2874 = vmatprep.subr.mxu0 %v2844
  %2875 = vmatpush1.msra.mxu0 %v2843
  %2876 = vmatprep.subr.mxu0 %v2846
  %2877 = vmatpush1.msra.mxu0 %v2845
  %2878 = vmatprep.subr.mxu0 %v2848
  %2879 = vmatpush1.msra.mxu0 %v2847
  %2880 = vmatprep.subr.mxu0 0.0
  %2881 = vmatpush1.msra.mxu0 0.0
  %2882 = vmatprep.subr.mxu0 0.0
  %2883 = vmatpush1.msra.mxu0 0.0
  %2884 = vmatprep.subr.mxu0 0.0
  %2885 = vmatpush1.msra.mxu0 0.0
  %2886 = vmatprep.subr.mxu0 0.0
  %2887 = vmatpush1.msra.mxu0 0.0
  %2888 = vmatprep.subr.mxu0 0.0
  %2889 = vmatpush1.msra.mxu0 0.0
  %2890 = vmatprep.subr.mxu0 0.0
  %2891 = vmatpush1.msra.mxu0 0.0
  %2892 = vmatprep.subr.mxu0 0.0
  %2893 = vmatpush1.msra.mxu0 0.0
  %2894 = vmatprep.subr.mxu0 0.0
  %2895 = vmatpush1.msra.mxu0 0.0
  %2896 = vmatprep.subr.mxu0 0.0
  %2897 = vmatpush1.msra.mxu0 0.0
  %2898 = vmatprep.subr.mxu0 0.0
  %2899 = vmatpush1.msra.mxu0 0.0
  %2900 = vmatprep.subr.mxu0 0.0
  %2901 = vmatpush1.msra.mxu0 0.0
  %2902 = vmatprep.subr.mxu0 0.0
  %2903 = vmatpush1.msra.mxu0 0.0
  %2904 = vmatprep.subr.mxu0 0.0
  %2905 = vmatpush1.msra.mxu0 0.0
  %2906 = vmatprep.subr.mxu0 0.0
  %2907 = vmatpush1.msra.mxu0 0.0
  %2908 = vmatprep.subr.mxu0 0.0
  %2909 = vmatpush1.msra.mxu0 0.0
  %2910 = vmatprep.subr.mxu0 0.0
  %2911 = vmatpush1.msra.mxu0 0.0
  %2912 = vmatprep.subr.mxu0 0.0
  %2913 = vmatpush1.msra.mxu0 0.0
  %2914 = vmatprep.subr.mxu0 0.0
  %2915 = vmatpush1.msra.mxu0 0.0
  %2916 = vmatprep.subr.mxu0 0.0
  %2917 = vmatpush1.msra.mxu0 0.0
  %2918 = vmatprep.subr.mxu0 0.0
  %2919 = vmatpush1.msra.mxu0 0.0
  %2920 = vmatprep.subr.mxu0 0.0
  %2921 = vmatpush1.msra.mxu0 0.0
  %2922 = vmatprep.subr.mxu0 0.0
  %2923 = vmatpush1.msra.mxu0 0.0
  %2924 = vmatprep.subr.mxu0 0.0
  %2925 = vmatpush1.msra.mxu0 0.0
  %2926 = vmatprep.subr.mxu0 0.0
  %2927 = vmatpush1.msra.mxu0 0.0
  %2928 = vmatprep.mubr.f32.mxu0 0.0
  %2929 = vmatmul.mubr.f32.gmra.mrb[0].mxu0 %v2862
  %v2930 = vpop.f32.mrb[0].mxu0
  %v2931 = vadd.f32 %v2854, %v2930
  %v2932 = vpop.f32.mrb[0].mxu0
  %v2933 = vadd.f32 %v2858, %v2932
  %2934 = vdwg.mxu0
  %v2937 = vcombine.low %v2931, %v2933
  %v2939 = vunpack.c.l.s4 1983009808
  %v2940 = vunpack.c.0.s8 %v2939
  %v2941 = vlaneseq
  %v2942 = vshrl.u32 %v2941, 7
  %v2943 = vsub.s32 %v2940, %v2942
  %v2944 = vrot.slane %v2937, %v2943
  %2946 = vst [vmem:[%s548] sm:$0xf] %v2944
  %v2947 = vld [vmem:[%s1418] sm:$0x3]
  %v2948 = vld [vmem:[%s4] sm:$0xff]
  %v2949 = vld [vmem:[%s4 + $0x8] sm:$0xff]
  %v2950 = vld [vmem:[%s4 + $0x10] sm:$0xff]
  %v2951 = vld [vmem:[%s4 + $0x18] sm:$0xff]
  %v2952 = vld [vmem:[%s4 + $0x20] sm:$0xff]
  %v2953 = vld [vmem:[%s4 + $0x28] sm:$0xff]
  %v2954 = vld [vmem:[%s4 + $0x30] sm:$0xff]
  %v2955 = vld [vmem:[%s4 + $0x38] sm:$0xff]
  %v2956 = vld [vmem:[%s4 + $0x40] sm:$0xff]
  %v2957 = vld [vmem:[%s4 + $0x48] sm:$0xff]
  %v2958 = vld [vmem:[%s4 + $0x50] sm:$0xff]
  %v2959 = vld [vmem:[%s4 + $0x58] sm:$0xff]
  %v2960 = vld [vmem:[%s4 + $0x60] sm:$0xff]
  %v2961 = vld [vmem:[%s4 + $0x68] sm:$0xff]
  %v2962 = vld [vmem:[%s4 + $0x70] sm:$0xff]
  %v2963 = vld [vmem:[%s4 + $0x78] sm:$0xff]
  %v2964 = vld [vmem:[%s6] sm:$0x3]
  %v2966 = vlaneseq
  %v2967 = vshrl.u32 %v2966, 7
  %v2968 = vsub.s32 0, %v2967
  %v2969 = vrot.slane %v2964, %v2968
  %v2970 = vlaneseq
  %v2971 = vshrl.u32 %v2970, 7
  %v2972 = vsub.s32 1, %v2971
  %v2973 = vrot.slane %v2964, %v2972
  %v2977 = vsel %vm881, %v2947, 0
  %2979 = vmatprep.subr.mxu0 %v2949
  %2980 = vmatpush1.msra.mxu0 %v2948
  %2981 = vmatprep.subr.mxu0 %v2951
  %2982 = vmatpush1.msra.mxu0 %v2950
  %2983 = vmatprep.subr.mxu0 %v2953
  %2984 = vmatpush1.msra.mxu0 %v2952
  %2985 = vmatprep.subr.mxu0 %v2955
  %2986 = vmatpush1.msra.mxu0 %v2954
  %2987 = vmatprep.subr.mxu0 %v2957
  %2988 = vmatpush1.msra.mxu0 %v2956
  %2989 = vmatprep.subr.mxu0 %v2959
  %2990 = vmatpush1.msra.mxu0 %v2958
  %2991 = vmatprep.subr.mxu0 %v2961
  %2992 = vmatpush1.msra.mxu0 %v2960
  %2993 = vmatprep.subr.mxu0 %v2963
  %2994 = vmatpush1.msra.mxu0 %v2962
  %2995 = vmatprep.subr.mxu0 0.0
  %2996 = vmatpush1.msra.mxu0 0.0
  %2997 = vmatprep.subr.mxu0 0.0
  %2998 = vmatpush1.msra.mxu0 0.0
  %2999 = vmatprep.subr.mxu0 0.0
  %3000 = vmatpush1.msra.mxu0 0.0
  %3001 = vmatprep.subr.mxu0 0.0
  %3002 = vmatpush1.msra.mxu0 0.0
  %3003 = vmatprep.subr.mxu0 0.0
  %3004 = vmatpush1.msra.mxu0 0.0
  %3005 = vmatprep.subr.mxu0 0.0
  %3006 = vmatpush1.msra.mxu0 0.0
  %3007 = vmatprep.subr.mxu0 0.0
  %3008 = vmatpush1.msra.mxu0 0.0
  %3009 = vmatprep.subr.mxu0 0.0
  %3010 = vmatpush1.msra.mxu0 0.0
  %3011 = vmatprep.subr.mxu0 0.0
  %3012 = vmatpush1.msra.mxu0 0.0
  %3013 = vmatprep.subr.mxu0 0.0
  %3014 = vmatpush1.msra.mxu0 0.0
  %3015 = vmatprep.subr.mxu0 0.0
  %3016 = vmatpush1.msra.mxu0 0.0
  %3017 = vmatprep.subr.mxu0 0.0
  %3018 = vmatpush1.msra.mxu0 0.0
  %3019 = vmatprep.subr.mxu0 0.0
  %3020 = vmatpush1.msra.mxu0 0.0
  %3021 = vmatprep.subr.mxu0 0.0
  %3022 = vmatpush1.msra.mxu0 0.0
  %3023 = vmatprep.subr.mxu0 0.0
  %3024 = vmatpush1.msra.mxu0 0.0
  %3025 = vmatprep.subr.mxu0 0.0
  %3026 = vmatpush1.msra.mxu0 0.0
  %3027 = vmatprep.subr.mxu0 0.0
  %3028 = vmatpush1.msra.mxu0 0.0
  %3029 = vmatprep.subr.mxu0 0.0
  %3030 = vmatpush1.msra.mxu0 0.0
  %3031 = vmatprep.subr.mxu0 0.0
  %3032 = vmatpush1.msra.mxu0 0.0
  %3033 = vmatprep.subr.mxu0 0.0
  %3034 = vmatpush1.msra.mxu0 0.0
  %3035 = vmatprep.subr.mxu0 0.0
  %3036 = vmatpush1.msra.mxu0 0.0
  %3037 = vmatprep.subr.mxu0 0.0
  %3038 = vmatpush1.msra.mxu0 0.0
  %3039 = vmatprep.subr.mxu0 0.0
  %3040 = vmatpush1.msra.mxu0 0.0
  %3041 = vmatprep.subr.mxu0 0.0
  %3042 = vmatpush1.msra.mxu0 0.0
  %3043 = vmatprep.mubr.f32.mxu0 0.0
  %3044 = vmatmul.mubr.f32.gmra.mrb[0].mxu0 %v2977
  %v3045 = vpop.f32.mrb[0].mxu0
  %v3046 = vadd.f32 %v2969, %v3045
  %v3047 = vpop.f32.mrb[0].mxu0
  %v3048 = vadd.f32 %v2973, %v3047
  %3049 = vdwg.mxu0
  %v3052 = vcombine.low %v3046, %v3048
  %v3054 = vunpack.c.l.s4 1983009808
  %v3055 = vunpack.c.0.s8 %v3054
  %v3056 = vlaneseq
  %v3057 = vshrl.u32 %v3056, 7
  %v3058 = vsub.s32 %v3055, %v3057
  %v3059 = vrot.slane %v3052, %v3058
  %3061 = vst [vmem:[%s653] sm:$0xf] %v3059
  %v3062 = vld [vmem:[%s1226] sm:$0x3]
  %v3063 = vld [vmem:[%s4] sm:$0xff]
  %v3064 = vld [vmem:[%s4 + $0x8] sm:$0xff]
  %v3065 = vld [vmem:[%s4 + $0x10] sm:$0xff]
  %v3066 = vld [vmem:[%s4 + $0x18] sm:$0xff]
  %v3067 = vld [vmem:[%s4 + $0x20] sm:$0xff]
  %v3068 = vld [vmem:[%s4 + $0x28] sm:$0xff]
  %v3069 = vld [vmem:[%s4 + $0x30] sm:$0xff]
  %v3070 = vld [vmem:[%s4 + $0x38] sm:$0xff]
  %v3071 = vld [vmem:[%s4 + $0x40] sm:$0xff]
  %v3072 = vld [vmem:[%s4 + $0x48] sm:$0xff]
  %v3073 = vld [vmem:[%s4 + $0x50] sm:$0xff]
  %v3074 = vld [vmem:[%s4 + $0x58] sm:$0xff]
  %v3075 = vld [vmem:[%s4 + $0x60] sm:$0xff]
  %v3076 = vld [vmem:[%s4 + $0x68] sm:$0xff]
  %v3077 = vld [vmem:[%s4 + $0x70] sm:$0xff]
  %v3078 = vld [vmem:[%s4 + $0x78] sm:$0xff]
  %v3079 = vld [vmem:[%s6] sm:$0x3]
  %v3081 = vlaneseq
  %v3082 = vshrl.u32 %v3081, 7
  %v3083 = vsub.s32 0, %v3082
  %v3084 = vrot.slane %v3079, %v3083
  %v3085 = vlaneseq
  %v3086 = vshrl.u32 %v3085, 7
  %v3087 = vsub.s32 1, %v3086
  %v3088 = vrot.slane %v3079, %v3087
  %v3092 = vsel %vm881, %v3062, 0
  %3094 = vmatprep.subr.mxu0 %v3064
  %3095 = vmatpush1.msra.mxu0 %v3063
  %3096 = vmatprep.subr.mxu0 %v3066
  %3097 = vmatpush1.msra.mxu0 %v3065
  %3098 = vmatprep.subr.mxu0 %v3068
  %3099 = vmatpush1.msra.mxu0 %v3067
  %3100 = vmatprep.subr.mxu0 %v3070
  %3101 = vmatpush1.msra.mxu0 %v3069
  %3102 = vmatprep.subr.mxu0 %v3072
  %3103 = vmatpush1.msra.mxu0 %v3071
  %3104 = vmatprep.subr.mxu0 %v3074
  %3105 = vmatpush1.msra.mxu0 %v3073
  %3106 = vmatprep.subr.mxu0 %v3076
  %3107 = vmatpush1.msra.mxu0 %v3075
  %3108 = vmatprep.subr.mxu0 %v3078
  %3109 = vmatpush1.msra.mxu0 %v3077
  %3110 = vmatprep.subr.mxu0 0.0
  %3111 = vmatpush1.msra.mxu0 0.0
  %3112 = vmatprep.subr.mxu0 0.0
  %3113 = vmatpush1.msra.mxu0 0.0
  %3114 = vmatprep.subr.mxu0 0.0
  %3115 = vmatpush1.msra.mxu0 0.0
  %3116 = vmatprep.subr.mxu0 0.0
  %3117 = vmatpush1.msra.mxu0 0.0
  %3118 = vmatprep.subr.mxu0 0.0
  %3119 = vmatpush1.msra.mxu0 0.0
  %3120 = vmatprep.subr.mxu0 0.0
  %3121 = vmatpush1.msra.mxu0 0.0
  %3122 = vmatprep.subr.mxu0 0.0
  %3123 = vmatpush1.msra.mxu0 0.0
  %3124 = vmatprep.subr.mxu0 0.0
  %3125 = vmatpush1.msra.mxu0 0.0
  %3126 = vmatprep.subr.mxu0 0.0
  %3127 = vmatpush1.msra.mxu0 0.0
  %3128 = vmatprep.subr.mxu0 0.0
  %3129 = vmatpush1.msra.mxu0 0.0
  %3130 = vmatprep.subr.mxu0 0.0
  %3131 = vmatpush1.msra.mxu0 0.0
  %3132 = vmatprep.subr.mxu0 0.0
  %3133 = vmatpush1.msra.mxu0 0.0
  %3134 = vmatprep.subr.mxu0 0.0
  %3135 = vmatpush1.msra.mxu0 0.0
  %3136 = vmatprep.subr.mxu0 0.0
  %3137 = vmatpush1.msra.mxu0 0.0
  %3138 = vmatprep.subr.mxu0 0.0
  %3139 = vmatpush1.msra.mxu0 0.0
  %3140 = vmatprep.subr.mxu0 0.0
  %3141 = vmatpush1.msra.mxu0 0.0
  %3142 = vmatprep.subr.mxu0 0.0
  %3143 = vmatpush1.msra.mxu0 0.0
  %3144 = vmatprep.subr.mxu0 0.0
  %3145 = vmatpush1.msra.mxu0 0.0
  %3146 = vmatprep.subr.mxu0 0.0
  %3147 = vmatpush1.msra.mxu0 0.0
  %3148 = vmatprep.subr.mxu0 0.0
  %3149 = vmatpush1.msra.mxu0 0.0
  %3150 = vmatprep.subr.mxu0 0.0
  %3151 = vmatpush1.msra.mxu0 0.0
  %3152 = vmatprep.subr.mxu0 0.0
  %3153 = vmatpush1.msra.mxu0 0.0
  %3154 = vmatprep.subr.mxu0 0.0
  %3155 = vmatpush1.msra.mxu0 0.0
  %3156 = vmatprep.subr.mxu0 0.0
  %3157 = vmatpush1.msra.mxu0 0.0
  %3158 = vmatprep.mubr.f32.mxu0 0.0
  %3159 = vmatmul.mubr.f32.gmra.mrb[0].mxu0 %v3092
  %v3160 = vpop.f32.mrb[0].mxu0
  %v3161 = vadd.f32 %v3084, %v3160
  %v3162 = vpop.f32.mrb[0].mxu0
  %v3163 = vadd.f32 %v3088, %v3162
  %3164 = vdwg.mxu0
  %v3167 = vcombine.low %v3161, %v3163
  %v3169 = vunpack.c.l.s4 1983009808
  %v3170 = vunpack.c.0.s8 %v3169
  %v3171 = vlaneseq
  %v3172 = vshrl.u32 %v3171, 7
  %v3173 = vsub.s32 %v3170, %v3172
  %v3174 = vrot.slane %v3167, %v3173
  %3176 = vst [vmem:[%s758] sm:$0xf] %v3174
  %v3177 = vld [vmem:[%s1032] sm:$0x3]
  %v3178 = vld [vmem:[%s4] sm:$0xff]
  %v3179 = vld [vmem:[%s4 + $0x8] sm:$0xff]
  %v3180 = vld [vmem:[%s4 + $0x10] sm:$0xff]
  %v3181 = vld [vmem:[%s4 + $0x18] sm:$0xff]
  %v3182 = vld [vmem:[%s4 + $0x20] sm:$0xff]
  %v3183 = vld [vmem:[%s4 + $0x28] sm:$0xff]
  %v3184 = vld [vmem:[%s4 + $0x30] sm:$0xff]
  %v3185 = vld [vmem:[%s4 + $0x38] sm:$0xff]
  %v3186 = vld [vmem:[%s4 + $0x40] sm:$0xff]
  %v3187 = vld [vmem:[%s4 + $0x48] sm:$0xff]
  %v3188 = vld [vmem:[%s4 + $0x50] sm:$0xff]
  %v3189 = vld [vmem:[%s4 + $0x58] sm:$0xff]
  %v3190 = vld [vmem:[%s4 + $0x60] sm:$0xff]
  %v3191 = vld [vmem:[%s4 + $0x68] sm:$0xff]
  %v3192 = vld [vmem:[%s4 + $0x70] sm:$0xff]
  %v3193 = vld [vmem:[%s4 + $0x78] sm:$0xff]
  %v3194 = vld [vmem:[%s6] sm:$0x3]
  %v3196 = vlaneseq
  %v3197 = vshrl.u32 %v3196, 7
  %v3198 = vsub.s32 0, %v3197
  %v3199 = vrot.slane %v3194, %v3198
  %v3200 = vlaneseq
  %v3201 = vshrl.u32 %v3200, 7
  %v3202 = vsub.s32 1, %v3201
  %v3203 = vrot.slane %v3194, %v3202
  %v3207 = vsel %vm881, %v3177, 0
  %3209 = vmatprep.subr.mxu0 %v3179
  %3210 = vmatpush1.msra.mxu0 %v3178
  %3211 = vmatprep.subr.mxu0 %v3181
  %3212 = vmatpush1.msra.mxu0 %v3180
  %3213 = vmatprep.subr.mxu0 %v3183
  %3214 = vmatpush1.msra.mxu0 %v3182
  %3215 = vmatprep.subr.mxu0 %v3185
  %3216 = vmatpush1.msra.mxu0 %v3184
  %3217 = vmatprep.subr.mxu0 %v3187
  %3218 = vmatpush1.msra.mxu0 %v3186
  %3219 = vmatprep.subr.mxu0 %v3189
  %3220 = vmatpush1.msra.mxu0 %v3188
  %3221 = vmatprep.subr.mxu0 %v3191
  %3222 = vmatpush1.msra.mxu0 %v3190
  %3223 = vmatprep.subr.mxu0 %v3193
  %3224 = vmatpush1.msra.mxu0 %v3192
  %3225 = vmatprep.subr.mxu0 0.0
  %3226 = vmatpush1.msra.mxu0 0.0
  %3227 = vmatprep.subr.mxu0 0.0
  %3228 = vmatpush1.msra.mxu0 0.0
  %3229 = vmatprep.subr.mxu0 0.0
  %3230 = vmatpush1.msra.mxu0 0.0
  %3231 = vmatprep.subr.mxu0 0.0
  %3232 = vmatpush1.msra.mxu0 0.0
  %3233 = vmatprep.subr.mxu0 0.0
  %3234 = vmatpush1.msra.mxu0 0.0
  %3235 = vmatprep.subr.mxu0 0.0
  %3236 = vmatpush1.msra.mxu0 0.0
  %3237 = vmatprep.subr.mxu0 0.0
  %3238 = vmatpush1.msra.mxu0 0.0
  %3239 = vmatprep.subr.mxu0 0.0
  %3240 = vmatpush1.msra.mxu0 0.0
  %3241 = vmatprep.subr.mxu0 0.0
  %3242 = vmatpush1.msra.mxu0 0.0
  %3243 = vmatprep.subr.mxu0 0.0
  %3244 = vmatpush1.msra.mxu0 0.0
  %3245 = vmatprep.subr.mxu0 0.0
  %3246 = vmatpush1.msra.mxu0 0.0
  %3247 = vmatprep.subr.mxu0 0.0
  %3248 = vmatpush1.msra.mxu0 0.0
  %3249 = vmatprep.subr.mxu0 0.0
  %3250 = vmatpush1.msra.mxu0 0.0
  %3251 = vmatprep.subr.mxu0 0.0
  %3252 = vmatpush1.msra.mxu0 0.0
  %3253 = vmatprep.subr.mxu0 0.0
  %3254 = vmatpush1.msra.mxu0 0.0
  %3255 = vmatprep.subr.mxu0 0.0
  %3256 = vmatpush1.msra.mxu0 0.0
  %3257 = vmatprep.subr.mxu0 0.0
  %3258 = vmatpush1.msra.mxu0 0.0
  %3259 = vmatprep.subr.mxu0 0.0
  %3260 = vmatpush1.msra.mxu0 0.0
  %3261 = vmatprep.subr.mxu0 0.0
  %3262 = vmatpush1.msra.mxu0 0.0
  %3263 = vmatprep.subr.mxu0 0.0
  %3264 = vmatpush1.msra.mxu0 0.0
  %3265 = vmatprep.subr.mxu0 0.0
  %3266 = vmatpush1.msra.mxu0 0.0
  %3267 = vmatprep.subr.mxu0 0.0
  %3268 = vmatpush1.msra.mxu0 0.0
  %3269 = vmatprep.subr.mxu0 0.0
  %3270 = vmatpush1.msra.mxu0 0.0
  %3271 = vmatprep.subr.mxu0 0.0
  %3272 = vmatpush1.msra.mxu0 0.0
  %3273 = vmatprep.mubr.f32.mxu0 0.0
  %3274 = vmatmul.mubr.f32.gmra.mrb[0].mxu0 %v3207
  %v3275 = vpop.f32.mrb[0].mxu0
  %v3276 = vadd.f32 %v3199, %v3275
  %v3277 = vpop.f32.mrb[0].mxu0
  %v3278 = vadd.f32 %v3203, %v3277
  %3279 = vdwg.mxu0
  %v3282 = vcombine.low %v3276, %v3278
  %v3284 = vunpack.c.l.s4 1983009808
  %v3285 = vunpack.c.0.s8 %v3284
  %v3286 = vlaneseq
  %v3287 = vshrl.u32 %v3286, 7
  %v3288 = vsub.s32 %v3285, %v3287
  %v3289 = vrot.slane %v3282, %v3288
  %3291 = vst [vmem:[%s863] sm:$0xf] %v3289
  %v3292 = vld [vmem:[%s5] sm:$0xff]
  %v3293 = vld [vmem:[%s5 + $0x8] sm:$0xff]
  %v3294 = vld [vmem:[%s5 + $0x10] sm:$0xff]
  %v3295 = vld [vmem:[%s5 + $0x18] sm:$0xff]
  %v3296 = vld [vmem:[%s5 + $0x20] sm:$0xff]
  %v3297 = vld [vmem:[%s5 + $0x28] sm:$0xff]
  %v3298 = vld [vmem:[%s5 + $0x30] sm:$0xff]
  %v3299 = vld [vmem:[%s5 + $0x38] sm:$0xff]
  %v3300 = vld [vmem:[%s5 + $0x40] sm:$0xff]
  %v3301 = vld [vmem:[%s5 + $0x48] sm:$0xff]
  %v3302 = vld [vmem:[%s5 + $0x50] sm:$0xff]
  %v3303 = vld [vmem:[%s5 + $0x58] sm:$0xff]
  %v3304 = vld [vmem:[%s5 + $0x60] sm:$0xff]
  %v3305 = vld [vmem:[%s5 + $0x68] sm:$0xff]
  %v3306 = vld [vmem:[%s5 + $0x70] sm:$0xff]
  %v3307 = vld [vmem:[%s5 + $0x78] sm:$0xff]
  %3308 = vmatprep.subr.mxu0 %v3293
  %3309 = vmatpush1.msra.mxu0 %v3292
  %3310 = vmatprep.subr.mxu0 %v3295
  %3311 = vmatpush1.msra.mxu0 %v3294
  %3312 = vmatprep.subr.mxu0 %v3297
  %3313 = vmatpush1.msra.mxu0 %v3296
  %3314 = vmatprep.subr.mxu0 %v3299
  %3315 = vmatpush1.msra.mxu0 %v3298
  %3316 = vmatprep.subr.mxu0 %v3301
  %3317 = vmatpush1.msra.mxu0 %v3300
  %3318 = vmatprep.subr.mxu0 %v3303
  %3319 = vmatpush1.msra.mxu0 %v3302
  %3320 = vmatprep.subr.mxu0 %v3305
  %3321 = vmatpush1.msra.mxu0 %v3304
  %3322 = vmatprep.subr.mxu0 %v3307
  %3323 = vmatpush1.msra.mxu0 %v3306
  %3324 = vmatprep.subr.mxu0 0.0
  %3325 = vmatpush1.msra.mxu0 0.0
  %3326 = vmatprep.subr.mxu0 0.0
  %3327 = vmatpush1.msra.mxu0 0.0
  %3328 = vmatprep.subr.mxu0 0.0
  %3329 = vmatpush1.msra.mxu0 0.0
  %3330 = vmatprep.subr.mxu0 0.0
  %3331 = vmatpush1.msra.mxu0 0.0
  %3332 = vmatprep.subr.mxu0 0.0
  %3333 = vmatpush1.msra.mxu0 0.0
  %3334 = vmatprep.subr.mxu0 0.0
  %3335 = vmatpush1.msra.mxu0 0.0
  %3336 = vmatprep.subr.mxu0 0.0
  %3337 = vmatpush1.msra.mxu0 0.0
  %3338 = vmatprep.subr.mxu0 0.0
  %3339 = vmatpush1.msra.mxu0 0.0
  %3340 = vmatprep.subr.mxu0 0.0
  %3341 = vmatpush1.msra.mxu0 0.0
  %3342 = vmatprep.subr.mxu0 0.0
  %3343 = vmatpush1.msra.mxu0 0.0
  %3344 = vmatprep.subr.mxu0 0.0
  %3345 = vmatpush1.msra.mxu0 0.0
  %3346 = vmatprep.subr.mxu0 0.0
  %3347 = vmatpush1.msra.mxu0 0.0
  %3348 = vmatprep.subr.mxu0 0.0
  %3349 = vmatpush1.msra.mxu0 0.0
  %3350 = vmatprep.subr.mxu0 0.0
  %3351 = vmatpush1.msra.mxu0 0.0
  %3352 = vmatprep.subr.mxu0 0.0
  %3353 = vmatpush1.msra.mxu0 0.0
  %3354 = vmatprep.subr.mxu0 0.0
  %3355 = vmatpush1.msra.mxu0 0.0
  %3356 = vmatprep.subr.mxu0 0.0
  %3357 = vmatpush1.msra.mxu0 0.0
  %3358 = vmatprep.subr.mxu0 0.0
  %3359 = vmatpush1.msra.mxu0 0.0
  %3360 = vmatprep.subr.mxu0 0.0
  %3361 = vmatpush1.msra.mxu0 0.0
  %3362 = vmatprep.subr.mxu0 0.0
  %3363 = vmatpush1.msra.mxu0 0.0
  %3364 = vmatprep.subr.mxu0 0.0
  %3365 = vmatpush1.msra.mxu0 0.0
  %3366 = vmatprep.subr.mxu0 0.0
  %3367 = vmatpush1.msra.mxu0 0.0
  %3368 = vmatprep.subr.mxu0 0.0
  %3369 = vmatpush1.msra.mxu0 0.0
  %3370 = vmatprep.subr.mxu0 0.0
  %3371 = vmatpush1.msra.mxu0 0.0
  %3372 = vmatprep.mubr.f32.mxu0 0.0
  %3373 = vmatmul.mubr.f32.gmra.mrb[0].mxu0 %v883
  %v3374 = vpop.f32.mrb[0].mxu0
  %v3375 = vadd.f32 0.0, %v3374
  %v3376 = vpop.f32.mrb[0].mxu0
  %v3377 = vadd.f32 0.0, %v3376
  %3378 = vdwg.mxu0
  %v3379 = vld [vmem:[#allocation2] sm:$0x3]
  %v3380 = vadd.f32 %v3379, %v3375
  %v3381 = vxor.u32 %v3380, 2147483648
  %v3382 = vmul.f32 %v3381, 1.442695
  %v3383 = vpow.pop %v3382
  %v3384 = vadd.f32 %v3383, 1.0
  %v3385 = vrcp.pop %v3384
  %v3386 = vmul.f32 1.0, %v3385
  %v3387 = vtanh.pop %v3380
  %v3388 = vmul.f32 %v3386, 0.0
  %3390 = vrot.lane.b32.xlu0 %v3387, 64
  %v3391 = vpop.permute.xlu0 %3390
  %v3393 = vmul.f32 %v3386, %v3391
  %3395 = vrot.lane.b32.xlu0 %v3393, 32
  %v3396 = vpop.permute.xlu0 %3395
  %v3398 = vadd.f32 %v3388, %v3396
  %v3399 = vtanh.pop %v3398
  %3401 = vrot.lane.b32.xlu0 %v3399, 64
  %v3402 = vpop.permute.xlu0 %3401
  %v3404 = vmul.f32 %v3386, %v3402
  %v3407 = vunpack.c.l.s4 1983009808
  %v3408 = vunpack.c.0.s8 %v3407
  %v3409 = vlaneseq
  %v3410 = vshrl.u32 %v3409, 7
  %v3411 = vsub.s32 %v3408, %v3410
  %v3412 = vrot.slane %v3404, %v3411
  %3413 = vrot.lane.b32.xlu0 %v3412, 32
  %v3414 = vpop.permute.xlu0 %3413
  %3416 = vst.msk [vmem:[%s7] sm:$0x3] %vm993, %v3414
  %v3417 = vld [vmem:[%s863 + $0x2] sm:$0x3]
  %v3418 = vadd.f32 %v3417, %v3377
  %v3419 = vxor.u32 %v3418, 2147483648
  %v3420 = vmul.f32 %v3419, 1.442695
  %v3421 = vpow.pop %v3420
  %v3422 = vadd.f32 %v3421, 1.0
  %v3423 = vrcp.pop %v3422
  %v3424 = vmul.f32 1.0, %v3423
  %v3425 = vtanh.pop %v3418
  %v3426 = vmul.f32 %v3424, 0.0
  %3428 = vrot.lane.b32.xlu0 %v3425, 64
  %v3429 = vpop.permute.xlu0 %3428
  %v3431 = vmul.f32 %v3424, %v3429
  %3433 = vrot.lane.b32.xlu0 %v3431, 32
  %v3434 = vpop.permute.xlu0 %3433
  %v3436 = vadd.f32 %v3426, %v3434
  %v3437 = vtanh.pop %v3436
  %3439 = vrot.lane.b32.xlu0 %v3437, 64
  %v3440 = vpop.permute.xlu0 %3439
  %v3442 = vmul.f32 %v3424, %v3440
  %v3445 = vunpack.c.l.s4 1983009808
  %v3446 = vunpack.c.0.s8 %v3445
  %v3447 = vlaneseq
  %v3448 = vshrl.u32 %v3447, 7
  %v3449 = vsub.s32 %v3446, %v3448
  %v3450 = vrot.slane %v3442, %v3449
  %3451 = vrot.lane.b32.xlu0 %v3450, 64
  %v3452 = vpop.permute.xlu0 %3451
  %s3454 = scalar_lea.vmem %s7, 14
  %3455 = vst.msk [vmem:[%s3454] sm:$0x3] %vm1033, %v3452
  %v3456 = vsel %vm1035, %v3414, %v3452
  %v3459 = vunpack.c.l.s4 1983009808
  %v3460 = vunpack.c.0.s8 %v3459
  %v3461 = vlaneseq
  %v3462 = vshrl.u32 %v3461, 7
  %v3463 = vsub.s32 %v3460, %v3462
  %v3464 = vrot.slane %v3398, %v3463
  %3465 = vrot.lane.b32.xlu0 %v3464, 96
  %v3466 = vpop.permute.xlu0 %3465
  %v3468 = vsel %vm1035, %v3466, %v3436
  %v3469 = vld [vmem:[%s5] sm:$0xff]
  %v3470 = vld [vmem:[%s5 + $0x8] sm:$0xff]
  %v3471 = vld [vmem:[%s5 + $0x10] sm:$0xff]
  %v3472 = vld [vmem:[%s5 + $0x18] sm:$0xff]
  %v3473 = vld [vmem:[%s5 + $0x20] sm:$0xff]
  %v3474 = vld [vmem:[%s5 + $0x28] sm:$0xff]
  %v3475 = vld [vmem:[%s5 + $0x30] sm:$0xff]
  %v3476 = vld [vmem:[%s5 + $0x38] sm:$0xff]
  %v3477 = vld [vmem:[%s5 + $0x40] sm:$0xff]
  %v3478 = vld [vmem:[%s5 + $0x48] sm:$0xff]
  %v3479 = vld [vmem:[%s5 + $0x50] sm:$0xff]
  %v3480 = vld [vmem:[%s5 + $0x58] sm:$0xff]
  %v3481 = vld [vmem:[%s5 + $0x60] sm:$0xff]
  %v3482 = vld [vmem:[%s5 + $0x68] sm:$0xff]
  %v3483 = vld [vmem:[%s5 + $0x70] sm:$0xff]
  %v3484 = vld [vmem:[%s5 + $0x78] sm:$0xff]
  %v3486 = vsel %vm881, %v3456, 0
  %3488 = vmatprep.subr.mxu0 %v3470
  %3489 = vmatpush1.msra.mxu0 %v3469
  %3490 = vmatprep.subr.mxu0 %v3472
  %3491 = vmatpush1.msra.mxu0 %v3471
  %3492 = vmatprep.subr.mxu0 %v3474
  %3493 = vmatpush1.msra.mxu0 %v3473
  %3494 = vmatprep.subr.mxu0 %v3476
  %3495 = vmatpush1.msra.mxu0 %v3475
  %3496 = vmatprep.subr.mxu0 %v3478
  %3497 = vmatpush1.msra.mxu0 %v3477
  %3498 = vmatprep.subr.mxu0 %v3480
  %3499 = vmatpush1.msra.mxu0 %v3479
  %3500 = vmatprep.subr.mxu0 %v3482
  %3501 = vmatpush1.msra.mxu0 %v3481
  %3502 = vmatprep.subr.mxu0 %v3484
  %3503 = vmatpush1.msra.mxu0 %v3483
  %3504 = vmatprep.subr.mxu0 0.0
  %3505 = vmatpush1.msra.mxu0 0.0
  %3506 = vmatprep.subr.mxu0 0.0
  %3507 = vmatpush1.msra.mxu0 0.0
  %3508 = vmatprep.subr.mxu0 0.0
  %3509 = vmatpush1.msra.mxu0 0.0
  %3510 = vmatprep.subr.mxu0 0.0
  %3511 = vmatpush1.msra.mxu0 0.0
  %3512 = vmatprep.subr.mxu0 0.0
  %3513 = vmatpush1.msra.mxu0 0.0
  %3514 = vmatprep.subr.mxu0 0.0
  %3515 = vmatpush1.msra.mxu0 0.0
  %3516 = vmatprep.subr.mxu0 0.0
  %3517 = vmatpush1.msra.mxu0 0.0
  %3518 = vmatprep.subr.mxu0 0.0
  %3519 = vmatpush1.msra.mxu0 0.0
  %3520 = vmatprep.subr.mxu0 0.0
  %3521 = vmatpush1.msra.mxu0 0.0
  %3522 = vmatprep.subr.mxu0 0.0
  %3523 = vmatpush1.msra.mxu0 0.0
  %3524 = vmatprep.subr.mxu0 0.0
  %3525 = vmatpush1.msra.mxu0 0.0
  %3526 = vmatprep.subr.mxu0 0.0
  %3527 = vmatpush1.msra.mxu0 0.0
  %3528 = vmatprep.subr.mxu0 0.0
  %3529 = vmatpush1.msra.mxu0 0.0
  %3530 = vmatprep.subr.mxu0 0.0
  %3531 = vmatpush1.msra.mxu0 0.0
  %3532 = vmatprep.subr.mxu0 0.0
  %3533 = vmatpush1.msra.mxu0 0.0
  %3534 = vmatprep.subr.mxu0 0.0
  %3535 = vmatpush1.msra.mxu0 0.0
  %3536 = vmatprep.subr.mxu0 0.0
  %3537 = vmatpush1.msra.mxu0 0.0
  %3538 = vmatprep.subr.mxu0 0.0
  %3539 = vmatpush1.msra.mxu0 0.0
  %3540 = vmatprep.subr.mxu0 0.0
  %3541 = vmatpush1.msra.mxu0 0.0
  %3542 = vmatprep.subr.mxu0 0.0
  %3543 = vmatpush1.msra.mxu0 0.0
  %3544 = vmatprep.subr.mxu0 0.0
  %3545 = vmatpush1.msra.mxu0 0.0
  %3546 = vmatprep.subr.mxu0 0.0
  %3547 = vmatpush1.msra.mxu0 0.0
  %3548 = vmatprep.subr.mxu0 0.0
  %3549 = vmatpush1.msra.mxu0 0.0
  %3550 = vmatprep.subr.mxu0 0.0
  %3551 = vmatpush1.msra.mxu0 0.0
  %3552 = vmatprep.mubr.f32.mxu0 0.0
  %3553 = vmatmul.mubr.f32.gmra.mrb[0].mxu0 %v3486
  %v3554 = vpop.f32.mrb[0].mxu0
  %v3555 = vadd.f32 0.0, %v3554
  %v3556 = vpop.f32.mrb[0].mxu0
  %v3557 = vadd.f32 0.0, %v3556
  %3558 = vdwg.mxu0
  %v3559 = vld [vmem:[%s233] sm:$0x3]
  %v3560 = vadd.f32 %v3559, %v3555
  %v3561 = vxor.u32 %v3560, 2147483648
  %v3562 = vmul.f32 %v3561, 1.442695
  %v3563 = vpow.pop %v3562
  %v3564 = vadd.f32 %v3563, 1.0
  %v3565 = vrcp.pop %v3564
  %v3566 = vmul.f32 1.0, %v3565
  %v3567 = vtanh.pop %v3560
  %v3570 = vunpack.c.l.s4 1983009808
  %v3571 = vunpack.c.0.s8 %v3570
  %v3572 = vlaneseq
  %v3573 = vshrl.u32 %v3572, 7
  %v3574 = vsub.s32 %v3571, %v3573
  %v3575 = vrot.slane %v3468, %v3574
  %3576 = vrot.lane.b32.xlu0 %v3575, 32
  %v3577 = vpop.permute.xlu0 %3576
  %v3579 = vmul.f32 %v3566, %v3577
  %3581 = vrot.lane.b32.xlu0 %v3567, 64
  %v3582 = vpop.permute.xlu0 %3581
  %v3584 = vmul.f32 %v3566, %v3582
  %3586 = vrot.lane.b32.xlu0 %v3584, 32
  %v3587 = vpop.permute.xlu0 %3586
  %v3589 = vadd.f32 %v3579, %v3587
  %v3590 = vtanh.pop %v3589
  %3592 = vrot.lane.b32.xlu0 %v3590, 64
  %v3593 = vpop.permute.xlu0 %3592
  %v3595 = vmul.f32 %v3566, %v3593
  %v3598 = vunpack.c.l.s4 1983009808
  %v3599 = vunpack.c.0.s8 %v3598
  %v3600 = vlaneseq
  %v3601 = vshrl.u32 %v3600, 7
  %v3602 = vsub.s32 %v3599, %v3601
  %v3603 = vrot.slane %v3595, %v3602
  %3604 = vrot.lane.b32.xlu0 %v3603, 32
  %v3605 = vpop.permute.xlu0 %3604
  %s3607 = scalar_lea.vmem %s7, 2
  %3608 = vst.msk [vmem:[%s3607] sm:$0x3] %vm993, %v3605
  %v3609 = vld [vmem:[%s758 + $0x2] sm:$0x3]
  %v3610 = vadd.f32 %v3609, %v3557
  %v3611 = vxor.u32 %v3610, 2147483648
  %v3612 = vmul.f32 %v3611, 1.442695
  %v3613 = vpow.pop %v3612
  %v3614 = vadd.f32 %v3613, 1.0
  %v3615 = vrcp.pop %v3614
  %v3616 = vmul.f32 1.0, %v3615
  %v3617 = vtanh.pop %v3610
  %v3618 = vmul.f32 %v3616, %v3468
  %3620 = vrot.lane.b32.xlu0 %v3617, 64
  %v3621 = vpop.permute.xlu0 %3620
  %v3623 = vmul.f32 %v3616, %v3621
  %3625 = vrot.lane.b32.xlu0 %v3623, 32
  %v3626 = vpop.permute.xlu0 %3625
  %v3628 = vadd.f32 %v3618, %v3626
  %v3629 = vtanh.pop %v3628
  %3631 = vrot.lane.b32.xlu0 %v3629, 64
  %v3632 = vpop.permute.xlu0 %3631
  %v3634 = vmul.f32 %v3616, %v3632
  %v3637 = vunpack.c.l.s4 1983009808
  %v3638 = vunpack.c.0.s8 %v3637
  %v3639 = vlaneseq
  %v3640 = vshrl.u32 %v3639, 7
  %v3641 = vsub.s32 %v3638, %v3640
  %v3642 = vrot.slane %v3634, %v3641
  %3643 = vrot.lane.b32.xlu0 %v3642, 64
  %v3644 = vpop.permute.xlu0 %3643
  %s3646 = scalar_lea.vmem %s7, 12
  %3647 = vst.msk [vmem:[%s3646] sm:$0x3] %vm1033, %v3644
  %v3648 = vsel %vm1035, %v3605, %v3644
  %v3651 = vunpack.c.l.s4 1983009808
  %v3652 = vunpack.c.0.s8 %v3651
  %v3653 = vlaneseq
  %v3654 = vshrl.u32 %v3653, 7
  %v3655 = vsub.s32 %v3652, %v3654
  %v3656 = vrot.slane %v3589, %v3655
  %3657 = vrot.lane.b32.xlu0 %v3656, 96
  %v3658 = vpop.permute.xlu0 %3657
  %v3660 = vsel %vm1035, %v3658, %v3628
  %v3661 = vld [vmem:[%s5] sm:$0xff]
  %v3662 = vld [vmem:[%s5 + $0x8] sm:$0xff]
  %v3663 = vld [vmem:[%s5 + $0x10] sm:$0xff]
  %v3664 = vld [vmem:[%s5 + $0x18] sm:$0xff]
  %v3665 = vld [vmem:[%s5 + $0x20] sm:$0xff]
  %v3666 = vld [vmem:[%s5 + $0x28] sm:$0xff]
  %v3667 = vld [vmem:[%s5 + $0x30] sm:$0xff]
  %v3668 = vld [vmem:[%s5 + $0x38] sm:$0xff]
  %v3669 = vld [vmem:[%s5 + $0x40] sm:$0xff]
  %v3670 = vld [vmem:[%s5 + $0x48] sm:$0xff]
  %v3671 = vld [vmem:[%s5 + $0x50] sm:$0xff]
  %v3672 = vld [vmem:[%s5 + $0x58] sm:$0xff]
  %v3673 = vld [vmem:[%s5 + $0x60] sm:$0xff]
  %v3674 = vld [vmem:[%s5 + $0x68] sm:$0xff]
  %v3675 = vld [vmem:[%s5 + $0x70] sm:$0xff]
  %v3676 = vld [vmem:[%s5 + $0x78] sm:$0xff]
  %v3678 = vsel %vm881, %v3648, 0
  %3680 = vmatprep.subr.mxu0 %v3662
  %3681 = vmatpush1.msra.mxu0 %v3661
  %3682 = vmatprep.subr.mxu0 %v3664
  %3683 = vmatpush1.msra.mxu0 %v3663
  %3684 = vmatprep.subr.mxu0 %v3666
  %3685 = vmatpush1.msra.mxu0 %v3665
  %3686 = vmatprep.subr.mxu0 %v3668
  %3687 = vmatpush1.msra.mxu0 %v3667
  %3688 = vmatprep.subr.mxu0 %v3670
  %3689 = vmatpush1.msra.mxu0 %v3669
  %3690 = vmatprep.subr.mxu0 %v3672
  %3691 = vmatpush1.msra.mxu0 %v3671
  %3692 = vmatprep.subr.mxu0 %v3674
  %3693 = vmatpush1.msra.mxu0 %v3673
  %3694 = vmatprep.subr.mxu0 %v3676
  %3695 = vmatpush1.msra.mxu0 %v3675
  %3696 = vmatprep.subr.mxu0 0.0
  %3697 = vmatpush1.msra.mxu0 0.0
  %3698 = vmatprep.subr.mxu0 0.0
  %3699 = vmatpush1.msra.mxu0 0.0
  %3700 = vmatprep.subr.mxu0 0.0
  %3701 = vmatpush1.msra.mxu0 0.0
  %3702 = vmatprep.subr.mxu0 0.0
  %3703 = vmatpush1.msra.mxu0 0.0
  %3704 = vmatprep.subr.mxu0 0.0
  %3705 = vmatpush1.msra.mxu0 0.0
  %3706 = vmatprep.subr.mxu0 0.0
  %3707 = vmatpush1.msra.mxu0 0.0
  %3708 = vmatprep.subr.mxu0 0.0
  %3709 = vmatpush1.msra.mxu0 0.0
  %3710 = vmatprep.subr.mxu0 0.0
  %3711 = vmatpush1.msra.mxu0 0.0
  %3712 = vmatprep.subr.mxu0 0.0
  %3713 = vmatpush1.msra.mxu0 0.0
  %3714 = vmatprep.subr.mxu0 0.0
  %3715 = vmatpush1.msra.mxu0 0.0
  %3716 = vmatprep.subr.mxu0 0.0
  %3717 = vmatpush1.msra.mxu0 0.0
  %3718 = vmatprep.subr.mxu0 0.0
  %3719 = vmatpush1.msra.mxu0 0.0
  %3720 = vmatprep.subr.mxu0 0.0
  %3721 = vmatpush1.msra.mxu0 0.0
  %3722 = vmatprep.subr.mxu0 0.0
  %3723 = vmatpush1.msra.mxu0 0.0
  %3724 = vmatprep.subr.mxu0 0.0
  %3725 = vmatpush1.msra.mxu0 0.0
  %3726 = vmatprep.subr.mxu0 0.0
  %3727 = vmatpush1.msra.mxu0 0.0
  %3728 = vmatprep.subr.mxu0 0.0
  %3729 = vmatpush1.msra.mxu0 0.0
  %3730 = vmatprep.subr.mxu0 0.0
  %3731 = vmatpush1.msra.mxu0 0.0
  %3732 = vmatprep.subr.mxu0 0.0
  %3733 = vmatpush1.msra.mxu0 0.0
  %3734 = vmatprep.subr.mxu0 0.0
  %3735 = vmatpush1.msra.mxu0 0.0
  %3736 = vmatprep.subr.mxu0 0.0
  %3737 = vmatpush1.msra.mxu0 0.0
  %3738 = vmatprep.subr.mxu0 0.0
  %3739 = vmatpush1.msra.mxu0 0.0
  %3740 = vmatprep.subr.mxu0 0.0
  %3741 = vmatpush1.msra.mxu0 0.0
  %3742 = vmatprep.subr.mxu0 0.0
  %3743 = vmatpush1.msra.mxu0 0.0
  %3744 = vmatprep.mubr.f32.mxu0 0.0
  %3745 = vmatmul.mubr.f32.gmra.mrb[0].mxu0 %v3678
  %v3746 = vpop.f32.mrb[0].mxu0
  %v3747 = vadd.f32 0.0, %v3746
  %v3748 = vpop.f32.mrb[0].mxu0
  %v3749 = vadd.f32 0.0, %v3748
  %3750 = vdwg.mxu0
  %v3751 = vld [vmem:[%s338] sm:$0x3]
  %v3752 = vadd.f32 %v3751, %v3747
  %v3753 = vxor.u32 %v3752, 2147483648
  %v3754 = vmul.f32 %v3753, 1.442695
  %v3755 = vpow.pop %v3754
  %v3756 = vadd.f32 %v3755, 1.0
  %v3757 = vrcp.pop %v3756
  %v3758 = vmul.f32 1.0, %v3757
  %v3759 = vtanh.pop %v3752
  %v3762 = vunpack.c.l.s4 1983009808
  %v3763 = vunpack.c.0.s8 %v3762
  %v3764 = vlaneseq
  %v3765 = vshrl.u32 %v3764, 7
  %v3766 = vsub.s32 %v3763, %v3765
  %v3767 = vrot.slane %v3660, %v3766
  %3768 = vrot.lane.b32.xlu0 %v3767, 32
  %v3769 = vpop.permute.xlu0 %3768
  %v3771 = vmul.f32 %v3758, %v3769
  %3773 = vrot.lane.b32.xlu0 %v3759, 64
  %v3774 = vpop.permute.xlu0 %3773
  %v3776 = vmul.f32 %v3758, %v3774
  %3778 = vrot.lane.b32.xlu0 %v3776, 32
  %v3779 = vpop.permute.xlu0 %3778
  %v3781 = vadd.f32 %v3771, %v3779
  %v3782 = vtanh.pop %v3781
  %3784 = vrot.lane.b32.xlu0 %v3782, 64
  %v3785 = vpop.permute.xlu0 %3784
  %v3787 = vmul.f32 %v3758, %v3785
  %v3790 = vunpack.c.l.s4 1983009808
  %v3791 = vunpack.c.0.s8 %v3790
  %v3792 = vlaneseq
  %v3793 = vshrl.u32 %v3792, 7
  %v3794 = vsub.s32 %v3791, %v3793
  %v3795 = vrot.slane %v3787, %v3794
  %3796 = vrot.lane.b32.xlu0 %v3795, 32
  %v3797 = vpop.permute.xlu0 %3796
  %s3799 = scalar_lea.vmem %s7, 4
  %3800 = vst.msk [vmem:[%s3799] sm:$0x3] %vm993, %v3797
  %v3801 = vld [vmem:[%s653 + $0x2] sm:$0x3]
  %v3802 = vadd.f32 %v3801, %v3749
  %v3803 = vxor.u32 %v3802, 2147483648
  %v3804 = vmul.f32 %v3803, 1.442695
  %v3805 = vpow.pop %v3804
  %v3806 = vadd.f32 %v3805, 1.0
  %v3807 = vrcp.pop %v3806
  %v3808 = vmul.f32 1.0, %v3807
  %v3809 = vtanh.pop %v3802
  %v3810 = vmul.f32 %v3808, %v3660
  %3812 = vrot.lane.b32.xlu0 %v3809, 64
  %v3813 = vpop.permute.xlu0 %3812
  %v3815 = vmul.f32 %v3808, %v3813
  %3817 = vrot.lane.b32.xlu0 %v3815, 32
  %v3818 = vpop.permute.xlu0 %3817
  %v3820 = vadd.f32 %v3810, %v3818
  %v3821 = vtanh.pop %v3820
  %3823 = vrot.lane.b32.xlu0 %v3821, 64
  %v3824 = vpop.permute.xlu0 %3823
  %v3826 = vmul.f32 %v3808, %v3824
  %v3829 = vunpack.c.l.s4 1983009808
  %v3830 = vunpack.c.0.s8 %v3829
  %v3831 = vlaneseq
  %v3832 = vshrl.u32 %v3831, 7
  %v3833 = vsub.s32 %v3830, %v3832
  %v3834 = vrot.slane %v3826, %v3833
  %3835 = vrot.lane.b32.xlu0 %v3834, 64
  %v3836 = vpop.permute.xlu0 %3835
  %s3838 = scalar_lea.vmem %s7, 10
  %3839 = vst.msk [vmem:[%s3838] sm:$0x3] %vm1033, %v3836
  %v3840 = vsel %vm1035, %v3797, %v3836
  %v3843 = vunpack.c.l.s4 1983009808
  %v3844 = vunpack.c.0.s8 %v3843
  %v3845 = vlaneseq
  %v3846 = vshrl.u32 %v3845, 7
  %v3847 = vsub.s32 %v3844, %v3846
  %v3848 = vrot.slane %v3781, %v3847
  %3849 = vrot.lane.b32.xlu0 %v3848, 96
  %v3850 = vpop.permute.xlu0 %3849
  %v3852 = vsel %vm1035, %v3850, %v3820
  %v3853 = vld [vmem:[%s5] sm:$0xff]
  %v3854 = vld [vmem:[%s5 + $0x8] sm:$0xff]
  %v3855 = vld [vmem:[%s5 + $0x10] sm:$0xff]
  %v3856 = vld [vmem:[%s5 + $0x18] sm:$0xff]
  %v3857 = vld [vmem:[%s5 + $0x20] sm:$0xff]
  %v3858 = vld [vmem:[%s5 + $0x28] sm:$0xff]
  %v3859 = vld [vmem:[%s5 + $0x30] sm:$0xff]
  %v3860 = vld [vmem:[%s5 + $0x38] sm:$0xff]
  %v3861 = vld [vmem:[%s5 + $0x40] sm:$0xff]
  %v3862 = vld [vmem:[%s5 + $0x48] sm:$0xff]
  %v3863 = vld [vmem:[%s5 + $0x50] sm:$0xff]
  %v3864 = vld [vmem:[%s5 + $0x58] sm:$0xff]
  %v3865 = vld [vmem:[%s5 + $0x60] sm:$0xff]
  %v3866 = vld [vmem:[%s5 + $0x68] sm:$0xff]
  %v3867 = vld [vmem:[%s5 + $0x70] sm:$0xff]
  %v3868 = vld [vmem:[%s5 + $0x78] sm:$0xff]
  %v3870 = vsel %vm881, %v3840, 0
  %3872 = vmatprep.subr.mxu0 %v3854
  %3873 = vmatpush1.msra.mxu0 %v3853
  %3874 = vmatprep.subr.mxu0 %v3856
  %3875 = vmatpush1.msra.mxu0 %v3855
  %3876 = vmatprep.subr.mxu0 %v3858
  %3877 = vmatpush1.msra.mxu0 %v3857
  %3878 = vmatprep.subr.mxu0 %v3860
  %3879 = vmatpush1.msra.mxu0 %v3859
  %3880 = vmatprep.subr.mxu0 %v3862
  %3881 = vmatpush1.msra.mxu0 %v3861
  %3882 = vmatprep.subr.mxu0 %v3864
  %3883 = vmatpush1.msra.mxu0 %v3863
  %3884 = vmatprep.subr.mxu0 %v3866
  %3885 = vmatpush1.msra.mxu0 %v3865
  %3886 = vmatprep.subr.mxu0 %v3868
  %3887 = vmatpush1.msra.mxu0 %v3867
  %3888 = vmatprep.subr.mxu0 0.0
  %3889 = vmatpush1.msra.mxu0 0.0
  %3890 = vmatprep.subr.mxu0 0.0
  %3891 = vmatpush1.msra.mxu0 0.0
  %3892 = vmatprep.subr.mxu0 0.0
  %3893 = vmatpush1.msra.mxu0 0.0
  %3894 = vmatprep.subr.mxu0 0.0
  %3895 = vmatpush1.msra.mxu0 0.0
  %3896 = vmatprep.subr.mxu0 0.0
  %3897 = vmatpush1.msra.mxu0 0.0
  %3898 = vmatprep.subr.mxu0 0.0
  %3899 = vmatpush1.msra.mxu0 0.0
  %3900 = vmatprep.subr.mxu0 0.0
  %3901 = vmatpush1.msra.mxu0 0.0
  %3902 = vmatprep.subr.mxu0 0.0
  %3903 = vmatpush1.msra.mxu0 0.0
  %3904 = vmatprep.subr.mxu0 0.0
  %3905 = vmatpush1.msra.mxu0 0.0
  %3906 = vmatprep.subr.mxu0 0.0
  %3907 = vmatpush1.msra.mxu0 0.0
  %3908 = vmatprep.subr.mxu0 0.0
  %3909 = vmatpush1.msra.mxu0 0.0
  %3910 = vmatprep.subr.mxu0 0.0
  %3911 = vmatpush1.msra.mxu0 0.0
  %3912 = vmatprep.subr.mxu0 0.0
  %3913 = vmatpush1.msra.mxu0 0.0
  %3914 = vmatprep.subr.mxu0 0.0
  %3915 = vmatpush1.msra.mxu0 0.0
  %3916 = vmatprep.subr.mxu0 0.0
  %3917 = vmatpush1.msra.mxu0 0.0
  %3918 = vmatprep.subr.mxu0 0.0
  %3919 = vmatpush1.msra.mxu0 0.0
  %3920 = vmatprep.subr.mxu0 0.0
  %3921 = vmatpush1.msra.mxu0 0.0
  %3922 = vmatprep.subr.mxu0 0.0
  %3923 = vmatpush1.msra.mxu0 0.0
  %3924 = vmatprep.subr.mxu0 0.0
  %3925 = vmatpush1.msra.mxu0 0.0
  %3926 = vmatprep.subr.mxu0 0.0
  %3927 = vmatpush1.msra.mxu0 0.0
  %3928 = vmatprep.subr.mxu0 0.0
  %3929 = vmatpush1.msra.mxu0 0.0
  %3930 = vmatprep.subr.mxu0 0.0
  %3931 = vmatpush1.msra.mxu0 0.0
  %3932 = vmatprep.subr.mxu0 0.0
  %3933 = vmatpush1.msra.mxu0 0.0
  %3934 = vmatprep.subr.mxu0 0.0
  %3935 = vmatpush1.msra.mxu0 0.0
  %3936 = vmatprep.mubr.f32.mxu0 0.0
  %3937 = vmatmul.mubr.f32.gmra.mrb[0].mxu0 %v3870
  %v3938 = vpop.f32.mrb[0].mxu0
  %v3939 = vadd.f32 0.0, %v3938
  %v3940 = vpop.f32.mrb[0].mxu0
  %v3941 = vadd.f32 0.0, %v3940
  %3942 = vdwg.mxu0
  %v3943 = vld [vmem:[%s443] sm:$0x3]
  %v3944 = vadd.f32 %v3943, %v3939
  %v3945 = vxor.u32 %v3944, 2147483648
  %v3946 = vmul.f32 %v3945, 1.442695
  %v3947 = vpow.pop %v3946
  %v3948 = vadd.f32 %v3947, 1.0
  %v3949 = vrcp.pop %v3948
  %v3950 = vmul.f32 1.0, %v3949
  %v3951 = vtanh.pop %v3944
  %v3954 = vunpack.c.l.s4 1983009808
  %v3955 = vunpack.c.0.s8 %v3954
  %v3956 = vlaneseq
  %v3957 = vshrl.u32 %v3956, 7
  %v3958 = vsub.s32 %v3955, %v3957
  %v3959 = vrot.slane %v3852, %v3958
  %3960 = vrot.lane.b32.xlu0 %v3959, 32
  %v3961 = vpop.permute.xlu0 %3960
  %v3963 = vmul.f32 %v3950, %v3961
  %3965 = vrot.lane.b32.xlu0 %v3951, 64
  %v3966 = vpop.permute.xlu0 %3965
  %v3968 = vmul.f32 %v3950, %v3966
  %3970 = vrot.lane.b32.xlu0 %v3968, 32
  %v3971 = vpop.permute.xlu0 %3970
  %v3973 = vadd.f32 %v3963, %v3971
  %v3974 = vtanh.pop %v3973
  %3976 = vrot.lane.b32.xlu0 %v3974, 64
  %v3977 = vpop.permute.xlu0 %3976
  %v3979 = vmul.f32 %v3950, %v3977
  %v3982 = vunpack.c.l.s4 1983009808
  %v3983 = vunpack.c.0.s8 %v3982
  %v3984 = vlaneseq
  %v3985 = vshrl.u32 %v3984, 7
  %v3986 = vsub.s32 %v3983, %v3985
  %v3987 = vrot.slane %v3979, %v3986
  %3988 = vrot.lane.b32.xlu0 %v3987, 32
  %v3989 = vpop.permute.xlu0 %3988
  %s3991 = scalar_lea.vmem %s7, 6
  %3992 = vst.msk [vmem:[%s3991] sm:$0x3] %vm993, %v3989
  %v3993 = vld [vmem:[%s548 + $0x2] sm:$0x3]
  %v3994 = vadd.f32 %v3993, %v3941
  %v3995 = vxor.u32 %v3994, 2147483648
  %v3996 = vmul.f32 %v3995, 1.442695
  %v3997 = vpow.pop %v3996
  %v3998 = vadd.f32 %v3997, 1.0
  %v3999 = vrcp.pop %v3998
  %v4000 = vmul.f32 1.0, %v3999
  %v4001 = vtanh.pop %v3994
  %v4002 = vmul.f32 %v4000, %v3852
  %4004 = vrot.lane.b32.xlu0 %v4001, 64
  %v4005 = vpop.permute.xlu0 %4004
  %v4007 = vmul.f32 %v4000, %v4005
  %4009 = vrot.lane.b32.xlu0 %v4007, 32
  %v4010 = vpop.permute.xlu0 %4009
  %v4012 = vadd.f32 %v4002, %v4010
  %v4013 = vtanh.pop %v4012
  %4015 = vrot.lane.b32.xlu0 %v4013, 64
  %v4016 = vpop.permute.xlu0 %4015
  %v4018 = vmul.f32 %v4000, %v4016
  %v4021 = vunpack.c.l.s4 1983009808
  %v4022 = vunpack.c.0.s8 %v4021
  %v4023 = vlaneseq
  %v4024 = vshrl.u32 %v4023, 7
  %v4025 = vsub.s32 %v4022, %v4024
  %v4026 = vrot.slane %v4018, %v4025
  %4027 = vrot.lane.b32.xlu0 %v4026, 64
  %v4028 = vpop.permute.xlu0 %4027
  %s4030 = scalar_lea.vmem %s7, 8
  %4031 = vst.msk [vmem:[%s4030] sm:$0x3] %vm1033, %v4028
  %v4032 = vsel %vm1035, %v3989, %v4028
  %v4035 = vunpack.c.l.s4 1983009808
  %v4036 = vunpack.c.0.s8 %v4035
  %v4037 = vlaneseq
  %v4038 = vshrl.u32 %v4037, 7
  %v4039 = vsub.s32 %v4036, %v4038
  %v4040 = vrot.slane %v3973, %v4039
  %4041 = vrot.lane.b32.xlu0 %v4040, 96
  %v4042 = vpop.permute.xlu0 %4041
  %v4044 = vsel %vm1035, %v4042, %v4012
  %v4045 = vld [vmem:[%s5] sm:$0xff]
  %v4046 = vld [vmem:[%s5 + $0x8] sm:$0xff]
  %v4047 = vld [vmem:[%s5 + $0x10] sm:$0xff]
  %v4048 = vld [vmem:[%s5 + $0x18] sm:$0xff]
  %v4049 = vld [vmem:[%s5 + $0x20] sm:$0xff]
  %v4050 = vld [vmem:[%s5 + $0x28] sm:$0xff]
  %v4051 = vld [vmem:[%s5 + $0x30] sm:$0xff]
  %v4052 = vld [vmem:[%s5 + $0x38] sm:$0xff]
  %v4053 = vld [vmem:[%s5 + $0x40] sm:$0xff]
  %v4054 = vld [vmem:[%s5 + $0x48] sm:$0xff]
  %v4055 = vld [vmem:[%s5 + $0x50] sm:$0xff]
  %v4056 = vld [vmem:[%s5 + $0x58] sm:$0xff]
  %v4057 = vld [vmem:[%s5 + $0x60] sm:$0xff]
  %v4058 = vld [vmem:[%s5 + $0x68] sm:$0xff]
  %v4059 = vld [vmem:[%s5 + $0x70] sm:$0xff]
  %v4060 = vld [vmem:[%s5 + $0x78] sm:$0xff]
  %v4062 = vsel %vm881, %v4032, 0
  %4064 = vmatprep.subr.mxu0 %v4046
  %4065 = vmatpush1.msra.mxu0 %v4045
  %4066 = vmatprep.subr.mxu0 %v4048
  %4067 = vmatpush1.msra.mxu0 %v4047
  %4068 = vmatprep.subr.mxu0 %v4050
  %4069 = vmatpush1.msra.mxu0 %v4049
  %4070 = vmatprep.subr.mxu0 %v4052
  %4071 = vmatpush1.msra.mxu0 %v4051
  %4072 = vmatprep.subr.mxu0 %v4054
  %4073 = vmatpush1.msra.mxu0 %v4053
  %4074 = vmatprep.subr.mxu0 %v4056
  %4075 = vmatpush1.msra.mxu0 %v4055
  %4076 = vmatprep.subr.mxu0 %v4058
  %4077 = vmatpush1.msra.mxu0 %v4057
  %4078 = vmatprep.subr.mxu0 %v4060
  %4079 = vmatpush1.msra.mxu0 %v4059
  %4080 = vmatprep.subr.mxu0 0.0
  %4081 = vmatpush1.msra.mxu0 0.0
  %4082 = vmatprep.subr.mxu0 0.0
  %4083 = vmatpush1.msra.mxu0 0.0
  %4084 = vmatprep.subr.mxu0 0.0
  %4085 = vmatpush1.msra.mxu0 0.0
  %4086 = vmatprep.subr.mxu0 0.0
  %4087 = vmatpush1.msra.mxu0 0.0
  %4088 = vmatprep.subr.mxu0 0.0
  %4089 = vmatpush1.msra.mxu0 0.0
  %4090 = vmatprep.subr.mxu0 0.0
  %4091 = vmatpush1.msra.mxu0 0.0
  %4092 = vmatprep.subr.mxu0 0.0
  %4093 = vmatpush1.msra.mxu0 0.0
  %4094 = vmatprep.subr.mxu0 0.0
  %4095 = vmatpush1.msra.mxu0 0.0
  %4096 = vmatprep.subr.mxu0 0.0
  %4097 = vmatpush1.msra.mxu0 0.0
  %4098 = vmatprep.subr.mxu0 0.0
  %4099 = vmatpush1.msra.mxu0 0.0
  %4100 = vmatprep.subr.mxu0 0.0
  %4101 = vmatpush1.msra.mxu0 0.0
  %4102 = vmatprep.subr.mxu0 0.0
  %4103 = vmatpush1.msra.mxu0 0.0
  %4104 = vmatprep.subr.mxu0 0.0
  %4105 = vmatpush1.msra.mxu0 0.0
  %4106 = vmatprep.subr.mxu0 0.0
  %4107 = vmatpush1.msra.mxu0 0.0
  %4108 = vmatprep.subr.mxu0 0.0
  %4109 = vmatpush1.msra.mxu0 0.0
  %4110 = vmatprep.subr.mxu0 0.0
  %4111 = vmatpush1.msra.mxu0 0.0
  %4112 = vmatprep.subr.mxu0 0.0
  %4113 = vmatpush1.msra.mxu0 0.0
  %4114 = vmatprep.subr.mxu0 0.0
  %4115 = vmatpush1.msra.mxu0 0.0
  %4116 = vmatprep.subr.mxu0 0.0
  %4117 = vmatpush1.msra.mxu0 0.0
  %4118 = vmatprep.subr.mxu0 0.0
  %4119 = vmatpush1.msra.mxu0 0.0
  %4120 = vmatprep.subr.mxu0 0.0
  %4121 = vmatpush1.msra.mxu0 0.0
  %4122 = vmatprep.subr.mxu0 0.0
  %4123 = vmatpush1.msra.mxu0 0.0
  %4124 = vmatprep.subr.mxu0 0.0
  %4125 = vmatpush1.msra.mxu0 0.0
  %4126 = vmatprep.subr.mxu0 0.0
  %4127 = vmatpush1.msra.mxu0 0.0
  %4128 = vmatprep.mubr.f32.mxu0 0.0
  %4129 = vmatmul.mubr.f32.gmra.mrb[0].mxu0 %v4062
  %v4130 = vpop.f32.mrb[0].mxu0
  %v4131 = vadd.f32 0.0, %v4130
  %v4132 = vpop.f32.mrb[0].mxu0
  %v4133 = vadd.f32 0.0, %v4132
  %4134 = vdwg.mxu0
  %v4135 = vld [vmem:[%s548] sm:$0x3]
  %v4136 = vadd.f32 %v4135, %v4131
  %v4137 = vxor.u32 %v4136, 2147483648
  %v4138 = vmul.f32 %v4137, 1.442695
  %v4139 = vpow.pop %v4138
  %v4140 = vadd.f32 %v4139, 1.0
  %v4141 = vrcp.pop %v4140
  %v4142 = vmul.f32 1.0, %v4141
  %v4143 = vtanh.pop %v4136
  %v4146 = vunpack.c.l.s4 1983009808
  %v4147 = vunpack.c.0.s8 %v4146
  %v4148 = vlaneseq
  %v4149 = vshrl.u32 %v4148, 7
  %v4150 = vsub.s32 %v4147, %v4149
  %v4151 = vrot.slane %v4044, %v4150
  %4152 = vrot.lane.b32.xlu0 %v4151, 32
  %v4153 = vpop.permute.xlu0 %4152
  %v4155 = vmul.f32 %v4142, %v4153
  %4157 = vrot.lane.b32.xlu0 %v4143, 64
  %v4158 = vpop.permute.xlu0 %4157
  %v4160 = vmul.f32 %v4142, %v4158
  %4162 = vrot.lane.b32.xlu0 %v4160, 32
  %v4163 = vpop.permute.xlu0 %4162
  %v4165 = vadd.f32 %v4155, %v4163
  %v4166 = vtanh.pop %v4165
  %4168 = vrot.lane.b32.xlu0 %v4166, 64
  %v4169 = vpop.permute.xlu0 %4168
  %v4171 = vmul.f32 %v4142, %v4169
  %v4174 = vunpack.c.l.s4 1983009808
  %v4175 = vunpack.c.0.s8 %v4174
  %v4176 = vlaneseq
  %v4177 = vshrl.u32 %v4176, 7
  %v4178 = vsub.s32 %v4175, %v4177
  %v4179 = vrot.slane %v4171, %v4178
  %4180 = vrot.lane.b32.xlu0 %v4179, 32
  %v4181 = vpop.permute.xlu0 %4180
  %4183 = vst.msk [vmem:[%s4030] sm:$0x3] %vm993, %v4181
  %v4184 = vld [vmem:[%s443 + $0x2] sm:$0x3]
  %v4185 = vadd.f32 %v4184, %v4133
  %v4186 = vxor.u32 %v4185, 2147483648
  %v4187 = vmul.f32 %v4186, 1.442695
  %v4188 = vpow.pop %v4187
  %v4189 = vadd.f32 %v4188, 1.0
  %v4190 = vrcp.pop %v4189
  %v4191 = vmul.f32 1.0, %v4190
  %v4192 = vtanh.pop %v4185
  %v4193 = vmul.f32 %v4191, %v4044
  %4195 = vrot.lane.b32.xlu0 %v4192, 64
  %v4196 = vpop.permute.xlu0 %4195
  %v4198 = vmul.f32 %v4191, %v4196
  %4200 = vrot.lane.b32.xlu0 %v4198, 32
  %v4201 = vpop.permute.xlu0 %4200
  %v4203 = vadd.f32 %v4193, %v4201
  %v4204 = vtanh.pop %v4203
  %4206 = vrot.lane.b32.xlu0 %v4204, 64
  %v4207 = vpop.permute.xlu0 %4206
  %v4209 = vmul.f32 %v4191, %v4207
  %v4212 = vunpack.c.l.s4 1983009808
  %v4213 = vunpack.c.0.s8 %v4212
  %v4214 = vlaneseq
  %v4215 = vshrl.u32 %v4214, 7
  %v4216 = vsub.s32 %v4213, %v4215
  %v4217 = vrot.slane %v4209, %v4216
  %4218 = vrot.lane.b32.xlu0 %v4217, 64
  %v4219 = vpop.permute.xlu0 %4218
  %4221 = vst.msk [vmem:[%s3991] sm:$0x3] %vm1033, %v4219
  %v4222 = vsel %vm1035, %v4181, %v4219
  %v4225 = vunpack.c.l.s4 1983009808
  %v4226 = vunpack.c.0.s8 %v4225
  %v4227 = vlaneseq
  %v4228 = vshrl.u32 %v4227, 7
  %v4229 = vsub.s32 %v4226, %v4228
  %v4230 = vrot.slane %v4165, %v4229
  %4231 = vrot.lane.b32.xlu0 %v4230, 96
  %v4232 = vpop.permute.xlu0 %4231
  %v4234 = vsel %vm1035, %v4232, %v4203
  %v4235 = vld [vmem:[%s5] sm:$0xff]
  %v4236 = vld [vmem:[%s5 + $0x8] sm:$0xff]
  %v4237 = vld [vmem:[%s5 + $0x10] sm:$0xff]
  %v4238 = vld [vmem:[%s5 + $0x18] sm:$0xff]
  %v4239 = vld [vmem:[%s5 + $0x20] sm:$0xff]
  %v4240 = vld [vmem:[%s5 + $0x28] sm:$0xff]
  %v4241 = vld [vmem:[%s5 + $0x30] sm:$0xff]
  %v4242 = vld [vmem:[%s5 + $0x38] sm:$0xff]
  %v4243 = vld [vmem:[%s5 + $0x40] sm:$0xff]
  %v4244 = vld [vmem:[%s5 + $0x48] sm:$0xff]
  %v4245 = vld [vmem:[%s5 + $0x50] sm:$0xff]
  %v4246 = vld [vmem:[%s5 + $0x58] sm:$0xff]
  %v4247 = vld [vmem:[%s5 + $0x60] sm:$0xff]
  %v4248 = vld [vmem:[%s5 + $0x68] sm:$0xff]
  %v4249 = vld [vmem:[%s5 + $0x70] sm:$0xff]
  %v4250 = vld [vmem:[%s5 + $0x78] sm:$0xff]
  %v4252 = vsel %vm881, %v4222, 0
  %4254 = vmatprep.subr.mxu0 %v4236
  %4255 = vmatpush1.msra.mxu0 %v4235
  %4256 = vmatprep.subr.mxu0 %v4238
  %4257 = vmatpush1.msra.mxu0 %v4237
  %4258 = vmatprep.subr.mxu0 %v4240
  %4259 = vmatpush1.msra.mxu0 %v4239
  %4260 = vmatprep.subr.mxu0 %v4242
  %4261 = vmatpush1.msra.mxu0 %v4241
  %4262 = vmatprep.subr.mxu0 %v4244
  %4263 = vmatpush1.msra.mxu0 %v4243
  %4264 = vmatprep.subr.mxu0 %v4246
  %4265 = vmatpush1.msra.mxu0 %v4245
  %4266 = vmatprep.subr.mxu0 %v4248
  %4267 = vmatpush1.msra.mxu0 %v4247
  %4268 = vmatprep.subr.mxu0 %v4250
  %4269 = vmatpush1.msra.mxu0 %v4249
  %4270 = vmatprep.subr.mxu0 0.0
  %4271 = vmatpush1.msra.mxu0 0.0
  %4272 = vmatprep.subr.mxu0 0.0
  %4273 = vmatpush1.msra.mxu0 0.0
  %4274 = vmatprep.subr.mxu0 0.0
  %4275 = vmatpush1.msra.mxu0 0.0
  %4276 = vmatprep.subr.mxu0 0.0
  %4277 = vmatpush1.msra.mxu0 0.0
  %4278 = vmatprep.subr.mxu0 0.0
  %4279 = vmatpush1.msra.mxu0 0.0
  %4280 = vmatprep.subr.mxu0 0.0
  %4281 = vmatpush1.msra.mxu0 0.0
  %4282 = vmatprep.subr.mxu0 0.0
  %4283 = vmatpush1.msra.mxu0 0.0
  %4284 = vmatprep.subr.mxu0 0.0
  %4285 = vmatpush1.msra.mxu0 0.0
  %4286 = vmatprep.subr.mxu0 0.0
  %4287 = vmatpush1.msra.mxu0 0.0
  %4288 = vmatprep.subr.mxu0 0.0
  %4289 = vmatpush1.msra.mxu0 0.0
  %4290 = vmatprep.subr.mxu0 0.0
  %4291 = vmatpush1.msra.mxu0 0.0
  %4292 = vmatprep.subr.mxu0 0.0
  %4293 = vmatpush1.msra.mxu0 0.0
  %4294 = vmatprep.subr.mxu0 0.0
  %4295 = vmatpush1.msra.mxu0 0.0
  %4296 = vmatprep.subr.mxu0 0.0
  %4297 = vmatpush1.msra.mxu0 0.0
  %4298 = vmatprep.subr.mxu0 0.0
  %4299 = vmatpush1.msra.mxu0 0.0
  %4300 = vmatprep.subr.mxu0 0.0
  %4301 = vmatpush1.msra.mxu0 0.0
  %4302 = vmatprep.subr.mxu0 0.0
  %4303 = vmatpush1.msra.mxu0 0.0
  %4304 = vmatprep.subr.mxu0 0.0
  %4305 = vmatpush1.msra.mxu0 0.0
  %4306 = vmatprep.subr.mxu0 0.0
  %4307 = vmatpush1.msra.mxu0 0.0
  %4308 = vmatprep.subr.mxu0 0.0
  %4309 = vmatpush1.msra.mxu0 0.0
  %4310 = vmatprep.subr.mxu0 0.0
  %4311 = vmatpush1.msra.mxu0 0.0
  %4312 = vmatprep.subr.mxu0 0.0
  %4313 = vmatpush1.msra.mxu0 0.0
  %4314 = vmatprep.subr.mxu0 0.0
  %4315 = vmatpush1.msra.mxu0 0.0
  %4316 = vmatprep.subr.mxu0 0.0
  %4317 = vmatpush1.msra.mxu0 0.0
  %4318 = vmatprep.mubr.f32.mxu0 0.0
  %4319 = vmatmul.mubr.f32.gmra.mrb[0].mxu0 %v4252
  %v4320 = vpop.f32.mrb[0].mxu0
  %v4321 = vadd.f32 0.0, %v4320
  %v4322 = vpop.f32.mrb[0].mxu0
  %v4323 = vadd.f32 0.0, %v4322
  %4324 = vdwg.mxu0
  %v4325 = vld [vmem:[%s653] sm:$0x3]
  %v4326 = vadd.f32 %v4325, %v4321
  %v4327 = vxor.u32 %v4326, 2147483648
  %v4328 = vmul.f32 %v4327, 1.442695
  %v4329 = vpow.pop %v4328
  %v4330 = vadd.f32 %v4329, 1.0
  %v4331 = vrcp.pop %v4330
  %v4332 = vmul.f32 1.0, %v4331
  %v4333 = vtanh.pop %v4326
  %v4336 = vunpack.c.l.s4 1983009808
  %v4337 = vunpack.c.0.s8 %v4336
  %v4338 = vlaneseq
  %v4339 = vshrl.u32 %v4338, 7
  %v4340 = vsub.s32 %v4337, %v4339
  %v4341 = vrot.slane %v4234, %v4340
  %4342 = vrot.lane.b32.xlu0 %v4341, 32
  %v4343 = vpop.permute.xlu0 %4342
  %v4345 = vmul.f32 %v4332, %v4343
  %4347 = vrot.lane.b32.xlu0 %v4333, 64
  %v4348 = vpop.permute.xlu0 %4347
  %v4350 = vmul.f32 %v4332, %v4348
  %4352 = vrot.lane.b32.xlu0 %v4350, 32
  %v4353 = vpop.permute.xlu0 %4352
  %v4355 = vadd.f32 %v4345, %v4353
  %v4356 = vtanh.pop %v4355
  %4358 = vrot.lane.b32.xlu0 %v4356, 64
  %v4359 = vpop.permute.xlu0 %4358
  %v4361 = vmul.f32 %v4332, %v4359
  %v4364 = vunpack.c.l.s4 1983009808
  %v4365 = vunpack.c.0.s8 %v4364
  %v4366 = vlaneseq
  %v4367 = vshrl.u32 %v4366, 7
  %v4368 = vsub.s32 %v4365, %v4367
  %v4369 = vrot.slane %v4361, %v4368
  %4370 = vrot.lane.b32.xlu0 %v4369, 32
  %v4371 = vpop.permute.xlu0 %4370
  %4373 = vst.msk [vmem:[%s3838] sm:$0x3] %vm993, %v4371
  %v4374 = vld [vmem:[%s338 + $0x2] sm:$0x3]
  %v4375 = vadd.f32 %v4374, %v4323
  %v4376 = vxor.u32 %v4375, 2147483648
  %v4377 = vmul.f32 %v4376, 1.442695
  %v4378 = vpow.pop %v4377
  %v4379 = vadd.f32 %v4378, 1.0
  %v4380 = vrcp.pop %v4379
  %v4381 = vmul.f32 1.0, %v4380
  %v4382 = vtanh.pop %v4375
  %v4383 = vmul.f32 %v4381, %v4234
  %4385 = vrot.lane.b32.xlu0 %v4382, 64
  %v4386 = vpop.permute.xlu0 %4385
  %v4388 = vmul.f32 %v4381, %v4386
  %4390 = vrot.lane.b32.xlu0 %v4388, 32
  %v4391 = vpop.permute.xlu0 %4390
  %v4393 = vadd.f32 %v4383, %v4391
  %v4394 = vtanh.pop %v4393
  %4396 = vrot.lane.b32.xlu0 %v4394, 64
  %v4397 = vpop.permute.xlu0 %4396
  %v4399 = vmul.f32 %v4381, %v4397
  %v4402 = vunpack.c.l.s4 1983009808
  %v4403 = vunpack.c.0.s8 %v4402
  %v4404 = vlaneseq
  %v4405 = vshrl.u32 %v4404, 7
  %v4406 = vsub.s32 %v4403, %v4405
  %v4407 = vrot.slane %v4399, %v4406
  %4408 = vrot.lane.b32.xlu0 %v4407, 64
  %v4409 = vpop.permute.xlu0 %4408
  %4411 = vst.msk [vmem:[%s3799] sm:$0x3] %vm1033, %v4409
  %v4412 = vsel %vm1035, %v4371, %v4409
  %v4415 = vunpack.c.l.s4 1983009808
  %v4416 = vunpack.c.0.s8 %v4415
  %v4417 = vlaneseq
  %v4418 = vshrl.u32 %v4417, 7
  %v4419 = vsub.s32 %v4416, %v4418
  %v4420 = vrot.slane %v4355, %v4419
  %4421 = vrot.lane.b32.xlu0 %v4420, 96
  %v4422 = vpop.permute.xlu0 %4421
  %v4424 = vsel %vm1035, %v4422, %v4393
  %v4425 = vld [vmem:[%s5] sm:$0xff]
  %v4426 = vld [vmem:[%s5 + $0x8] sm:$0xff]
  %v4427 = vld [vmem:[%s5 + $0x10] sm:$0xff]
  %v4428 = vld [vmem:[%s5 + $0x18] sm:$0xff]
  %v4429 = vld [vmem:[%s5 + $0x20] sm:$0xff]
  %v4430 = vld [vmem:[%s5 + $0x28] sm:$0xff]
  %v4431 = vld [vmem:[%s5 + $0x30] sm:$0xff]
  %v4432 = vld [vmem:[%s5 + $0x38] sm:$0xff]
  %v4433 = vld [vmem:[%s5 + $0x40] sm:$0xff]
  %v4434 = vld [vmem:[%s5 + $0x48] sm:$0xff]
  %v4435 = vld [vmem:[%s5 + $0x50] sm:$0xff]
  %v4436 = vld [vmem:[%s5 + $0x58] sm:$0xff]
  %v4437 = vld [vmem:[%s5 + $0x60] sm:$0xff]
  %v4438 = vld [vmem:[%s5 + $0x68] sm:$0xff]
  %v4439 = vld [vmem:[%s5 + $0x70] sm:$0xff]
  %v4440 = vld [vmem:[%s5 + $0x78] sm:$0xff]
  %v4442 = vsel %vm881, %v4412, 0
  %4444 = vmatprep.subr.mxu0 %v4426
  %4445 = vmatpush1.msra.mxu0 %v4425
  %4446 = vmatprep.subr.mxu0 %v4428
  %4447 = vmatpush1.msra.mxu0 %v4427
  %4448 = vmatprep.subr.mxu0 %v4430
  %4449 = vmatpush1.msra.mxu0 %v4429
  %4450 = vmatprep.subr.mxu0 %v4432
  %4451 = vmatpush1.msra.mxu0 %v4431
  %4452 = vmatprep.subr.mxu0 %v4434
  %4453 = vmatpush1.msra.mxu0 %v4433
  %4454 = vmatprep.subr.mxu0 %v4436
  %4455 = vmatpush1.msra.mxu0 %v4435
  %4456 = vmatprep.subr.mxu0 %v4438
  %4457 = vmatpush1.msra.mxu0 %v4437
  %4458 = vmatprep.subr.mxu0 %v4440
  %4459 = vmatpush1.msra.mxu0 %v4439
  %4460 = vmatprep.subr.mxu0 0.0
  %4461 = vmatpush1.msra.mxu0 0.0
  %4462 = vmatprep.subr.mxu0 0.0
  %4463 = vmatpush1.msra.mxu0 0.0
  %4464 = vmatprep.subr.mxu0 0.0
  %4465 = vmatpush1.msra.mxu0 0.0
  %4466 = vmatprep.subr.mxu0 0.0
  %4467 = vmatpush1.msra.mxu0 0.0
  %4468 = vmatprep.subr.mxu0 0.0
  %4469 = vmatpush1.msra.mxu0 0.0
  %4470 = vmatprep.subr.mxu0 0.0
  %4471 = vmatpush1.msra.mxu0 0.0
  %4472 = vmatprep.subr.mxu0 0.0
  %4473 = vmatpush1.msra.mxu0 0.0
  %4474 = vmatprep.subr.mxu0 0.0
  %4475 = vmatpush1.msra.mxu0 0.0
  %4476 = vmatprep.subr.mxu0 0.0
  %4477 = vmatpush1.msra.mxu0 0.0
  %4478 = vmatprep.subr.mxu0 0.0
  %4479 = vmatpush1.msra.mxu0 0.0
  %4480 = vmatprep.subr.mxu0 0.0
  %4481 = vmatpush1.msra.mxu0 0.0
  %4482 = vmatprep.subr.mxu0 0.0
  %4483 = vmatpush1.msra.mxu0 0.0
  %4484 = vmatprep.subr.mxu0 0.0
  %4485 = vmatpush1.msra.mxu0 0.0
  %4486 = vmatprep.subr.mxu0 0.0
  %4487 = vmatpush1.msra.mxu0 0.0
  %4488 = vmatprep.subr.mxu0 0.0
  %4489 = vmatpush1.msra.mxu0 0.0
  %4490 = vmatprep.subr.mxu0 0.0
  %4491 = vmatpush1.msra.mxu0 0.0
  %4492 = vmatprep.subr.mxu0 0.0
  %4493 = vmatpush1.msra.mxu0 0.0
  %4494 = vmatprep.subr.mxu0 0.0
  %4495 = vmatpush1.msra.mxu0 0.0
  %4496 = vmatprep.subr.mxu0 0.0
  %4497 = vmatpush1.msra.mxu0 0.0
  %4498 = vmatprep.subr.mxu0 0.0
  %4499 = vmatpush1.msra.mxu0 0.0
  %4500 = vmatprep.subr.mxu0 0.0
  %4501 = vmatpush1.msra.mxu0 0.0
  %4502 = vmatprep.subr.mxu0 0.0
  %4503 = vmatpush1.msra.mxu0 0.0
  %4504 = vmatprep.subr.mxu0 0.0
  %4505 = vmatpush1.msra.mxu0 0.0
  %4506 = vmatprep.subr.mxu0 0.0
  %4507 = vmatpush1.msra.mxu0 0.0
  %4508 = vmatprep.mubr.f32.mxu0 0.0
  %4509 = vmatmul.mubr.f32.gmra.mrb[0].mxu0 %v4442
  %v4510 = vpop.f32.mrb[0].mxu0
  %v4511 = vadd.f32 0.0, %v4510
  %v4512 = vpop.f32.mrb[0].mxu0
  %v4513 = vadd.f32 0.0, %v4512
  %4514 = vdwg.mxu0
  %v4515 = vld [vmem:[%s758] sm:$0x3]
  %v4516 = vadd.f32 %v4515, %v4511
  %v4517 = vxor.u32 %v4516, 2147483648
  %v4518 = vmul.f32 %v4517, 1.442695
  %v4519 = vpow.pop %v4518
  %v4520 = vadd.f32 %v4519, 1.0
  %v4521 = vrcp.pop %v4520
  %v4522 = vmul.f32 1.0, %v4521
  %v4523 = vtanh.pop %v4516
  %v4526 = vunpack.c.l.s4 1983009808
  %v4527 = vunpack.c.0.s8 %v4526
  %v4528 = vlaneseq
  %v4529 = vshrl.u32 %v4528, 7
  %v4530 = vsub.s32 %v4527, %v4529
  %v4531 = vrot.slane %v4424, %v4530
  %4532 = vrot.lane.b32.xlu0 %v4531, 32
  %v4533 = vpop.permute.xlu0 %4532
  %v4535 = vmul.f32 %v4522, %v4533
  %4537 = vrot.lane.b32.xlu0 %v4523, 64
  %v4538 = vpop.permute.xlu0 %4537
  %v4540 = vmul.f32 %v4522, %v4538
  %4542 = vrot.lane.b32.xlu0 %v4540, 32
  %v4543 = vpop.permute.xlu0 %4542
  %v4545 = vadd.f32 %v4535, %v4543
  %v4546 = vtanh.pop %v4545
  %4548 = vrot.lane.b32.xlu0 %v4546, 64
  %v4549 = vpop.permute.xlu0 %4548
  %v4551 = vmul.f32 %v4522, %v4549
  %v4554 = vunpack.c.l.s4 1983009808
  %v4555 = vunpack.c.0.s8 %v4554
  %v4556 = vlaneseq
  %v4557 = vshrl.u32 %v4556, 7
  %v4558 = vsub.s32 %v4555, %v4557
  %v4559 = vrot.slane %v4551, %v4558
  %4560 = vrot.lane.b32.xlu0 %v4559, 32
  %v4561 = vpop.permute.xlu0 %4560
  %4563 = vst.msk [vmem:[%s3646] sm:$0x3] %vm993, %v4561
  %v4564 = vld [vmem:[%s233 + $0x2] sm:$0x3]
  %v4565 = vadd.f32 %v4564, %v4513
  %v4566 = vxor.u32 %v4565, 2147483648
  %v4567 = vmul.f32 %v4566, 1.442695
  %v4568 = vpow.pop %v4567
  %v4569 = vadd.f32 %v4568, 1.0
  %v4570 = vrcp.pop %v4569
  %v4571 = vmul.f32 1.0, %v4570
  %v4572 = vtanh.pop %v4565
  %v4573 = vmul.f32 %v4571, %v4424
  %4575 = vrot.lane.b32.xlu0 %v4572, 64
  %v4576 = vpop.permute.xlu0 %4575
  %v4578 = vmul.f32 %v4571, %v4576
  %4580 = vrot.lane.b32.xlu0 %v4578, 32
  %v4581 = vpop.permute.xlu0 %4580
  %v4583 = vadd.f32 %v4573, %v4581
  %v4584 = vtanh.pop %v4583
  %4586 = vrot.lane.b32.xlu0 %v4584, 64
  %v4587 = vpop.permute.xlu0 %4586
  %v4589 = vmul.f32 %v4571, %v4587
  %v4592 = vunpack.c.l.s4 1983009808
  %v4593 = vunpack.c.0.s8 %v4592
  %v4594 = vlaneseq
  %v4595 = vshrl.u32 %v4594, 7
  %v4596 = vsub.s32 %v4593, %v4595
  %v4597 = vrot.slane %v4589, %v4596
  %4598 = vrot.lane.b32.xlu0 %v4597, 64
  %v4599 = vpop.permute.xlu0 %4598
  %4601 = vst.msk [vmem:[%s3607] sm:$0x3] %vm1033, %v4599
  %v4602 = vsel %vm1035, %v4561, %v4599
  %v4605 = vunpack.c.l.s4 1983009808
  %v4606 = vunpack.c.0.s8 %v4605
  %v4607 = vlaneseq
  %v4608 = vshrl.u32 %v4607, 7
  %v4609 = vsub.s32 %v4606, %v4608
  %v4610 = vrot.slane %v4545, %v4609
  %4611 = vrot.lane.b32.xlu0 %v4610, 96
  %v4612 = vpop.permute.xlu0 %4611
  %v4614 = vsel %vm1035, %v4612, %v4583
  %v4615 = vld [vmem:[%s5] sm:$0xff]
  %v4616 = vld [vmem:[%s5 + $0x8] sm:$0xff]
  %v4617 = vld [vmem:[%s5 + $0x10] sm:$0xff]
  %v4618 = vld [vmem:[%s5 + $0x18] sm:$0xff]
  %v4619 = vld [vmem:[%s5 + $0x20] sm:$0xff]
  %v4620 = vld [vmem:[%s5 + $0x28] sm:$0xff]
  %v4621 = vld [vmem:[%s5 + $0x30] sm:$0xff]
  %v4622 = vld [vmem:[%s5 + $0x38] sm:$0xff]
  %v4623 = vld [vmem:[%s5 + $0x40] sm:$0xff]
  %v4624 = vld [vmem:[%s5 + $0x48] sm:$0xff]
  %v4625 = vld [vmem:[%s5 + $0x50] sm:$0xff]
  %v4626 = vld [vmem:[%s5 + $0x58] sm:$0xff]
  %v4627 = vld [vmem:[%s5 + $0x60] sm:$0xff]
  %v4628 = vld [vmem:[%s5 + $0x68] sm:$0xff]
  %v4629 = vld [vmem:[%s5 + $0x70] sm:$0xff]
  %v4630 = vld [vmem:[%s5 + $0x78] sm:$0xff]
  %v4632 = vsel %vm881, %v4602, 0
  %4634 = vmatprep.subr.mxu0 %v4616
  %4635 = vmatpush1.msra.mxu0 %v4615
  %4636 = vmatprep.subr.mxu0 %v4618
  %4637 = vmatpush1.msra.mxu0 %v4617
  %4638 = vmatprep.subr.mxu0 %v4620
  %4639 = vmatpush1.msra.mxu0 %v4619
  %4640 = vmatprep.subr.mxu0 %v4622
  %4641 = vmatpush1.msra.mxu0 %v4621
  %4642 = vmatprep.subr.mxu0 %v4624
  %4643 = vmatpush1.msra.mxu0 %v4623
  %4644 = vmatprep.subr.mxu0 %v4626
  %4645 = vmatpush1.msra.mxu0 %v4625
  %4646 = vmatprep.subr.mxu0 %v4628
  %4647 = vmatpush1.msra.mxu0 %v4627
  %4648 = vmatprep.subr.mxu0 %v4630
  %4649 = vmatpush1.msra.mxu0 %v4629
  %4650 = vmatprep.subr.mxu0 0.0
  %4651 = vmatpush1.msra.mxu0 0.0
  %4652 = vmatprep.subr.mxu0 0.0
  %4653 = vmatpush1.msra.mxu0 0.0
  %4654 = vmatprep.subr.mxu0 0.0
  %4655 = vmatpush1.msra.mxu0 0.0
  %4656 = vmatprep.subr.mxu0 0.0
  %4657 = vmatpush1.msra.mxu0 0.0
  %4658 = vmatprep.subr.mxu0 0.0
  %4659 = vmatpush1.msra.mxu0 0.0
  %4660 = vmatprep.subr.mxu0 0.0
  %4661 = vmatpush1.msra.mxu0 0.0
  %4662 = vmatprep.subr.mxu0 0.0
  %4663 = vmatpush1.msra.mxu0 0.0
  %4664 = vmatprep.subr.mxu0 0.0
  %4665 = vmatpush1.msra.mxu0 0.0
  %4666 = vmatprep.subr.mxu0 0.0
  %4667 = vmatpush1.msra.mxu0 0.0
  %4668 = vmatprep.subr.mxu0 0.0
  %4669 = vmatpush1.msra.mxu0 0.0
  %4670 = vmatprep.subr.mxu0 0.0
  %4671 = vmatpush1.msra.mxu0 0.0
  %4672 = vmatprep.subr.mxu0 0.0
  %4673 = vmatpush1.msra.mxu0 0.0
  %4674 = vmatprep.subr.mxu0 0.0
  %4675 = vmatpush1.msra.mxu0 0.0
  %4676 = vmatprep.subr.mxu0 0.0
  %4677 = vmatpush1.msra.mxu0 0.0
  %4678 = vmatprep.subr.mxu0 0.0
  %4679 = vmatpush1.msra.mxu0 0.0
  %4680 = vmatprep.subr.mxu0 0.0
  %4681 = vmatpush1.msra.mxu0 0.0
  %4682 = vmatprep.subr.mxu0 0.0
  %4683 = vmatpush1.msra.mxu0 0.0
  %4684 = vmatprep.subr.mxu0 0.0
  %4685 = vmatpush1.msra.mxu0 0.0
  %4686 = vmatprep.subr.mxu0 0.0
  %4687 = vmatpush1.msra.mxu0 0.0
  %4688 = vmatprep.subr.mxu0 0.0
  %4689 = vmatpush1.msra.mxu0 0.0
  %4690 = vmatprep.subr.mxu0 0.0
  %4691 = vmatpush1.msra.mxu0 0.0
  %4692 = vmatprep.subr.mxu0 0.0
  %4693 = vmatpush1.msra.mxu0 0.0
  %4694 = vmatprep.subr.mxu0 0.0
  %4695 = vmatpush1.msra.mxu0 0.0
  %4696 = vmatprep.subr.mxu0 0.0
  %4697 = vmatpush1.msra.mxu0 0.0
  %4698 = vmatprep.mubr.f32.mxu0 0.0
  %4699 = vmatmul.mubr.f32.gmra.mrb[0].mxu0 %v4632
  %v4700 = vpop.f32.mrb[0].mxu0
  %v4701 = vadd.f32 0.0, %v4700
  %v4702 = vpop.f32.mrb[0].mxu0
  %v4703 = vadd.f32 0.0, %v4702
  %4704 = vdwg.mxu0
  %v4705 = vld [vmem:[%s863] sm:$0x3]
  %v4706 = vadd.f32 %v4705, %v4701
  %v4707 = vxor.u32 %v4706, 2147483648
  %v4708 = vmul.f32 %v4707, 1.442695
  %v4709 = vpow.pop %v4708
  %v4710 = vadd.f32 %v4709, 1.0
  %v4711 = vrcp.pop %v4710
  %v4712 = vmul.f32 1.0, %v4711
  %v4713 = vtanh.pop %v4706
  %v4716 = vunpack.c.l.s4 1983009808
  %v4717 = vunpack.c.0.s8 %v4716
  %v4718 = vlaneseq
  %v4719 = vshrl.u32 %v4718, 7
  %v4720 = vsub.s32 %v4717, %v4719
  %v4721 = vrot.slane %v4614, %v4720
  %4722 = vrot.lane.b32.xlu0 %v4721, 32
  %v4723 = vpop.permute.xlu0 %4722
  %v4725 = vmul.f32 %v4712, %v4723
  %4727 = vrot.lane.b32.xlu0 %v4713, 64
  %v4728 = vpop.permute.xlu0 %4727
  %v4730 = vmul.f32 %v4712, %v4728
  %4732 = vrot.lane.b32.xlu0 %v4730, 32
  %v4733 = vpop.permute.xlu0 %4732
  %v4735 = vadd.f32 %v4725, %v4733
  %v4736 = vtanh.pop %v4735
  %4738 = vrot.lane.b32.xlu0 %v4736, 64
  %v4739 = vpop.permute.xlu0 %4738
  %v4741 = vmul.f32 %v4712, %v4739
  %v4744 = vunpack.c.l.s4 1983009808
  %v4745 = vunpack.c.0.s8 %v4744
  %v4746 = vlaneseq
  %v4747 = vshrl.u32 %v4746, 7
  %v4748 = vsub.s32 %v4745, %v4747
  %v4749 = vrot.slane %v4741, %v4748
  %4750 = vrot.lane.b32.xlu0 %v4749, 32
  %v4751 = vpop.permute.xlu0 %4750
  %4753 = vst.msk [vmem:[%s3454] sm:$0x3] %vm993, %v4751
  %v4754 = vld [vmem:[#allocation2 + $0x2] sm:$0x3]
  %v4755 = vadd.f32 %v4754, %v4703
  %v4756 = vxor.u32 %v4755, 2147483648
  %v4757 = vmul.f32 %v4756, 1.442695
  %v4758 = vpow.pop %v4757
  %v4759 = vadd.f32 %v4758, 1.0
  %v4760 = vrcp.pop %v4759
  %v4761 = vmul.f32 1.0, %v4760
  %v4762 = vtanh.pop %v4755
  %v4763 = vmul.f32 %v4761, %v4614
  %4765 = vrot.lane.b32.xlu0 %v4762, 64
  %v4766 = vpop.permute.xlu0 %4765
  %v4768 = vmul.f32 %v4761, %v4766
  %4770 = vrot.lane.b32.xlu0 %v4768, 32
  %v4771 = vpop.permute.xlu0 %4770
  %v4773 = vadd.f32 %v4763, %v4771
  %v4774 = vtanh.pop %v4773
  %4776 = vrot.lane.b32.xlu0 %v4774, 64
  %v4777 = vpop.permute.xlu0 %4776
  %v4779 = vmul.f32 %v4761, %v4777
  %v4782 = vunpack.c.l.s4 1983009808
  %v4783 = vunpack.c.0.s8 %v4782
  %v4784 = vlaneseq
  %v4785 = vshrl.u32 %v4784, 7
  %v4786 = vsub.s32 %v4783, %v4785
  %v4787 = vrot.slane %v4779, %v4786
  %4788 = vrot.lane.b32.xlu0 %v4787, 64
  %v4789 = vpop.permute.xlu0 %4788
  %4791 = vst.msk [vmem:[%s7] sm:$0x3] %vm1033, %v4789
  // Predicated region
  $region30: #{bilstm_forward.1} parent=0 // pred_check
    _
  $region31: #{bilstm_forward.1} parent=0 // pred_check_branch
    %4793 = sbr.rel (0) target = $region33
  $region32: #{bilstm_forward.1} parent=0 // pred_region
    _
  $region33: #{bilstm_forward.1} parent=0 // pred_fallthru
    _
  // Predicated region
  $region34: #{bilstm_forward.1} parent=0 // pred_check
    _
  $region35: #{bilstm_forward.1} parent=0 // pred_check_branch
    %4795 = sbr.rel (0) target = $region37
  $region36: #{bilstm_forward.1} parent=0 // pred_region
    _
  $region37: #{bilstm_forward.1} parent=0 // pred_fallthru
    _

</llo_original>
